<compile_context>
chip_gen: v7x
topology: tpu7x:2x2x1
jax: 0.10.0
libtpu: 0.0.40
codegen_flags: <defaults>
</compile_context>

<pallas_src>
import jax
import jax.numpy as jnp
from jax import lax
from jax.experimental import pallas as pl
from jax.experimental.pallas import tpu as pltpu


def _round_up(x, m):
    return -(-x // m) * m


# ----------------------------------------------------------------------------
# Fused kernel for a tile of TB images.
#   x_ref : (16, tb, 256)  lane-dense tap slabs,
#           x_ref[4*r + c, b, h*14 + w] == x_pad[b, 2*h + r, 2*w + c]   (x_pad: 30x30)
#   wc_ref: (16, 9)  conv weights in SMEM (scalar reads)
#   bc_ref: (16,)    conv bias    in SMEM
#   w1_ref: (16, 256, 128)  fc1 weights, spatial zero-padded 196->256
#   w2_ref: (128, 128)      fc2 weights, output zero-padded 10->128
# ----------------------------------------------------------------------------
def fused_cnn_kernel(x_ref, wc_ref, bc_ref, w1_ref, b1_ref, w2_ref, b2_ref, out_ref):
    tb = x_ref.shape[1]

    # 16 lane-dense tap slabs (leading-index reads, no relayout).
    slabs = [x_ref[i] for i in range(16)]                    # each (tb, 256) f32

    acc = jnp.zeros((tb, 128), jnp.float32)                  # FC1 accumulator (f32)

    # Per conv-output channel: VPU tap accumulation (9 taps x 4 pooling phases),
    # phase max, bias+ReLU (exact: max before monotone bias/ReLU), then one
    # K=256 MXU matmul slice of FC1.  Fully unrolled so the scheduler overlaps
    # channel c+1's VPU work with channel c's matmul.
    for co in range(16):
        wk = [wc_ref[co, t] for t in range(9)]               # 9 SMEM scalars
        phase_vals = []
        for dy in (0, 1):
            for dx in (0, 1):
                v = None
                for kh in range(3):
                    for kw in range(3):
                        t = slabs[4 * (dy + kh) + (dx + kw)] * wk[3 * kh + kw]
                        v = t if v is None else v + t
                phase_vals.append(v)
        pooled = jnp.maximum(jnp.maximum(phase_vals[0], phase_vals[1]),
                             jnp.maximum(phase_vals[2], phase_vals[3]))
        pooled = jnp.maximum(pooled + bc_ref[co], 0.0)        # bias + ReLU  (tb, 256)
        # Padding lanes 196..255 hold relu(bias) garbage; the matching w1 rows are zero.
        acc = acc + jnp.dot(pooled.astype(w1_ref.dtype), w1_ref[co],
                            preferred_element_type=jnp.float32)

    h = jnp.maximum(acc + b1_ref[...], 0.0)                   # (tb, 128)
    o = jnp.dot(h.astype(w2_ref.dtype), w2_ref[...],
                preferred_element_type=jnp.float32) + b2_ref[...]
    out_ref[...] = o.astype(out_ref.dtype)                    # (tb, 128) lane-dense store


# ----------------------------------------------------------------------------
# One-time parameter repack (call OUTSIDE jit / the hot loop).
# fc_dtype=jnp.bfloat16 is a valid option on v6e/v7x (accumulation stays f32).
# ----------------------------------------------------------------------------
def prepack_params(params, fc_dtype=jnp.float32):
    wc, bc = params["conv_w"], params["conv_b"]
    w1, b1 = params["fc1_w"], params["fc1_b"]
    w2, b2 = params["fc2_w"], params["fc2_b"]
    # PyTorch flatten index c*196 + hw  ->  per-channel (hw, n) slabs, spatial padded to 256.
    w1p = w1.reshape(128, 16, 196).transpose(1, 2, 0)         # (16, 196, 128)
    w1p = jnp.pad(w1p, ((0, 0), (0, 256 - 196), (0, 0)))      # (16, 256, 128)
    w2p = jnp.pad(w2.T, ((0, 0), (0, 128 - 10)))              # (128, 128) zero cols 10..127
    return {
        "wc": wc.reshape(16, 9),                               # SMEM: [c, 3*kh+kw]
        "bc": bc,                                              # SMEM: (16,)
        "w1": w1p.astype(fc_dtype),
        "b1": b1.reshape(1, 128),
        "w2": w2p.astype(fc_dtype),
        "b2": jnp.pad(b2, (0, 128 - 10)).reshape(1, 128),
    }


# ----------------------------------------------------------------------------
# Forward pass.  Cheap per-input glue in XLA: pad the image and extract the 16
# lane-dense tap slabs (strided slices; 3.5x the image bytes, negligible HBM).
# ----------------------------------------------------------------------------
def simple_cnn_forward(x, packed, tile_b=128):
    B = x.shape[0]
    ru = _round_up(B, 8)
    tb = _round_up(min(tile_b, ru), 8)
    # v7x has 2 TensorCores: give the "parallel" batch axis >= 2 grid steps when possible.
    if ru // tb < 2 and ru >= 16:
        tb = _round_up(ru // 2, 8)
    bp = _round_up(ru, tb)

    # xs[4*r + c, b, h*14 + w] = x_pad[b, 2*h + r, 2*w + c],   r, c in 0..3
    x_pad = jnp.pad(x[:, 0], ((0, 0), (1, 1), (1, 1)))                     # (B, 30, 30)
    slabs = [x_pad[:, r::2, c::2][:, :14, :14].reshape(B, 196)
             for r in range(4) for c in range(4)]
    xs = jnp.stack(slabs, axis=0)                                          # (16, B, 196)
    xs = jnp.pad(xs, ((0, 0), (0, bp - B), (0, 256 - 196)))                # (16, bp, 256)

    out = pl.pallas_call(
        fused_cnn_kernel,
        out_shape=jax.ShapeDtypeStruct((bp, 128), jnp.float32),
        grid=(bp // tb,),
        in_specs=[
            pl.BlockSpec((16, tb, 256), lambda i: (0, i, 0)),              # tap slabs
            pl.BlockSpec(memory_space=pltpu.MemorySpace.SMEM),             # conv w (16,9)
            pl.BlockSpec(memory_space=pltpu.MemorySpace.SMEM),             # conv b (16,)
            pl.BlockSpec((16, 256, 128), lambda i: (0, 0, 0)),             # fc1 w
            pl.BlockSpec((1, 128), lambda i: (0, 0)),                      # fc1 b
            pl.BlockSpec((128, 128), lambda i: (0, 0)),                    # fc2 w (padded)
            pl.BlockSpec((1, 128), lambda i: (0, 0)),                      # fc2 b (padded)
        ],
        out_specs=pl.BlockSpec((tb, 128), lambda i: (i, 0)),
        compiler_params=pltpu.CompilerParams(
            dimension_semantics=("parallel",),
            # ~16 MiB working set at tb=128 (f32): fits v7x's 64 MiB with headroom,
            # and this raises v5e's 16 MiB default scoped limit.
            vmem_limit_bytes=48 * 1024 * 1024),
    )(xs, packed["wc"], packed["bc"], packed["w1"], packed["b1"],
      packed["w2"], packed["b2"])
    return out[:B, :10]


# ----------------------------------------------------------------------------
# Pure-JAX reference, matching the PyTorch module exactly (NCHW, (C,H,W) flatten).
# ----------------------------------------------------------------------------
def reference_forward(x, params):
    conv = lax.conv_general_dilated(
        x, params["conv_w"], window_strides=(1, 1), padding=((1, 1), (1, 1)),
        dimension_numbers=("NCHW", "OIHW", "NCHW"),
        precision=lax.Precision.HIGHEST)
    conv = conv + params["conv_b"].reshape(1, 16, 1, 1)
    conv = jnp.maximum(conv, 0.0)
    pooled = lax.reduce_window(conv, -jnp.inf, lax.max,
                               (1, 1, 2, 2), (1, 1, 2, 2), "VALID")
    flat = pooled.reshape(x.shape[0], -1)
    h = jnp.maximum(jnp.dot(flat, params["fc1_w"].T, precision=lax.Precision.HIGHEST)
                    + params["fc1_b"], 0.0)
    return jnp.dot(h, params["fc2_w"].T, precision=lax.Precision.HIGHEST) + params["fc2_b"]


def init_params(key):
    k = jax.random.split(key, 6)
    return {
        "conv_w": jax.random.normal(k[0], (16, 1, 3, 3), jnp.float32) / 3.0,
        "conv_b": jax.random.normal(k[1], (16,), jnp.float32) * 0.1,
        "fc1_w": jax.random.normal(k[2], (128, 3136), jnp.float32) / jnp.sqrt(3136.0),
        "fc1_b": jax.random.normal(k[3], (128,), jnp.float32) * 0.1,
        "fc2_w": jax.random.normal(k[4], (10, 128), jnp.float32) / jnp.sqrt(128.0),
        "fc2_b": jax.random.normal(k[5], (10,), jnp.float32) * 0.1,
    }


if __name__ == "__main__":
    key = jax.random.PRNGKey(0)
    pkey, xkey = jax.random.split(key)
    params = init_params(pkey)
    packed = prepack_params(params)          # one-time weight repack, outside jit

    B = 2
    x = jax.random.normal(xkey, (B, 1, 28, 28), jnp.float32)   # NCHW, like PyTorch

    fwd = jax.jit(simple_cnn_forward)
    out = jax.block_until_ready(fwd(x, packed))
    assert out.shape == (B, 10) and out.dtype == jnp.float32

    ref = reference_forward(x, params)
    assert jnp.allclose(out, ref, rtol=2e-3, atol=2e-3), (out, ref)

    print("KERNEL_OK")
</pallas_src>

<mosaic_0001>
module attributes {stable_mosaic.version = 11 : i64} {
  func.func @fused_cnn_kernel(%arg0: i32, %arg1: memref<16x8x256xf32, #tpu.memory_space<vmem>>, %arg2: memref<16x9xf32, #tpu.memory_space<smem>>, %arg3: memref<16xf32, #tpu.memory_space<smem>>, %arg4: memref<16x256x128xf32, #tpu.memory_space<vmem>>, %arg5: memref<1x128xf32, #tpu.memory_space<vmem>>, %arg6: memref<128x128xf32, #tpu.memory_space<vmem>>, %arg7: memref<1x128xf32, #tpu.memory_space<vmem>>, %arg8: memref<8x128xf32, #tpu.memory_space<vmem>>) attributes {dimension_semantics = [#tpu.dimension_semantics<parallel>], iteration_bounds = array<i64: 1>, scalar_prefetch = 0 : i64, scratch_operands = 0 : i64, tpu.core_type = #tpu.core_type<tc>, window_params = [{transform_indices = @transform_0, window_bounds = array<i64: 16, 8, 256>}, {transform_indices = @transform_1, window_bounds = array<i64: 16, 9>}, {transform_indices = @transform_2, window_bounds = array<i64: 16>}, {pipeline_mode = #tpu.pipeline_mode<synchronous>, transform_indices = @transform_3, window_bounds = array<i64: 16, 256, 128>}, {pipeline_mode = #tpu.pipeline_mode<synchronous>, transform_indices = @transform_4, window_bounds = array<i64: 1, 128>}, {pipeline_mode = #tpu.pipeline_mode<synchronous>, transform_indices = @transform_5, window_bounds = array<i64: 128, 128>}, {pipeline_mode = #tpu.pipeline_mode<synchronous>, transform_indices = @transform_6, window_bounds = array<i64: 1, 128>}, {transform_indices = @transform_7, window_bounds = array<i64: 8, 128>}]} {
    %c0 = arith.constant 0 : index
    %c0_0 = arith.constant 0 : index
    %c0_1 = arith.constant 0 : index
    %0 = vector.load %arg1[%c0, %c0_0, %c0_1] : memref<16x8x256xf32, #tpu.memory_space<vmem>>, vector<1x8x256xf32>
    %1 = vector.shape_cast %0 : vector<1x8x256xf32> to vector<8x256xf32>
    %c1 = arith.constant 1 : index
    %c0_2 = arith.constant 0 : index
    %c0_3 = arith.constant 0 : index
    %2 = vector.load %arg1[%c1, %c0_2, %c0_3] : memref<16x8x256xf32, #tpu.memory_space<vmem>>, vector<1x8x256xf32>
    %3 = vector.shape_cast %2 : vector<1x8x256xf32> to vector<8x256xf32>
    %c2 = arith.constant 2 : index
    %c0_4 = arith.constant 0 : index
    %c0_5 = arith.constant 0 : index
    %4 = vector.load %arg1[%c2, %c0_4, %c0_5] : memref<16x8x256xf32, #tpu.memory_space<vmem>>, vector<1x8x256xf32>
    %5 = vector.shape_cast %4 : vector<1x8x256xf32> to vector<8x256xf32>
    %c3 = arith.constant 3 : index
    %c0_6 = arith.constant 0 : index
    %c0_7 = arith.constant 0 : index
    %6 = vector.load %arg1[%c3, %c0_6, %c0_7] : memref<16x8x256xf32, #tpu.memory_space<vmem>>, vector<1x8x256xf32>
    %7 = vector.shape_cast %6 : vector<1x8x256xf32> to vector<8x256xf32>
    %c4 = arith.constant 4 : index
    %c0_8 = arith.constant 0 : index
    %c0_9 = arith.constant 0 : index
    %8 = vector.load %arg1[%c4, %c0_8, %c0_9] : memref<16x8x256xf32, #tpu.memory_space<vmem>>, vector<1x8x256xf32>
    %9 = vector.shape_cast %8 : vector<1x8x256xf32> to vector<8x256xf32>
    %c5 = arith.constant 5 : index
    %c0_10 = arith.constant 0 : index
    %c0_11 = arith.constant 0 : index
    %10 = vector.load %arg1[%c5, %c0_10, %c0_11] : memref<16x8x256xf32, #tpu.memory_space<vmem>>, vector<1x8x256xf32>
    %11 = vector.shape_cast %10 : vector<1x8x256xf32> to vector<8x256xf32>
    %c6 = arith.constant 6 : index
    %c0_12 = arith.constant 0 : index
    %c0_13 = arith.constant 0 : index
    %12 = vector.load %arg1[%c6, %c0_12, %c0_13] : memref<16x8x256xf32, #tpu.memory_space<vmem>>, vector<1x8x256xf32>
    %13 = vector.shape_cast %12 : vector<1x8x256xf32> to vector<8x256xf32>
    %c7 = arith.constant 7 : index
    %c0_14 = arith.constant 0 : index
    %c0_15 = arith.constant 0 : index
    %14 = vector.load %arg1[%c7, %c0_14, %c0_15] : memref<16x8x256xf32, #tpu.memory_space<vmem>>, vector<1x8x256xf32>
    %15 = vector.shape_cast %14 : vector<1x8x256xf32> to vector<8x256xf32>
    %c8 = arith.constant 8 : index
    %c0_16 = arith.constant 0 : index
    %c0_17 = arith.constant 0 : index
    %16 = vector.load %arg1[%c8, %c0_16, %c0_17] : memref<16x8x256xf32, #tpu.memory_space<vmem>>, vector<1x8x256xf32>
    %17 = vector.shape_cast %16 : vector<1x8x256xf32> to vector<8x256xf32>
    %c9 = arith.constant 9 : index
    %c0_18 = arith.constant 0 : index
    %c0_19 = arith.constant 0 : index
    %18 = vector.load %arg1[%c9, %c0_18, %c0_19] : memref<16x8x256xf32, #tpu.memory_space<vmem>>, vector<1x8x256xf32>
    %19 = vector.shape_cast %18 : vector<1x8x256xf32> to vector<8x256xf32>
    %c10 = arith.constant 10 : index
    %c0_20 = arith.constant 0 : index
    %c0_21 = arith.constant 0 : index
    %20 = vector.load %arg1[%c10, %c0_20, %c0_21] : memref<16x8x256xf32, #tpu.memory_space<vmem>>, vector<1x8x256xf32>
    %21 = vector.shape_cast %20 : vector<1x8x256xf32> to vector<8x256xf32>
    %c11 = arith.constant 11 : index
    %c0_22 = arith.constant 0 : index
    %c0_23 = arith.constant 0 : index
    %22 = vector.load %arg1[%c11, %c0_22, %c0_23] : memref<16x8x256xf32, #tpu.memory_space<vmem>>, vector<1x8x256xf32>
    %23 = vector.shape_cast %22 : vector<1x8x256xf32> to vector<8x256xf32>
    %c12 = arith.constant 12 : index
    %c0_24 = arith.constant 0 : index
    %c0_25 = arith.constant 0 : index
    %24 = vector.load %arg1[%c12, %c0_24, %c0_25] : memref<16x8x256xf32, #tpu.memory_space<vmem>>, vector<1x8x256xf32>
    %25 = vector.shape_cast %24 : vector<1x8x256xf32> to vector<8x256xf32>
    %c13 = arith.constant 13 : index
    %c0_26 = arith.constant 0 : index
    %c0_27 = arith.constant 0 : index
    %26 = vector.load %arg1[%c13, %c0_26, %c0_27] : memref<16x8x256xf32, #tpu.memory_space<vmem>>, vector<1x8x256xf32>
    %27 = vector.shape_cast %26 : vector<1x8x256xf32> to vector<8x256xf32>
    %c14 = arith.constant 14 : index
    %c0_28 = arith.constant 0 : index
    %c0_29 = arith.constant 0 : index
    %28 = vector.load %arg1[%c14, %c0_28, %c0_29] : memref<16x8x256xf32, #tpu.memory_space<vmem>>, vector<1x8x256xf32>
    %29 = vector.shape_cast %28 : vector<1x8x256xf32> to vector<8x256xf32>
    %c15 = arith.constant 15 : index
    %c0_30 = arith.constant 0 : index
    %c0_31 = arith.constant 0 : index
    %30 = vector.load %arg1[%c15, %c0_30, %c0_31] : memref<16x8x256xf32, #tpu.memory_space<vmem>>, vector<1x8x256xf32>
    %31 = vector.shape_cast %30 : vector<1x8x256xf32> to vector<8x256xf32>
    %cst = arith.constant 0.000000e+00 : f32
    %32 = vector.broadcast %cst : f32 to vector<8x128xf32>
    %c0_32 = arith.constant 0 : index
    %c0_33 = arith.constant 0 : index
    %33 = memref.load %arg2[%c0_32, %c0_33] : memref<16x9xf32, #tpu.memory_space<smem>>
    %c0_34 = arith.constant 0 : index
    %c1_35 = arith.constant 1 : index
    %34 = memref.load %arg2[%c0_34, %c1_35] : memref<16x9xf32, #tpu.memory_space<smem>>
    %c0_36 = arith.constant 0 : index
    %c2_37 = arith.constant 2 : index
    %35 = memref.load %arg2[%c0_36, %c2_37] : memref<16x9xf32, #tpu.memory_space<smem>>
    %c0_38 = arith.constant 0 : index
    %c3_39 = arith.constant 3 : index
    %36 = memref.load %arg2[%c0_38, %c3_39] : memref<16x9xf32, #tpu.memory_space<smem>>
    %c0_40 = arith.constant 0 : index
    %c4_41 = arith.constant 4 : index
    %37 = memref.load %arg2[%c0_40, %c4_41] : memref<16x9xf32, #tpu.memory_space<smem>>
    %c0_42 = arith.constant 0 : index
    %c5_43 = arith.constant 5 : index
    %38 = memref.load %arg2[%c0_42, %c5_43] : memref<16x9xf32, #tpu.memory_space<smem>>
    %c0_44 = arith.constant 0 : index
    %c6_45 = arith.constant 6 : index
    %39 = memref.load %arg2[%c0_44, %c6_45] : memref<16x9xf32, #tpu.memory_space<smem>>
    %c0_46 = arith.constant 0 : index
    %c7_47 = arith.constant 7 : index
    %40 = memref.load %arg2[%c0_46, %c7_47] : memref<16x9xf32, #tpu.memory_space<smem>>
    %c0_48 = arith.constant 0 : index
    %c8_49 = arith.constant 8 : index
    %41 = memref.load %arg2[%c0_48, %c8_49] : memref<16x9xf32, #tpu.memory_space<smem>>
    %42 = vector.broadcast %33 : f32 to vector<8x256xf32>
    %43 = arith.mulf %1, %42 : vector<8x256xf32>
    %44 = vector.broadcast %34 : f32 to vector<8x256xf32>
    %45 = arith.mulf %3, %44 : vector<8x256xf32>
    %46 = arith.addf %43, %45 : vector<8x256xf32>
    %47 = vector.broadcast %35 : f32 to vector<8x256xf32>
    %48 = arith.mulf %5, %47 : vector<8x256xf32>
    %49 = arith.addf %46, %48 : vector<8x256xf32>
    %50 = vector.broadcast %36 : f32 to vector<8x256xf32>
    %51 = arith.mulf %9, %50 : vector<8x256xf32>
    %52 = arith.addf %49, %51 : vector<8x256xf32>
    %53 = vector.broadcast %37 : f32 to vector<8x256xf32>
    %54 = arith.mulf %11, %53 : vector<8x256xf32>
    %55 = arith.addf %52, %54 : vector<8x256xf32>
    %56 = vector.broadcast %38 : f32 to vector<8x256xf32>
    %57 = arith.mulf %13, %56 : vector<8x256xf32>
    %58 = arith.addf %55, %57 : vector<8x256xf32>
    %59 = vector.broadcast %39 : f32 to vector<8x256xf32>
    %60 = arith.mulf %17, %59 : vector<8x256xf32>
    %61 = arith.addf %58, %60 : vector<8x256xf32>
    %62 = vector.broadcast %40 : f32 to vector<8x256xf32>
    %63 = arith.mulf %19, %62 : vector<8x256xf32>
    %64 = arith.addf %61, %63 : vector<8x256xf32>
    %65 = vector.broadcast %41 : f32 to vector<8x256xf32>
    %66 = arith.mulf %21, %65 : vector<8x256xf32>
    %67 = arith.addf %64, %66 : vector<8x256xf32>
    %68 = vector.broadcast %33 : f32 to vector<8x256xf32>
    %69 = arith.mulf %3, %68 : vector<8x256xf32>
    %70 = vector.broadcast %34 : f32 to vector<8x256xf32>
    %71 = arith.mulf %5, %70 : vector<8x256xf32>
    %72 = arith.addf %69, %71 : vector<8x256xf32>
    %73 = vector.broadcast %35 : f32 to vector<8x256xf32>
    %74 = arith.mulf %7, %73 : vector<8x256xf32>
    %75 = arith.addf %72, %74 : vector<8x256xf32>
    %76 = vector.broadcast %36 : f32 to vector<8x256xf32>
    %77 = arith.mulf %11, %76 : vector<8x256xf32>
    %78 = arith.addf %75, %77 : vector<8x256xf32>
    %79 = vector.broadcast %37 : f32 to vector<8x256xf32>
    %80 = arith.mulf %13, %79 : vector<8x256xf32>
    %81 = arith.addf %78, %80 : vector<8x256xf32>
    %82 = vector.broadcast %38 : f32 to vector<8x256xf32>
    %83 = arith.mulf %15, %82 : vector<8x256xf32>
    %84 = arith.addf %81, %83 : vector<8x256xf32>
    %85 = vector.broadcast %39 : f32 to vector<8x256xf32>
    %86 = arith.mulf %19, %85 : vector<8x256xf32>
    %87 = arith.addf %84, %86 : vector<8x256xf32>
    %88 = vector.broadcast %40 : f32 to vector<8x256xf32>
    %89 = arith.mulf %21, %88 : vector<8x256xf32>
    %90 = arith.addf %87, %89 : vector<8x256xf32>
    %91 = vector.broadcast %41 : f32 to vector<8x256xf32>
    %92 = arith.mulf %23, %91 : vector<8x256xf32>
    %93 = arith.addf %90, %92 : vector<8x256xf32>
    %94 = vector.broadcast %33 : f32 to vector<8x256xf32>
    %95 = arith.mulf %9, %94 : vector<8x256xf32>
    %96 = vector.broadcast %34 : f32 to vector<8x256xf32>
    %97 = arith.mulf %11, %96 : vector<8x256xf32>
    %98 = arith.addf %95, %97 : vector<8x256xf32>
    %99 = vector.broadcast %35 : f32 to vector<8x256xf32>
    %100 = arith.mulf %13, %99 : vector<8x256xf32>
    %101 = arith.addf %98, %100 : vector<8x256xf32>
    %102 = vector.broadcast %36 : f32 to vector<8x256xf32>
    %103 = arith.mulf %17, %102 : vector<8x256xf32>
    %104 = arith.addf %101, %103 : vector<8x256xf32>
    %105 = vector.broadcast %37 : f32 to vector<8x256xf32>
    %106 = arith.mulf %19, %105 : vector<8x256xf32>
    %107 = arith.addf %104, %106 : vector<8x256xf32>
    %108 = vector.broadcast %38 : f32 to vector<8x256xf32>
    %109 = arith.mulf %21, %108 : vector<8x256xf32>
    %110 = arith.addf %107, %109 : vector<8x256xf32>
    %111 = vector.broadcast %39 : f32 to vector<8x256xf32>
    %112 = arith.mulf %25, %111 : vector<8x256xf32>
    %113 = arith.addf %110, %112 : vector<8x256xf32>
    %114 = vector.broadcast %40 : f32 to vector<8x256xf32>
    %115 = arith.mulf %27, %114 : vector<8x256xf32>
    %116 = arith.addf %113, %115 : vector<8x256xf32>
    %117 = vector.broadcast %41 : f32 to vector<8x256xf32>
    %118 = arith.mulf %29, %117 : vector<8x256xf32>
    %119 = arith.addf %116, %118 : vector<8x256xf32>
    %120 = vector.broadcast %33 : f32 to vector<8x256xf32>
    %121 = arith.mulf %11, %120 : vector<8x256xf32>
    %122 = vector.broadcast %34 : f32 to vector<8x256xf32>
    %123 = arith.mulf %13, %122 : vector<8x256xf32>
    %124 = arith.addf %121, %123 : vector<8x256xf32>
    %125 = vector.broadcast %35 : f32 to vector<8x256xf32>
    %126 = arith.mulf %15, %125 : vector<8x256xf32>
    %127 = arith.addf %124, %126 : vector<8x256xf32>
    %128 = vector.broadcast %36 : f32 to vector<8x256xf32>
    %129 = arith.mulf %19, %128 : vector<8x256xf32>
    %130 = arith.addf %127, %129 : vector<8x256xf32>
    %131 = vector.broadcast %37 : f32 to vector<8x256xf32>
    %132 = arith.mulf %21, %131 : vector<8x256xf32>
    %133 = arith.addf %130, %132 : vector<8x256xf32>
    %134 = vector.broadcast %38 : f32 to vector<8x256xf32>
    %135 = arith.mulf %23, %134 : vector<8x256xf32>
    %136 = arith.addf %133, %135 : vector<8x256xf32>
    %137 = vector.broadcast %39 : f32 to vector<8x256xf32>
    %138 = arith.mulf %27, %137 : vector<8x256xf32>
    %139 = arith.addf %136, %138 : vector<8x256xf32>
    %140 = vector.broadcast %40 : f32 to vector<8x256xf32>
    %141 = arith.mulf %29, %140 : vector<8x256xf32>
    %142 = arith.addf %139, %141 : vector<8x256xf32>
    %143 = vector.broadcast %41 : f32 to vector<8x256xf32>
    %144 = arith.mulf %31, %143 : vector<8x256xf32>
    %145 = arith.addf %142, %144 : vector<8x256xf32>
    %146 = arith.maximumf %67, %93 : vector<8x256xf32>
    %147 = arith.maximumf %119, %145 : vector<8x256xf32>
    %148 = arith.maximumf %146, %147 : vector<8x256xf32>
    %c0_50 = arith.constant 0 : index
    %149 = memref.load %arg3[%c0_50] : memref<16xf32, #tpu.memory_space<smem>>
    %150 = vector.broadcast %149 : f32 to vector<8x256xf32>
    %151 = arith.addf %148, %150 : vector<8x256xf32>
    %cst_51 = arith.constant 0.000000e+00 : f32
    %152 = vector.broadcast %cst_51 : f32 to vector<8x256xf32>
    %153 = arith.maximumf %151, %152 : vector<8x256xf32>
    %c0_52 = arith.constant 0 : index
    %c0_53 = arith.constant 0 : index
    %c0_54 = arith.constant 0 : index
    %154 = vector.load %arg4[%c0_52, %c0_53, %c0_54] : memref<16x256x128xf32, #tpu.memory_space<vmem>>, vector<1x256x128xf32>
    %155 = vector.shape_cast %154 : vector<1x256x128xf32> to vector<256x128xf32>
    %cst_55 = arith.constant dense<0.000000e+00> : vector<8x128xf32>
    %156 = tpu.matmul %153, %155, %cst_55 {dimension_numbers = #tpu.dot_dimension_numbers<[1], [0], [0], [1], [0, 0, 1, 1], [], []>} : vector<8x256xf32>, vector<256x128xf32>, vector<8x128xf32> -> vector<8x128xf32>
    %157 = arith.addf %32, %156 : vector<8x128xf32>
    %c1_56 = arith.constant 1 : index
    %c0_57 = arith.constant 0 : index
    %158 = memref.load %arg2[%c1_56, %c0_57] : memref<16x9xf32, #tpu.memory_space<smem>>
    %c1_58 = arith.constant 1 : index
    %c1_59 = arith.constant 1 : index
    %159 = memref.load %arg2[%c1_58, %c1_59] : memref<16x9xf32, #tpu.memory_space<smem>>
    %c1_60 = arith.constant 1 : index
    %c2_61 = arith.constant 2 : index
    %160 = memref.load %arg2[%c1_60, %c2_61] : memref<16x9xf32, #tpu.memory_space<smem>>
    %c1_62 = arith.constant 1 : index
    %c3_63 = arith.constant 3 : index
    %161 = memref.load %arg2[%c1_62, %c3_63] : memref<16x9xf32, #tpu.memory_space<smem>>
    %c1_64 = arith.constant 1 : index
    %c4_65 = arith.constant 4 : index
    %162 = memref.load %arg2[%c1_64, %c4_65] : memref<16x9xf32, #tpu.memory_space<smem>>
    %c1_66 = arith.constant 1 : index
    %c5_67 = arith.constant 5 : index
    %163 = memref.load %arg2[%c1_66, %c5_67] : memref<16x9xf32, #tpu.memory_space<smem>>
    %c1_68 = arith.constant 1 : index
    %c6_69 = arith.constant 6 : index
    %164 = memref.load %arg2[%c1_68, %c6_69] : memref<16x9xf32, #tpu.memory_space<smem>>
    %c1_70 = arith.constant 1 : index
    %c7_71 = arith.constant 7 : index
    %165 = memref.load %arg2[%c1_70, %c7_71] : memref<16x9xf32, #tpu.memory_space<smem>>
    %c1_72 = arith.constant 1 : index
    %c8_73 = arith.constant 8 : index
    %166 = memref.load %arg2[%c1_72, %c8_73] : memref<16x9xf32, #tpu.memory_space<smem>>
    %167 = vector.broadcast %158 : f32 to vector<8x256xf32>
    %168 = arith.mulf %1, %167 : vector<8x256xf32>
    %169 = vector.broadcast %159 : f32 to vector<8x256xf32>
    %170 = arith.mulf %3, %169 : vector<8x256xf32>
    %171 = arith.addf %168, %170 : vector<8x256xf32>
    %172 = vector.broadcast %160 : f32 to vector<8x256xf32>
    %173 = arith.mulf %5, %172 : vector<8x256xf32>
    %174 = arith.addf %171, %173 : vector<8x256xf32>
    %175 = vector.broadcast %161 : f32 to vector<8x256xf32>
    %176 = arith.mulf %9, %175 : vector<8x256xf32>
    %177 = arith.addf %174, %176 : vector<8x256xf32>
    %178 = vector.broadcast %162 : f32 to vector<8x256xf32>
    %179 = arith.mulf %11, %178 : vector<8x256xf32>
    %180 = arith.addf %177, %179 : vector<8x256xf32>
    %181 = vector.broadcast %163 : f32 to vector<8x256xf32>
    %182 = arith.mulf %13, %181 : vector<8x256xf32>
    %183 = arith.addf %180, %182 : vector<8x256xf32>
    %184 = vector.broadcast %164 : f32 to vector<8x256xf32>
    %185 = arith.mulf %17, %184 : vector<8x256xf32>
    %186 = arith.addf %183, %185 : vector<8x256xf32>
    %187 = vector.broadcast %165 : f32 to vector<8x256xf32>
    %188 = arith.mulf %19, %187 : vector<8x256xf32>
    %189 = arith.addf %186, %188 : vector<8x256xf32>
    %190 = vector.broadcast %166 : f32 to vector<8x256xf32>
    %191 = arith.mulf %21, %190 : vector<8x256xf32>
    %192 = arith.addf %189, %191 : vector<8x256xf32>
    %193 = vector.broadcast %158 : f32 to vector<8x256xf32>
    %194 = arith.mulf %3, %193 : vector<8x256xf32>
    %195 = vector.broadcast %159 : f32 to vector<8x256xf32>
    %196 = arith.mulf %5, %195 : vector<8x256xf32>
    %197 = arith.addf %194, %196 : vector<8x256xf32>
    %198 = vector.broadcast %160 : f32 to vector<8x256xf32>
    %199 = arith.mulf %7, %198 : vector<8x256xf32>
    %200 = arith.addf %197, %199 : vector<8x256xf32>
    %201 = vector.broadcast %161 : f32 to vector<8x256xf32>
    %202 = arith.mulf %11, %201 : vector<8x256xf32>
    %203 = arith.addf %200, %202 : vector<8x256xf32>
    %204 = vector.broadcast %162 : f32 to vector<8x256xf32>
    %205 = arith.mulf %13, %204 : vector<8x256xf32>
    %206 = arith.addf %203, %205 : vector<8x256xf32>
    %207 = vector.broadcast %163 : f32 to vector<8x256xf32>
    %208 = arith.mulf %15, %207 : vector<8x256xf32>
    %209 = arith.addf %206, %208 : vector<8x256xf32>
    %210 = vector.broadcast %164 : f32 to vector<8x256xf32>
    %211 = arith.mulf %19, %210 : vector<8x256xf32>
    %212 = arith.addf %209, %211 : vector<8x256xf32>
    %213 = vector.broadcast %165 : f32 to vector<8x256xf32>
    %214 = arith.mulf %21, %213 : vector<8x256xf32>
    %215 = arith.addf %212, %214 : vector<8x256xf32>
    %216 = vector.broadcast %166 : f32 to vector<8x256xf32>
    %217 = arith.mulf %23, %216 : vector<8x256xf32>
    %218 = arith.addf %215, %217 : vector<8x256xf32>
    %219 = vector.broadcast %158 : f32 to vector<8x256xf32>
    %220 = arith.mulf %9, %219 : vector<8x256xf32>
    %221 = vector.broadcast %159 : f32 to vector<8x256xf32>
    %222 = arith.mulf %11, %221 : vector<8x256xf32>
    %223 = arith.addf %220, %222 : vector<8x256xf32>
    %224 = vector.broadcast %160 : f32 to vector<8x256xf32>
    %225 = arith.mulf %13, %224 : vector<8x256xf32>
    %226 = arith.addf %223, %225 : vector<8x256xf32>
    %227 = vector.broadcast %161 : f32 to vector<8x256xf32>
    %228 = arith.mulf %17, %227 : vector<8x256xf32>
    %229 = arith.addf %226, %228 : vector<8x256xf32>
    %230 = vector.broadcast %162 : f32 to vector<8x256xf32>
    %231 = arith.mulf %19, %230 : vector<8x256xf32>
    %232 = arith.addf %229, %231 : vector<8x256xf32>
    %233 = vector.broadcast %163 : f32 to vector<8x256xf32>
    %234 = arith.mulf %21, %233 : vector<8x256xf32>
    %235 = arith.addf %232, %234 : vector<8x256xf32>
    %236 = vector.broadcast %164 : f32 to vector<8x256xf32>
    %237 = arith.mulf %25, %236 : vector<8x256xf32>
    %238 = arith.addf %235, %237 : vector<8x256xf32>
    %239 = vector.broadcast %165 : f32 to vector<8x256xf32>
    %240 = arith.mulf %27, %239 : vector<8x256xf32>
    %241 = arith.addf %238, %240 : vector<8x256xf32>
    %242 = vector.broadcast %166 : f32 to vector<8x256xf32>
    %243 = arith.mulf %29, %242 : vector<8x256xf32>
    %244 = arith.addf %241, %243 : vector<8x256xf32>
    %245 = vector.broadcast %158 : f32 to vector<8x256xf32>
    %246 = arith.mulf %11, %245 : vector<8x256xf32>
    %247 = vector.broadcast %159 : f32 to vector<8x256xf32>
    %248 = arith.mulf %13, %247 : vector<8x256xf32>
    %249 = arith.addf %246, %248 : vector<8x256xf32>
    %250 = vector.broadcast %160 : f32 to vector<8x256xf32>
    %251 = arith.mulf %15, %250 : vector<8x256xf32>
    %252 = arith.addf %249, %251 : vector<8x256xf32>
    %253 = vector.broadcast %161 : f32 to vector<8x256xf32>
    %254 = arith.mulf %19, %253 : vector<8x256xf32>
    %255 = arith.addf %252, %254 : vector<8x256xf32>
    %256 = vector.broadcast %162 : f32 to vector<8x256xf32>
    %257 = arith.mulf %21, %256 : vector<8x256xf32>
    %258 = arith.addf %255, %257 : vector<8x256xf32>
    %259 = vector.broadcast %163 : f32 to vector<8x256xf32>
    %260 = arith.mulf %23, %259 : vector<8x256xf32>
    %261 = arith.addf %258, %260 : vector<8x256xf32>
    %262 = vector.broadcast %164 : f32 to vector<8x256xf32>
    %263 = arith.mulf %27, %262 : vector<8x256xf32>
    %264 = arith.addf %261, %263 : vector<8x256xf32>
    %265 = vector.broadcast %165 : f32 to vector<8x256xf32>
    %266 = arith.mulf %29, %265 : vector<8x256xf32>
    %267 = arith.addf %264, %266 : vector<8x256xf32>
    %268 = vector.broadcast %166 : f32 to vector<8x256xf32>
    %269 = arith.mulf %31, %268 : vector<8x256xf32>
    %270 = arith.addf %267, %269 : vector<8x256xf32>
    %271 = arith.maximumf %192, %218 : vector<8x256xf32>
    %272 = arith.maximumf %244, %270 : vector<8x256xf32>
    %273 = arith.maximumf %271, %272 : vector<8x256xf32>
    %c1_74 = arith.constant 1 : index
    %274 = memref.load %arg3[%c1_74] : memref<16xf32, #tpu.memory_space<smem>>
    %275 = vector.broadcast %274 : f32 to vector<8x256xf32>
    %276 = arith.addf %273, %275 : vector<8x256xf32>
    %cst_75 = arith.constant 0.000000e+00 : f32
    %277 = vector.broadcast %cst_75 : f32 to vector<8x256xf32>
    %278 = arith.maximumf %276, %277 : vector<8x256xf32>
    %c1_76 = arith.constant 1 : index
    %c0_77 = arith.constant 0 : index
    %c0_78 = arith.constant 0 : index
    %279 = vector.load %arg4[%c1_76, %c0_77, %c0_78] : memref<16x256x128xf32, #tpu.memory_space<vmem>>, vector<1x256x128xf32>
    %280 = vector.shape_cast %279 : vector<1x256x128xf32> to vector<256x128xf32>
    %cst_79 = arith.constant dense<0.000000e+00> : vector<8x128xf32>
    %281 = tpu.matmul %278, %280, %cst_79 {dimension_numbers = #tpu.dot_dimension_numbers<[1], [0], [0], [1], [0, 0, 1, 1], [], []>} : vector<8x256xf32>, vector<256x128xf32>, vector<8x128xf32> -> vector<8x128xf32>
    %282 = arith.addf %157, %281 : vector<8x128xf32>
    %c2_80 = arith.constant 2 : index
    %c0_81 = arith.constant 0 : index
    %283 = memref.load %arg2[%c2_80, %c0_81] : memref<16x9xf32, #tpu.memory_space<smem>>
    %c2_82 = arith.constant 2 : index
    %c1_83 = arith.constant 1 : index
    %284 = memref.load %arg2[%c2_82, %c1_83] : memref<16x9xf32, #tpu.memory_space<smem>>
    %c2_84 = arith.constant 2 : index
    %c2_85 = arith.constant 2 : index
    %285 = memref.load %arg2[%c2_84, %c2_85] : memref<16x9xf32, #tpu.memory_space<smem>>
    %c2_86 = arith.constant 2 : index
    %c3_87 = arith.constant 3 : index
    %286 = memref.load %arg2[%c2_86, %c3_87] : memref<16x9xf32, #tpu.memory_space<smem>>
    %c2_88 = arith.constant 2 : index
    %c4_89 = arith.constant 4 : index
    %287 = memref.load %arg2[%c2_88, %c4_89] : memref<16x9xf32, #tpu.memory_space<smem>>
    %c2_90 = arith.constant 2 : index
    %c5_91 = arith.constant 5 : index
    %288 = memref.load %arg2[%c2_90, %c5_91] : memref<16x9xf32, #tpu.memory_space<smem>>
    %c2_92 = arith.constant 2 : index
    %c6_93 = arith.constant 6 : index
    %289 = memref.load %arg2[%c2_92, %c6_93] : memref<16x9xf32, #tpu.memory_space<smem>>
    %c2_94 = arith.constant 2 : index
    %c7_95 = arith.constant 7 : index
    %290 = memref.load %arg2[%c2_94, %c7_95] : memref<16x9xf32, #tpu.memory_space<smem>>
    %c2_96 = arith.constant 2 : index
    %c8_97 = arith.constant 8 : index
    %291 = memref.load %arg2[%c2_96, %c8_97] : memref<16x9xf32, #tpu.memory_space<smem>>
    %292 = vector.broadcast %283 : f32 to vector<8x256xf32>
    %293 = arith.mulf %1, %292 : vector<8x256xf32>
    %294 = vector.broadcast %284 : f32 to vector<8x256xf32>
    %295 = arith.mulf %3, %294 : vector<8x256xf32>
    %296 = arith.addf %293, %295 : vector<8x256xf32>
    %297 = vector.broadcast %285 : f32 to vector<8x256xf32>
    %298 = arith.mulf %5, %297 : vector<8x256xf32>
    %299 = arith.addf %296, %298 : vector<8x256xf32>
    %300 = vector.broadcast %286 : f32 to vector<8x256xf32>
    %301 = arith.mulf %9, %300 : vector<8x256xf32>
    %302 = arith.addf %299, %301 : vector<8x256xf32>
    %303 = vector.broadcast %287 : f32 to vector<8x256xf32>
    %304 = arith.mulf %11, %303 : vector<8x256xf32>
    %305 = arith.addf %302, %304 : vector<8x256xf32>
    %306 = vector.broadcast %288 : f32 to vector<8x256xf32>
    %307 = arith.mulf %13, %306 : vector<8x256xf32>
    %308 = arith.addf %305, %307 : vector<8x256xf32>
    %309 = vector.broadcast %289 : f32 to vector<8x256xf32>
    %310 = arith.mulf %17, %309 : vector<8x256xf32>
    %311 = arith.addf %308, %310 : vector<8x256xf32>
    %312 = vector.broadcast %290 : f32 to vector<8x256xf32>
    %313 = arith.mulf %19, %312 : vector<8x256xf32>
    %314 = arith.addf %311, %313 : vector<8x256xf32>
    %315 = vector.broadcast %291 : f32 to vector<8x256xf32>
    %316 = arith.mulf %21, %315 : vector<8x256xf32>
    %317 = arith.addf %314, %316 : vector<8x256xf32>
    %318 = vector.broadcast %283 : f32 to vector<8x256xf32>
    %319 = arith.mulf %3, %318 : vector<8x256xf32>
    %320 = vector.broadcast %284 : f32 to vector<8x256xf32>
    %321 = arith.mulf %5, %320 : vector<8x256xf32>
    %322 = arith.addf %319, %321 : vector<8x256xf32>
    %323 = vector.broadcast %285 : f32 to vector<8x256xf32>
    %324 = arith.mulf %7, %323 : vector<8x256xf32>
    %325 = arith.addf %322, %324 : vector<8x256xf32>
    %326 = vector.broadcast %286 : f32 to vector<8x256xf32>
    %327 = arith.mulf %11, %326 : vector<8x256xf32>
    %328 = arith.addf %325, %327 : vector<8x256xf32>
    %329 = vector.broadcast %287 : f32 to vector<8x256xf32>
    %330 = arith.mulf %13, %329 : vector<8x256xf32>
    %331 = arith.addf %328, %330 : vector<8x256xf32>
    %332 = vector.broadcast %288 : f32 to vector<8x256xf32>
    %333 = arith.mulf %15, %332 : vector<8x256xf32>
    %334 = arith.addf %331, %333 : vector<8x256xf32>
    %335 = vector.broadcast %289 : f32 to vector<8x256xf32>
    %336 = arith.mulf %19, %335 : vector<8x256xf32>
    %337 = arith.addf %334, %336 : vector<8x256xf32>
    %338 = vector.broadcast %290 : f32 to vector<8x256xf32>
    %339 = arith.mulf %21, %338 : vector<8x256xf32>
    %340 = arith.addf %337, %339 : vector<8x256xf32>
    %341 = vector.broadcast %291 : f32 to vector<8x256xf32>
    %342 = arith.mulf %23, %341 : vector<8x256xf32>
    %343 = arith.addf %340, %342 : vector<8x256xf32>
    %344 = vector.broadcast %283 : f32 to vector<8x256xf32>
    %345 = arith.mulf %9, %344 : vector<8x256xf32>
    %346 = vector.broadcast %284 : f32 to vector<8x256xf32>
    %347 = arith.mulf %11, %346 : vector<8x256xf32>
    %348 = arith.addf %345, %347 : vector<8x256xf32>
    %349 = vector.broadcast %285 : f32 to vector<8x256xf32>
    %350 = arith.mulf %13, %349 : vector<8x256xf32>
    %351 = arith.addf %348, %350 : vector<8x256xf32>
    %352 = vector.broadcast %286 : f32 to vector<8x256xf32>
    %353 = arith.mulf %17, %352 : vector<8x256xf32>
    %354 = arith.addf %351, %353 : vector<8x256xf32>
    %355 = vector.broadcast %287 : f32 to vector<8x256xf32>
    %356 = arith.mulf %19, %355 : vector<8x256xf32>
    %357 = arith.addf %354, %356 : vector<8x256xf32>
    %358 = vector.broadcast %288 : f32 to vector<8x256xf32>
    %359 = arith.mulf %21, %358 : vector<8x256xf32>
    %360 = arith.addf %357, %359 : vector<8x256xf32>
    %361 = vector.broadcast %289 : f32 to vector<8x256xf32>
    %362 = arith.mulf %25, %361 : vector<8x256xf32>
    %363 = arith.addf %360, %362 : vector<8x256xf32>
    %364 = vector.broadcast %290 : f32 to vector<8x256xf32>
    %365 = arith.mulf %27, %364 : vector<8x256xf32>
    %366 = arith.addf %363, %365 : vector<8x256xf32>
    %367 = vector.broadcast %291 : f32 to vector<8x256xf32>
    %368 = arith.mulf %29, %367 : vector<8x256xf32>
    %369 = arith.addf %366, %368 : vector<8x256xf32>
    %370 = vector.broadcast %283 : f32 to vector<8x256xf32>
    %371 = arith.mulf %11, %370 : vector<8x256xf32>
    %372 = vector.broadcast %284 : f32 to vector<8x256xf32>
    %373 = arith.mulf %13, %372 : vector<8x256xf32>
    %374 = arith.addf %371, %373 : vector<8x256xf32>
    %375 = vector.broadcast %285 : f32 to vector<8x256xf32>
    %376 = arith.mulf %15, %375 : vector<8x256xf32>
    %377 = arith.addf %374, %376 : vector<8x256xf32>
    %378 = vector.broadcast %286 : f32 to vector<8x256xf32>
    %379 = arith.mulf %19, %378 : vector<8x256xf32>
    %380 = arith.addf %377, %379 : vector<8x256xf32>
    %381 = vector.broadcast %287 : f32 to vector<8x256xf32>
    %382 = arith.mulf %21, %381 : vector<8x256xf32>
    %383 = arith.addf %380, %382 : vector<8x256xf32>
    %384 = vector.broadcast %288 : f32 to vector<8x256xf32>
    %385 = arith.mulf %23, %384 : vector<8x256xf32>
    %386 = arith.addf %383, %385 : vector<8x256xf32>
    %387 = vector.broadcast %289 : f32 to vector<8x256xf32>
    %388 = arith.mulf %27, %387 : vector<8x256xf32>
    %389 = arith.addf %386, %388 : vector<8x256xf32>
    %390 = vector.broadcast %290 : f32 to vector<8x256xf32>
    %391 = arith.mulf %29, %390 : vector<8x256xf32>
    %392 = arith.addf %389, %391 : vector<8x256xf32>
    %393 = vector.broadcast %291 : f32 to vector<8x256xf32>
    %394 = arith.mulf %31, %393 : vector<8x256xf32>
    %395 = arith.addf %392, %394 : vector<8x256xf32>
    %396 = arith.maximumf %317, %343 : vector<8x256xf32>
    %397 = arith.maximumf %369, %395 : vector<8x256xf32>
    %398 = arith.maximumf %396, %397 : vector<8x256xf32>
    %c2_98 = arith.constant 2 : index
    %399 = memref.load %arg3[%c2_98] : memref<16xf32, #tpu.memory_space<smem>>
    %400 = vector.broadcast %399 : f32 to vector<8x256xf32>
    %401 = arith.addf %398, %400 : vector<8x256xf32>
    %cst_99 = arith.constant 0.000000e+00 : f32
    %402 = vector.broadcast %cst_99 : f32 to vector<8x256xf32>
    %403 = arith.maximumf %401, %402 : vector<8x256xf32>
    %c2_100 = arith.constant 2 : index
    %c0_101 = arith.constant 0 : index
    %c0_102 = arith.constant 0 : index
    %404 = vector.load %arg4[%c2_100, %c0_101, %c0_102] : memref<16x256x128xf32, #tpu.memory_space<vmem>>, vector<1x256x128xf32>
    %405 = vector.shape_cast %404 : vector<1x256x128xf32> to vector<256x128xf32>
    %cst_103 = arith.constant dense<0.000000e+00> : vector<8x128xf32>
    %406 = tpu.matmul %403, %405, %cst_103 {dimension_numbers = #tpu.dot_dimension_numbers<[1], [0], [0], [1], [0, 0, 1, 1], [], []>} : vector<8x256xf32>, vector<256x128xf32>, vector<8x128xf32> -> vector<8x128xf32>
    %407 = arith.addf %282, %406 : vector<8x128xf32>
    %c3_104 = arith.constant 3 : index
    %c0_105 = arith.constant 0 : index
    %408 = memref.load %arg2[%c3_104, %c0_105] : memref<16x9xf32, #tpu.memory_space<smem>>
    %c3_106 = arith.constant 3 : index
    %c1_107 = arith.constant 1 : index
    %409 = memref.load %arg2[%c3_106, %c1_107] : memref<16x9xf32, #tpu.memory_space<smem>>
    %c3_108 = arith.constant 3 : index
    %c2_109 = arith.constant 2 : index
    %410 = memref.load %arg2[%c3_108, %c2_109] : memref<16x9xf32, #tpu.memory_space<smem>>
    %c3_110 = arith.constant 3 : index
    %c3_111 = arith.constant 3 : index
    %411 = memref.load %arg2[%c3_110, %c3_111] : memref<16x9xf32, #tpu.memory_space<smem>>
    %c3_112 = arith.constant 3 : index
    %c4_113 = arith.constant 4 : index
    %412 = memref.load %arg2[%c3_112, %c4_113] : memref<16x9xf32, #tpu.memory_space<smem>>
    %c3_114 = arith.constant 3 : index
    %c5_115 = arith.constant 5 : index
    %413 = memref.load %arg2[%c3_114, %c5_115] : memref<16x9xf32, #tpu.memory_space<smem>>
    %c3_116 = arith.constant 3 : index
    %c6_117 = arith.constant 6 : index
    %414 = memref.load %arg2[%c3_116, %c6_117] : memref<16x9xf32, #tpu.memory_space<smem>>
    %c3_118 = arith.constant 3 : index
    %c7_119 = arith.constant 7 : index
    %415 = memref.load %arg2[%c3_118, %c7_119] : memref<16x9xf32, #tpu.memory_space<smem>>
    %c3_120 = arith.constant 3 : index
    %c8_121 = arith.constant 8 : index
    %416 = memref.load %arg2[%c3_120, %c8_121] : memref<16x9xf32, #tpu.memory_space<smem>>
    %417 = vector.broadcast %408 : f32 to vector<8x256xf32>
    %418 = arith.mulf %1, %417 : vector<8x256xf32>
    %419 = vector.broadcast %409 : f32 to vector<8x256xf32>
    %420 = arith.mulf %3, %419 : vector<8x256xf32>
    %421 = arith.addf %418, %420 : vector<8x256xf32>
    %422 = vector.broadcast %410 : f32 to vector<8x256xf32>
    %423 = arith.mulf %5, %422 : vector<8x256xf32>
    %424 = arith.addf %421, %423 : vector<8x256xf32>
    %425 = vector.broadcast %411 : f32 to vector<8x256xf32>
    %426 = arith.mulf %9, %425 : vector<8x256xf32>
    %427 = arith.addf %424, %426 : vector<8x256xf32>
    %428 = vector.broadcast %412 : f32 to vector<8x256xf32>
    %429 = arith.mulf %11, %428 : vector<8x256xf32>
    %430 = arith.addf %427, %429 : vector<8x256xf32>
    %431 = vector.broadcast %413 : f32 to vector<8x256xf32>
    %432 = arith.mulf %13, %431 : vector<8x256xf32>
    %433 = arith.addf %430, %432 : vector<8x256xf32>
    %434 = vector.broadcast %414 : f32 to vector<8x256xf32>
    %435 = arith.mulf %17, %434 : vector<8x256xf32>
    %436 = arith.addf %433, %435 : vector<8x256xf32>
    %437 = vector.broadcast %415 : f32 to vector<8x256xf32>
    %438 = arith.mulf %19, %437 : vector<8x256xf32>
    %439 = arith.addf %436, %438 : vector<8x256xf32>
    %440 = vector.broadcast %416 : f32 to vector<8x256xf32>
    %441 = arith.mulf %21, %440 : vector<8x256xf32>
    %442 = arith.addf %439, %441 : vector<8x256xf32>
    %443 = vector.broadcast %408 : f32 to vector<8x256xf32>
    %444 = arith.mulf %3, %443 : vector<8x256xf32>
    %445 = vector.broadcast %409 : f32 to vector<8x256xf32>
    %446 = arith.mulf %5, %445 : vector<8x256xf32>
    %447 = arith.addf %444, %446 : vector<8x256xf32>
    %448 = vector.broadcast %410 : f32 to vector<8x256xf32>
    %449 = arith.mulf %7, %448 : vector<8x256xf32>
    %450 = arith.addf %447, %449 : vector<8x256xf32>
    %451 = vector.broadcast %411 : f32 to vector<8x256xf32>
    %452 = arith.mulf %11, %451 : vector<8x256xf32>
    %453 = arith.addf %450, %452 : vector<8x256xf32>
    %454 = vector.broadcast %412 : f32 to vector<8x256xf32>
    %455 = arith.mulf %13, %454 : vector<8x256xf32>
    %456 = arith.addf %453, %455 : vector<8x256xf32>
    %457 = vector.broadcast %413 : f32 to vector<8x256xf32>
    %458 = arith.mulf %15, %457 : vector<8x256xf32>
    %459 = arith.addf %456, %458 : vector<8x256xf32>
    %460 = vector.broadcast %414 : f32 to vector<8x256xf32>
    %461 = arith.mulf %19, %460 : vector<8x256xf32>
    %462 = arith.addf %459, %461 : vector<8x256xf32>
    %463 = vector.broadcast %415 : f32 to vector<8x256xf32>
    %464 = arith.mulf %21, %463 : vector<8x256xf32>
    %465 = arith.addf %462, %464 : vector<8x256xf32>
    %466 = vector.broadcast %416 : f32 to vector<8x256xf32>
    %467 = arith.mulf %23, %466 : vector<8x256xf32>
    %468 = arith.addf %465, %467 : vector<8x256xf32>
    %469 = vector.broadcast %408 : f32 to vector<8x256xf32>
    %470 = arith.mulf %9, %469 : vector<8x256xf32>
    %471 = vector.broadcast %409 : f32 to vector<8x256xf32>
    %472 = arith.mulf %11, %471 : vector<8x256xf32>
    %473 = arith.addf %470, %472 : vector<8x256xf32>
    %474 = vector.broadcast %410 : f32 to vector<8x256xf32>
    %475 = arith.mulf %13, %474 : vector<8x256xf32>
    %476 = arith.addf %473, %475 : vector<8x256xf32>
    %477 = vector.broadcast %411 : f32 to vector<8x256xf32>
    %478 = arith.mulf %17, %477 : vector<8x256xf32>
    %479 = arith.addf %476, %478 : vector<8x256xf32>
    %480 = vector.broadcast %412 : f32 to vector<8x256xf32>
    %481 = arith.mulf %19, %480 : vector<8x256xf32>
    %482 = arith.addf %479, %481 : vector<8x256xf32>
    %483 = vector.broadcast %413 : f32 to vector<8x256xf32>
    %484 = arith.mulf %21, %483 : vector<8x256xf32>
    %485 = arith.addf %482, %484 : vector<8x256xf32>
    %486 = vector.broadcast %414 : f32 to vector<8x256xf32>
    %487 = arith.mulf %25, %486 : vector<8x256xf32>
    %488 = arith.addf %485, %487 : vector<8x256xf32>
    %489 = vector.broadcast %415 : f32 to vector<8x256xf32>
    %490 = arith.mulf %27, %489 : vector<8x256xf32>
    %491 = arith.addf %488, %490 : vector<8x256xf32>
    %492 = vector.broadcast %416 : f32 to vector<8x256xf32>
    %493 = arith.mulf %29, %492 : vector<8x256xf32>
    %494 = arith.addf %491, %493 : vector<8x256xf32>
    %495 = vector.broadcast %408 : f32 to vector<8x256xf32>
    %496 = arith.mulf %11, %495 : vector<8x256xf32>
    %497 = vector.broadcast %409 : f32 to vector<8x256xf32>
    %498 = arith.mulf %13, %497 : vector<8x256xf32>
    %499 = arith.addf %496, %498 : vector<8x256xf32>
    %500 = vector.broadcast %410 : f32 to vector<8x256xf32>
    %501 = arith.mulf %15, %500 : vector<8x256xf32>
    %502 = arith.addf %499, %501 : vector<8x256xf32>
    %503 = vector.broadcast %411 : f32 to vector<8x256xf32>
    %504 = arith.mulf %19, %503 : vector<8x256xf32>
    %505 = arith.addf %502, %504 : vector<8x256xf32>
    %506 = vector.broadcast %412 : f32 to vector<8x256xf32>
    %507 = arith.mulf %21, %506 : vector<8x256xf32>
    %508 = arith.addf %505, %507 : vector<8x256xf32>
    %509 = vector.broadcast %413 : f32 to vector<8x256xf32>
    %510 = arith.mulf %23, %509 : vector<8x256xf32>
    %511 = arith.addf %508, %510 : vector<8x256xf32>
    %512 = vector.broadcast %414 : f32 to vector<8x256xf32>
    %513 = arith.mulf %27, %512 : vector<8x256xf32>
    %514 = arith.addf %511, %513 : vector<8x256xf32>
    %515 = vector.broadcast %415 : f32 to vector<8x256xf32>
    %516 = arith.mulf %29, %515 : vector<8x256xf32>
    %517 = arith.addf %514, %516 : vector<8x256xf32>
    %518 = vector.broadcast %416 : f32 to vector<8x256xf32>
    %519 = arith.mulf %31, %518 : vector<8x256xf32>
    %520 = arith.addf %517, %519 : vector<8x256xf32>
    %521 = arith.maximumf %442, %468 : vector<8x256xf32>
    %522 = arith.maximumf %494, %520 : vector<8x256xf32>
    %523 = arith.maximumf %521, %522 : vector<8x256xf32>
    %c3_122 = arith.constant 3 : index
    %524 = memref.load %arg3[%c3_122] : memref<16xf32, #tpu.memory_space<smem>>
    %525 = vector.broadcast %524 : f32 to vector<8x256xf32>
    %526 = arith.addf %523, %525 : vector<8x256xf32>
    %cst_123 = arith.constant 0.000000e+00 : f32
    %527 = vector.broadcast %cst_123 : f32 to vector<8x256xf32>
    %528 = arith.maximumf %526, %527 : vector<8x256xf32>
    %c3_124 = arith.constant 3 : index
    %c0_125 = arith.constant 0 : index
    %c0_126 = arith.constant 0 : index
    %529 = vector.load %arg4[%c3_124, %c0_125, %c0_126] : memref<16x256x128xf32, #tpu.memory_space<vmem>>, vector<1x256x128xf32>
    %530 = vector.shape_cast %529 : vector<1x256x128xf32> to vector<256x128xf32>
    %cst_127 = arith.constant dense<0.000000e+00> : vector<8x128xf32>
    %531 = tpu.matmul %528, %530, %cst_127 {dimension_numbers = #tpu.dot_dimension_numbers<[1], [0], [0], [1], [0, 0, 1, 1], [], []>} : vector<8x256xf32>, vector<256x128xf32>, vector<8x128xf32> -> vector<8x128xf32>
    %532 = arith.addf %407, %531 : vector<8x128xf32>
    %c4_128 = arith.constant 4 : index
    %c0_129 = arith.constant 0 : index
    %533 = memref.load %arg2[%c4_128, %c0_129] : memref<16x9xf32, #tpu.memory_space<smem>>
    %c4_130 = arith.constant 4 : index
    %c1_131 = arith.constant 1 : index
    %534 = memref.load %arg2[%c4_130, %c1_131] : memref<16x9xf32, #tpu.memory_space<smem>>
    %c4_132 = arith.constant 4 : index
    %c2_133 = arith.constant 2 : index
    %535 = memref.load %arg2[%c4_132, %c2_133] : memref<16x9xf32, #tpu.memory_space<smem>>
    %c4_134 = arith.constant 4 : index
    %c3_135 = arith.constant 3 : index
    %536 = memref.load %arg2[%c4_134, %c3_135] : memref<16x9xf32, #tpu.memory_space<smem>>
    %c4_136 = arith.constant 4 : index
    %c4_137 = arith.constant 4 : index
    %537 = memref.load %arg2[%c4_136, %c4_137] : memref<16x9xf32, #tpu.memory_space<smem>>
    %c4_138 = arith.constant 4 : index
    %c5_139 = arith.constant 5 : index
    %538 = memref.load %arg2[%c4_138, %c5_139] : memref<16x9xf32, #tpu.memory_space<smem>>
    %c4_140 = arith.constant 4 : index
    %c6_141 = arith.constant 6 : index
    %539 = memref.load %arg2[%c4_140, %c6_141] : memref<16x9xf32, #tpu.memory_space<smem>>
    %c4_142 = arith.constant 4 : index
    %c7_143 = arith.constant 7 : index
    %540 = memref.load %arg2[%c4_142, %c7_143] : memref<16x9xf32, #tpu.memory_space<smem>>
    %c4_144 = arith.constant 4 : index
    %c8_145 = arith.constant 8 : index
    %541 = memref.load %arg2[%c4_144, %c8_145] : memref<16x9xf32, #tpu.memory_space<smem>>
    %542 = vector.broadcast %533 : f32 to vector<8x256xf32>
    %543 = arith.mulf %1, %542 : vector<8x256xf32>
    %544 = vector.broadcast %534 : f32 to vector<8x256xf32>
    %545 = arith.mulf %3, %544 : vector<8x256xf32>
    %546 = arith.addf %543, %545 : vector<8x256xf32>
    %547 = vector.broadcast %535 : f32 to vector<8x256xf32>
    %548 = arith.mulf %5, %547 : vector<8x256xf32>
    %549 = arith.addf %546, %548 : vector<8x256xf32>
    %550 = vector.broadcast %536 : f32 to vector<8x256xf32>
    %551 = arith.mulf %9, %550 : vector<8x256xf32>
    %552 = arith.addf %549, %551 : vector<8x256xf32>
    %553 = vector.broadcast %537 : f32 to vector<8x256xf32>
    %554 = arith.mulf %11, %553 : vector<8x256xf32>
    %555 = arith.addf %552, %554 : vector<8x256xf32>
    %556 = vector.broadcast %538 : f32 to vector<8x256xf32>
    %557 = arith.mulf %13, %556 : vector<8x256xf32>
    %558 = arith.addf %555, %557 : vector<8x256xf32>
    %559 = vector.broadcast %539 : f32 to vector<8x256xf32>
    %560 = arith.mulf %17, %559 : vector<8x256xf32>
    %561 = arith.addf %558, %560 : vector<8x256xf32>
    %562 = vector.broadcast %540 : f32 to vector<8x256xf32>
    %563 = arith.mulf %19, %562 : vector<8x256xf32>
    %564 = arith.addf %561, %563 : vector<8x256xf32>
    %565 = vector.broadcast %541 : f32 to vector<8x256xf32>
    %566 = arith.mulf %21, %565 : vector<8x256xf32>
    %567 = arith.addf %564, %566 : vector<8x256xf32>
    %568 = vector.broadcast %533 : f32 to vector<8x256xf32>
    %569 = arith.mulf %3, %568 : vector<8x256xf32>
    %570 = vector.broadcast %534 : f32 to vector<8x256xf32>
    %571 = arith.mulf %5, %570 : vector<8x256xf32>
    %572 = arith.addf %569, %571 : vector<8x256xf32>
    %573 = vector.broadcast %535 : f32 to vector<8x256xf32>
    %574 = arith.mulf %7, %573 : vector<8x256xf32>
    %575 = arith.addf %572, %574 : vector<8x256xf32>
    %576 = vector.broadcast %536 : f32 to vector<8x256xf32>
    %577 = arith.mulf %11, %576 : vector<8x256xf32>
    %578 = arith.addf %575, %577 : vector<8x256xf32>
    %579 = vector.broadcast %537 : f32 to vector<8x256xf32>
    %580 = arith.mulf %13, %579 : vector<8x256xf32>
    %581 = arith.addf %578, %580 : vector<8x256xf32>
    %582 = vector.broadcast %538 : f32 to vector<8x256xf32>
    %583 = arith.mulf %15, %582 : vector<8x256xf32>
    %584 = arith.addf %581, %583 : vector<8x256xf32>
    %585 = vector.broadcast %539 : f32 to vector<8x256xf32>
    %586 = arith.mulf %19, %585 : vector<8x256xf32>
    %587 = arith.addf %584, %586 : vector<8x256xf32>
    %588 = vector.broadcast %540 : f32 to vector<8x256xf32>
    %589 = arith.mulf %21, %588 : vector<8x256xf32>
    %590 = arith.addf %587, %589 : vector<8x256xf32>
    %591 = vector.broadcast %541 : f32 to vector<8x256xf32>
    %592 = arith.mulf %23, %591 : vector<8x256xf32>
    %593 = arith.addf %590, %592 : vector<8x256xf32>
    %594 = vector.broadcast %533 : f32 to vector<8x256xf32>
    %595 = arith.mulf %9, %594 : vector<8x256xf32>
    %596 = vector.broadcast %534 : f32 to vector<8x256xf32>
    %597 = arith.mulf %11, %596 : vector<8x256xf32>
    %598 = arith.addf %595, %597 : vector<8x256xf32>
    %599 = vector.broadcast %535 : f32 to vector<8x256xf32>
    %600 = arith.mulf %13, %599 : vector<8x256xf32>
    %601 = arith.addf %598, %600 : vector<8x256xf32>
    %602 = vector.broadcast %536 : f32 to vector<8x256xf32>
    %603 = arith.mulf %17, %602 : vector<8x256xf32>
    %604 = arith.addf %601, %603 : vector<8x256xf32>
    %605 = vector.broadcast %537 : f32 to vector<8x256xf32>
    %606 = arith.mulf %19, %605 : vector<8x256xf32>
    %607 = arith.addf %604, %606 : vector<8x256xf32>
    %608 = vector.broadcast %538 : f32 to vector<8x256xf32>
    %609 = arith.mulf %21, %608 : vector<8x256xf32>
    %610 = arith.addf %607, %609 : vector<8x256xf32>
    %611 = vector.broadcast %539 : f32 to vector<8x256xf32>
    %612 = arith.mulf %25, %611 : vector<8x256xf32>
    %613 = arith.addf %610, %612 : vector<8x256xf32>
    %614 = vector.broadcast %540 : f32 to vector<8x256xf32>
    %615 = arith.mulf %27, %614 : vector<8x256xf32>
    %616 = arith.addf %613, %615 : vector<8x256xf32>
    %617 = vector.broadcast %541 : f32 to vector<8x256xf32>
    %618 = arith.mulf %29, %617 : vector<8x256xf32>
    %619 = arith.addf %616, %618 : vector<8x256xf32>
    %620 = vector.broadcast %533 : f32 to vector<8x256xf32>
    %621 = arith.mulf %11, %620 : vector<8x256xf32>
    %622 = vector.broadcast %534 : f32 to vector<8x256xf32>
    %623 = arith.mulf %13, %622 : vector<8x256xf32>
    %624 = arith.addf %621, %623 : vector<8x256xf32>
    %625 = vector.broadcast %535 : f32 to vector<8x256xf32>
    %626 = arith.mulf %15, %625 : vector<8x256xf32>
    %627 = arith.addf %624, %626 : vector<8x256xf32>
    %628 = vector.broadcast %536 : f32 to vector<8x256xf32>
    %629 = arith.mulf %19, %628 : vector<8x256xf32>
    %630 = arith.addf %627, %629 : vector<8x256xf32>
    %631 = vector.broadcast %537 : f32 to vector<8x256xf32>
    %632 = arith.mulf %21, %631 : vector<8x256xf32>
    %633 = arith.addf %630, %632 : vector<8x256xf32>
    %634 = vector.broadcast %538 : f32 to vector<8x256xf32>
    %635 = arith.mulf %23, %634 : vector<8x256xf32>
    %636 = arith.addf %633, %635 : vector<8x256xf32>
    %637 = vector.broadcast %539 : f32 to vector<8x256xf32>
    %638 = arith.mulf %27, %637 : vector<8x256xf32>
    %639 = arith.addf %636, %638 : vector<8x256xf32>
    %640 = vector.broadcast %540 : f32 to vector<8x256xf32>
    %641 = arith.mulf %29, %640 : vector<8x256xf32>
    %642 = arith.addf %639, %641 : vector<8x256xf32>
    %643 = vector.broadcast %541 : f32 to vector<8x256xf32>
    %644 = arith.mulf %31, %643 : vector<8x256xf32>
    %645 = arith.addf %642, %644 : vector<8x256xf32>
    %646 = arith.maximumf %567, %593 : vector<8x256xf32>
    %647 = arith.maximumf %619, %645 : vector<8x256xf32>
    %648 = arith.maximumf %646, %647 : vector<8x256xf32>
    %c4_146 = arith.constant 4 : index
    %649 = memref.load %arg3[%c4_146] : memref<16xf32, #tpu.memory_space<smem>>
    %650 = vector.broadcast %649 : f32 to vector<8x256xf32>
    %651 = arith.addf %648, %650 : vector<8x256xf32>
    %cst_147 = arith.constant 0.000000e+00 : f32
    %652 = vector.broadcast %cst_147 : f32 to vector<8x256xf32>
    %653 = arith.maximumf %651, %652 : vector<8x256xf32>
    %c4_148 = arith.constant 4 : index
    %c0_149 = arith.constant 0 : index
    %c0_150 = arith.constant 0 : index
    %654 = vector.load %arg4[%c4_148, %c0_149, %c0_150] : memref<16x256x128xf32, #tpu.memory_space<vmem>>, vector<1x256x128xf32>
    %655 = vector.shape_cast %654 : vector<1x256x128xf32> to vector<256x128xf32>
    %cst_151 = arith.constant dense<0.000000e+00> : vector<8x128xf32>
    %656 = tpu.matmul %653, %655, %cst_151 {dimension_numbers = #tpu.dot_dimension_numbers<[1], [0], [0], [1], [0, 0, 1, 1], [], []>} : vector<8x256xf32>, vector<256x128xf32>, vector<8x128xf32> -> vector<8x128xf32>
    %657 = arith.addf %532, %656 : vector<8x128xf32>
    %c5_152 = arith.constant 5 : index
    %c0_153 = arith.constant 0 : index
    %658 = memref.load %arg2[%c5_152, %c0_153] : memref<16x9xf32, #tpu.memory_space<smem>>
    %c5_154 = arith.constant 5 : index
    %c1_155 = arith.constant 1 : index
    %659 = memref.load %arg2[%c5_154, %c1_155] : memref<16x9xf32, #tpu.memory_space<smem>>
    %c5_156 = arith.constant 5 : index
    %c2_157 = arith.constant 2 : index
    %660 = memref.load %arg2[%c5_156, %c2_157] : memref<16x9xf32, #tpu.memory_space<smem>>
    %c5_158 = arith.constant 5 : index
    %c3_159 = arith.constant 3 : index
    %661 = memref.load %arg2[%c5_158, %c3_159] : memref<16x9xf32, #tpu.memory_space<smem>>
    %c5_160 = arith.constant 5 : index
    %c4_161 = arith.constant 4 : index
    %662 = memref.load %arg2[%c5_160, %c4_161] : memref<16x9xf32, #tpu.memory_space<smem>>
    %c5_162 = arith.constant 5 : index
    %c5_163 = arith.constant 5 : index
    %663 = memref.load %arg2[%c5_162, %c5_163] : memref<16x9xf32, #tpu.memory_space<smem>>
    %c5_164 = arith.constant 5 : index
    %c6_165 = arith.constant 6 : index
    %664 = memref.load %arg2[%c5_164, %c6_165] : memref<16x9xf32, #tpu.memory_space<smem>>
    %c5_166 = arith.constant 5 : index
    %c7_167 = arith.constant 7 : index
    %665 = memref.load %arg2[%c5_166, %c7_167] : memref<16x9xf32, #tpu.memory_space<smem>>
    %c5_168 = arith.constant 5 : index
    %c8_169 = arith.constant 8 : index
    %666 = memref.load %arg2[%c5_168, %c8_169] : memref<16x9xf32, #tpu.memory_space<smem>>
    %667 = vector.broadcast %658 : f32 to vector<8x256xf32>
    %668 = arith.mulf %1, %667 : vector<8x256xf32>
    %669 = vector.broadcast %659 : f32 to vector<8x256xf32>
    %670 = arith.mulf %3, %669 : vector<8x256xf32>
    %671 = arith.addf %668, %670 : vector<8x256xf32>
    %672 = vector.broadcast %660 : f32 to vector<8x256xf32>
    %673 = arith.mulf %5, %672 : vector<8x256xf32>
    %674 = arith.addf %671, %673 : vector<8x256xf32>
    %675 = vector.broadcast %661 : f32 to vector<8x256xf32>
    %676 = arith.mulf %9, %675 : vector<8x256xf32>
    %677 = arith.addf %674, %676 : vector<8x256xf32>
    %678 = vector.broadcast %662 : f32 to vector<8x256xf32>
    %679 = arith.mulf %11, %678 : vector<8x256xf32>
    %680 = arith.addf %677, %679 : vector<8x256xf32>
    %681 = vector.broadcast %663 : f32 to vector<8x256xf32>
    %682 = arith.mulf %13, %681 : vector<8x256xf32>
    %683 = arith.addf %680, %682 : vector<8x256xf32>
    %684 = vector.broadcast %664 : f32 to vector<8x256xf32>
    %685 = arith.mulf %17, %684 : vector<8x256xf32>
    %686 = arith.addf %683, %685 : vector<8x256xf32>
    %687 = vector.broadcast %665 : f32 to vector<8x256xf32>
    %688 = arith.mulf %19, %687 : vector<8x256xf32>
    %689 = arith.addf %686, %688 : vector<8x256xf32>
    %690 = vector.broadcast %666 : f32 to vector<8x256xf32>
    %691 = arith.mulf %21, %690 : vector<8x256xf32>
    %692 = arith.addf %689, %691 : vector<8x256xf32>
    %693 = vector.broadcast %658 : f32 to vector<8x256xf32>
    %694 = arith.mulf %3, %693 : vector<8x256xf32>
    %695 = vector.broadcast %659 : f32 to vector<8x256xf32>
    %696 = arith.mulf %5, %695 : vector<8x256xf32>
    %697 = arith.addf %694, %696 : vector<8x256xf32>
    %698 = vector.broadcast %660 : f32 to vector<8x256xf32>
    %699 = arith.mulf %7, %698 : vector<8x256xf32>
    %700 = arith.addf %697, %699 : vector<8x256xf32>
    %701 = vector.broadcast %661 : f32 to vector<8x256xf32>
    %702 = arith.mulf %11, %701 : vector<8x256xf32>
    %703 = arith.addf %700, %702 : vector<8x256xf32>
    %704 = vector.broadcast %662 : f32 to vector<8x256xf32>
    %705 = arith.mulf %13, %704 : vector<8x256xf32>
    %706 = arith.addf %703, %705 : vector<8x256xf32>
    %707 = vector.broadcast %663 : f32 to vector<8x256xf32>
    %708 = arith.mulf %15, %707 : vector<8x256xf32>
    %709 = arith.addf %706, %708 : vector<8x256xf32>
    %710 = vector.broadcast %664 : f32 to vector<8x256xf32>
    %711 = arith.mulf %19, %710 : vector<8x256xf32>
    %712 = arith.addf %709, %711 : vector<8x256xf32>
    %713 = vector.broadcast %665 : f32 to vector<8x256xf32>
    %714 = arith.mulf %21, %713 : vector<8x256xf32>
    %715 = arith.addf %712, %714 : vector<8x256xf32>
    %716 = vector.broadcast %666 : f32 to vector<8x256xf32>
    %717 = arith.mulf %23, %716 : vector<8x256xf32>
    %718 = arith.addf %715, %717 : vector<8x256xf32>
    %719 = vector.broadcast %658 : f32 to vector<8x256xf32>
    %720 = arith.mulf %9, %719 : vector<8x256xf32>
    %721 = vector.broadcast %659 : f32 to vector<8x256xf32>
    %722 = arith.mulf %11, %721 : vector<8x256xf32>
    %723 = arith.addf %720, %722 : vector<8x256xf32>
    %724 = vector.broadcast %660 : f32 to vector<8x256xf32>
    %725 = arith.mulf %13, %724 : vector<8x256xf32>
    %726 = arith.addf %723, %725 : vector<8x256xf32>
    %727 = vector.broadcast %661 : f32 to vector<8x256xf32>
    %728 = arith.mulf %17, %727 : vector<8x256xf32>
    %729 = arith.addf %726, %728 : vector<8x256xf32>
    %730 = vector.broadcast %662 : f32 to vector<8x256xf32>
    %731 = arith.mulf %19, %730 : vector<8x256xf32>
    %732 = arith.addf %729, %731 : vector<8x256xf32>
    %733 = vector.broadcast %663 : f32 to vector<8x256xf32>
    %734 = arith.mulf %21, %733 : vector<8x256xf32>
    %735 = arith.addf %732, %734 : vector<8x256xf32>
    %736 = vector.broadcast %664 : f32 to vector<8x256xf32>
    %737 = arith.mulf %25, %736 : vector<8x256xf32>
    %738 = arith.addf %735, %737 : vector<8x256xf32>
    %739 = vector.broadcast %665 : f32 to vector<8x256xf32>
    %740 = arith.mulf %27, %739 : vector<8x256xf32>
    %741 = arith.addf %738, %740 : vector<8x256xf32>
    %742 = vector.broadcast %666 : f32 to vector<8x256xf32>
    %743 = arith.mulf %29, %742 : vector<8x256xf32>
    %744 = arith.addf %741, %743 : vector<8x256xf32>
    %745 = vector.broadcast %658 : f32 to vector<8x256xf32>
    %746 = arith.mulf %11, %745 : vector<8x256xf32>
    %747 = vector.broadcast %659 : f32 to vector<8x256xf32>
    %748 = arith.mulf %13, %747 : vector<8x256xf32>
    %749 = arith.addf %746, %748 : vector<8x256xf32>
    %750 = vector.broadcast %660 : f32 to vector<8x256xf32>
    %751 = arith.mulf %15, %750 : vector<8x256xf32>
    %752 = arith.addf %749, %751 : vector<8x256xf32>
    %753 = vector.broadcast %661 : f32 to vector<8x256xf32>
    %754 = arith.mulf %19, %753 : vector<8x256xf32>
    %755 = arith.addf %752, %754 : vector<8x256xf32>
    %756 = vector.broadcast %662 : f32 to vector<8x256xf32>
    %757 = arith.mulf %21, %756 : vector<8x256xf32>
    %758 = arith.addf %755, %757 : vector<8x256xf32>
    %759 = vector.broadcast %663 : f32 to vector<8x256xf32>
    %760 = arith.mulf %23, %759 : vector<8x256xf32>
    %761 = arith.addf %758, %760 : vector<8x256xf32>
    %762 = vector.broadcast %664 : f32 to vector<8x256xf32>
    %763 = arith.mulf %27, %762 : vector<8x256xf32>
    %764 = arith.addf %761, %763 : vector<8x256xf32>
    %765 = vector.broadcast %665 : f32 to vector<8x256xf32>
    %766 = arith.mulf %29, %765 : vector<8x256xf32>
    %767 = arith.addf %764, %766 : vector<8x256xf32>
    %768 = vector.broadcast %666 : f32 to vector<8x256xf32>
    %769 = arith.mulf %31, %768 : vector<8x256xf32>
    %770 = arith.addf %767, %769 : vector<8x256xf32>
    %771 = arith.maximumf %692, %718 : vector<8x256xf32>
    %772 = arith.maximumf %744, %770 : vector<8x256xf32>
    %773 = arith.maximumf %771, %772 : vector<8x256xf32>
    %c5_170 = arith.constant 5 : index
    %774 = memref.load %arg3[%c5_170] : memref<16xf32, #tpu.memory_space<smem>>
    %775 = vector.broadcast %774 : f32 to vector<8x256xf32>
    %776 = arith.addf %773, %775 : vector<8x256xf32>
    %cst_171 = arith.constant 0.000000e+00 : f32
    %777 = vector.broadcast %cst_171 : f32 to vector<8x256xf32>
    %778 = arith.maximumf %776, %777 : vector<8x256xf32>
    %c5_172 = arith.constant 5 : index
    %c0_173 = arith.constant 0 : index
    %c0_174 = arith.constant 0 : index
    %779 = vector.load %arg4[%c5_172, %c0_173, %c0_174] : memref<16x256x128xf32, #tpu.memory_space<vmem>>, vector<1x256x128xf32>
    %780 = vector.shape_cast %779 : vector<1x256x128xf32> to vector<256x128xf32>
    %cst_175 = arith.constant dense<0.000000e+00> : vector<8x128xf32>
    %781 = tpu.matmul %778, %780, %cst_175 {dimension_numbers = #tpu.dot_dimension_numbers<[1], [0], [0], [1], [0, 0, 1, 1], [], []>} : vector<8x256xf32>, vector<256x128xf32>, vector<8x128xf32> -> vector<8x128xf32>
    %782 = arith.addf %657, %781 : vector<8x128xf32>
    %c6_176 = arith.constant 6 : index
    %c0_177 = arith.constant 0 : index
    %783 = memref.load %arg2[%c6_176, %c0_177] : memref<16x9xf32, #tpu.memory_space<smem>>
    %c6_178 = arith.constant 6 : index
    %c1_179 = arith.constant 1 : index
    %784 = memref.load %arg2[%c6_178, %c1_179] : memref<16x9xf32, #tpu.memory_space<smem>>
    %c6_180 = arith.constant 6 : index
    %c2_181 = arith.constant 2 : index
    %785 = memref.load %arg2[%c6_180, %c2_181] : memref<16x9xf32, #tpu.memory_space<smem>>
    %c6_182 = arith.constant 6 : index
    %c3_183 = arith.constant 3 : index
    %786 = memref.load %arg2[%c6_182, %c3_183] : memref<16x9xf32, #tpu.memory_space<smem>>
    %c6_184 = arith.constant 6 : index
    %c4_185 = arith.constant 4 : index
    %787 = memref.load %arg2[%c6_184, %c4_185] : memref<16x9xf32, #tpu.memory_space<smem>>
    %c6_186 = arith.constant 6 : index
    %c5_187 = arith.constant 5 : index
    %788 = memref.load %arg2[%c6_186, %c5_187] : memref<16x9xf32, #tpu.memory_space<smem>>
    %c6_188 = arith.constant 6 : index
    %c6_189 = arith.constant 6 : index
    %789 = memref.load %arg2[%c6_188, %c6_189] : memref<16x9xf32, #tpu.memory_space<smem>>
    %c6_190 = arith.constant 6 : index
    %c7_191 = arith.constant 7 : index
    %790 = memref.load %arg2[%c6_190, %c7_191] : memref<16x9xf32, #tpu.memory_space<smem>>
    %c6_192 = arith.constant 6 : index
    %c8_193 = arith.constant 8 : index
    %791 = memref.load %arg2[%c6_192, %c8_193] : memref<16x9xf32, #tpu.memory_space<smem>>
    %792 = vector.broadcast %783 : f32 to vector<8x256xf32>
    %793 = arith.mulf %1, %792 : vector<8x256xf32>
    %794 = vector.broadcast %784 : f32 to vector<8x256xf32>
    %795 = arith.mulf %3, %794 : vector<8x256xf32>
    %796 = arith.addf %793, %795 : vector<8x256xf32>
    %797 = vector.broadcast %785 : f32 to vector<8x256xf32>
    %798 = arith.mulf %5, %797 : vector<8x256xf32>
    %799 = arith.addf %796, %798 : vector<8x256xf32>
    %800 = vector.broadcast %786 : f32 to vector<8x256xf32>
    %801 = arith.mulf %9, %800 : vector<8x256xf32>
    %802 = arith.addf %799, %801 : vector<8x256xf32>
    %803 = vector.broadcast %787 : f32 to vector<8x256xf32>
    %804 = arith.mulf %11, %803 : vector<8x256xf32>
    %805 = arith.addf %802, %804 : vector<8x256xf32>
    %806 = vector.broadcast %788 : f32 to vector<8x256xf32>
    %807 = arith.mulf %13, %806 : vector<8x256xf32>
    %808 = arith.addf %805, %807 : vector<8x256xf32>
    %809 = vector.broadcast %789 : f32 to vector<8x256xf32>
    %810 = arith.mulf %17, %809 : vector<8x256xf32>
    %811 = arith.addf %808, %810 : vector<8x256xf32>
    %812 = vector.broadcast %790 : f32 to vector<8x256xf32>
    %813 = arith.mulf %19, %812 : vector<8x256xf32>
    %814 = arith.addf %811, %813 : vector<8x256xf32>
    %815 = vector.broadcast %791 : f32 to vector<8x256xf32>
    %816 = arith.mulf %21, %815 : vector<8x256xf32>
    %817 = arith.addf %814, %816 : vector<8x256xf32>
    %818 = vector.broadcast %783 : f32 to vector<8x256xf32>
    %819 = arith.mulf %3, %818 : vector<8x256xf32>
    %820 = vector.broadcast %784 : f32 to vector<8x256xf32>
    %821 = arith.mulf %5, %820 : vector<8x256xf32>
    %822 = arith.addf %819, %821 : vector<8x256xf32>
    %823 = vector.broadcast %785 : f32 to vector<8x256xf32>
    %824 = arith.mulf %7, %823 : vector<8x256xf32>
    %825 = arith.addf %822, %824 : vector<8x256xf32>
    %826 = vector.broadcast %786 : f32 to vector<8x256xf32>
    %827 = arith.mulf %11, %826 : vector<8x256xf32>
    %828 = arith.addf %825, %827 : vector<8x256xf32>
    %829 = vector.broadcast %787 : f32 to vector<8x256xf32>
    %830 = arith.mulf %13, %829 : vector<8x256xf32>
    %831 = arith.addf %828, %830 : vector<8x256xf32>
    %832 = vector.broadcast %788 : f32 to vector<8x256xf32>
    %833 = arith.mulf %15, %832 : vector<8x256xf32>
    %834 = arith.addf %831, %833 : vector<8x256xf32>
    %835 = vector.broadcast %789 : f32 to vector<8x256xf32>
    %836 = arith.mulf %19, %835 : vector<8x256xf32>
    %837 = arith.addf %834, %836 : vector<8x256xf32>
    %838 = vector.broadcast %790 : f32 to vector<8x256xf32>
    %839 = arith.mulf %21, %838 : vector<8x256xf32>
    %840 = arith.addf %837, %839 : vector<8x256xf32>
    %841 = vector.broadcast %791 : f32 to vector<8x256xf32>
    %842 = arith.mulf %23, %841 : vector<8x256xf32>
    %843 = arith.addf %840, %842 : vector<8x256xf32>
    %844 = vector.broadcast %783 : f32 to vector<8x256xf32>
    %845 = arith.mulf %9, %844 : vector<8x256xf32>
    %846 = vector.broadcast %784 : f32 to vector<8x256xf32>
    %847 = arith.mulf %11, %846 : vector<8x256xf32>
    %848 = arith.addf %845, %847 : vector<8x256xf32>
    %849 = vector.broadcast %785 : f32 to vector<8x256xf32>
    %850 = arith.mulf %13, %849 : vector<8x256xf32>
    %851 = arith.addf %848, %850 : vector<8x256xf32>
    %852 = vector.broadcast %786 : f32 to vector<8x256xf32>
    %853 = arith.mulf %17, %852 : vector<8x256xf32>
    %854 = arith.addf %851, %853 : vector<8x256xf32>
    %855 = vector.broadcast %787 : f32 to vector<8x256xf32>
    %856 = arith.mulf %19, %855 : vector<8x256xf32>
    %857 = arith.addf %854, %856 : vector<8x256xf32>
    %858 = vector.broadcast %788 : f32 to vector<8x256xf32>
    %859 = arith.mulf %21, %858 : vector<8x256xf32>
    %860 = arith.addf %857, %859 : vector<8x256xf32>
    %861 = vector.broadcast %789 : f32 to vector<8x256xf32>
    %862 = arith.mulf %25, %861 : vector<8x256xf32>
    %863 = arith.addf %860, %862 : vector<8x256xf32>
    %864 = vector.broadcast %790 : f32 to vector<8x256xf32>
    %865 = arith.mulf %27, %864 : vector<8x256xf32>
    %866 = arith.addf %863, %865 : vector<8x256xf32>
    %867 = vector.broadcast %791 : f32 to vector<8x256xf32>
    %868 = arith.mulf %29, %867 : vector<8x256xf32>
    %869 = arith.addf %866, %868 : vector<8x256xf32>
    %870 = vector.broadcast %783 : f32 to vector<8x256xf32>
    %871 = arith.mulf %11, %870 : vector<8x256xf32>
    %872 = vector.broadcast %784 : f32 to vector<8x256xf32>
    %873 = arith.mulf %13, %872 : vector<8x256xf32>
    %874 = arith.addf %871, %873 : vector<8x256xf32>
    %875 = vector.broadcast %785 : f32 to vector<8x256xf32>
    %876 = arith.mulf %15, %875 : vector<8x256xf32>
    %877 = arith.addf %874, %876 : vector<8x256xf32>
    %878 = vector.broadcast %786 : f32 to vector<8x256xf32>
    %879 = arith.mulf %19, %878 : vector<8x256xf32>
    %880 = arith.addf %877, %879 : vector<8x256xf32>
    %881 = vector.broadcast %787 : f32 to vector<8x256xf32>
    %882 = arith.mulf %21, %881 : vector<8x256xf32>
    %883 = arith.addf %880, %882 : vector<8x256xf32>
    %884 = vector.broadcast %788 : f32 to vector<8x256xf32>
    %885 = arith.mulf %23, %884 : vector<8x256xf32>
    %886 = arith.addf %883, %885 : vector<8x256xf32>
    %887 = vector.broadcast %789 : f32 to vector<8x256xf32>
    %888 = arith.mulf %27, %887 : vector<8x256xf32>
    %889 = arith.addf %886, %888 : vector<8x256xf32>
    %890 = vector.broadcast %790 : f32 to vector<8x256xf32>
    %891 = arith.mulf %29, %890 : vector<8x256xf32>
    %892 = arith.addf %889, %891 : vector<8x256xf32>
    %893 = vector.broadcast %791 : f32 to vector<8x256xf32>
    %894 = arith.mulf %31, %893 : vector<8x256xf32>
    %895 = arith.addf %892, %894 : vector<8x256xf32>
    %896 = arith.maximumf %817, %843 : vector<8x256xf32>
    %897 = arith.maximumf %869, %895 : vector<8x256xf32>
    %898 = arith.maximumf %896, %897 : vector<8x256xf32>
    %c6_194 = arith.constant 6 : index
    %899 = memref.load %arg3[%c6_194] : memref<16xf32, #tpu.memory_space<smem>>
    %900 = vector.broadcast %899 : f32 to vector<8x256xf32>
    %901 = arith.addf %898, %900 : vector<8x256xf32>
    %cst_195 = arith.constant 0.000000e+00 : f32
    %902 = vector.broadcast %cst_195 : f32 to vector<8x256xf32>
    %903 = arith.maximumf %901, %902 : vector<8x256xf32>
    %c6_196 = arith.constant 6 : index
    %c0_197 = arith.constant 0 : index
    %c0_198 = arith.constant 0 : index
    %904 = vector.load %arg4[%c6_196, %c0_197, %c0_198] : memref<16x256x128xf32, #tpu.memory_space<vmem>>, vector<1x256x128xf32>
    %905 = vector.shape_cast %904 : vector<1x256x128xf32> to vector<256x128xf32>
    %cst_199 = arith.constant dense<0.000000e+00> : vector<8x128xf32>
    %906 = tpu.matmul %903, %905, %cst_199 {dimension_numbers = #tpu.dot_dimension_numbers<[1], [0], [0], [1], [0, 0, 1, 1], [], []>} : vector<8x256xf32>, vector<256x128xf32>, vector<8x128xf32> -> vector<8x128xf32>
    %907 = arith.addf %782, %906 : vector<8x128xf32>
    %c7_200 = arith.constant 7 : index
    %c0_201 = arith.constant 0 : index
    %908 = memref.load %arg2[%c7_200, %c0_201] : memref<16x9xf32, #tpu.memory_space<smem>>
    %c7_202 = arith.constant 7 : index
    %c1_203 = arith.constant 1 : index
    %909 = memref.load %arg2[%c7_202, %c1_203] : memref<16x9xf32, #tpu.memory_space<smem>>
    %c7_204 = arith.constant 7 : index
    %c2_205 = arith.constant 2 : index
    %910 = memref.load %arg2[%c7_204, %c2_205] : memref<16x9xf32, #tpu.memory_space<smem>>
    %c7_206 = arith.constant 7 : index
    %c3_207 = arith.constant 3 : index
    %911 = memref.load %arg2[%c7_206, %c3_207] : memref<16x9xf32, #tpu.memory_space<smem>>
    %c7_208 = arith.constant 7 : index
    %c4_209 = arith.constant 4 : index
    %912 = memref.load %arg2[%c7_208, %c4_209] : memref<16x9xf32, #tpu.memory_space<smem>>
    %c7_210 = arith.constant 7 : index
    %c5_211 = arith.constant 5 : index
    %913 = memref.load %arg2[%c7_210, %c5_211] : memref<16x9xf32, #tpu.memory_space<smem>>
    %c7_212 = arith.constant 7 : index
    %c6_213 = arith.constant 6 : index
    %914 = memref.load %arg2[%c7_212, %c6_213] : memref<16x9xf32, #tpu.memory_space<smem>>
    %c7_214 = arith.constant 7 : index
    %c7_215 = arith.constant 7 : index
    %915 = memref.load %arg2[%c7_214, %c7_215] : memref<16x9xf32, #tpu.memory_space<smem>>
    %c7_216 = arith.constant 7 : index
    %c8_217 = arith.constant 8 : index
    %916 = memref.load %arg2[%c7_216, %c8_217] : memref<16x9xf32, #tpu.memory_space<smem>>
    %917 = vector.broadcast %908 : f32 to vector<8x256xf32>
    %918 = arith.mulf %1, %917 : vector<8x256xf32>
    %919 = vector.broadcast %909 : f32 to vector<8x256xf32>
    %920 = arith.mulf %3, %919 : vector<8x256xf32>
    %921 = arith.addf %918, %920 : vector<8x256xf32>
    %922 = vector.broadcast %910 : f32 to vector<8x256xf32>
    %923 = arith.mulf %5, %922 : vector<8x256xf32>
    %924 = arith.addf %921, %923 : vector<8x256xf32>
    %925 = vector.broadcast %911 : f32 to vector<8x256xf32>
    %926 = arith.mulf %9, %925 : vector<8x256xf32>
    %927 = arith.addf %924, %926 : vector<8x256xf32>
    %928 = vector.broadcast %912 : f32 to vector<8x256xf32>
    %929 = arith.mulf %11, %928 : vector<8x256xf32>
    %930 = arith.addf %927, %929 : vector<8x256xf32>
    %931 = vector.broadcast %913 : f32 to vector<8x256xf32>
    %932 = arith.mulf %13, %931 : vector<8x256xf32>
    %933 = arith.addf %930, %932 : vector<8x256xf32>
    %934 = vector.broadcast %914 : f32 to vector<8x256xf32>
    %935 = arith.mulf %17, %934 : vector<8x256xf32>
    %936 = arith.addf %933, %935 : vector<8x256xf32>
    %937 = vector.broadcast %915 : f32 to vector<8x256xf32>
    %938 = arith.mulf %19, %937 : vector<8x256xf32>
    %939 = arith.addf %936, %938 : vector<8x256xf32>
    %940 = vector.broadcast %916 : f32 to vector<8x256xf32>
    %941 = arith.mulf %21, %940 : vector<8x256xf32>
    %942 = arith.addf %939, %941 : vector<8x256xf32>
    %943 = vector.broadcast %908 : f32 to vector<8x256xf32>
    %944 = arith.mulf %3, %943 : vector<8x256xf32>
    %945 = vector.broadcast %909 : f32 to vector<8x256xf32>
    %946 = arith.mulf %5, %945 : vector<8x256xf32>
    %947 = arith.addf %944, %946 : vector<8x256xf32>
    %948 = vector.broadcast %910 : f32 to vector<8x256xf32>
    %949 = arith.mulf %7, %948 : vector<8x256xf32>
    %950 = arith.addf %947, %949 : vector<8x256xf32>
    %951 = vector.broadcast %911 : f32 to vector<8x256xf32>
    %952 = arith.mulf %11, %951 : vector<8x256xf32>
    %953 = arith.addf %950, %952 : vector<8x256xf32>
    %954 = vector.broadcast %912 : f32 to vector<8x256xf32>
    %955 = arith.mulf %13, %954 : vector<8x256xf32>
    %956 = arith.addf %953, %955 : vector<8x256xf32>
    %957 = vector.broadcast %913 : f32 to vector<8x256xf32>
    %958 = arith.mulf %15, %957 : vector<8x256xf32>
    %959 = arith.addf %956, %958 : vector<8x256xf32>
    %960 = vector.broadcast %914 : f32 to vector<8x256xf32>
    %961 = arith.mulf %19, %960 : vector<8x256xf32>
    %962 = arith.addf %959, %961 : vector<8x256xf32>
    %963 = vector.broadcast %915 : f32 to vector<8x256xf32>
    %964 = arith.mulf %21, %963 : vector<8x256xf32>
    %965 = arith.addf %962, %964 : vector<8x256xf32>
    %966 = vector.broadcast %916 : f32 to vector<8x256xf32>
    %967 = arith.mulf %23, %966 : vector<8x256xf32>
    %968 = arith.addf %965, %967 : vector<8x256xf32>
    %969 = vector.broadcast %908 : f32 to vector<8x256xf32>
    %970 = arith.mulf %9, %969 : vector<8x256xf32>
    %971 = vector.broadcast %909 : f32 to vector<8x256xf32>
    %972 = arith.mulf %11, %971 : vector<8x256xf32>
    %973 = arith.addf %970, %972 : vector<8x256xf32>
    %974 = vector.broadcast %910 : f32 to vector<8x256xf32>
    %975 = arith.mulf %13, %974 : vector<8x256xf32>
    %976 = arith.addf %973, %975 : vector<8x256xf32>
    %977 = vector.broadcast %911 : f32 to vector<8x256xf32>
    %978 = arith.mulf %17, %977 : vector<8x256xf32>
    %979 = arith.addf %976, %978 : vector<8x256xf32>
    %980 = vector.broadcast %912 : f32 to vector<8x256xf32>
    %981 = arith.mulf %19, %980 : vector<8x256xf32>
    %982 = arith.addf %979, %981 : vector<8x256xf32>
    %983 = vector.broadcast %913 : f32 to vector<8x256xf32>
    %984 = arith.mulf %21, %983 : vector<8x256xf32>
    %985 = arith.addf %982, %984 : vector<8x256xf32>
    %986 = vector.broadcast %914 : f32 to vector<8x256xf32>
    %987 = arith.mulf %25, %986 : vector<8x256xf32>
    %988 = arith.addf %985, %987 : vector<8x256xf32>
    %989 = vector.broadcast %915 : f32 to vector<8x256xf32>
    %990 = arith.mulf %27, %989 : vector<8x256xf32>
    %991 = arith.addf %988, %990 : vector<8x256xf32>
    %992 = vector.broadcast %916 : f32 to vector<8x256xf32>
    %993 = arith.mulf %29, %992 : vector<8x256xf32>
    %994 = arith.addf %991, %993 : vector<8x256xf32>
    %995 = vector.broadcast %908 : f32 to vector<8x256xf32>
    %996 = arith.mulf %11, %995 : vector<8x256xf32>
    %997 = vector.broadcast %909 : f32 to vector<8x256xf32>
    %998 = arith.mulf %13, %997 : vector<8x256xf32>
    %999 = arith.addf %996, %998 : vector<8x256xf32>
    %1000 = vector.broadcast %910 : f32 to vector<8x256xf32>
    %1001 = arith.mulf %15, %1000 : vector<8x256xf32>
    %1002 = arith.addf %999, %1001 : vector<8x256xf32>
    %1003 = vector.broadcast %911 : f32 to vector<8x256xf32>
    %1004 = arith.mulf %19, %1003 : vector<8x256xf32>
    %1005 = arith.addf %1002, %1004 : vector<8x256xf32>
    %1006 = vector.broadcast %912 : f32 to vector<8x256xf32>
    %1007 = arith.mulf %21, %1006 : vector<8x256xf32>
    %1008 = arith.addf %1005, %1007 : vector<8x256xf32>
    %1009 = vector.broadcast %913 : f32 to vector<8x256xf32>
    %1010 = arith.mulf %23, %1009 : vector<8x256xf32>
    %1011 = arith.addf %1008, %1010 : vector<8x256xf32>
    %1012 = vector.broadcast %914 : f32 to vector<8x256xf32>
    %1013 = arith.mulf %27, %1012 : vector<8x256xf32>
    %1014 = arith.addf %1011, %1013 : vector<8x256xf32>
    %1015 = vector.broadcast %915 : f32 to vector<8x256xf32>
    %1016 = arith.mulf %29, %1015 : vector<8x256xf32>
    %1017 = arith.addf %1014, %1016 : vector<8x256xf32>
    %1018 = vector.broadcast %916 : f32 to vector<8x256xf32>
    %1019 = arith.mulf %31, %1018 : vector<8x256xf32>
    %1020 = arith.addf %1017, %1019 : vector<8x256xf32>
    %1021 = arith.maximumf %942, %968 : vector<8x256xf32>
    %1022 = arith.maximumf %994, %1020 : vector<8x256xf32>
    %1023 = arith.maximumf %1021, %1022 : vector<8x256xf32>
    %c7_218 = arith.constant 7 : index
    %1024 = memref.load %arg3[%c7_218] : memref<16xf32, #tpu.memory_space<smem>>
    %1025 = vector.broadcast %1024 : f32 to vector<8x256xf32>
    %1026 = arith.addf %1023, %1025 : vector<8x256xf32>
    %cst_219 = arith.constant 0.000000e+00 : f32
    %1027 = vector.broadcast %cst_219 : f32 to vector<8x256xf32>
    %1028 = arith.maximumf %1026, %1027 : vector<8x256xf32>
    %c7_220 = arith.constant 7 : index
    %c0_221 = arith.constant 0 : index
    %c0_222 = arith.constant 0 : index
    %1029 = vector.load %arg4[%c7_220, %c0_221, %c0_222] : memref<16x256x128xf32, #tpu.memory_space<vmem>>, vector<1x256x128xf32>
    %1030 = vector.shape_cast %1029 : vector<1x256x128xf32> to vector<256x128xf32>
    %cst_223 = arith.constant dense<0.000000e+00> : vector<8x128xf32>
    %1031 = tpu.matmul %1028, %1030, %cst_223 {dimension_numbers = #tpu.dot_dimension_numbers<[1], [0], [0], [1], [0, 0, 1, 1], [], []>} : vector<8x256xf32>, vector<256x128xf32>, vector<8x128xf32> -> vector<8x128xf32>
    %1032 = arith.addf %907, %1031 : vector<8x128xf32>
    %c8_224 = arith.constant 8 : index
    %c0_225 = arith.constant 0 : index
    %1033 = memref.load %arg2[%c8_224, %c0_225] : memref<16x9xf32, #tpu.memory_space<smem>>
    %c8_226 = arith.constant 8 : index
    %c1_227 = arith.constant 1 : index
    %1034 = memref.load %arg2[%c8_226, %c1_227] : memref<16x9xf32, #tpu.memory_space<smem>>
    %c8_228 = arith.constant 8 : index
    %c2_229 = arith.constant 2 : index
    %1035 = memref.load %arg2[%c8_228, %c2_229] : memref<16x9xf32, #tpu.memory_space<smem>>
    %c8_230 = arith.constant 8 : index
    %c3_231 = arith.constant 3 : index
    %1036 = memref.load %arg2[%c8_230, %c3_231] : memref<16x9xf32, #tpu.memory_space<smem>>
    %c8_232 = arith.constant 8 : index
    %c4_233 = arith.constant 4 : index
    %1037 = memref.load %arg2[%c8_232, %c4_233] : memref<16x9xf32, #tpu.memory_space<smem>>
    %c8_234 = arith.constant 8 : index
    %c5_235 = arith.constant 5 : index
    %1038 = memref.load %arg2[%c8_234, %c5_235] : memref<16x9xf32, #tpu.memory_space<smem>>
    %c8_236 = arith.constant 8 : index
    %c6_237 = arith.constant 6 : index
    %1039 = memref.load %arg2[%c8_236, %c6_237] : memref<16x9xf32, #tpu.memory_space<smem>>
    %c8_238 = arith.constant 8 : index
    %c7_239 = arith.constant 7 : index
    %1040 = memref.load %arg2[%c8_238, %c7_239] : memref<16x9xf32, #tpu.memory_space<smem>>
    %c8_240 = arith.constant 8 : index
    %c8_241 = arith.constant 8 : index
    %1041 = memref.load %arg2[%c8_240, %c8_241] : memref<16x9xf32, #tpu.memory_space<smem>>
    %1042 = vector.broadcast %1033 : f32 to vector<8x256xf32>
    %1043 = arith.mulf %1, %1042 : vector<8x256xf32>
    %1044 = vector.broadcast %1034 : f32 to vector<8x256xf32>
    %1045 = arith.mulf %3, %1044 : vector<8x256xf32>
    %1046 = arith.addf %1043, %1045 : vector<8x256xf32>
    %1047 = vector.broadcast %1035 : f32 to vector<8x256xf32>
    %1048 = arith.mulf %5, %1047 : vector<8x256xf32>
    %1049 = arith.addf %1046, %1048 : vector<8x256xf32>
    %1050 = vector.broadcast %1036 : f32 to vector<8x256xf32>
    %1051 = arith.mulf %9, %1050 : vector<8x256xf32>
    %1052 = arith.addf %1049, %1051 : vector<8x256xf32>
    %1053 = vector.broadcast %1037 : f32 to vector<8x256xf32>
    %1054 = arith.mulf %11, %1053 : vector<8x256xf32>
    %1055 = arith.addf %1052, %1054 : vector<8x256xf32>
    %1056 = vector.broadcast %1038 : f32 to vector<8x256xf32>
    %1057 = arith.mulf %13, %1056 : vector<8x256xf32>
    %1058 = arith.addf %1055, %1057 : vector<8x256xf32>
    %1059 = vector.broadcast %1039 : f32 to vector<8x256xf32>
    %1060 = arith.mulf %17, %1059 : vector<8x256xf32>
    %1061 = arith.addf %1058, %1060 : vector<8x256xf32>
    %1062 = vector.broadcast %1040 : f32 to vector<8x256xf32>
    %1063 = arith.mulf %19, %1062 : vector<8x256xf32>
    %1064 = arith.addf %1061, %1063 : vector<8x256xf32>
    %1065 = vector.broadcast %1041 : f32 to vector<8x256xf32>
    %1066 = arith.mulf %21, %1065 : vector<8x256xf32>
    %1067 = arith.addf %1064, %1066 : vector<8x256xf32>
    %1068 = vector.broadcast %1033 : f32 to vector<8x256xf32>
    %1069 = arith.mulf %3, %1068 : vector<8x256xf32>
    %1070 = vector.broadcast %1034 : f32 to vector<8x256xf32>
    %1071 = arith.mulf %5, %1070 : vector<8x256xf32>
    %1072 = arith.addf %1069, %1071 : vector<8x256xf32>
    %1073 = vector.broadcast %1035 : f32 to vector<8x256xf32>
    %1074 = arith.mulf %7, %1073 : vector<8x256xf32>
    %1075 = arith.addf %1072, %1074 : vector<8x256xf32>
    %1076 = vector.broadcast %1036 : f32 to vector<8x256xf32>
    %1077 = arith.mulf %11, %1076 : vector<8x256xf32>
    %1078 = arith.addf %1075, %1077 : vector<8x256xf32>
    %1079 = vector.broadcast %1037 : f32 to vector<8x256xf32>
    %1080 = arith.mulf %13, %1079 : vector<8x256xf32>
    %1081 = arith.addf %1078, %1080 : vector<8x256xf32>
    %1082 = vector.broadcast %1038 : f32 to vector<8x256xf32>
    %1083 = arith.mulf %15, %1082 : vector<8x256xf32>
    %1084 = arith.addf %1081, %1083 : vector<8x256xf32>
    %1085 = vector.broadcast %1039 : f32 to vector<8x256xf32>
    %1086 = arith.mulf %19, %1085 : vector<8x256xf32>
    %1087 = arith.addf %1084, %1086 : vector<8x256xf32>
    %1088 = vector.broadcast %1040 : f32 to vector<8x256xf32>
    %1089 = arith.mulf %21, %1088 : vector<8x256xf32>
    %1090 = arith.addf %1087, %1089 : vector<8x256xf32>
    %1091 = vector.broadcast %1041 : f32 to vector<8x256xf32>
    %1092 = arith.mulf %23, %1091 : vector<8x256xf32>
    %1093 = arith.addf %1090, %1092 : vector<8x256xf32>
    %1094 = vector.broadcast %1033 : f32 to vector<8x256xf32>
    %1095 = arith.mulf %9, %1094 : vector<8x256xf32>
    %1096 = vector.broadcast %1034 : f32 to vector<8x256xf32>
    %1097 = arith.mulf %11, %1096 : vector<8x256xf32>
    %1098 = arith.addf %1095, %1097 : vector<8x256xf32>
    %1099 = vector.broadcast %1035 : f32 to vector<8x256xf32>
    %1100 = arith.mulf %13, %1099 : vector<8x256xf32>
    %1101 = arith.addf %1098, %1100 : vector<8x256xf32>
    %1102 = vector.broadcast %1036 : f32 to vector<8x256xf32>
    %1103 = arith.mulf %17, %1102 : vector<8x256xf32>
    %1104 = arith.addf %1101, %1103 : vector<8x256xf32>
    %1105 = vector.broadcast %1037 : f32 to vector<8x256xf32>
    %1106 = arith.mulf %19, %1105 : vector<8x256xf32>
    %1107 = arith.addf %1104, %1106 : vector<8x256xf32>
    %1108 = vector.broadcast %1038 : f32 to vector<8x256xf32>
    %1109 = arith.mulf %21, %1108 : vector<8x256xf32>
    %1110 = arith.addf %1107, %1109 : vector<8x256xf32>
    %1111 = vector.broadcast %1039 : f32 to vector<8x256xf32>
    %1112 = arith.mulf %25, %1111 : vector<8x256xf32>
    %1113 = arith.addf %1110, %1112 : vector<8x256xf32>
    %1114 = vector.broadcast %1040 : f32 to vector<8x256xf32>
    %1115 = arith.mulf %27, %1114 : vector<8x256xf32>
    %1116 = arith.addf %1113, %1115 : vector<8x256xf32>
    %1117 = vector.broadcast %1041 : f32 to vector<8x256xf32>
    %1118 = arith.mulf %29, %1117 : vector<8x256xf32>
    %1119 = arith.addf %1116, %1118 : vector<8x256xf32>
    %1120 = vector.broadcast %1033 : f32 to vector<8x256xf32>
    %1121 = arith.mulf %11, %1120 : vector<8x256xf32>
    %1122 = vector.broadcast %1034 : f32 to vector<8x256xf32>
    %1123 = arith.mulf %13, %1122 : vector<8x256xf32>
    %1124 = arith.addf %1121, %1123 : vector<8x256xf32>
    %1125 = vector.broadcast %1035 : f32 to vector<8x256xf32>
    %1126 = arith.mulf %15, %1125 : vector<8x256xf32>
    %1127 = arith.addf %1124, %1126 : vector<8x256xf32>
    %1128 = vector.broadcast %1036 : f32 to vector<8x256xf32>
    %1129 = arith.mulf %19, %1128 : vector<8x256xf32>
    %1130 = arith.addf %1127, %1129 : vector<8x256xf32>
    %1131 = vector.broadcast %1037 : f32 to vector<8x256xf32>
    %1132 = arith.mulf %21, %1131 : vector<8x256xf32>
    %1133 = arith.addf %1130, %1132 : vector<8x256xf32>
    %1134 = vector.broadcast %1038 : f32 to vector<8x256xf32>
    %1135 = arith.mulf %23, %1134 : vector<8x256xf32>
    %1136 = arith.addf %1133, %1135 : vector<8x256xf32>
    %1137 = vector.broadcast %1039 : f32 to vector<8x256xf32>
    %1138 = arith.mulf %27, %1137 : vector<8x256xf32>
    %1139 = arith.addf %1136, %1138 : vector<8x256xf32>
    %1140 = vector.broadcast %1040 : f32 to vector<8x256xf32>
    %1141 = arith.mulf %29, %1140 : vector<8x256xf32>
    %1142 = arith.addf %1139, %1141 : vector<8x256xf32>
    %1143 = vector.broadcast %1041 : f32 to vector<8x256xf32>
    %1144 = arith.mulf %31, %1143 : vector<8x256xf32>
    %1145 = arith.addf %1142, %1144 : vector<8x256xf32>
    %1146 = arith.maximumf %1067, %1093 : vector<8x256xf32>
    %1147 = arith.maximumf %1119, %1145 : vector<8x256xf32>
    %1148 = arith.maximumf %1146, %1147 : vector<8x256xf32>
    %c8_242 = arith.constant 8 : index
    %1149 = memref.load %arg3[%c8_242] : memref<16xf32, #tpu.memory_space<smem>>
    %1150 = vector.broadcast %1149 : f32 to vector<8x256xf32>
    %1151 = arith.addf %1148, %1150 : vector<8x256xf32>
    %cst_243 = arith.constant 0.000000e+00 : f32
    %1152 = vector.broadcast %cst_243 : f32 to vector<8x256xf32>
    %1153 = arith.maximumf %1151, %1152 : vector<8x256xf32>
    %c8_244 = arith.constant 8 : index
    %c0_245 = arith.constant 0 : index
    %c0_246 = arith.constant 0 : index
    %1154 = vector.load %arg4[%c8_244, %c0_245, %c0_246] : memref<16x256x128xf32, #tpu.memory_space<vmem>>, vector<1x256x128xf32>
    %1155 = vector.shape_cast %1154 : vector<1x256x128xf32> to vector<256x128xf32>
    %cst_247 = arith.constant dense<0.000000e+00> : vector<8x128xf32>
    %1156 = tpu.matmul %1153, %1155, %cst_247 {dimension_numbers = #tpu.dot_dimension_numbers<[1], [0], [0], [1], [0, 0, 1, 1], [], []>} : vector<8x256xf32>, vector<256x128xf32>, vector<8x128xf32> -> vector<8x128xf32>
    %1157 = arith.addf %1032, %1156 : vector<8x128xf32>
    %c9_248 = arith.constant 9 : index
    %c0_249 = arith.constant 0 : index
    %1158 = memref.load %arg2[%c9_248, %c0_249] : memref<16x9xf32, #tpu.memory_space<smem>>
    %c9_250 = arith.constant 9 : index
    %c1_251 = arith.constant 1 : index
    %1159 = memref.load %arg2[%c9_250, %c1_251] : memref<16x9xf32, #tpu.memory_space<smem>>
    %c9_252 = arith.constant 9 : index
    %c2_253 = arith.constant 2 : index
    %1160 = memref.load %arg2[%c9_252, %c2_253] : memref<16x9xf32, #tpu.memory_space<smem>>
    %c9_254 = arith.constant 9 : index
    %c3_255 = arith.constant 3 : index
    %1161 = memref.load %arg2[%c9_254, %c3_255] : memref<16x9xf32, #tpu.memory_space<smem>>
    %c9_256 = arith.constant 9 : index
    %c4_257 = arith.constant 4 : index
    %1162 = memref.load %arg2[%c9_256, %c4_257] : memref<16x9xf32, #tpu.memory_space<smem>>
    %c9_258 = arith.constant 9 : index
    %c5_259 = arith.constant 5 : index
    %1163 = memref.load %arg2[%c9_258, %c5_259] : memref<16x9xf32, #tpu.memory_space<smem>>
    %c9_260 = arith.constant 9 : index
    %c6_261 = arith.constant 6 : index
    %1164 = memref.load %arg2[%c9_260, %c6_261] : memref<16x9xf32, #tpu.memory_space<smem>>
    %c9_262 = arith.constant 9 : index
    %c7_263 = arith.constant 7 : index
    %1165 = memref.load %arg2[%c9_262, %c7_263] : memref<16x9xf32, #tpu.memory_space<smem>>
    %c9_264 = arith.constant 9 : index
    %c8_265 = arith.constant 8 : index
    %1166 = memref.load %arg2[%c9_264, %c8_265] : memref<16x9xf32, #tpu.memory_space<smem>>
    %1167 = vector.broadcast %1158 : f32 to vector<8x256xf32>
    %1168 = arith.mulf %1, %1167 : vector<8x256xf32>
    %1169 = vector.broadcast %1159 : f32 to vector<8x256xf32>
    %1170 = arith.mulf %3, %1169 : vector<8x256xf32>
    %1171 = arith.addf %1168, %1170 : vector<8x256xf32>
    %1172 = vector.broadcast %1160 : f32 to vector<8x256xf32>
    %1173 = arith.mulf %5, %1172 : vector<8x256xf32>
    %1174 = arith.addf %1171, %1173 : vector<8x256xf32>
    %1175 = vector.broadcast %1161 : f32 to vector<8x256xf32>
    %1176 = arith.mulf %9, %1175 : vector<8x256xf32>
    %1177 = arith.addf %1174, %1176 : vector<8x256xf32>
    %1178 = vector.broadcast %1162 : f32 to vector<8x256xf32>
    %1179 = arith.mulf %11, %1178 : vector<8x256xf32>
    %1180 = arith.addf %1177, %1179 : vector<8x256xf32>
    %1181 = vector.broadcast %1163 : f32 to vector<8x256xf32>
    %1182 = arith.mulf %13, %1181 : vector<8x256xf32>
    %1183 = arith.addf %1180, %1182 : vector<8x256xf32>
    %1184 = vector.broadcast %1164 : f32 to vector<8x256xf32>
    %1185 = arith.mulf %17, %1184 : vector<8x256xf32>
    %1186 = arith.addf %1183, %1185 : vector<8x256xf32>
    %1187 = vector.broadcast %1165 : f32 to vector<8x256xf32>
    %1188 = arith.mulf %19, %1187 : vector<8x256xf32>
    %1189 = arith.addf %1186, %1188 : vector<8x256xf32>
    %1190 = vector.broadcast %1166 : f32 to vector<8x256xf32>
    %1191 = arith.mulf %21, %1190 : vector<8x256xf32>
    %1192 = arith.addf %1189, %1191 : vector<8x256xf32>
    %1193 = vector.broadcast %1158 : f32 to vector<8x256xf32>
    %1194 = arith.mulf %3, %1193 : vector<8x256xf32>
    %1195 = vector.broadcast %1159 : f32 to vector<8x256xf32>
    %1196 = arith.mulf %5, %1195 : vector<8x256xf32>
    %1197 = arith.addf %1194, %1196 : vector<8x256xf32>
    %1198 = vector.broadcast %1160 : f32 to vector<8x256xf32>
    %1199 = arith.mulf %7, %1198 : vector<8x256xf32>
    %1200 = arith.addf %1197, %1199 : vector<8x256xf32>
    %1201 = vector.broadcast %1161 : f32 to vector<8x256xf32>
    %1202 = arith.mulf %11, %1201 : vector<8x256xf32>
    %1203 = arith.addf %1200, %1202 : vector<8x256xf32>
    %1204 = vector.broadcast %1162 : f32 to vector<8x256xf32>
    %1205 = arith.mulf %13, %1204 : vector<8x256xf32>
    %1206 = arith.addf %1203, %1205 : vector<8x256xf32>
    %1207 = vector.broadcast %1163 : f32 to vector<8x256xf32>
    %1208 = arith.mulf %15, %1207 : vector<8x256xf32>
    %1209 = arith.addf %1206, %1208 : vector<8x256xf32>
    %1210 = vector.broadcast %1164 : f32 to vector<8x256xf32>
    %1211 = arith.mulf %19, %1210 : vector<8x256xf32>
    %1212 = arith.addf %1209, %1211 : vector<8x256xf32>
    %1213 = vector.broadcast %1165 : f32 to vector<8x256xf32>
    %1214 = arith.mulf %21, %1213 : vector<8x256xf32>
    %1215 = arith.addf %1212, %1214 : vector<8x256xf32>
    %1216 = vector.broadcast %1166 : f32 to vector<8x256xf32>
    %1217 = arith.mulf %23, %1216 : vector<8x256xf32>
    %1218 = arith.addf %1215, %1217 : vector<8x256xf32>
    %1219 = vector.broadcast %1158 : f32 to vector<8x256xf32>
    %1220 = arith.mulf %9, %1219 : vector<8x256xf32>
    %1221 = vector.broadcast %1159 : f32 to vector<8x256xf32>
    %1222 = arith.mulf %11, %1221 : vector<8x256xf32>
    %1223 = arith.addf %1220, %1222 : vector<8x256xf32>
    %1224 = vector.broadcast %1160 : f32 to vector<8x256xf32>
    %1225 = arith.mulf %13, %1224 : vector<8x256xf32>
    %1226 = arith.addf %1223, %1225 : vector<8x256xf32>
    %1227 = vector.broadcast %1161 : f32 to vector<8x256xf32>
    %1228 = arith.mulf %17, %1227 : vector<8x256xf32>
    %1229 = arith.addf %1226, %1228 : vector<8x256xf32>
    %1230 = vector.broadcast %1162 : f32 to vector<8x256xf32>
    %1231 = arith.mulf %19, %1230 : vector<8x256xf32>
    %1232 = arith.addf %1229, %1231 : vector<8x256xf32>
    %1233 = vector.broadcast %1163 : f32 to vector<8x256xf32>
    %1234 = arith.mulf %21, %1233 : vector<8x256xf32>
    %1235 = arith.addf %1232, %1234 : vector<8x256xf32>
    %1236 = vector.broadcast %1164 : f32 to vector<8x256xf32>
    %1237 = arith.mulf %25, %1236 : vector<8x256xf32>
    %1238 = arith.addf %1235, %1237 : vector<8x256xf32>
    %1239 = vector.broadcast %1165 : f32 to vector<8x256xf32>
    %1240 = arith.mulf %27, %1239 : vector<8x256xf32>
    %1241 = arith.addf %1238, %1240 : vector<8x256xf32>
    %1242 = vector.broadcast %1166 : f32 to vector<8x256xf32>
    %1243 = arith.mulf %29, %1242 : vector<8x256xf32>
    %1244 = arith.addf %1241, %1243 : vector<8x256xf32>
    %1245 = vector.broadcast %1158 : f32 to vector<8x256xf32>
    %1246 = arith.mulf %11, %1245 : vector<8x256xf32>
    %1247 = vector.broadcast %1159 : f32 to vector<8x256xf32>
    %1248 = arith.mulf %13, %1247 : vector<8x256xf32>
    %1249 = arith.addf %1246, %1248 : vector<8x256xf32>
    %1250 = vector.broadcast %1160 : f32 to vector<8x256xf32>
    %1251 = arith.mulf %15, %1250 : vector<8x256xf32>
    %1252 = arith.addf %1249, %1251 : vector<8x256xf32>
    %1253 = vector.broadcast %1161 : f32 to vector<8x256xf32>
    %1254 = arith.mulf %19, %1253 : vector<8x256xf32>
    %1255 = arith.addf %1252, %1254 : vector<8x256xf32>
    %1256 = vector.broadcast %1162 : f32 to vector<8x256xf32>
    %1257 = arith.mulf %21, %1256 : vector<8x256xf32>
    %1258 = arith.addf %1255, %1257 : vector<8x256xf32>
    %1259 = vector.broadcast %1163 : f32 to vector<8x256xf32>
    %1260 = arith.mulf %23, %1259 : vector<8x256xf32>
    %1261 = arith.addf %1258, %1260 : vector<8x256xf32>
    %1262 = vector.broadcast %1164 : f32 to vector<8x256xf32>
    %1263 = arith.mulf %27, %1262 : vector<8x256xf32>
    %1264 = arith.addf %1261, %1263 : vector<8x256xf32>
    %1265 = vector.broadcast %1165 : f32 to vector<8x256xf32>
    %1266 = arith.mulf %29, %1265 : vector<8x256xf32>
    %1267 = arith.addf %1264, %1266 : vector<8x256xf32>
    %1268 = vector.broadcast %1166 : f32 to vector<8x256xf32>
    %1269 = arith.mulf %31, %1268 : vector<8x256xf32>
    %1270 = arith.addf %1267, %1269 : vector<8x256xf32>
    %1271 = arith.maximumf %1192, %1218 : vector<8x256xf32>
    %1272 = arith.maximumf %1244, %1270 : vector<8x256xf32>
    %1273 = arith.maximumf %1271, %1272 : vector<8x256xf32>
    %c9_266 = arith.constant 9 : index
    %1274 = memref.load %arg3[%c9_266] : memref<16xf32, #tpu.memory_space<smem>>
    %1275 = vector.broadcast %1274 : f32 to vector<8x256xf32>
    %1276 = arith.addf %1273, %1275 : vector<8x256xf32>
    %cst_267 = arith.constant 0.000000e+00 : f32
    %1277 = vector.broadcast %cst_267 : f32 to vector<8x256xf32>
    %1278 = arith.maximumf %1276, %1277 : vector<8x256xf32>
    %c9_268 = arith.constant 9 : index
    %c0_269 = arith.constant 0 : index
    %c0_270 = arith.constant 0 : index
    %1279 = vector.load %arg4[%c9_268, %c0_269, %c0_270] : memref<16x256x128xf32, #tpu.memory_space<vmem>>, vector<1x256x128xf32>
    %1280 = vector.shape_cast %1279 : vector<1x256x128xf32> to vector<256x128xf32>
    %cst_271 = arith.constant dense<0.000000e+00> : vector<8x128xf32>
    %1281 = tpu.matmul %1278, %1280, %cst_271 {dimension_numbers = #tpu.dot_dimension_numbers<[1], [0], [0], [1], [0, 0, 1, 1], [], []>} : vector<8x256xf32>, vector<256x128xf32>, vector<8x128xf32> -> vector<8x128xf32>
    %1282 = arith.addf %1157, %1281 : vector<8x128xf32>
    %c10_272 = arith.constant 10 : index
    %c0_273 = arith.constant 0 : index
    %1283 = memref.load %arg2[%c10_272, %c0_273] : memref<16x9xf32, #tpu.memory_space<smem>>
    %c10_274 = arith.constant 10 : index
    %c1_275 = arith.constant 1 : index
    %1284 = memref.load %arg2[%c10_274, %c1_275] : memref<16x9xf32, #tpu.memory_space<smem>>
    %c10_276 = arith.constant 10 : index
    %c2_277 = arith.constant 2 : index
    %1285 = memref.load %arg2[%c10_276, %c2_277] : memref<16x9xf32, #tpu.memory_space<smem>>
    %c10_278 = arith.constant 10 : index
    %c3_279 = arith.constant 3 : index
    %1286 = memref.load %arg2[%c10_278, %c3_279] : memref<16x9xf32, #tpu.memory_space<smem>>
    %c10_280 = arith.constant 10 : index
    %c4_281 = arith.constant 4 : index
    %1287 = memref.load %arg2[%c10_280, %c4_281] : memref<16x9xf32, #tpu.memory_space<smem>>
    %c10_282 = arith.constant 10 : index
    %c5_283 = arith.constant 5 : index
    %1288 = memref.load %arg2[%c10_282, %c5_283] : memref<16x9xf32, #tpu.memory_space<smem>>
    %c10_284 = arith.constant 10 : index
    %c6_285 = arith.constant 6 : index
    %1289 = memref.load %arg2[%c10_284, %c6_285] : memref<16x9xf32, #tpu.memory_space<smem>>
    %c10_286 = arith.constant 10 : index
    %c7_287 = arith.constant 7 : index
    %1290 = memref.load %arg2[%c10_286, %c7_287] : memref<16x9xf32, #tpu.memory_space<smem>>
    %c10_288 = arith.constant 10 : index
    %c8_289 = arith.constant 8 : index
    %1291 = memref.load %arg2[%c10_288, %c8_289] : memref<16x9xf32, #tpu.memory_space<smem>>
    %1292 = vector.broadcast %1283 : f32 to vector<8x256xf32>
    %1293 = arith.mulf %1, %1292 : vector<8x256xf32>
    %1294 = vector.broadcast %1284 : f32 to vector<8x256xf32>
    %1295 = arith.mulf %3, %1294 : vector<8x256xf32>
    %1296 = arith.addf %1293, %1295 : vector<8x256xf32>
    %1297 = vector.broadcast %1285 : f32 to vector<8x256xf32>
    %1298 = arith.mulf %5, %1297 : vector<8x256xf32>
    %1299 = arith.addf %1296, %1298 : vector<8x256xf32>
    %1300 = vector.broadcast %1286 : f32 to vector<8x256xf32>
    %1301 = arith.mulf %9, %1300 : vector<8x256xf32>
    %1302 = arith.addf %1299, %1301 : vector<8x256xf32>
    %1303 = vector.broadcast %1287 : f32 to vector<8x256xf32>
    %1304 = arith.mulf %11, %1303 : vector<8x256xf32>
    %1305 = arith.addf %1302, %1304 : vector<8x256xf32>
    %1306 = vector.broadcast %1288 : f32 to vector<8x256xf32>
    %1307 = arith.mulf %13, %1306 : vector<8x256xf32>
    %1308 = arith.addf %1305, %1307 : vector<8x256xf32>
    %1309 = vector.broadcast %1289 : f32 to vector<8x256xf32>
    %1310 = arith.mulf %17, %1309 : vector<8x256xf32>
    %1311 = arith.addf %1308, %1310 : vector<8x256xf32>
    %1312 = vector.broadcast %1290 : f32 to vector<8x256xf32>
    %1313 = arith.mulf %19, %1312 : vector<8x256xf32>
    %1314 = arith.addf %1311, %1313 : vector<8x256xf32>
    %1315 = vector.broadcast %1291 : f32 to vector<8x256xf32>
    %1316 = arith.mulf %21, %1315 : vector<8x256xf32>
    %1317 = arith.addf %1314, %1316 : vector<8x256xf32>
    %1318 = vector.broadcast %1283 : f32 to vector<8x256xf32>
    %1319 = arith.mulf %3, %1318 : vector<8x256xf32>
    %1320 = vector.broadcast %1284 : f32 to vector<8x256xf32>
    %1321 = arith.mulf %5, %1320 : vector<8x256xf32>
    %1322 = arith.addf %1319, %1321 : vector<8x256xf32>
    %1323 = vector.broadcast %1285 : f32 to vector<8x256xf32>
    %1324 = arith.mulf %7, %1323 : vector<8x256xf32>
    %1325 = arith.addf %1322, %1324 : vector<8x256xf32>
    %1326 = vector.broadcast %1286 : f32 to vector<8x256xf32>
    %1327 = arith.mulf %11, %1326 : vector<8x256xf32>
    %1328 = arith.addf %1325, %1327 : vector<8x256xf32>
    %1329 = vector.broadcast %1287 : f32 to vector<8x256xf32>
    %1330 = arith.mulf %13, %1329 : vector<8x256xf32>
    %1331 = arith.addf %1328, %1330 : vector<8x256xf32>
    %1332 = vector.broadcast %1288 : f32 to vector<8x256xf32>
    %1333 = arith.mulf %15, %1332 : vector<8x256xf32>
    %1334 = arith.addf %1331, %1333 : vector<8x256xf32>
    %1335 = vector.broadcast %1289 : f32 to vector<8x256xf32>
    %1336 = arith.mulf %19, %1335 : vector<8x256xf32>
    %1337 = arith.addf %1334, %1336 : vector<8x256xf32>
    %1338 = vector.broadcast %1290 : f32 to vector<8x256xf32>
    %1339 = arith.mulf %21, %1338 : vector<8x256xf32>
    %1340 = arith.addf %1337, %1339 : vector<8x256xf32>
    %1341 = vector.broadcast %1291 : f32 to vector<8x256xf32>
    %1342 = arith.mulf %23, %1341 : vector<8x256xf32>
    %1343 = arith.addf %1340, %1342 : vector<8x256xf32>
    %1344 = vector.broadcast %1283 : f32 to vector<8x256xf32>
    %1345 = arith.mulf %9, %1344 : vector<8x256xf32>
    %1346 = vector.broadcast %1284 : f32 to vector<8x256xf32>
    %1347 = arith.mulf %11, %1346 : vector<8x256xf32>
    %1348 = arith.addf %1345, %1347 : vector<8x256xf32>
    %1349 = vector.broadcast %1285 : f32 to vector<8x256xf32>
    %1350 = arith.mulf %13, %1349 : vector<8x256xf32>
    %1351 = arith.addf %1348, %1350 : vector<8x256xf32>
    %1352 = vector.broadcast %1286 : f32 to vector<8x256xf32>
    %1353 = arith.mulf %17, %1352 : vector<8x256xf32>
    %1354 = arith.addf %1351, %1353 : vector<8x256xf32>
    %1355 = vector.broadcast %1287 : f32 to vector<8x256xf32>
    %1356 = arith.mulf %19, %1355 : vector<8x256xf32>
    %1357 = arith.addf %1354, %1356 : vector<8x256xf32>
    %1358 = vector.broadcast %1288 : f32 to vector<8x256xf32>
    %1359 = arith.mulf %21, %1358 : vector<8x256xf32>
    %1360 = arith.addf %1357, %1359 : vector<8x256xf32>
    %1361 = vector.broadcast %1289 : f32 to vector<8x256xf32>
    %1362 = arith.mulf %25, %1361 : vector<8x256xf32>
    %1363 = arith.addf %1360, %1362 : vector<8x256xf32>
    %1364 = vector.broadcast %1290 : f32 to vector<8x256xf32>
    %1365 = arith.mulf %27, %1364 : vector<8x256xf32>
    %1366 = arith.addf %1363, %1365 : vector<8x256xf32>
    %1367 = vector.broadcast %1291 : f32 to vector<8x256xf32>
    %1368 = arith.mulf %29, %1367 : vector<8x256xf32>
    %1369 = arith.addf %1366, %1368 : vector<8x256xf32>
    %1370 = vector.broadcast %1283 : f32 to vector<8x256xf32>
    %1371 = arith.mulf %11, %1370 : vector<8x256xf32>
    %1372 = vector.broadcast %1284 : f32 to vector<8x256xf32>
    %1373 = arith.mulf %13, %1372 : vector<8x256xf32>
    %1374 = arith.addf %1371, %1373 : vector<8x256xf32>
    %1375 = vector.broadcast %1285 : f32 to vector<8x256xf32>
    %1376 = arith.mulf %15, %1375 : vector<8x256xf32>
    %1377 = arith.addf %1374, %1376 : vector<8x256xf32>
    %1378 = vector.broadcast %1286 : f32 to vector<8x256xf32>
    %1379 = arith.mulf %19, %1378 : vector<8x256xf32>
    %1380 = arith.addf %1377, %1379 : vector<8x256xf32>
    %1381 = vector.broadcast %1287 : f32 to vector<8x256xf32>
    %1382 = arith.mulf %21, %1381 : vector<8x256xf32>
    %1383 = arith.addf %1380, %1382 : vector<8x256xf32>
    %1384 = vector.broadcast %1288 : f32 to vector<8x256xf32>
    %1385 = arith.mulf %23, %1384 : vector<8x256xf32>
    %1386 = arith.addf %1383, %1385 : vector<8x256xf32>
    %1387 = vector.broadcast %1289 : f32 to vector<8x256xf32>
    %1388 = arith.mulf %27, %1387 : vector<8x256xf32>
    %1389 = arith.addf %1386, %1388 : vector<8x256xf32>
    %1390 = vector.broadcast %1290 : f32 to vector<8x256xf32>
    %1391 = arith.mulf %29, %1390 : vector<8x256xf32>
    %1392 = arith.addf %1389, %1391 : vector<8x256xf32>
    %1393 = vector.broadcast %1291 : f32 to vector<8x256xf32>
    %1394 = arith.mulf %31, %1393 : vector<8x256xf32>
    %1395 = arith.addf %1392, %1394 : vector<8x256xf32>
    %1396 = arith.maximumf %1317, %1343 : vector<8x256xf32>
    %1397 = arith.maximumf %1369, %1395 : vector<8x256xf32>
    %1398 = arith.maximumf %1396, %1397 : vector<8x256xf32>
    %c10_290 = arith.constant 10 : index
    %1399 = memref.load %arg3[%c10_290] : memref<16xf32, #tpu.memory_space<smem>>
    %1400 = vector.broadcast %1399 : f32 to vector<8x256xf32>
    %1401 = arith.addf %1398, %1400 : vector<8x256xf32>
    %cst_291 = arith.constant 0.000000e+00 : f32
    %1402 = vector.broadcast %cst_291 : f32 to vector<8x256xf32>
    %1403 = arith.maximumf %1401, %1402 : vector<8x256xf32>
    %c10_292 = arith.constant 10 : index
    %c0_293 = arith.constant 0 : index
    %c0_294 = arith.constant 0 : index
    %1404 = vector.load %arg4[%c10_292, %c0_293, %c0_294] : memref<16x256x128xf32, #tpu.memory_space<vmem>>, vector<1x256x128xf32>
    %1405 = vector.shape_cast %1404 : vector<1x256x128xf32> to vector<256x128xf32>
    %cst_295 = arith.constant dense<0.000000e+00> : vector<8x128xf32>
    %1406 = tpu.matmul %1403, %1405, %cst_295 {dimension_numbers = #tpu.dot_dimension_numbers<[1], [0], [0], [1], [0, 0, 1, 1], [], []>} : vector<8x256xf32>, vector<256x128xf32>, vector<8x128xf32> -> vector<8x128xf32>
    %1407 = arith.addf %1282, %1406 : vector<8x128xf32>
    %c11_296 = arith.constant 11 : index
    %c0_297 = arith.constant 0 : index
    %1408 = memref.load %arg2[%c11_296, %c0_297] : memref<16x9xf32, #tpu.memory_space<smem>>
    %c11_298 = arith.constant 11 : index
    %c1_299 = arith.constant 1 : index
    %1409 = memref.load %arg2[%c11_298, %c1_299] : memref<16x9xf32, #tpu.memory_space<smem>>
    %c11_300 = arith.constant 11 : index
    %c2_301 = arith.constant 2 : index
    %1410 = memref.load %arg2[%c11_300, %c2_301] : memref<16x9xf32, #tpu.memory_space<smem>>
    %c11_302 = arith.constant 11 : index
    %c3_303 = arith.constant 3 : index
    %1411 = memref.load %arg2[%c11_302, %c3_303] : memref<16x9xf32, #tpu.memory_space<smem>>
    %c11_304 = arith.constant 11 : index
    %c4_305 = arith.constant 4 : index
    %1412 = memref.load %arg2[%c11_304, %c4_305] : memref<16x9xf32, #tpu.memory_space<smem>>
    %c11_306 = arith.constant 11 : index
    %c5_307 = arith.constant 5 : index
    %1413 = memref.load %arg2[%c11_306, %c5_307] : memref<16x9xf32, #tpu.memory_space<smem>>
    %c11_308 = arith.constant 11 : index
    %c6_309 = arith.constant 6 : index
    %1414 = memref.load %arg2[%c11_308, %c6_309] : memref<16x9xf32, #tpu.memory_space<smem>>
    %c11_310 = arith.constant 11 : index
    %c7_311 = arith.constant 7 : index
    %1415 = memref.load %arg2[%c11_310, %c7_311] : memref<16x9xf32, #tpu.memory_space<smem>>
    %c11_312 = arith.constant 11 : index
    %c8_313 = arith.constant 8 : index
    %1416 = memref.load %arg2[%c11_312, %c8_313] : memref<16x9xf32, #tpu.memory_space<smem>>
    %1417 = vector.broadcast %1408 : f32 to vector<8x256xf32>
    %1418 = arith.mulf %1, %1417 : vector<8x256xf32>
    %1419 = vector.broadcast %1409 : f32 to vector<8x256xf32>
    %1420 = arith.mulf %3, %1419 : vector<8x256xf32>
    %1421 = arith.addf %1418, %1420 : vector<8x256xf32>
    %1422 = vector.broadcast %1410 : f32 to vector<8x256xf32>
    %1423 = arith.mulf %5, %1422 : vector<8x256xf32>
    %1424 = arith.addf %1421, %1423 : vector<8x256xf32>
    %1425 = vector.broadcast %1411 : f32 to vector<8x256xf32>
    %1426 = arith.mulf %9, %1425 : vector<8x256xf32>
    %1427 = arith.addf %1424, %1426 : vector<8x256xf32>
    %1428 = vector.broadcast %1412 : f32 to vector<8x256xf32>
    %1429 = arith.mulf %11, %1428 : vector<8x256xf32>
    %1430 = arith.addf %1427, %1429 : vector<8x256xf32>
    %1431 = vector.broadcast %1413 : f32 to vector<8x256xf32>
    %1432 = arith.mulf %13, %1431 : vector<8x256xf32>
    %1433 = arith.addf %1430, %1432 : vector<8x256xf32>
    %1434 = vector.broadcast %1414 : f32 to vector<8x256xf32>
    %1435 = arith.mulf %17, %1434 : vector<8x256xf32>
    %1436 = arith.addf %1433, %1435 : vector<8x256xf32>
    %1437 = vector.broadcast %1415 : f32 to vector<8x256xf32>
    %1438 = arith.mulf %19, %1437 : vector<8x256xf32>
    %1439 = arith.addf %1436, %1438 : vector<8x256xf32>
    %1440 = vector.broadcast %1416 : f32 to vector<8x256xf32>
    %1441 = arith.mulf %21, %1440 : vector<8x256xf32>
    %1442 = arith.addf %1439, %1441 : vector<8x256xf32>
    %1443 = vector.broadcast %1408 : f32 to vector<8x256xf32>
    %1444 = arith.mulf %3, %1443 : vector<8x256xf32>
    %1445 = vector.broadcast %1409 : f32 to vector<8x256xf32>
    %1446 = arith.mulf %5, %1445 : vector<8x256xf32>
    %1447 = arith.addf %1444, %1446 : vector<8x256xf32>
    %1448 = vector.broadcast %1410 : f32 to vector<8x256xf32>
    %1449 = arith.mulf %7, %1448 : vector<8x256xf32>
    %1450 = arith.addf %1447, %1449 : vector<8x256xf32>
    %1451 = vector.broadcast %1411 : f32 to vector<8x256xf32>
    %1452 = arith.mulf %11, %1451 : vector<8x256xf32>
    %1453 = arith.addf %1450, %1452 : vector<8x256xf32>
    %1454 = vector.broadcast %1412 : f32 to vector<8x256xf32>
    %1455 = arith.mulf %13, %1454 : vector<8x256xf32>
    %1456 = arith.addf %1453, %1455 : vector<8x256xf32>
    %1457 = vector.broadcast %1413 : f32 to vector<8x256xf32>
    %1458 = arith.mulf %15, %1457 : vector<8x256xf32>
    %1459 = arith.addf %1456, %1458 : vector<8x256xf32>
    %1460 = vector.broadcast %1414 : f32 to vector<8x256xf32>
    %1461 = arith.mulf %19, %1460 : vector<8x256xf32>
    %1462 = arith.addf %1459, %1461 : vector<8x256xf32>
    %1463 = vector.broadcast %1415 : f32 to vector<8x256xf32>
    %1464 = arith.mulf %21, %1463 : vector<8x256xf32>
    %1465 = arith.addf %1462, %1464 : vector<8x256xf32>
    %1466 = vector.broadcast %1416 : f32 to vector<8x256xf32>
    %1467 = arith.mulf %23, %1466 : vector<8x256xf32>
    %1468 = arith.addf %1465, %1467 : vector<8x256xf32>
    %1469 = vector.broadcast %1408 : f32 to vector<8x256xf32>
    %1470 = arith.mulf %9, %1469 : vector<8x256xf32>
    %1471 = vector.broadcast %1409 : f32 to vector<8x256xf32>
    %1472 = arith.mulf %11, %1471 : vector<8x256xf32>
    %1473 = arith.addf %1470, %1472 : vector<8x256xf32>
    %1474 = vector.broadcast %1410 : f32 to vector<8x256xf32>
    %1475 = arith.mulf %13, %1474 : vector<8x256xf32>
    %1476 = arith.addf %1473, %1475 : vector<8x256xf32>
    %1477 = vector.broadcast %1411 : f32 to vector<8x256xf32>
    %1478 = arith.mulf %17, %1477 : vector<8x256xf32>
    %1479 = arith.addf %1476, %1478 : vector<8x256xf32>
    %1480 = vector.broadcast %1412 : f32 to vector<8x256xf32>
    %1481 = arith.mulf %19, %1480 : vector<8x256xf32>
    %1482 = arith.addf %1479, %1481 : vector<8x256xf32>
    %1483 = vector.broadcast %1413 : f32 to vector<8x256xf32>
    %1484 = arith.mulf %21, %1483 : vector<8x256xf32>
    %1485 = arith.addf %1482, %1484 : vector<8x256xf32>
    %1486 = vector.broadcast %1414 : f32 to vector<8x256xf32>
    %1487 = arith.mulf %25, %1486 : vector<8x256xf32>
    %1488 = arith.addf %1485, %1487 : vector<8x256xf32>
    %1489 = vector.broadcast %1415 : f32 to vector<8x256xf32>
    %1490 = arith.mulf %27, %1489 : vector<8x256xf32>
    %1491 = arith.addf %1488, %1490 : vector<8x256xf32>
    %1492 = vector.broadcast %1416 : f32 to vector<8x256xf32>
    %1493 = arith.mulf %29, %1492 : vector<8x256xf32>
    %1494 = arith.addf %1491, %1493 : vector<8x256xf32>
    %1495 = vector.broadcast %1408 : f32 to vector<8x256xf32>
    %1496 = arith.mulf %11, %1495 : vector<8x256xf32>
    %1497 = vector.broadcast %1409 : f32 to vector<8x256xf32>
    %1498 = arith.mulf %13, %1497 : vector<8x256xf32>
    %1499 = arith.addf %1496, %1498 : vector<8x256xf32>
    %1500 = vector.broadcast %1410 : f32 to vector<8x256xf32>
    %1501 = arith.mulf %15, %1500 : vector<8x256xf32>
    %1502 = arith.addf %1499, %1501 : vector<8x256xf32>
    %1503 = vector.broadcast %1411 : f32 to vector<8x256xf32>
    %1504 = arith.mulf %19, %1503 : vector<8x256xf32>
    %1505 = arith.addf %1502, %1504 : vector<8x256xf32>
    %1506 = vector.broadcast %1412 : f32 to vector<8x256xf32>
    %1507 = arith.mulf %21, %1506 : vector<8x256xf32>
    %1508 = arith.addf %1505, %1507 : vector<8x256xf32>
    %1509 = vector.broadcast %1413 : f32 to vector<8x256xf32>
    %1510 = arith.mulf %23, %1509 : vector<8x256xf32>
    %1511 = arith.addf %1508, %1510 : vector<8x256xf32>
    %1512 = vector.broadcast %1414 : f32 to vector<8x256xf32>
    %1513 = arith.mulf %27, %1512 : vector<8x256xf32>
    %1514 = arith.addf %1511, %1513 : vector<8x256xf32>
    %1515 = vector.broadcast %1415 : f32 to vector<8x256xf32>
    %1516 = arith.mulf %29, %1515 : vector<8x256xf32>
    %1517 = arith.addf %1514, %1516 : vector<8x256xf32>
    %1518 = vector.broadcast %1416 : f32 to vector<8x256xf32>
    %1519 = arith.mulf %31, %1518 : vector<8x256xf32>
    %1520 = arith.addf %1517, %1519 : vector<8x256xf32>
    %1521 = arith.maximumf %1442, %1468 : vector<8x256xf32>
    %1522 = arith.maximumf %1494, %1520 : vector<8x256xf32>
    %1523 = arith.maximumf %1521, %1522 : vector<8x256xf32>
    %c11_314 = arith.constant 11 : index
    %1524 = memref.load %arg3[%c11_314] : memref<16xf32, #tpu.memory_space<smem>>
    %1525 = vector.broadcast %1524 : f32 to vector<8x256xf32>
    %1526 = arith.addf %1523, %1525 : vector<8x256xf32>
    %cst_315 = arith.constant 0.000000e+00 : f32
    %1527 = vector.broadcast %cst_315 : f32 to vector<8x256xf32>
    %1528 = arith.maximumf %1526, %1527 : vector<8x256xf32>
    %c11_316 = arith.constant 11 : index
    %c0_317 = arith.constant 0 : index
    %c0_318 = arith.constant 0 : index
    %1529 = vector.load %arg4[%c11_316, %c0_317, %c0_318] : memref<16x256x128xf32, #tpu.memory_space<vmem>>, vector<1x256x128xf32>
    %1530 = vector.shape_cast %1529 : vector<1x256x128xf32> to vector<256x128xf32>
    %cst_319 = arith.constant dense<0.000000e+00> : vector<8x128xf32>
    %1531 = tpu.matmul %1528, %1530, %cst_319 {dimension_numbers = #tpu.dot_dimension_numbers<[1], [0], [0], [1], [0, 0, 1, 1], [], []>} : vector<8x256xf32>, vector<256x128xf32>, vector<8x128xf32> -> vector<8x128xf32>
    %1532 = arith.addf %1407, %1531 : vector<8x128xf32>
    %c12_320 = arith.constant 12 : index
    %c0_321 = arith.constant 0 : index
    %1533 = memref.load %arg2[%c12_320, %c0_321] : memref<16x9xf32, #tpu.memory_space<smem>>
    %c12_322 = arith.constant 12 : index
    %c1_323 = arith.constant 1 : index
    %1534 = memref.load %arg2[%c12_322, %c1_323] : memref<16x9xf32, #tpu.memory_space<smem>>
    %c12_324 = arith.constant 12 : index
    %c2_325 = arith.constant 2 : index
    %1535 = memref.load %arg2[%c12_324, %c2_325] : memref<16x9xf32, #tpu.memory_space<smem>>
    %c12_326 = arith.constant 12 : index
    %c3_327 = arith.constant 3 : index
    %1536 = memref.load %arg2[%c12_326, %c3_327] : memref<16x9xf32, #tpu.memory_space<smem>>
    %c12_328 = arith.constant 12 : index
    %c4_329 = arith.constant 4 : index
    %1537 = memref.load %arg2[%c12_328, %c4_329] : memref<16x9xf32, #tpu.memory_space<smem>>
    %c12_330 = arith.constant 12 : index
    %c5_331 = arith.constant 5 : index
    %1538 = memref.load %arg2[%c12_330, %c5_331] : memref<16x9xf32, #tpu.memory_space<smem>>
    %c12_332 = arith.constant 12 : index
    %c6_333 = arith.constant 6 : index
    %1539 = memref.load %arg2[%c12_332, %c6_333] : memref<16x9xf32, #tpu.memory_space<smem>>
    %c12_334 = arith.constant 12 : index
    %c7_335 = arith.constant 7 : index
    %1540 = memref.load %arg2[%c12_334, %c7_335] : memref<16x9xf32, #tpu.memory_space<smem>>
    %c12_336 = arith.constant 12 : index
    %c8_337 = arith.constant 8 : index
    %1541 = memref.load %arg2[%c12_336, %c8_337] : memref<16x9xf32, #tpu.memory_space<smem>>
    %1542 = vector.broadcast %1533 : f32 to vector<8x256xf32>
    %1543 = arith.mulf %1, %1542 : vector<8x256xf32>
    %1544 = vector.broadcast %1534 : f32 to vector<8x256xf32>
    %1545 = arith.mulf %3, %1544 : vector<8x256xf32>
    %1546 = arith.addf %1543, %1545 : vector<8x256xf32>
    %1547 = vector.broadcast %1535 : f32 to vector<8x256xf32>
    %1548 = arith.mulf %5, %1547 : vector<8x256xf32>
    %1549 = arith.addf %1546, %1548 : vector<8x256xf32>
    %1550 = vector.broadcast %1536 : f32 to vector<8x256xf32>
    %1551 = arith.mulf %9, %1550 : vector<8x256xf32>
    %1552 = arith.addf %1549, %1551 : vector<8x256xf32>
    %1553 = vector.broadcast %1537 : f32 to vector<8x256xf32>
    %1554 = arith.mulf %11, %1553 : vector<8x256xf32>
    %1555 = arith.addf %1552, %1554 : vector<8x256xf32>
    %1556 = vector.broadcast %1538 : f32 to vector<8x256xf32>
    %1557 = arith.mulf %13, %1556 : vector<8x256xf32>
    %1558 = arith.addf %1555, %1557 : vector<8x256xf32>
    %1559 = vector.broadcast %1539 : f32 to vector<8x256xf32>
    %1560 = arith.mulf %17, %1559 : vector<8x256xf32>
    %1561 = arith.addf %1558, %1560 : vector<8x256xf32>
    %1562 = vector.broadcast %1540 : f32 to vector<8x256xf32>
    %1563 = arith.mulf %19, %1562 : vector<8x256xf32>
    %1564 = arith.addf %1561, %1563 : vector<8x256xf32>
    %1565 = vector.broadcast %1541 : f32 to vector<8x256xf32>
    %1566 = arith.mulf %21, %1565 : vector<8x256xf32>
    %1567 = arith.addf %1564, %1566 : vector<8x256xf32>
    %1568 = vector.broadcast %1533 : f32 to vector<8x256xf32>
    %1569 = arith.mulf %3, %1568 : vector<8x256xf32>
    %1570 = vector.broadcast %1534 : f32 to vector<8x256xf32>
    %1571 = arith.mulf %5, %1570 : vector<8x256xf32>
    %1572 = arith.addf %1569, %1571 : vector<8x256xf32>
    %1573 = vector.broadcast %1535 : f32 to vector<8x256xf32>
    %1574 = arith.mulf %7, %1573 : vector<8x256xf32>
    %1575 = arith.addf %1572, %1574 : vector<8x256xf32>
    %1576 = vector.broadcast %1536 : f32 to vector<8x256xf32>
    %1577 = arith.mulf %11, %1576 : vector<8x256xf32>
    %1578 = arith.addf %1575, %1577 : vector<8x256xf32>
    %1579 = vector.broadcast %1537 : f32 to vector<8x256xf32>
    %1580 = arith.mulf %13, %1579 : vector<8x256xf32>
    %1581 = arith.addf %1578, %1580 : vector<8x256xf32>
    %1582 = vector.broadcast %1538 : f32 to vector<8x256xf32>
    %1583 = arith.mulf %15, %1582 : vector<8x256xf32>
    %1584 = arith.addf %1581, %1583 : vector<8x256xf32>
    %1585 = vector.broadcast %1539 : f32 to vector<8x256xf32>
    %1586 = arith.mulf %19, %1585 : vector<8x256xf32>
    %1587 = arith.addf %1584, %1586 : vector<8x256xf32>
    %1588 = vector.broadcast %1540 : f32 to vector<8x256xf32>
    %1589 = arith.mulf %21, %1588 : vector<8x256xf32>
    %1590 = arith.addf %1587, %1589 : vector<8x256xf32>
    %1591 = vector.broadcast %1541 : f32 to vector<8x256xf32>
    %1592 = arith.mulf %23, %1591 : vector<8x256xf32>
    %1593 = arith.addf %1590, %1592 : vector<8x256xf32>
    %1594 = vector.broadcast %1533 : f32 to vector<8x256xf32>
    %1595 = arith.mulf %9, %1594 : vector<8x256xf32>
    %1596 = vector.broadcast %1534 : f32 to vector<8x256xf32>
    %1597 = arith.mulf %11, %1596 : vector<8x256xf32>
    %1598 = arith.addf %1595, %1597 : vector<8x256xf32>
    %1599 = vector.broadcast %1535 : f32 to vector<8x256xf32>
    %1600 = arith.mulf %13, %1599 : vector<8x256xf32>
    %1601 = arith.addf %1598, %1600 : vector<8x256xf32>
    %1602 = vector.broadcast %1536 : f32 to vector<8x256xf32>
    %1603 = arith.mulf %17, %1602 : vector<8x256xf32>
    %1604 = arith.addf %1601, %1603 : vector<8x256xf32>
    %1605 = vector.broadcast %1537 : f32 to vector<8x256xf32>
    %1606 = arith.mulf %19, %1605 : vector<8x256xf32>
    %1607 = arith.addf %1604, %1606 : vector<8x256xf32>
    %1608 = vector.broadcast %1538 : f32 to vector<8x256xf32>
    %1609 = arith.mulf %21, %1608 : vector<8x256xf32>
    %1610 = arith.addf %1607, %1609 : vector<8x256xf32>
    %1611 = vector.broadcast %1539 : f32 to vector<8x256xf32>
    %1612 = arith.mulf %25, %1611 : vector<8x256xf32>
    %1613 = arith.addf %1610, %1612 : vector<8x256xf32>
    %1614 = vector.broadcast %1540 : f32 to vector<8x256xf32>
    %1615 = arith.mulf %27, %1614 : vector<8x256xf32>
    %1616 = arith.addf %1613, %1615 : vector<8x256xf32>
    %1617 = vector.broadcast %1541 : f32 to vector<8x256xf32>
    %1618 = arith.mulf %29, %1617 : vector<8x256xf32>
    %1619 = arith.addf %1616, %1618 : vector<8x256xf32>
    %1620 = vector.broadcast %1533 : f32 to vector<8x256xf32>
    %1621 = arith.mulf %11, %1620 : vector<8x256xf32>
    %1622 = vector.broadcast %1534 : f32 to vector<8x256xf32>
    %1623 = arith.mulf %13, %1622 : vector<8x256xf32>
    %1624 = arith.addf %1621, %1623 : vector<8x256xf32>
    %1625 = vector.broadcast %1535 : f32 to vector<8x256xf32>
    %1626 = arith.mulf %15, %1625 : vector<8x256xf32>
    %1627 = arith.addf %1624, %1626 : vector<8x256xf32>
    %1628 = vector.broadcast %1536 : f32 to vector<8x256xf32>
    %1629 = arith.mulf %19, %1628 : vector<8x256xf32>
    %1630 = arith.addf %1627, %1629 : vector<8x256xf32>
    %1631 = vector.broadcast %1537 : f32 to vector<8x256xf32>
    %1632 = arith.mulf %21, %1631 : vector<8x256xf32>
    %1633 = arith.addf %1630, %1632 : vector<8x256xf32>
    %1634 = vector.broadcast %1538 : f32 to vector<8x256xf32>
    %1635 = arith.mulf %23, %1634 : vector<8x256xf32>
    %1636 = arith.addf %1633, %1635 : vector<8x256xf32>
    %1637 = vector.broadcast %1539 : f32 to vector<8x256xf32>
    %1638 = arith.mulf %27, %1637 : vector<8x256xf32>
    %1639 = arith.addf %1636, %1638 : vector<8x256xf32>
    %1640 = vector.broadcast %1540 : f32 to vector<8x256xf32>
    %1641 = arith.mulf %29, %1640 : vector<8x256xf32>
    %1642 = arith.addf %1639, %1641 : vector<8x256xf32>
    %1643 = vector.broadcast %1541 : f32 to vector<8x256xf32>
    %1644 = arith.mulf %31, %1643 : vector<8x256xf32>
    %1645 = arith.addf %1642, %1644 : vector<8x256xf32>
    %1646 = arith.maximumf %1567, %1593 : vector<8x256xf32>
    %1647 = arith.maximumf %1619, %1645 : vector<8x256xf32>
    %1648 = arith.maximumf %1646, %1647 : vector<8x256xf32>
    %c12_338 = arith.constant 12 : index
    %1649 = memref.load %arg3[%c12_338] : memref<16xf32, #tpu.memory_space<smem>>
    %1650 = vector.broadcast %1649 : f32 to vector<8x256xf32>
    %1651 = arith.addf %1648, %1650 : vector<8x256xf32>
    %cst_339 = arith.constant 0.000000e+00 : f32
    %1652 = vector.broadcast %cst_339 : f32 to vector<8x256xf32>
    %1653 = arith.maximumf %1651, %1652 : vector<8x256xf32>
    %c12_340 = arith.constant 12 : index
    %c0_341 = arith.constant 0 : index
    %c0_342 = arith.constant 0 : index
    %1654 = vector.load %arg4[%c12_340, %c0_341, %c0_342] : memref<16x256x128xf32, #tpu.memory_space<vmem>>, vector<1x256x128xf32>
    %1655 = vector.shape_cast %1654 : vector<1x256x128xf32> to vector<256x128xf32>
    %cst_343 = arith.constant dense<0.000000e+00> : vector<8x128xf32>
    %1656 = tpu.matmul %1653, %1655, %cst_343 {dimension_numbers = #tpu.dot_dimension_numbers<[1], [0], [0], [1], [0, 0, 1, 1], [], []>} : vector<8x256xf32>, vector<256x128xf32>, vector<8x128xf32> -> vector<8x128xf32>
    %1657 = arith.addf %1532, %1656 : vector<8x128xf32>
    %c13_344 = arith.constant 13 : index
    %c0_345 = arith.constant 0 : index
    %1658 = memref.load %arg2[%c13_344, %c0_345] : memref<16x9xf32, #tpu.memory_space<smem>>
    %c13_346 = arith.constant 13 : index
    %c1_347 = arith.constant 1 : index
    %1659 = memref.load %arg2[%c13_346, %c1_347] : memref<16x9xf32, #tpu.memory_space<smem>>
    %c13_348 = arith.constant 13 : index
    %c2_349 = arith.constant 2 : index
    %1660 = memref.load %arg2[%c13_348, %c2_349] : memref<16x9xf32, #tpu.memory_space<smem>>
    %c13_350 = arith.constant 13 : index
    %c3_351 = arith.constant 3 : index
    %1661 = memref.load %arg2[%c13_350, %c3_351] : memref<16x9xf32, #tpu.memory_space<smem>>
    %c13_352 = arith.constant 13 : index
    %c4_353 = arith.constant 4 : index
    %1662 = memref.load %arg2[%c13_352, %c4_353] : memref<16x9xf32, #tpu.memory_space<smem>>
    %c13_354 = arith.constant 13 : index
    %c5_355 = arith.constant 5 : index
    %1663 = memref.load %arg2[%c13_354, %c5_355] : memref<16x9xf32, #tpu.memory_space<smem>>
    %c13_356 = arith.constant 13 : index
    %c6_357 = arith.constant 6 : index
    %1664 = memref.load %arg2[%c13_356, %c6_357] : memref<16x9xf32, #tpu.memory_space<smem>>
    %c13_358 = arith.constant 13 : index
    %c7_359 = arith.constant 7 : index
    %1665 = memref.load %arg2[%c13_358, %c7_359] : memref<16x9xf32, #tpu.memory_space<smem>>
    %c13_360 = arith.constant 13 : index
    %c8_361 = arith.constant 8 : index
    %1666 = memref.load %arg2[%c13_360, %c8_361] : memref<16x9xf32, #tpu.memory_space<smem>>
    %1667 = vector.broadcast %1658 : f32 to vector<8x256xf32>
    %1668 = arith.mulf %1, %1667 : vector<8x256xf32>
    %1669 = vector.broadcast %1659 : f32 to vector<8x256xf32>
    %1670 = arith.mulf %3, %1669 : vector<8x256xf32>
    %1671 = arith.addf %1668, %1670 : vector<8x256xf32>
    %1672 = vector.broadcast %1660 : f32 to vector<8x256xf32>
    %1673 = arith.mulf %5, %1672 : vector<8x256xf32>
    %1674 = arith.addf %1671, %1673 : vector<8x256xf32>
    %1675 = vector.broadcast %1661 : f32 to vector<8x256xf32>
    %1676 = arith.mulf %9, %1675 : vector<8x256xf32>
    %1677 = arith.addf %1674, %1676 : vector<8x256xf32>
    %1678 = vector.broadcast %1662 : f32 to vector<8x256xf32>
    %1679 = arith.mulf %11, %1678 : vector<8x256xf32>
    %1680 = arith.addf %1677, %1679 : vector<8x256xf32>
    %1681 = vector.broadcast %1663 : f32 to vector<8x256xf32>
    %1682 = arith.mulf %13, %1681 : vector<8x256xf32>
    %1683 = arith.addf %1680, %1682 : vector<8x256xf32>
    %1684 = vector.broadcast %1664 : f32 to vector<8x256xf32>
    %1685 = arith.mulf %17, %1684 : vector<8x256xf32>
    %1686 = arith.addf %1683, %1685 : vector<8x256xf32>
    %1687 = vector.broadcast %1665 : f32 to vector<8x256xf32>
    %1688 = arith.mulf %19, %1687 : vector<8x256xf32>
    %1689 = arith.addf %1686, %1688 : vector<8x256xf32>
    %1690 = vector.broadcast %1666 : f32 to vector<8x256xf32>
    %1691 = arith.mulf %21, %1690 : vector<8x256xf32>
    %1692 = arith.addf %1689, %1691 : vector<8x256xf32>
    %1693 = vector.broadcast %1658 : f32 to vector<8x256xf32>
    %1694 = arith.mulf %3, %1693 : vector<8x256xf32>
    %1695 = vector.broadcast %1659 : f32 to vector<8x256xf32>
    %1696 = arith.mulf %5, %1695 : vector<8x256xf32>
    %1697 = arith.addf %1694, %1696 : vector<8x256xf32>
    %1698 = vector.broadcast %1660 : f32 to vector<8x256xf32>
    %1699 = arith.mulf %7, %1698 : vector<8x256xf32>
    %1700 = arith.addf %1697, %1699 : vector<8x256xf32>
    %1701 = vector.broadcast %1661 : f32 to vector<8x256xf32>
    %1702 = arith.mulf %11, %1701 : vector<8x256xf32>
    %1703 = arith.addf %1700, %1702 : vector<8x256xf32>
    %1704 = vector.broadcast %1662 : f32 to vector<8x256xf32>
    %1705 = arith.mulf %13, %1704 : vector<8x256xf32>
    %1706 = arith.addf %1703, %1705 : vector<8x256xf32>
    %1707 = vector.broadcast %1663 : f32 to vector<8x256xf32>
    %1708 = arith.mulf %15, %1707 : vector<8x256xf32>
    %1709 = arith.addf %1706, %1708 : vector<8x256xf32>
    %1710 = vector.broadcast %1664 : f32 to vector<8x256xf32>
    %1711 = arith.mulf %19, %1710 : vector<8x256xf32>
    %1712 = arith.addf %1709, %1711 : vector<8x256xf32>
    %1713 = vector.broadcast %1665 : f32 to vector<8x256xf32>
    %1714 = arith.mulf %21, %1713 : vector<8x256xf32>
    %1715 = arith.addf %1712, %1714 : vector<8x256xf32>
    %1716 = vector.broadcast %1666 : f32 to vector<8x256xf32>
    %1717 = arith.mulf %23, %1716 : vector<8x256xf32>
    %1718 = arith.addf %1715, %1717 : vector<8x256xf32>
    %1719 = vector.broadcast %1658 : f32 to vector<8x256xf32>
    %1720 = arith.mulf %9, %1719 : vector<8x256xf32>
    %1721 = vector.broadcast %1659 : f32 to vector<8x256xf32>
    %1722 = arith.mulf %11, %1721 : vector<8x256xf32>
    %1723 = arith.addf %1720, %1722 : vector<8x256xf32>
    %1724 = vector.broadcast %1660 : f32 to vector<8x256xf32>
    %1725 = arith.mulf %13, %1724 : vector<8x256xf32>
    %1726 = arith.addf %1723, %1725 : vector<8x256xf32>
    %1727 = vector.broadcast %1661 : f32 to vector<8x256xf32>
    %1728 = arith.mulf %17, %1727 : vector<8x256xf32>
    %1729 = arith.addf %1726, %1728 : vector<8x256xf32>
    %1730 = vector.broadcast %1662 : f32 to vector<8x256xf32>
    %1731 = arith.mulf %19, %1730 : vector<8x256xf32>
    %1732 = arith.addf %1729, %1731 : vector<8x256xf32>
    %1733 = vector.broadcast %1663 : f32 to vector<8x256xf32>
    %1734 = arith.mulf %21, %1733 : vector<8x256xf32>
    %1735 = arith.addf %1732, %1734 : vector<8x256xf32>
    %1736 = vector.broadcast %1664 : f32 to vector<8x256xf32>
    %1737 = arith.mulf %25, %1736 : vector<8x256xf32>
    %1738 = arith.addf %1735, %1737 : vector<8x256xf32>
    %1739 = vector.broadcast %1665 : f32 to vector<8x256xf32>
    %1740 = arith.mulf %27, %1739 : vector<8x256xf32>
    %1741 = arith.addf %1738, %1740 : vector<8x256xf32>
    %1742 = vector.broadcast %1666 : f32 to vector<8x256xf32>
    %1743 = arith.mulf %29, %1742 : vector<8x256xf32>
    %1744 = arith.addf %1741, %1743 : vector<8x256xf32>
    %1745 = vector.broadcast %1658 : f32 to vector<8x256xf32>
    %1746 = arith.mulf %11, %1745 : vector<8x256xf32>
    %1747 = vector.broadcast %1659 : f32 to vector<8x256xf32>
    %1748 = arith.mulf %13, %1747 : vector<8x256xf32>
    %1749 = arith.addf %1746, %1748 : vector<8x256xf32>
    %1750 = vector.broadcast %1660 : f32 to vector<8x256xf32>
    %1751 = arith.mulf %15, %1750 : vector<8x256xf32>
    %1752 = arith.addf %1749, %1751 : vector<8x256xf32>
    %1753 = vector.broadcast %1661 : f32 to vector<8x256xf32>
    %1754 = arith.mulf %19, %1753 : vector<8x256xf32>
    %1755 = arith.addf %1752, %1754 : vector<8x256xf32>
    %1756 = vector.broadcast %1662 : f32 to vector<8x256xf32>
    %1757 = arith.mulf %21, %1756 : vector<8x256xf32>
    %1758 = arith.addf %1755, %1757 : vector<8x256xf32>
    %1759 = vector.broadcast %1663 : f32 to vector<8x256xf32>
    %1760 = arith.mulf %23, %1759 : vector<8x256xf32>
    %1761 = arith.addf %1758, %1760 : vector<8x256xf32>
    %1762 = vector.broadcast %1664 : f32 to vector<8x256xf32>
    %1763 = arith.mulf %27, %1762 : vector<8x256xf32>
    %1764 = arith.addf %1761, %1763 : vector<8x256xf32>
    %1765 = vector.broadcast %1665 : f32 to vector<8x256xf32>
    %1766 = arith.mulf %29, %1765 : vector<8x256xf32>
    %1767 = arith.addf %1764, %1766 : vector<8x256xf32>
    %1768 = vector.broadcast %1666 : f32 to vector<8x256xf32>
    %1769 = arith.mulf %31, %1768 : vector<8x256xf32>
    %1770 = arith.addf %1767, %1769 : vector<8x256xf32>
    %1771 = arith.maximumf %1692, %1718 : vector<8x256xf32>
    %1772 = arith.maximumf %1744, %1770 : vector<8x256xf32>
    %1773 = arith.maximumf %1771, %1772 : vector<8x256xf32>
    %c13_362 = arith.constant 13 : index
    %1774 = memref.load %arg3[%c13_362] : memref<16xf32, #tpu.memory_space<smem>>
    %1775 = vector.broadcast %1774 : f32 to vector<8x256xf32>
    %1776 = arith.addf %1773, %1775 : vector<8x256xf32>
    %cst_363 = arith.constant 0.000000e+00 : f32
    %1777 = vector.broadcast %cst_363 : f32 to vector<8x256xf32>
    %1778 = arith.maximumf %1776, %1777 : vector<8x256xf32>
    %c13_364 = arith.constant 13 : index
    %c0_365 = arith.constant 0 : index
    %c0_366 = arith.constant 0 : index
    %1779 = vector.load %arg4[%c13_364, %c0_365, %c0_366] : memref<16x256x128xf32, #tpu.memory_space<vmem>>, vector<1x256x128xf32>
    %1780 = vector.shape_cast %1779 : vector<1x256x128xf32> to vector<256x128xf32>
    %cst_367 = arith.constant dense<0.000000e+00> : vector<8x128xf32>
    %1781 = tpu.matmul %1778, %1780, %cst_367 {dimension_numbers = #tpu.dot_dimension_numbers<[1], [0], [0], [1], [0, 0, 1, 1], [], []>} : vector<8x256xf32>, vector<256x128xf32>, vector<8x128xf32> -> vector<8x128xf32>
    %1782 = arith.addf %1657, %1781 : vector<8x128xf32>
    %c14_368 = arith.constant 14 : index
    %c0_369 = arith.constant 0 : index
    %1783 = memref.load %arg2[%c14_368, %c0_369] : memref<16x9xf32, #tpu.memory_space<smem>>
    %c14_370 = arith.constant 14 : index
    %c1_371 = arith.constant 1 : index
    %1784 = memref.load %arg2[%c14_370, %c1_371] : memref<16x9xf32, #tpu.memory_space<smem>>
    %c14_372 = arith.constant 14 : index
    %c2_373 = arith.constant 2 : index
    %1785 = memref.load %arg2[%c14_372, %c2_373] : memref<16x9xf32, #tpu.memory_space<smem>>
    %c14_374 = arith.constant 14 : index
    %c3_375 = arith.constant 3 : index
    %1786 = memref.load %arg2[%c14_374, %c3_375] : memref<16x9xf32, #tpu.memory_space<smem>>
    %c14_376 = arith.constant 14 : index
    %c4_377 = arith.constant 4 : index
    %1787 = memref.load %arg2[%c14_376, %c4_377] : memref<16x9xf32, #tpu.memory_space<smem>>
    %c14_378 = arith.constant 14 : index
    %c5_379 = arith.constant 5 : index
    %1788 = memref.load %arg2[%c14_378, %c5_379] : memref<16x9xf32, #tpu.memory_space<smem>>
    %c14_380 = arith.constant 14 : index
    %c6_381 = arith.constant 6 : index
    %1789 = memref.load %arg2[%c14_380, %c6_381] : memref<16x9xf32, #tpu.memory_space<smem>>
    %c14_382 = arith.constant 14 : index
    %c7_383 = arith.constant 7 : index
    %1790 = memref.load %arg2[%c14_382, %c7_383] : memref<16x9xf32, #tpu.memory_space<smem>>
    %c14_384 = arith.constant 14 : index
    %c8_385 = arith.constant 8 : index
    %1791 = memref.load %arg2[%c14_384, %c8_385] : memref<16x9xf32, #tpu.memory_space<smem>>
    %1792 = vector.broadcast %1783 : f32 to vector<8x256xf32>
    %1793 = arith.mulf %1, %1792 : vector<8x256xf32>
    %1794 = vector.broadcast %1784 : f32 to vector<8x256xf32>
    %1795 = arith.mulf %3, %1794 : vector<8x256xf32>
    %1796 = arith.addf %1793, %1795 : vector<8x256xf32>
    %1797 = vector.broadcast %1785 : f32 to vector<8x256xf32>
    %1798 = arith.mulf %5, %1797 : vector<8x256xf32>
    %1799 = arith.addf %1796, %1798 : vector<8x256xf32>
    %1800 = vector.broadcast %1786 : f32 to vector<8x256xf32>
    %1801 = arith.mulf %9, %1800 : vector<8x256xf32>
    %1802 = arith.addf %1799, %1801 : vector<8x256xf32>
    %1803 = vector.broadcast %1787 : f32 to vector<8x256xf32>
    %1804 = arith.mulf %11, %1803 : vector<8x256xf32>
    %1805 = arith.addf %1802, %1804 : vector<8x256xf32>
    %1806 = vector.broadcast %1788 : f32 to vector<8x256xf32>
    %1807 = arith.mulf %13, %1806 : vector<8x256xf32>
    %1808 = arith.addf %1805, %1807 : vector<8x256xf32>
    %1809 = vector.broadcast %1789 : f32 to vector<8x256xf32>
    %1810 = arith.mulf %17, %1809 : vector<8x256xf32>
    %1811 = arith.addf %1808, %1810 : vector<8x256xf32>
    %1812 = vector.broadcast %1790 : f32 to vector<8x256xf32>
    %1813 = arith.mulf %19, %1812 : vector<8x256xf32>
    %1814 = arith.addf %1811, %1813 : vector<8x256xf32>
    %1815 = vector.broadcast %1791 : f32 to vector<8x256xf32>
    %1816 = arith.mulf %21, %1815 : vector<8x256xf32>
    %1817 = arith.addf %1814, %1816 : vector<8x256xf32>
    %1818 = vector.broadcast %1783 : f32 to vector<8x256xf32>
    %1819 = arith.mulf %3, %1818 : vector<8x256xf32>
    %1820 = vector.broadcast %1784 : f32 to vector<8x256xf32>
    %1821 = arith.mulf %5, %1820 : vector<8x256xf32>
    %1822 = arith.addf %1819, %1821 : vector<8x256xf32>
    %1823 = vector.broadcast %1785 : f32 to vector<8x256xf32>
    %1824 = arith.mulf %7, %1823 : vector<8x256xf32>
    %1825 = arith.addf %1822, %1824 : vector<8x256xf32>
    %1826 = vector.broadcast %1786 : f32 to vector<8x256xf32>
    %1827 = arith.mulf %11, %1826 : vector<8x256xf32>
    %1828 = arith.addf %1825, %1827 : vector<8x256xf32>
    %1829 = vector.broadcast %1787 : f32 to vector<8x256xf32>
    %1830 = arith.mulf %13, %1829 : vector<8x256xf32>
    %1831 = arith.addf %1828, %1830 : vector<8x256xf32>
    %1832 = vector.broadcast %1788 : f32 to vector<8x256xf32>
    %1833 = arith.mulf %15, %1832 : vector<8x256xf32>
    %1834 = arith.addf %1831, %1833 : vector<8x256xf32>
    %1835 = vector.broadcast %1789 : f32 to vector<8x256xf32>
    %1836 = arith.mulf %19, %1835 : vector<8x256xf32>
    %1837 = arith.addf %1834, %1836 : vector<8x256xf32>
    %1838 = vector.broadcast %1790 : f32 to vector<8x256xf32>
    %1839 = arith.mulf %21, %1838 : vector<8x256xf32>
    %1840 = arith.addf %1837, %1839 : vector<8x256xf32>
    %1841 = vector.broadcast %1791 : f32 to vector<8x256xf32>
    %1842 = arith.mulf %23, %1841 : vector<8x256xf32>
    %1843 = arith.addf %1840, %1842 : vector<8x256xf32>
    %1844 = vector.broadcast %1783 : f32 to vector<8x256xf32>
    %1845 = arith.mulf %9, %1844 : vector<8x256xf32>
    %1846 = vector.broadcast %1784 : f32 to vector<8x256xf32>
    %1847 = arith.mulf %11, %1846 : vector<8x256xf32>
    %1848 = arith.addf %1845, %1847 : vector<8x256xf32>
    %1849 = vector.broadcast %1785 : f32 to vector<8x256xf32>
    %1850 = arith.mulf %13, %1849 : vector<8x256xf32>
    %1851 = arith.addf %1848, %1850 : vector<8x256xf32>
    %1852 = vector.broadcast %1786 : f32 to vector<8x256xf32>
    %1853 = arith.mulf %17, %1852 : vector<8x256xf32>
    %1854 = arith.addf %1851, %1853 : vector<8x256xf32>
    %1855 = vector.broadcast %1787 : f32 to vector<8x256xf32>
    %1856 = arith.mulf %19, %1855 : vector<8x256xf32>
    %1857 = arith.addf %1854, %1856 : vector<8x256xf32>
    %1858 = vector.broadcast %1788 : f32 to vector<8x256xf32>
    %1859 = arith.mulf %21, %1858 : vector<8x256xf32>
    %1860 = arith.addf %1857, %1859 : vector<8x256xf32>
    %1861 = vector.broadcast %1789 : f32 to vector<8x256xf32>
    %1862 = arith.mulf %25, %1861 : vector<8x256xf32>
    %1863 = arith.addf %1860, %1862 : vector<8x256xf32>
    %1864 = vector.broadcast %1790 : f32 to vector<8x256xf32>
    %1865 = arith.mulf %27, %1864 : vector<8x256xf32>
    %1866 = arith.addf %1863, %1865 : vector<8x256xf32>
    %1867 = vector.broadcast %1791 : f32 to vector<8x256xf32>
    %1868 = arith.mulf %29, %1867 : vector<8x256xf32>
    %1869 = arith.addf %1866, %1868 : vector<8x256xf32>
    %1870 = vector.broadcast %1783 : f32 to vector<8x256xf32>
    %1871 = arith.mulf %11, %1870 : vector<8x256xf32>
    %1872 = vector.broadcast %1784 : f32 to vector<8x256xf32>
    %1873 = arith.mulf %13, %1872 : vector<8x256xf32>
    %1874 = arith.addf %1871, %1873 : vector<8x256xf32>
    %1875 = vector.broadcast %1785 : f32 to vector<8x256xf32>
    %1876 = arith.mulf %15, %1875 : vector<8x256xf32>
    %1877 = arith.addf %1874, %1876 : vector<8x256xf32>
    %1878 = vector.broadcast %1786 : f32 to vector<8x256xf32>
    %1879 = arith.mulf %19, %1878 : vector<8x256xf32>
    %1880 = arith.addf %1877, %1879 : vector<8x256xf32>
    %1881 = vector.broadcast %1787 : f32 to vector<8x256xf32>
    %1882 = arith.mulf %21, %1881 : vector<8x256xf32>
    %1883 = arith.addf %1880, %1882 : vector<8x256xf32>
    %1884 = vector.broadcast %1788 : f32 to vector<8x256xf32>
    %1885 = arith.mulf %23, %1884 : vector<8x256xf32>
    %1886 = arith.addf %1883, %1885 : vector<8x256xf32>
    %1887 = vector.broadcast %1789 : f32 to vector<8x256xf32>
    %1888 = arith.mulf %27, %1887 : vector<8x256xf32>
    %1889 = arith.addf %1886, %1888 : vector<8x256xf32>
    %1890 = vector.broadcast %1790 : f32 to vector<8x256xf32>
    %1891 = arith.mulf %29, %1890 : vector<8x256xf32>
    %1892 = arith.addf %1889, %1891 : vector<8x256xf32>
    %1893 = vector.broadcast %1791 : f32 to vector<8x256xf32>
    %1894 = arith.mulf %31, %1893 : vector<8x256xf32>
    %1895 = arith.addf %1892, %1894 : vector<8x256xf32>
    %1896 = arith.maximumf %1817, %1843 : vector<8x256xf32>
    %1897 = arith.maximumf %1869, %1895 : vector<8x256xf32>
    %1898 = arith.maximumf %1896, %1897 : vector<8x256xf32>
    %c14_386 = arith.constant 14 : index
    %1899 = memref.load %arg3[%c14_386] : memref<16xf32, #tpu.memory_space<smem>>
    %1900 = vector.broadcast %1899 : f32 to vector<8x256xf32>
    %1901 = arith.addf %1898, %1900 : vector<8x256xf32>
    %cst_387 = arith.constant 0.000000e+00 : f32
    %1902 = vector.broadcast %cst_387 : f32 to vector<8x256xf32>
    %1903 = arith.maximumf %1901, %1902 : vector<8x256xf32>
    %c14_388 = arith.constant 14 : index
    %c0_389 = arith.constant 0 : index
    %c0_390 = arith.constant 0 : index
    %1904 = vector.load %arg4[%c14_388, %c0_389, %c0_390] : memref<16x256x128xf32, #tpu.memory_space<vmem>>, vector<1x256x128xf32>
    %1905 = vector.shape_cast %1904 : vector<1x256x128xf32> to vector<256x128xf32>
    %cst_391 = arith.constant dense<0.000000e+00> : vector<8x128xf32>
    %1906 = tpu.matmul %1903, %1905, %cst_391 {dimension_numbers = #tpu.dot_dimension_numbers<[1], [0], [0], [1], [0, 0, 1, 1], [], []>} : vector<8x256xf32>, vector<256x128xf32>, vector<8x128xf32> -> vector<8x128xf32>
    %1907 = arith.addf %1782, %1906 : vector<8x128xf32>
    %c15_392 = arith.constant 15 : index
    %c0_393 = arith.constant 0 : index
    %1908 = memref.load %arg2[%c15_392, %c0_393] : memref<16x9xf32, #tpu.memory_space<smem>>
    %c15_394 = arith.constant 15 : index
    %c1_395 = arith.constant 1 : index
    %1909 = memref.load %arg2[%c15_394, %c1_395] : memref<16x9xf32, #tpu.memory_space<smem>>
    %c15_396 = arith.constant 15 : index
    %c2_397 = arith.constant 2 : index
    %1910 = memref.load %arg2[%c15_396, %c2_397] : memref<16x9xf32, #tpu.memory_space<smem>>
    %c15_398 = arith.constant 15 : index
    %c3_399 = arith.constant 3 : index
    %1911 = memref.load %arg2[%c15_398, %c3_399] : memref<16x9xf32, #tpu.memory_space<smem>>
    %c15_400 = arith.constant 15 : index
    %c4_401 = arith.constant 4 : index
    %1912 = memref.load %arg2[%c15_400, %c4_401] : memref<16x9xf32, #tpu.memory_space<smem>>
    %c15_402 = arith.constant 15 : index
    %c5_403 = arith.constant 5 : index
    %1913 = memref.load %arg2[%c15_402, %c5_403] : memref<16x9xf32, #tpu.memory_space<smem>>
    %c15_404 = arith.constant 15 : index
    %c6_405 = arith.constant 6 : index
    %1914 = memref.load %arg2[%c15_404, %c6_405] : memref<16x9xf32, #tpu.memory_space<smem>>
    %c15_406 = arith.constant 15 : index
    %c7_407 = arith.constant 7 : index
    %1915 = memref.load %arg2[%c15_406, %c7_407] : memref<16x9xf32, #tpu.memory_space<smem>>
    %c15_408 = arith.constant 15 : index
    %c8_409 = arith.constant 8 : index
    %1916 = memref.load %arg2[%c15_408, %c8_409] : memref<16x9xf32, #tpu.memory_space<smem>>
    %1917 = vector.broadcast %1908 : f32 to vector<8x256xf32>
    %1918 = arith.mulf %1, %1917 : vector<8x256xf32>
    %1919 = vector.broadcast %1909 : f32 to vector<8x256xf32>
    %1920 = arith.mulf %3, %1919 : vector<8x256xf32>
    %1921 = arith.addf %1918, %1920 : vector<8x256xf32>
    %1922 = vector.broadcast %1910 : f32 to vector<8x256xf32>
    %1923 = arith.mulf %5, %1922 : vector<8x256xf32>
    %1924 = arith.addf %1921, %1923 : vector<8x256xf32>
    %1925 = vector.broadcast %1911 : f32 to vector<8x256xf32>
    %1926 = arith.mulf %9, %1925 : vector<8x256xf32>
    %1927 = arith.addf %1924, %1926 : vector<8x256xf32>
    %1928 = vector.broadcast %1912 : f32 to vector<8x256xf32>
    %1929 = arith.mulf %11, %1928 : vector<8x256xf32>
    %1930 = arith.addf %1927, %1929 : vector<8x256xf32>
    %1931 = vector.broadcast %1913 : f32 to vector<8x256xf32>
    %1932 = arith.mulf %13, %1931 : vector<8x256xf32>
    %1933 = arith.addf %1930, %1932 : vector<8x256xf32>
    %1934 = vector.broadcast %1914 : f32 to vector<8x256xf32>
    %1935 = arith.mulf %17, %1934 : vector<8x256xf32>
    %1936 = arith.addf %1933, %1935 : vector<8x256xf32>
    %1937 = vector.broadcast %1915 : f32 to vector<8x256xf32>
    %1938 = arith.mulf %19, %1937 : vector<8x256xf32>
    %1939 = arith.addf %1936, %1938 : vector<8x256xf32>
    %1940 = vector.broadcast %1916 : f32 to vector<8x256xf32>
    %1941 = arith.mulf %21, %1940 : vector<8x256xf32>
    %1942 = arith.addf %1939, %1941 : vector<8x256xf32>
    %1943 = vector.broadcast %1908 : f32 to vector<8x256xf32>
    %1944 = arith.mulf %3, %1943 : vector<8x256xf32>
    %1945 = vector.broadcast %1909 : f32 to vector<8x256xf32>
    %1946 = arith.mulf %5, %1945 : vector<8x256xf32>
    %1947 = arith.addf %1944, %1946 : vector<8x256xf32>
    %1948 = vector.broadcast %1910 : f32 to vector<8x256xf32>
    %1949 = arith.mulf %7, %1948 : vector<8x256xf32>
    %1950 = arith.addf %1947, %1949 : vector<8x256xf32>
    %1951 = vector.broadcast %1911 : f32 to vector<8x256xf32>
    %1952 = arith.mulf %11, %1951 : vector<8x256xf32>
    %1953 = arith.addf %1950, %1952 : vector<8x256xf32>
    %1954 = vector.broadcast %1912 : f32 to vector<8x256xf32>
    %1955 = arith.mulf %13, %1954 : vector<8x256xf32>
    %1956 = arith.addf %1953, %1955 : vector<8x256xf32>
    %1957 = vector.broadcast %1913 : f32 to vector<8x256xf32>
    %1958 = arith.mulf %15, %1957 : vector<8x256xf32>
    %1959 = arith.addf %1956, %1958 : vector<8x256xf32>
    %1960 = vector.broadcast %1914 : f32 to vector<8x256xf32>
    %1961 = arith.mulf %19, %1960 : vector<8x256xf32>
    %1962 = arith.addf %1959, %1961 : vector<8x256xf32>
    %1963 = vector.broadcast %1915 : f32 to vector<8x256xf32>
    %1964 = arith.mulf %21, %1963 : vector<8x256xf32>
    %1965 = arith.addf %1962, %1964 : vector<8x256xf32>
    %1966 = vector.broadcast %1916 : f32 to vector<8x256xf32>
    %1967 = arith.mulf %23, %1966 : vector<8x256xf32>
    %1968 = arith.addf %1965, %1967 : vector<8x256xf32>
    %1969 = vector.broadcast %1908 : f32 to vector<8x256xf32>
    %1970 = arith.mulf %9, %1969 : vector<8x256xf32>
    %1971 = vector.broadcast %1909 : f32 to vector<8x256xf32>
    %1972 = arith.mulf %11, %1971 : vector<8x256xf32>
    %1973 = arith.addf %1970, %1972 : vector<8x256xf32>
    %1974 = vector.broadcast %1910 : f32 to vector<8x256xf32>
    %1975 = arith.mulf %13, %1974 : vector<8x256xf32>
    %1976 = arith.addf %1973, %1975 : vector<8x256xf32>
    %1977 = vector.broadcast %1911 : f32 to vector<8x256xf32>
    %1978 = arith.mulf %17, %1977 : vector<8x256xf32>
    %1979 = arith.addf %1976, %1978 : vector<8x256xf32>
    %1980 = vector.broadcast %1912 : f32 to vector<8x256xf32>
    %1981 = arith.mulf %19, %1980 : vector<8x256xf32>
    %1982 = arith.addf %1979, %1981 : vector<8x256xf32>
    %1983 = vector.broadcast %1913 : f32 to vector<8x256xf32>
    %1984 = arith.mulf %21, %1983 : vector<8x256xf32>
    %1985 = arith.addf %1982, %1984 : vector<8x256xf32>
    %1986 = vector.broadcast %1914 : f32 to vector<8x256xf32>
    %1987 = arith.mulf %25, %1986 : vector<8x256xf32>
    %1988 = arith.addf %1985, %1987 : vector<8x256xf32>
    %1989 = vector.broadcast %1915 : f32 to vector<8x256xf32>
    %1990 = arith.mulf %27, %1989 : vector<8x256xf32>
    %1991 = arith.addf %1988, %1990 : vector<8x256xf32>
    %1992 = vector.broadcast %1916 : f32 to vector<8x256xf32>
    %1993 = arith.mulf %29, %1992 : vector<8x256xf32>
    %1994 = arith.addf %1991, %1993 : vector<8x256xf32>
    %1995 = vector.broadcast %1908 : f32 to vector<8x256xf32>
    %1996 = arith.mulf %11, %1995 : vector<8x256xf32>
    %1997 = vector.broadcast %1909 : f32 to vector<8x256xf32>
    %1998 = arith.mulf %13, %1997 : vector<8x256xf32>
    %1999 = arith.addf %1996, %1998 : vector<8x256xf32>
    %2000 = vector.broadcast %1910 : f32 to vector<8x256xf32>
    %2001 = arith.mulf %15, %2000 : vector<8x256xf32>
    %2002 = arith.addf %1999, %2001 : vector<8x256xf32>
    %2003 = vector.broadcast %1911 : f32 to vector<8x256xf32>
    %2004 = arith.mulf %19, %2003 : vector<8x256xf32>
    %2005 = arith.addf %2002, %2004 : vector<8x256xf32>
    %2006 = vector.broadcast %1912 : f32 to vector<8x256xf32>
    %2007 = arith.mulf %21, %2006 : vector<8x256xf32>
    %2008 = arith.addf %2005, %2007 : vector<8x256xf32>
    %2009 = vector.broadcast %1913 : f32 to vector<8x256xf32>
    %2010 = arith.mulf %23, %2009 : vector<8x256xf32>
    %2011 = arith.addf %2008, %2010 : vector<8x256xf32>
    %2012 = vector.broadcast %1914 : f32 to vector<8x256xf32>
    %2013 = arith.mulf %27, %2012 : vector<8x256xf32>
    %2014 = arith.addf %2011, %2013 : vector<8x256xf32>
    %2015 = vector.broadcast %1915 : f32 to vector<8x256xf32>
    %2016 = arith.mulf %29, %2015 : vector<8x256xf32>
    %2017 = arith.addf %2014, %2016 : vector<8x256xf32>
    %2018 = vector.broadcast %1916 : f32 to vector<8x256xf32>
    %2019 = arith.mulf %31, %2018 : vector<8x256xf32>
    %2020 = arith.addf %2017, %2019 : vector<8x256xf32>
    %2021 = arith.maximumf %1942, %1968 : vector<8x256xf32>
    %2022 = arith.maximumf %1994, %2020 : vector<8x256xf32>
    %2023 = arith.maximumf %2021, %2022 : vector<8x256xf32>
    %c15_410 = arith.constant 15 : index
    %2024 = memref.load %arg3[%c15_410] : memref<16xf32, #tpu.memory_space<smem>>
    %2025 = vector.broadcast %2024 : f32 to vector<8x256xf32>
    %2026 = arith.addf %2023, %2025 : vector<8x256xf32>
    %cst_411 = arith.constant 0.000000e+00 : f32
    %2027 = vector.broadcast %cst_411 : f32 to vector<8x256xf32>
    %2028 = arith.maximumf %2026, %2027 : vector<8x256xf32>
    %c15_412 = arith.constant 15 : index
    %c0_413 = arith.constant 0 : index
    %c0_414 = arith.constant 0 : index
    %2029 = vector.load %arg4[%c15_412, %c0_413, %c0_414] : memref<16x256x128xf32, #tpu.memory_space<vmem>>, vector<1x256x128xf32>
    %2030 = vector.shape_cast %2029 : vector<1x256x128xf32> to vector<256x128xf32>
    %cst_415 = arith.constant dense<0.000000e+00> : vector<8x128xf32>
    %2031 = tpu.matmul %2028, %2030, %cst_415 {dimension_numbers = #tpu.dot_dimension_numbers<[1], [0], [0], [1], [0, 0, 1, 1], [], []>} : vector<8x256xf32>, vector<256x128xf32>, vector<8x128xf32> -> vector<8x128xf32>
    %2032 = arith.addf %1907, %2031 : vector<8x128xf32>
    %c0_416 = arith.constant 0 : index
    %c0_417 = arith.constant 0 : index
    %2033 = vector.load %arg5[%c0_416, %c0_417] : memref<1x128xf32, #tpu.memory_space<vmem>>, vector<1x128xf32>
    %2034 = vector.broadcast %2033 : vector<1x128xf32> to vector<8x128xf32>
    %2035 = arith.addf %2032, %2034 : vector<8x128xf32>
    %cst_418 = arith.constant 0.000000e+00 : f32
    %2036 = vector.broadcast %cst_418 : f32 to vector<8x128xf32>
    %2037 = arith.maximumf %2035, %2036 : vector<8x128xf32>
    %c0_419 = arith.constant 0 : index
    %c0_420 = arith.constant 0 : index
    %2038 = vector.load %arg6[%c0_419, %c0_420] : memref<128x128xf32, #tpu.memory_space<vmem>>, vector<128x128xf32>
    %cst_421 = arith.constant dense<0.000000e+00> : vector<8x128xf32>
    %2039 = tpu.matmul %2037, %2038, %cst_421 {dimension_numbers = #tpu.dot_dimension_numbers<[1], [0], [0], [1], [0, 0, 1, 1], [], []>} : vector<8x128xf32>, vector<128x128xf32>, vector<8x128xf32> -> vector<8x128xf32>
    %c0_422 = arith.constant 0 : index
    %c0_423 = arith.constant 0 : index
    %2040 = vector.load %arg7[%c0_422, %c0_423] : memref<1x128xf32, #tpu.memory_space<vmem>>, vector<1x128xf32>
    %2041 = vector.broadcast %2040 : vector<1x128xf32> to vector<8x128xf32>
    %2042 = arith.addf %2039, %2041 : vector<8x128xf32>
    %c0_424 = arith.constant 0 : index
    %c0_425 = arith.constant 0 : index
    %2043 = vector.load %arg8[%c0_424, %c0_425] : memref<8x128xf32, #tpu.memory_space<vmem>>, vector<8x128xf32>
    tpu.vector_store %arg8[%c0_424, %c0_425], %2042 {strides = array<i32>} : memref<8x128xf32, #tpu.memory_space<vmem>>, vector<8x128xf32>,
    return
  }
  func.func @transform_0(%arg0: i32) -> (i32, i32, i32) {
    %c0_i32 = arith.constant 0 : i32
    %c0_i32_0 = arith.constant 0 : i32
    %c0_i32_1 = arith.constant 0 : i32
    return %c0_i32, %arg0, %c0_i32_0 : i32, i32, i32
  }
  func.func @transform_1(%arg0: i32) -> (i32, i32) {
    %c0_i32 = arith.constant 0 : i32
    %c0_i32_0 = arith.constant 0 : i32
    %c0_i32_1 = arith.constant 0 : i32
    return %c0_i32, %c0_i32_0 : i32, i32
  }
  func.func @transform_2(%arg0: i32) -> i32 {
    %c0_i32 = arith.constant 0 : i32
    %c0_i32_0 = arith.constant 0 : i32
    return %c0_i32 : i32
  }
  func.func @transform_3(%arg0: i32) -> (i32, i32, i32) {
    %c0_i32 = arith.constant 0 : i32
    %c0_i32_0 = arith.constant 0 : i32
    %c0_i32_1 = arith.constant 0 : i32
    %c0_i32_2 = arith.constant 0 : i32
    return %c0_i32, %c0_i32_0, %c0_i32_1 : i32, i32, i32
  }
  func.func @transform_4(%arg0: i32) -> (i32, i32) {
    %c0_i32 = arith.constant 0 : i32
    %c0_i32_0 = arith.constant 0 : i32
    %c0_i32_1 = arith.constant 0 : i32
    return %c0_i32, %c0_i32_0 : i32, i32
  }
  func.func @transform_5(%arg0: i32) -> (i32, i32) {
    %c0_i32 = arith.constant 0 : i32
    %c0_i32_0 = arith.constant 0 : i32
    %c0_i32_1 = arith.constant 0 : i32
    return %c0_i32, %c0_i32_0 : i32, i32
  }
  func.func @transform_6(%arg0: i32) -> (i32, i32) {
    %c0_i32 = arith.constant 0 : i32
    %c0_i32_0 = arith.constant 0 : i32
    %c0_i32_1 = arith.constant 0 : i32
    return %c0_i32, %c0_i32_0 : i32, i32
  }
  func.func @transform_7(%arg0: i32) -> (i32, i32) {
    %c0_i32 = arith.constant 0 : i32
    %c0_i32_0 = arith.constant 0 : i32
    return %arg0, %c0_i32 : i32, i32
  }
}

</mosaic_0001>

<llo_original>
// kernel: simple_cnn_forward.1
$region0: #{simple_cnn_forward.1}
  #allocation0 [shape = 'u32[]', space=smem, size = 0x4, offset = 0x4, fixed_abs, tag = 'smem constant byte address 0x4 - core index']
  #allocation1 [shape = 'u32[144,128]{1,0:T(1,128)}', space=vmem, size = 0x12000, scoped, tag = 'internal scratch']
  %s0 = inlined_call_operand.vmem [shape: f32[16,8,256], index: 0, kind: input, shape index: {}]
  %s1 = inlined_call_operand.hbm [shape: f32[16,9], index: 1, kind: input, shape index: {}]
  %s2 = inlined_call_operand.hbm [shape: f32[16], index: 2, kind: input, shape index: {}]
  %s3 = inlined_call_operand.hbm [shape: f32[16,256,128], index: 3, kind: input, shape index: {}]
  %s4 = inlined_call_operand.hbm [shape: f32[1,128], index: 4, kind: input, shape index: {}]
  %s5 = inlined_call_operand.hbm [shape: f32[128,128], index: 5, kind: input, shape index: {}]
  %s6 = inlined_call_operand.hbm [shape: f32[1,128], index: 6, kind: input, shape index: {}]
  %s7 = inlined_call_operand.vmem [shape: f32[8,128], index: 7, kind: output, shape index: {}]
  %s8 = sld [smem:[#allocation0]]
  $region62: #{simple_cnn_forward.1} parent=0
    _
  %s10 = ssub.s32 1, %s8
  %s11 = scalar_select 0, %s10, %s8
  $region1: #{simple_cnn_forward.1} parent=0
    #allocation2 [shape = 'u8[8192]{0}', space=smem, size = 0x2000, scoped, tag = 'input window, operand 1, single buffered']
    #allocation3 [shape = 's32[1]{0}', space=sflag, size = 0x4, scoped, tag = 'scoped memory for simple_cnn_forward.1']
    #allocation4 [shape = 's32[1]{0}', space=sflag, size = 0x4, scoped, tag = 'scoped memory for simple_cnn_forward.1']
    #allocation5 [shape = 'u8[512]{0}', space=smem, size = 0x200, scoped, tag = 'input window, operand 2, single buffered']
    #allocation6 [shape = 's32[1]{0}', space=sflag, size = 0x4, scoped, tag = 'scoped memory for simple_cnn_forward.1']
    #allocation7 [shape = 'u8[2097152]{0}', space=vmem, size = 0x200000, scoped, tag = 'input window, operand 3, single buffered']
    #allocation8 [shape = 'u8[512]{0}', space=vmem, size = 0x400, scoped, tag = 'input window, operand 4, single buffered']
    #allocation9 [shape = 's32[1]{0}', space=sflag, size = 0x4, scoped, tag = 'scoped memory for simple_cnn_forward.1']
    #allocation10 [shape = 'u8[65536]{0}', space=vmem, size = 0x10000, scoped, tag = 'input window, operand 5, single buffered']
    #allocation11 [shape = 'u8[512]{0}', space=vmem, size = 0x400, scoped, tag = 'input window, operand 6, single buffered']
    #allocation12 [shape = 's32[1]{0}', space=sflag, size = 0x4, scoped, tag = 'scoped memory for simple_cnn_forward.1']
    %12 = vsyncpa [#allocation4], 0
    %13 = vsyncpa [#allocation6], 0
    %14 = vsyncpa [#allocation3], 0
    %15 = vsyncpa [#allocation9], 0
    %16 = vsyncpa [#allocation12], 0
    // Predicated region
    $region2: #{simple_cnn_forward.1} parent=1 // pred_check
      _
    $region3: #{simple_cnn_forward.1} parent=1 // pred_check_branch
      %18 = sbr.rel (0) target = $region5
    $region4: #{simple_cnn_forward.1} parent=1 // pred_region
      _
    $region5: #{simple_cnn_forward.1} parent=1 // pred_fallthru
      _
    // Predicated region
    $region6: #{simple_cnn_forward.1} parent=1 // pred_check
      _
    $region7: #{simple_cnn_forward.1} parent=1 // pred_check_branch
      %20 = sbr.rel (0) target = $region9
    $region8: #{simple_cnn_forward.1} parent=1 // pred_region
      %s22 = ssub.s32 256, 256
      %23 = vsyncadd [#allocation4], %s22
      %28 = dma.hbm_to_smem %s1, 256, [#allocation2], [#allocation4], 128, 128, 8
    $region9: #{simple_cnn_forward.1} parent=1 // pred_fallthru
      _
    // Predicated region
    $region10: #{simple_cnn_forward.1} parent=1 // pred_check
      _
    $region11: #{simple_cnn_forward.1} parent=1 // pred_check_branch
      %30 = sbr.rel (0) target = $region13
    $region12: #{simple_cnn_forward.1} parent=1 // pred_region
      %s32 = ssub.s32 16, 16
      %33 = vsyncadd [#allocation6], %s32
      %36 = dma.hbm_to_smem %s2, 16, [#allocation5], [#allocation6]
    $region13: #{simple_cnn_forward.1} parent=1 // pred_fallthru
      _
    // Predicated region
    $region14: #{simple_cnn_forward.1} parent=1 // pred_check
      _
    $region15: #{simple_cnn_forward.1} parent=1 // pred_check_branch
      %38 = sbr.rel (0) target = $region17
    $region16: #{simple_cnn_forward.1} parent=1 // pred_region
      %s40 = ssub.s32 65536, 65536
      %41 = vsyncadd [#allocation3], %s40
      %s42 = sshll.u32 [#allocation7], 4
      %s43 = int_to_ptr.vmem [resolvable:$true] %s42
      %48 = dma.hbm_to_vmem [thread:$0]  %s3, 65536, %s43, [#allocation3], 128, 128, 8
    $region17: #{simple_cnn_forward.1} parent=1 // pred_fallthru
      _
    // Predicated region
    $region18: #{simple_cnn_forward.1} parent=1 // pred_check
      _
    $region19: #{simple_cnn_forward.1} parent=1 // pred_check_branch
      %50 = sbr.rel (0) target = $region21
    $region20: #{simple_cnn_forward.1} parent=1 // pred_region
      %s52 = ssub.s32 16, 16
      %53 = vsyncadd [#allocation9], %s52
      %s55 = sshll.u32 [#allocation8], 4
      %s56 = int_to_ptr.vmem [resolvable:$true] %s55
      %58 = dma.hbm_to_vmem [thread:$0]  %s4, 16, %s56, [#allocation9]
    $region21: #{simple_cnn_forward.1} parent=1 // pred_fallthru
      _
    // Predicated region
    $region22: #{simple_cnn_forward.1} parent=1 // pred_check
      _
    $region23: #{simple_cnn_forward.1} parent=1 // pred_check_branch
      %60 = sbr.rel (0) target = $region25
    $region24: #{simple_cnn_forward.1} parent=1 // pred_region
      %s62 = ssub.s32 2048, 2048
      %63 = vsyncadd [#allocation9], %s62
      %s64 = sshll.u32 [#allocation10], 4
      %s65 = int_to_ptr.vmem [resolvable:$true] %s64
      %70 = dma.hbm_to_vmem [thread:$0]  %s5, 2048, %s65, [#allocation9], 128, 128, 8
    $region25: #{simple_cnn_forward.1} parent=1 // pred_fallthru
      _
    // Predicated region
    $region26: #{simple_cnn_forward.1} parent=1 // pred_check
      _
    $region27: #{simple_cnn_forward.1} parent=1 // pred_check_branch
      %72 = sbr.rel (0) target = $region29
    $region28: #{simple_cnn_forward.1} parent=1 // pred_region
      %s74 = ssub.s32 16, 16
      %75 = vsyncadd [#allocation12], %s74
      %s77 = sshll.u32 [#allocation11], 4
      %s78 = int_to_ptr.vmem [resolvable:$true] %s77
      %80 = dma.hbm_to_vmem [thread:$0]  %s6, 16, %s78, [#allocation12]
    $region29: #{simple_cnn_forward.1} parent=1 // pred_fallthru
      _
    // Predicated region
    $region30: #{simple_cnn_forward.1} parent=1 // pred_check
      _
    $region31: #{simple_cnn_forward.1} parent=1 // pred_check_branch
      %82 = sbr.rel (0) target = $region33
    $region32: #{simple_cnn_forward.1} parent=1 // pred_region
      %83 = dma.done [#allocation4], 256
    $region33: #{simple_cnn_forward.1} parent=1 // pred_fallthru
      _
    // Predicated region
    $region34: #{simple_cnn_forward.1} parent=1 // pred_check
      _
    $region35: #{simple_cnn_forward.1} parent=1 // pred_check_branch
      %85 = sbr.rel (0) target = $region37
    $region36: #{simple_cnn_forward.1} parent=1 // pred_region
      %86 = dma.done [#allocation6], 16
    $region37: #{simple_cnn_forward.1} parent=1 // pred_fallthru
      _
    // Predicated region
    $region38: #{simple_cnn_forward.1} parent=1 // pred_check
      _
    $region39: #{simple_cnn_forward.1} parent=1 // pred_check_branch
      %88 = sbr.rel (0) target = $region41
    $region40: #{simple_cnn_forward.1} parent=1 // pred_region
      %89 = dma.done [#allocation3], 65536
    $region41: #{simple_cnn_forward.1} parent=1 // pred_fallthru
      _
    // Predicated region
    $region42: #{simple_cnn_forward.1} parent=1 // pred_check
      _
    $region43: #{simple_cnn_forward.1} parent=1 // pred_check_branch
      %91 = sbr.rel (0) target = $region45
    $region44: #{simple_cnn_forward.1} parent=1 // pred_region
      %92 = dma.done [#allocation9], 16
    $region45: #{simple_cnn_forward.1} parent=1 // pred_fallthru
      _
    // Predicated region
    $region46: #{simple_cnn_forward.1} parent=1 // pred_check
      _
    $region47: #{simple_cnn_forward.1} parent=1 // pred_check_branch
      %94 = sbr.rel (0) target = $region49
    $region48: #{simple_cnn_forward.1} parent=1 // pred_region
      %95 = dma.done [#allocation9], 2048
    $region49: #{simple_cnn_forward.1} parent=1 // pred_fallthru
      _
    // Predicated region
    $region50: #{simple_cnn_forward.1} parent=1 // pred_check
      _
    $region51: #{simple_cnn_forward.1} parent=1 // pred_check_branch
      %97 = sbr.rel (0) target = $region53
    $region52: #{simple_cnn_forward.1} parent=1 // pred_region
      %98 = dma.done [#allocation12], 16
    $region53: #{simple_cnn_forward.1} parent=1 // pred_fallthru
      _
    %99 = sfence
    %v100 = vld [vmem:[%s0] sm:$0xff]
    %v101 = vld [vmem:[%s0 + $0x8] sm:$0xff]
    %s102 = scalar_lea.vmem %s0, 16
    %v103 = vld [vmem:[%s102] sm:$0xff]
    %v104 = vld [vmem:[%s102 + $0x8] sm:$0xff]
    %s105 = scalar_lea.vmem %s0, 32
    %v106 = vld [vmem:[%s105] sm:$0xff]
    %v107 = vld [vmem:[%s105 + $0x8] sm:$0xff]
    %s108 = scalar_lea.vmem %s0, 48
    %v109 = vld [vmem:[%s108] sm:$0xff]
    %v110 = vld [vmem:[%s108 + $0x8] sm:$0xff]
    %s111 = scalar_lea.vmem %s0, 64
    %v112 = vld [vmem:[%s111] sm:$0xff]
    %v113 = vld [vmem:[%s111 + $0x8] sm:$0xff]
    %s114 = scalar_lea.vmem %s0, 80
    %v115 = vld [vmem:[%s114] sm:$0xff]
    %v116 = vld [vmem:[%s114 + $0x8] sm:$0xff]
    %s117 = scalar_lea.vmem %s0, 96
    %v118 = vld [vmem:[%s117] sm:$0xff]
    %v119 = vld [vmem:[%s117 + $0x8] sm:$0xff]
    %s120 = scalar_lea.vmem %s0, 112
    %v121 = vld [vmem:[%s120] sm:$0xff]
    %v122 = vld [vmem:[%s120 + $0x8] sm:$0xff]
    %s123 = scalar_lea.vmem %s0, 128
    %v124 = vld [vmem:[%s123] sm:$0xff]
    %v125 = vld [vmem:[%s123 + $0x8] sm:$0xff]
    %s126 = scalar_lea.vmem %s0, 144
    %v127 = vld [vmem:[%s126] sm:$0xff]
    %v128 = vld [vmem:[%s126 + $0x8] sm:$0xff]
    %s129 = scalar_lea.vmem %s0, 160
    %v130 = vld [vmem:[%s129] sm:$0xff]
    %v131 = vld [vmem:[%s129 + $0x8] sm:$0xff]
    %s132 = scalar_lea.vmem %s0, 176
    %v133 = vld [vmem:[%s132] sm:$0xff]
    %v134 = vld [vmem:[%s132 + $0x8] sm:$0xff]
    %s135 = scalar_lea.vmem %s0, 192
    %v136 = vld [vmem:[%s135] sm:$0xff]
    %v137 = vld [vmem:[%s135 + $0x8] sm:$0xff]
    %s138 = scalar_lea.vmem %s0, 208
    %v139 = vld [vmem:[%s138] sm:$0xff]
    %v140 = vld [vmem:[%s138 + $0x8] sm:$0xff]
    %s141 = scalar_lea.vmem %s0, 224
    %v142 = vld [vmem:[%s141] sm:$0xff]
    %v143 = vld [vmem:[%s141 + $0x8] sm:$0xff]
    %s144 = scalar_lea.vmem %s0, 240
    %v145 = vld [vmem:[%s144] sm:$0xff]
    %v146 = vld [vmem:[%s144 + $0x8] sm:$0xff]
    %s147 = sld [smem:[#allocation2]]
    %s148 = sld [smem:[#allocation2 + $0x1]]
    %s149 = sld [smem:[#allocation2 + $0x2]]
    %s150 = sld [smem:[#allocation2 + $0x3]]
    %s151 = sld [smem:[#allocation2 + $0x4]]
    %s152 = sld [smem:[#allocation2 + $0x5]]
    %s153 = sld [smem:[#allocation2 + $0x6]]
    %s154 = sld [smem:[#allocation2 + $0x7]]
    %s155 = sld [smem:[#allocation2 + $0x8]]
    %v156 = vstv %s147
    %v157 = vmul.f32 %v100, %v156
    %v158 = vmul.f32 %v101, %v156
    %v159 = vstv %s148
    %v160 = vmul.f32 %v103, %v159
    %v161 = vmul.f32 %v104, %v159
    %v162 = vadd.f32 %v157, %v160
    %v163 = vadd.f32 %v158, %v161
    %v164 = vstv %s149
    %v165 = vmul.f32 %v106, %v164
    %v166 = vmul.f32 %v107, %v164
    %v167 = vadd.f32 %v162, %v165
    %v168 = vadd.f32 %v163, %v166
    %v169 = vstv %s150
    %v170 = vmul.f32 %v112, %v169
    %v171 = vmul.f32 %v113, %v169
    %v172 = vadd.f32 %v167, %v170
    %v173 = vadd.f32 %v168, %v171
    %v174 = vstv %s151
    %v175 = vmul.f32 %v115, %v174
    %v176 = vmul.f32 %v116, %v174
    %v177 = vadd.f32 %v172, %v175
    %v178 = vadd.f32 %v173, %v176
    %v179 = vstv %s152
    %v180 = vmul.f32 %v118, %v179
    %v181 = vmul.f32 %v119, %v179
    %v182 = vadd.f32 %v177, %v180
    %v183 = vadd.f32 %v178, %v181
    %v184 = vstv %s153
    %v185 = vmul.f32 %v124, %v184
    %v186 = vmul.f32 %v125, %v184
    %v187 = vadd.f32 %v182, %v185
    %v188 = vadd.f32 %v183, %v186
    %v189 = vstv %s154
    %v190 = vmul.f32 %v127, %v189
    %v191 = vmul.f32 %v128, %v189
    %v192 = vadd.f32 %v187, %v190
    %v193 = vadd.f32 %v188, %v191
    %v194 = vstv %s155
    %v195 = vmul.f32 %v130, %v194
    %v196 = vmul.f32 %v131, %v194
    %v197 = vadd.f32 %v192, %v195
    %v198 = vadd.f32 %v193, %v196
    %v199 = vmul.f32 %v103, %v156
    %v200 = vmul.f32 %v104, %v156
    %v201 = vmul.f32 %v106, %v159
    %v202 = vmul.f32 %v107, %v159
    %v203 = vadd.f32 %v199, %v201
    %v204 = vadd.f32 %v200, %v202
    %v205 = vmul.f32 %v109, %v164
    %v206 = vmul.f32 %v110, %v164
    %v207 = vadd.f32 %v203, %v205
    %v208 = vadd.f32 %v204, %v206
    %v209 = vmul.f32 %v115, %v169
    %v210 = vmul.f32 %v116, %v169
    %v211 = vadd.f32 %v207, %v209
    %v212 = vadd.f32 %v208, %v210
    %v213 = vmul.f32 %v118, %v174
    %v214 = vmul.f32 %v119, %v174
    %v215 = vadd.f32 %v211, %v213
    %v216 = vadd.f32 %v212, %v214
    %v217 = vmul.f32 %v121, %v179
    %v218 = vmul.f32 %v122, %v179
    %v219 = vadd.f32 %v215, %v217
    %v220 = vadd.f32 %v216, %v218
    %v221 = vmul.f32 %v127, %v184
    %v222 = vmul.f32 %v128, %v184
    %v223 = vadd.f32 %v219, %v221
    %v224 = vadd.f32 %v220, %v222
    %v225 = vmul.f32 %v130, %v189
    %v226 = vmul.f32 %v131, %v189
    %v227 = vadd.f32 %v223, %v225
    %v228 = vadd.f32 %v224, %v226
    %v229 = vmul.f32 %v133, %v194
    %v230 = vmul.f32 %v134, %v194
    %v231 = vadd.f32 %v227, %v229
    %v232 = vadd.f32 %v228, %v230
    %v233 = vmul.f32 %v112, %v156
    %v234 = vmul.f32 %v113, %v156
    %v235 = vmul.f32 %v115, %v159
    %v236 = vmul.f32 %v116, %v159
    %v237 = vadd.f32 %v233, %v235
    %v238 = vadd.f32 %v234, %v236
    %v239 = vmul.f32 %v118, %v164
    %v240 = vmul.f32 %v119, %v164
    %v241 = vadd.f32 %v237, %v239
    %v242 = vadd.f32 %v238, %v240
    %v243 = vmul.f32 %v124, %v169
    %v244 = vmul.f32 %v125, %v169
    %v245 = vadd.f32 %v241, %v243
    %v246 = vadd.f32 %v242, %v244
    %v247 = vmul.f32 %v127, %v174
    %v248 = vmul.f32 %v128, %v174
    %v249 = vadd.f32 %v245, %v247
    %v250 = vadd.f32 %v246, %v248
    %v251 = vmul.f32 %v130, %v179
    %v252 = vmul.f32 %v131, %v179
    %v253 = vadd.f32 %v249, %v251
    %v254 = vadd.f32 %v250, %v252
    %v255 = vmul.f32 %v136, %v184
    %v256 = vmul.f32 %v137, %v184
    %v257 = vadd.f32 %v253, %v255
    %v258 = vadd.f32 %v254, %v256
    %v259 = vmul.f32 %v139, %v189
    %v260 = vmul.f32 %v140, %v189
    %v261 = vadd.f32 %v257, %v259
    %v262 = vadd.f32 %v258, %v260
    %v263 = vmul.f32 %v142, %v194
    %v264 = vmul.f32 %v143, %v194
    %v265 = vadd.f32 %v261, %v263
    %v266 = vadd.f32 %v262, %v264
    %v267 = vmul.f32 %v115, %v156
    %v268 = vmul.f32 %v116, %v156
    %v269 = vmul.f32 %v118, %v159
    %v270 = vmul.f32 %v119, %v159
    %v271 = vadd.f32 %v267, %v269
    %v272 = vadd.f32 %v268, %v270
    %v273 = vmul.f32 %v121, %v164
    %v274 = vmul.f32 %v122, %v164
    %v275 = vadd.f32 %v271, %v273
    %v276 = vadd.f32 %v272, %v274
    %v277 = vmul.f32 %v127, %v169
    %v278 = vmul.f32 %v128, %v169
    %v279 = vadd.f32 %v275, %v277
    %v280 = vadd.f32 %v276, %v278
    %v281 = vmul.f32 %v130, %v174
    %v282 = vmul.f32 %v131, %v174
    %v283 = vadd.f32 %v279, %v281
    %v284 = vadd.f32 %v280, %v282
    %v285 = vmul.f32 %v133, %v179
    %v286 = vmul.f32 %v134, %v179
    %v287 = vadd.f32 %v283, %v285
    %v288 = vadd.f32 %v284, %v286
    %v289 = vmul.f32 %v139, %v184
    %v290 = vmul.f32 %v140, %v184
    %v291 = vadd.f32 %v287, %v289
    %v292 = vadd.f32 %v288, %v290
    %v293 = vmul.f32 %v142, %v189
    %v294 = vmul.f32 %v143, %v189
    %v295 = vadd.f32 %v291, %v293
    %v296 = vadd.f32 %v292, %v294
    %v297 = vmul.f32 %v145, %v194
    %v298 = vmul.f32 %v146, %v194
    %v299 = vadd.f32 %v295, %v297
    %v300 = vadd.f32 %v296, %v298
    %v301 = vmax.f32 %v197, %v231
    %v302 = vmax.f32 %v198, %v232
    %v303 = vmax.f32 %v265, %v299
    %v304 = vmax.f32 %v266, %v300
    %v305 = vmax.f32 %v301, %v303
    %v306 = vmax.f32 %v302, %v304
    %s307 = sld [smem:[#allocation5]]
    %v308 = vstv %s307
    %v309 = vadd.f32 %v305, %v308
    %v310 = vadd.f32 %v306, %v308
    %v311 = vmax.f32 %v309, 0.0
    %v312 = vmax.f32 %v310, 0.0
    %v313 = vld [vmem:[#allocation7] sm:$0xff]
    %v314 = vld [vmem:[#allocation7 + $0x8] sm:$0xff]
    %v315 = vld [vmem:[#allocation7 + $0x10] sm:$0xff]
    %v316 = vld [vmem:[#allocation7 + $0x18] sm:$0xff]
    %v317 = vld [vmem:[#allocation7 + $0x20] sm:$0xff]
    %v318 = vld [vmem:[#allocation7 + $0x28] sm:$0xff]
    %v319 = vld [vmem:[#allocation7 + $0x30] sm:$0xff]
    %v320 = vld [vmem:[#allocation7 + $0x38] sm:$0xff]
    %v321 = vld [vmem:[#allocation7 + $0x40] sm:$0xff]
    %v322 = vld [vmem:[#allocation7 + $0x48] sm:$0xff]
    %v323 = vld [vmem:[#allocation7 + $0x50] sm:$0xff]
    %v324 = vld [vmem:[#allocation7 + $0x58] sm:$0xff]
    %v325 = vld [vmem:[#allocation7 + $0x60] sm:$0xff]
    %v326 = vld [vmem:[#allocation7 + $0x68] sm:$0xff]
    %v327 = vld [vmem:[#allocation7 + $0x70] sm:$0xff]
    %v328 = vld [vmem:[#allocation7 + $0x78] sm:$0xff]
    %v329 = vld [vmem:[#allocation7 + $0x80] sm:$0xff]
    %v330 = vld [vmem:[#allocation7 + $0x88] sm:$0xff]
    %v331 = vld [vmem:[#allocation7 + $0x90] sm:$0xff]
    %v332 = vld [vmem:[#allocation7 + $0x98] sm:$0xff]
    %v333 = vld [vmem:[#allocation7 + $0xa0] sm:$0xff]
    %v334 = vld [vmem:[#allocation7 + $0xa8] sm:$0xff]
    %v335 = vld [vmem:[#allocation7 + $0xb0] sm:$0xff]
    %v336 = vld [vmem:[#allocation7 + $0xb8] sm:$0xff]
    %v337 = vld [vmem:[#allocation7 + $0xc0] sm:$0xff]
    %v338 = vld [vmem:[#allocation7 + $0xc8] sm:$0xff]
    %v339 = vld [vmem:[#allocation7 + $0xd0] sm:$0xff]
    %v340 = vld [vmem:[#allocation7 + $0xd8] sm:$0xff]
    %v341 = vld [vmem:[#allocation7 + $0xe0] sm:$0xff]
    %v342 = vld [vmem:[#allocation7 + $0xe8] sm:$0xff]
    %v343 = vld [vmem:[#allocation7 + $0xf0] sm:$0xff]
    %v344 = vld [vmem:[#allocation7 + $0xf8] sm:$0xff]
    %s345 = sld [smem:[#allocation2 + $0x80]]
    %s346 = sld [smem:[#allocation2 + $0x81]]
    %s347 = sld [smem:[#allocation2 + $0x82]]
    %s348 = sld [smem:[#allocation2 + $0x83]]
    %s349 = sld [smem:[#allocation2 + $0x84]]
    %s350 = sld [smem:[#allocation2 + $0x85]]
    %s351 = sld [smem:[#allocation2 + $0x86]]
    %s352 = sld [smem:[#allocation2 + $0x87]]
    %s353 = sld [smem:[#allocation2 + $0x88]]
    %v354 = vstv %s345
    %v355 = vmul.f32 %v100, %v354
    %v356 = vmul.f32 %v101, %v354
    %v357 = vstv %s346
    %v358 = vmul.f32 %v103, %v357
    %v359 = vmul.f32 %v104, %v357
    %v360 = vadd.f32 %v355, %v358
    %v361 = vadd.f32 %v356, %v359
    %v362 = vstv %s347
    %v363 = vmul.f32 %v106, %v362
    %v364 = vmul.f32 %v107, %v362
    %v365 = vadd.f32 %v360, %v363
    %v366 = vadd.f32 %v361, %v364
    %v367 = vstv %s348
    %v368 = vmul.f32 %v112, %v367
    %v369 = vmul.f32 %v113, %v367
    %v370 = vadd.f32 %v365, %v368
    %v371 = vadd.f32 %v366, %v369
    %v372 = vstv %s349
    %v373 = vmul.f32 %v115, %v372
    %v374 = vmul.f32 %v116, %v372
    %v375 = vadd.f32 %v370, %v373
    %v376 = vadd.f32 %v371, %v374
    %v377 = vstv %s350
    %v378 = vmul.f32 %v118, %v377
    %v379 = vmul.f32 %v119, %v377
    %v380 = vadd.f32 %v375, %v378
    %v381 = vadd.f32 %v376, %v379
    %v382 = vstv %s351
    %v383 = vmul.f32 %v124, %v382
    %v384 = vmul.f32 %v125, %v382
    %v385 = vadd.f32 %v380, %v383
    %v386 = vadd.f32 %v381, %v384
    %v387 = vstv %s352
    %v388 = vmul.f32 %v127, %v387
    %v389 = vmul.f32 %v128, %v387
    %v390 = vadd.f32 %v385, %v388
    %v391 = vadd.f32 %v386, %v389
    %v392 = vstv %s353
    %v393 = vmul.f32 %v130, %v392
    %v394 = vmul.f32 %v131, %v392
    %v395 = vadd.f32 %v390, %v393
    %v396 = vadd.f32 %v391, %v394
    %v397 = vmul.f32 %v103, %v354
    %v398 = vmul.f32 %v104, %v354
    %v399 = vmul.f32 %v106, %v357
    %v400 = vmul.f32 %v107, %v357
    %v401 = vadd.f32 %v397, %v399
    %v402 = vadd.f32 %v398, %v400
    %v403 = vmul.f32 %v109, %v362
    %v404 = vmul.f32 %v110, %v362
    %v405 = vadd.f32 %v401, %v403
    %v406 = vadd.f32 %v402, %v404
    %v407 = vmul.f32 %v115, %v367
    %v408 = vmul.f32 %v116, %v367
    %v409 = vadd.f32 %v405, %v407
    %v410 = vadd.f32 %v406, %v408
    %v411 = vmul.f32 %v118, %v372
    %v412 = vmul.f32 %v119, %v372
    %v413 = vadd.f32 %v409, %v411
    %v414 = vadd.f32 %v410, %v412
    %v415 = vmul.f32 %v121, %v377
    %v416 = vmul.f32 %v122, %v377
    %v417 = vadd.f32 %v413, %v415
    %v418 = vadd.f32 %v414, %v416
    %v419 = vmul.f32 %v127, %v382
    %v420 = vmul.f32 %v128, %v382
    %v421 = vadd.f32 %v417, %v419
    %v422 = vadd.f32 %v418, %v420
    %v423 = vmul.f32 %v130, %v387
    %v424 = vmul.f32 %v131, %v387
    %v425 = vadd.f32 %v421, %v423
    %v426 = vadd.f32 %v422, %v424
    %v427 = vmul.f32 %v133, %v392
    %v428 = vmul.f32 %v134, %v392
    %v429 = vadd.f32 %v425, %v427
    %v430 = vadd.f32 %v426, %v428
    %v431 = vmul.f32 %v112, %v354
    %v432 = vmul.f32 %v113, %v354
    %v433 = vmul.f32 %v115, %v357
    %v434 = vmul.f32 %v116, %v357
    %v435 = vadd.f32 %v431, %v433
    %v436 = vadd.f32 %v432, %v434
    %v437 = vmul.f32 %v118, %v362
    %v438 = vmul.f32 %v119, %v362
    %v439 = vadd.f32 %v435, %v437
    %v440 = vadd.f32 %v436, %v438
    %v441 = vmul.f32 %v124, %v367
    %v442 = vmul.f32 %v125, %v367
    %v443 = vadd.f32 %v439, %v441
    %v444 = vadd.f32 %v440, %v442
    %v445 = vmul.f32 %v127, %v372
    %v446 = vmul.f32 %v128, %v372
    %v447 = vadd.f32 %v443, %v445
    %v448 = vadd.f32 %v444, %v446
    %v449 = vmul.f32 %v130, %v377
    %v450 = vmul.f32 %v131, %v377
    %v451 = vadd.f32 %v447, %v449
    %v452 = vadd.f32 %v448, %v450
    %v453 = vmul.f32 %v136, %v382
    %v454 = vmul.f32 %v137, %v382
    %v455 = vadd.f32 %v451, %v453
    %v456 = vadd.f32 %v452, %v454
    %v457 = vmul.f32 %v139, %v387
    %v458 = vmul.f32 %v140, %v387
    %v459 = vadd.f32 %v455, %v457
    %v460 = vadd.f32 %v456, %v458
    %v461 = vmul.f32 %v142, %v392
    %v462 = vmul.f32 %v143, %v392
    %v463 = vadd.f32 %v459, %v461
    %v464 = vadd.f32 %v460, %v462
    %v465 = vmul.f32 %v115, %v354
    %v466 = vmul.f32 %v116, %v354
    %v467 = vmul.f32 %v118, %v357
    %v468 = vmul.f32 %v119, %v357
    %v469 = vadd.f32 %v465, %v467
    %v470 = vadd.f32 %v466, %v468
    %v471 = vmul.f32 %v121, %v362
    %v472 = vmul.f32 %v122, %v362
    %v473 = vadd.f32 %v469, %v471
    %v474 = vadd.f32 %v470, %v472
    %v475 = vmul.f32 %v127, %v367
    %v476 = vmul.f32 %v128, %v367
    %v477 = vadd.f32 %v473, %v475
    %v478 = vadd.f32 %v474, %v476
    %v479 = vmul.f32 %v130, %v372
    %v480 = vmul.f32 %v131, %v372
    %v481 = vadd.f32 %v477, %v479
    %v482 = vadd.f32 %v478, %v480
    %v483 = vmul.f32 %v133, %v377
    %v484 = vmul.f32 %v134, %v377
    %v485 = vadd.f32 %v481, %v483
    %v486 = vadd.f32 %v482, %v484
    %v487 = vmul.f32 %v139, %v382
    %v488 = vmul.f32 %v140, %v382
    %v489 = vadd.f32 %v485, %v487
    %v490 = vadd.f32 %v486, %v488
    %v491 = vmul.f32 %v142, %v387
    %v492 = vmul.f32 %v143, %v387
    %v493 = vadd.f32 %v489, %v491
    %v494 = vadd.f32 %v490, %v492
    %v495 = vmul.f32 %v145, %v392
    %v496 = vmul.f32 %v146, %v392
    %v497 = vadd.f32 %v493, %v495
    %v498 = vadd.f32 %v494, %v496
    %v499 = vmax.f32 %v395, %v429
    %v500 = vmax.f32 %v396, %v430
    %v501 = vmax.f32 %v463, %v497
    %v502 = vmax.f32 %v464, %v498
    %v503 = vmax.f32 %v499, %v501
    %v504 = vmax.f32 %v500, %v502
    %s505 = sld [smem:[#allocation5 + $0x1]]
    %v506 = vstv %s505
    %v507 = vadd.f32 %v503, %v506
    %v508 = vadd.f32 %v504, %v506
    %v509 = vmax.f32 %v507, 0.0
    %v510 = vmax.f32 %v508, 0.0
    %s511 = scalar_lea.vmem [#allocation7], 256
    %v512 = vld [vmem:[%s511] sm:$0xff]
    %v513 = vld [vmem:[%s511 + $0x8] sm:$0xff]
    %v514 = vld [vmem:[%s511 + $0x10] sm:$0xff]
    %v515 = vld [vmem:[%s511 + $0x18] sm:$0xff]
    %v516 = vld [vmem:[%s511 + $0x20] sm:$0xff]
    %v517 = vld [vmem:[%s511 + $0x28] sm:$0xff]
    %v518 = vld [vmem:[%s511 + $0x30] sm:$0xff]
    %v519 = vld [vmem:[%s511 + $0x38] sm:$0xff]
    %v520 = vld [vmem:[%s511 + $0x40] sm:$0xff]
    %v521 = vld [vmem:[%s511 + $0x48] sm:$0xff]
    %v522 = vld [vmem:[%s511 + $0x50] sm:$0xff]
    %v523 = vld [vmem:[%s511 + $0x58] sm:$0xff]
    %v524 = vld [vmem:[%s511 + $0x60] sm:$0xff]
    %v525 = vld [vmem:[%s511 + $0x68] sm:$0xff]
    %v526 = vld [vmem:[%s511 + $0x70] sm:$0xff]
    %v527 = vld [vmem:[%s511 + $0x78] sm:$0xff]
    %v528 = vld [vmem:[%s511 + $0x80] sm:$0xff]
    %v529 = vld [vmem:[%s511 + $0x88] sm:$0xff]
    %v530 = vld [vmem:[%s511 + $0x90] sm:$0xff]
    %v531 = vld [vmem:[%s511 + $0x98] sm:$0xff]
    %v532 = vld [vmem:[%s511 + $0xa0] sm:$0xff]
    %v533 = vld [vmem:[%s511 + $0xa8] sm:$0xff]
    %v534 = vld [vmem:[%s511 + $0xb0] sm:$0xff]
    %v535 = vld [vmem:[%s511 + $0xb8] sm:$0xff]
    %v536 = vld [vmem:[%s511 + $0xc0] sm:$0xff]
    %v537 = vld [vmem:[%s511 + $0xc8] sm:$0xff]
    %v538 = vld [vmem:[%s511 + $0xd0] sm:$0xff]
    %v539 = vld [vmem:[%s511 + $0xd8] sm:$0xff]
    %v540 = vld [vmem:[%s511 + $0xe0] sm:$0xff]
    %v541 = vld [vmem:[%s511 + $0xe8] sm:$0xff]
    %v542 = vld [vmem:[%s511 + $0xf0] sm:$0xff]
    %v543 = vld [vmem:[%s511 + $0xf8] sm:$0xff]
    %544 = vmatprep.subr.mxu0 0.0
    %545 = vmatpush1.msra.mxu0 %v512
    %546 = vmatprep.subr.mxu0 0.0
    %547 = vmatpush1.msra.mxu0 %v513
    %548 = vmatprep.subr.mxu0 0.0
    %549 = vmatpush1.msra.mxu0 %v514
    %550 = vmatprep.subr.mxu0 0.0
    %551 = vmatpush1.msra.mxu0 %v515
    %552 = vmatprep.subr.mxu0 0.0
    %553 = vmatpush1.msra.mxu0 %v516
    %554 = vmatprep.subr.mxu0 0.0
    %555 = vmatpush1.msra.mxu0 %v517
    %556 = vmatprep.subr.mxu0 0.0
    %557 = vmatpush1.msra.mxu0 %v518
    %558 = vmatprep.subr.mxu0 0.0
    %559 = vmatpush1.msra.mxu0 %v519
    %560 = vmatprep.subr.mxu0 0.0
    %561 = vmatpush1.msra.mxu0 %v520
    %562 = vmatprep.subr.mxu0 0.0
    %563 = vmatpush1.msra.mxu0 %v521
    %564 = vmatprep.subr.mxu0 0.0
    %565 = vmatpush1.msra.mxu0 %v522
    %566 = vmatprep.subr.mxu0 0.0
    %567 = vmatpush1.msra.mxu0 %v523
    %568 = vmatprep.subr.mxu0 0.0
    %569 = vmatpush1.msra.mxu0 %v524
    %570 = vmatprep.subr.mxu0 0.0
    %571 = vmatpush1.msra.mxu0 %v525
    %572 = vmatprep.subr.mxu0 0.0
    %573 = vmatpush1.msra.mxu0 %v526
    %574 = vmatprep.subr.mxu0 0.0
    %575 = vmatpush1.msra.mxu0 %v527
    %576 = vmatprep.subr.mxu0 0.0
    %577 = vmatpush1.msra.mxu0 %v528
    %578 = vmatprep.subr.mxu0 0.0
    %579 = vmatpush1.msra.mxu0 %v529
    %580 = vmatprep.subr.mxu0 0.0
    %581 = vmatpush1.msra.mxu0 %v530
    %582 = vmatprep.subr.mxu0 0.0
    %583 = vmatpush1.msra.mxu0 %v531
    %584 = vmatprep.subr.mxu0 0.0
    %585 = vmatpush1.msra.mxu0 %v532
    %586 = vmatprep.subr.mxu0 0.0
    %587 = vmatpush1.msra.mxu0 %v533
    %588 = vmatprep.subr.mxu0 0.0
    %589 = vmatpush1.msra.mxu0 %v534
    %590 = vmatprep.subr.mxu0 0.0
    %591 = vmatpush1.msra.mxu0 %v535
    %592 = vmatprep.subr.mxu0 0.0
    %593 = vmatpush1.msra.mxu0 %v536
    %594 = vmatprep.subr.mxu0 0.0
    %595 = vmatpush1.msra.mxu0 %v537
    %596 = vmatprep.subr.mxu0 0.0
    %597 = vmatpush1.msra.mxu0 %v538
    %598 = vmatprep.subr.mxu0 0.0
    %599 = vmatpush1.msra.mxu0 %v539
    %600 = vmatprep.subr.mxu0 0.0
    %601 = vmatpush1.msra.mxu0 %v540
    %602 = vmatprep.subr.mxu0 0.0
    %603 = vmatpush1.msra.mxu0 %v541
    %604 = vmatprep.subr.mxu0 0.0
    %605 = vmatpush1.msra.mxu0 %v542
    %606 = vmatprep.subr.mxu0 0.0
    %607 = vmatpush1.msra.mxu0 %v543
    %608 = vmatprep.mubr.f32.mxu0 %v510
    %609 = vmatmul.mubr.f32.gmra.mrb[0].mxu0 %v509
    %v610 = vpop.f32.mrb[0].mxu0
    %v611 = vadd.f32 0.0, %v610
    %v612 = vpop.f32.mrb[0].mxu0
    %613 = vdwg.mxu0
    %614 = vmatprep.subr.mxu0 0.0
    %615 = vmatpush1.msra.mxu0 %v313
    %616 = vmatprep.subr.mxu0 0.0
    %617 = vmatpush1.msra.mxu0 %v314
    %618 = vmatprep.subr.mxu0 0.0
    %619 = vmatpush1.msra.mxu0 %v315
    %620 = vmatprep.subr.mxu0 0.0
    %621 = vmatpush1.msra.mxu0 %v316
    %622 = vmatprep.subr.mxu0 0.0
    %623 = vmatpush1.msra.mxu0 %v317
    %624 = vmatprep.subr.mxu0 0.0
    %625 = vmatpush1.msra.mxu0 %v318
    %626 = vmatprep.subr.mxu0 0.0
    %627 = vmatpush1.msra.mxu0 %v319
    %628 = vmatprep.subr.mxu0 0.0
    %629 = vmatpush1.msra.mxu0 %v320
    %630 = vmatprep.subr.mxu0 0.0
    %631 = vmatpush1.msra.mxu0 %v321
    %632 = vmatprep.subr.mxu0 0.0
    %633 = vmatpush1.msra.mxu0 %v322
    %634 = vmatprep.subr.mxu0 0.0
    %635 = vmatpush1.msra.mxu0 %v323
    %636 = vmatprep.subr.mxu0 0.0
    %637 = vmatpush1.msra.mxu0 %v324
    %638 = vmatprep.subr.mxu0 0.0
    %639 = vmatpush1.msra.mxu0 %v325
    %640 = vmatprep.subr.mxu0 0.0
    %641 = vmatpush1.msra.mxu0 %v326
    %642 = vmatprep.subr.mxu0 0.0
    %643 = vmatpush1.msra.mxu0 %v327
    %644 = vmatprep.subr.mxu0 0.0
    %645 = vmatpush1.msra.mxu0 %v328
    %646 = vmatprep.subr.mxu0 0.0
    %647 = vmatpush1.msra.mxu0 %v329
    %648 = vmatprep.subr.mxu0 0.0
    %649 = vmatpush1.msra.mxu0 %v330
    %650 = vmatprep.subr.mxu0 0.0
    %651 = vmatpush1.msra.mxu0 %v331
    %652 = vmatprep.subr.mxu0 0.0
    %653 = vmatpush1.msra.mxu0 %v332
    %654 = vmatprep.subr.mxu0 0.0
    %655 = vmatpush1.msra.mxu0 %v333
    %656 = vmatprep.subr.mxu0 0.0
    %657 = vmatpush1.msra.mxu0 %v334
    %658 = vmatprep.subr.mxu0 0.0
    %659 = vmatpush1.msra.mxu0 %v335
    %660 = vmatprep.subr.mxu0 0.0
    %661 = vmatpush1.msra.mxu0 %v336
    %662 = vmatprep.subr.mxu0 0.0
    %663 = vmatpush1.msra.mxu0 %v337
    %664 = vmatprep.subr.mxu0 0.0
    %665 = vmatpush1.msra.mxu0 %v338
    %666 = vmatprep.subr.mxu0 0.0
    %667 = vmatpush1.msra.mxu0 %v339
    %668 = vmatprep.subr.mxu0 0.0
    %669 = vmatpush1.msra.mxu0 %v340
    %670 = vmatprep.subr.mxu0 0.0
    %671 = vmatpush1.msra.mxu0 %v341
    %672 = vmatprep.subr.mxu0 0.0
    %673 = vmatpush1.msra.mxu0 %v342
    %674 = vmatprep.subr.mxu0 0.0
    %675 = vmatpush1.msra.mxu0 %v343
    %676 = vmatprep.subr.mxu0 0.0
    %677 = vmatpush1.msra.mxu0 %v344
    %678 = vmatprep.mubr.f32.mxu0 %v312
    %679 = vmatmul.mubr.f32.gmra.mrb[0].mxu0 %v311
    %v680 = vpop.f32.mrb[0].mxu0
    %v681 = vadd.f32 %v611, %v680
    %v682 = vpop.f32.mrb[0].mxu0
    %683 = vdwg.mxu0
    %s684 = sld [smem:[#allocation2 + $0x100]]
    %s685 = sld [smem:[#allocation2 + $0x101]]
    %s686 = sld [smem:[#allocation2 + $0x102]]
    %s687 = sld [smem:[#allocation2 + $0x103]]
    %s688 = sld [smem:[#allocation2 + $0x104]]
    %s689 = sld [smem:[#allocation2 + $0x105]]
    %s690 = sld [smem:[#allocation2 + $0x106]]
    %s691 = sld [smem:[#allocation2 + $0x107]]
    %s692 = sld [smem:[#allocation2 + $0x108]]
    %v693 = vstv %s684
    %v694 = vmul.f32 %v100, %v693
    %v695 = vmul.f32 %v101, %v693
    %v696 = vstv %s685
    %v697 = vmul.f32 %v103, %v696
    %v698 = vmul.f32 %v104, %v696
    %v699 = vadd.f32 %v694, %v697
    %v700 = vadd.f32 %v695, %v698
    %v701 = vstv %s686
    %v702 = vmul.f32 %v106, %v701
    %v703 = vmul.f32 %v107, %v701
    %v704 = vadd.f32 %v699, %v702
    %v705 = vadd.f32 %v700, %v703
    %v706 = vstv %s687
    %v707 = vmul.f32 %v112, %v706
    %v708 = vmul.f32 %v113, %v706
    %v709 = vadd.f32 %v704, %v707
    %v710 = vadd.f32 %v705, %v708
    %v711 = vstv %s688
    %v712 = vmul.f32 %v115, %v711
    %v713 = vmul.f32 %v116, %v711
    %v714 = vadd.f32 %v709, %v712
    %v715 = vadd.f32 %v710, %v713
    %v716 = vstv %s689
    %v717 = vmul.f32 %v118, %v716
    %v718 = vmul.f32 %v119, %v716
    %v719 = vadd.f32 %v714, %v717
    %v720 = vadd.f32 %v715, %v718
    %v721 = vstv %s690
    %v722 = vmul.f32 %v124, %v721
    %v723 = vmul.f32 %v125, %v721
    %v724 = vadd.f32 %v719, %v722
    %v725 = vadd.f32 %v720, %v723
    %v726 = vstv %s691
    %v727 = vmul.f32 %v127, %v726
    %v728 = vmul.f32 %v128, %v726
    %v729 = vadd.f32 %v724, %v727
    %v730 = vadd.f32 %v725, %v728
    %v731 = vstv %s692
    %v732 = vmul.f32 %v130, %v731
    %v733 = vmul.f32 %v131, %v731
    %v734 = vadd.f32 %v729, %v732
    %v735 = vadd.f32 %v730, %v733
    %v736 = vmul.f32 %v103, %v693
    %v737 = vmul.f32 %v104, %v693
    %v738 = vmul.f32 %v106, %v696
    %v739 = vmul.f32 %v107, %v696
    %v740 = vadd.f32 %v736, %v738
    %v741 = vadd.f32 %v737, %v739
    %v742 = vmul.f32 %v109, %v701
    %v743 = vmul.f32 %v110, %v701
    %v744 = vadd.f32 %v740, %v742
    %v745 = vadd.f32 %v741, %v743
    %v746 = vmul.f32 %v115, %v706
    %v747 = vmul.f32 %v116, %v706
    %v748 = vadd.f32 %v744, %v746
    %v749 = vadd.f32 %v745, %v747
    %v750 = vmul.f32 %v118, %v711
    %v751 = vmul.f32 %v119, %v711
    %v752 = vadd.f32 %v748, %v750
    %v753 = vadd.f32 %v749, %v751
    %v754 = vmul.f32 %v121, %v716
    %v755 = vmul.f32 %v122, %v716
    %v756 = vadd.f32 %v752, %v754
    %v757 = vadd.f32 %v753, %v755
    %v758 = vmul.f32 %v127, %v721
    %v759 = vmul.f32 %v128, %v721
    %v760 = vadd.f32 %v756, %v758
    %v761 = vadd.f32 %v757, %v759
    %v762 = vmul.f32 %v130, %v726
    %v763 = vmul.f32 %v131, %v726
    %v764 = vadd.f32 %v760, %v762
    %v765 = vadd.f32 %v761, %v763
    %v766 = vmul.f32 %v133, %v731
    %v767 = vmul.f32 %v134, %v731
    %v768 = vadd.f32 %v764, %v766
    %v769 = vadd.f32 %v765, %v767
    %v770 = vmul.f32 %v112, %v693
    %v771 = vmul.f32 %v113, %v693
    %v772 = vmul.f32 %v115, %v696
    %v773 = vmul.f32 %v116, %v696
    %v774 = vadd.f32 %v770, %v772
    %v775 = vadd.f32 %v771, %v773
    %v776 = vmul.f32 %v118, %v701
    %v777 = vmul.f32 %v119, %v701
    %v778 = vadd.f32 %v774, %v776
    %v779 = vadd.f32 %v775, %v777
    %v780 = vmul.f32 %v124, %v706
    %v781 = vmul.f32 %v125, %v706
    %v782 = vadd.f32 %v778, %v780
    %v783 = vadd.f32 %v779, %v781
    %v784 = vmul.f32 %v127, %v711
    %v785 = vmul.f32 %v128, %v711
    %v786 = vadd.f32 %v782, %v784
    %v787 = vadd.f32 %v783, %v785
    %v788 = vmul.f32 %v130, %v716
    %v789 = vmul.f32 %v131, %v716
    %v790 = vadd.f32 %v786, %v788
    %v791 = vadd.f32 %v787, %v789
    %v792 = vmul.f32 %v136, %v721
    %v793 = vmul.f32 %v137, %v721
    %v794 = vadd.f32 %v790, %v792
    %v795 = vadd.f32 %v791, %v793
    %v796 = vmul.f32 %v139, %v726
    %v797 = vmul.f32 %v140, %v726
    %v798 = vadd.f32 %v794, %v796
    %v799 = vadd.f32 %v795, %v797
    %v800 = vmul.f32 %v142, %v731
    %v801 = vmul.f32 %v143, %v731
    %v802 = vadd.f32 %v798, %v800
    %v803 = vadd.f32 %v799, %v801
    %v804 = vmul.f32 %v115, %v693
    %v805 = vmul.f32 %v116, %v693
    %v806 = vmul.f32 %v118, %v696
    %v807 = vmul.f32 %v119, %v696
    %v808 = vadd.f32 %v804, %v806
    %v809 = vadd.f32 %v805, %v807
    %v810 = vmul.f32 %v121, %v701
    %v811 = vmul.f32 %v122, %v701
    %v812 = vadd.f32 %v808, %v810
    %v813 = vadd.f32 %v809, %v811
    %v814 = vmul.f32 %v127, %v706
    %v815 = vmul.f32 %v128, %v706
    %v816 = vadd.f32 %v812, %v814
    %v817 = vadd.f32 %v813, %v815
    %v818 = vmul.f32 %v130, %v711
    %v819 = vmul.f32 %v131, %v711
    %v820 = vadd.f32 %v816, %v818
    %v821 = vadd.f32 %v817, %v819
    %v822 = vmul.f32 %v133, %v716
    %v823 = vmul.f32 %v134, %v716
    %v824 = vadd.f32 %v820, %v822
    %v825 = vadd.f32 %v821, %v823
    %v826 = vmul.f32 %v139, %v721
    %v827 = vmul.f32 %v140, %v721
    %v828 = vadd.f32 %v824, %v826
    %v829 = vadd.f32 %v825, %v827
    %v830 = vmul.f32 %v142, %v726
    %v831 = vmul.f32 %v143, %v726
    %v832 = vadd.f32 %v828, %v830
    %v833 = vadd.f32 %v829, %v831
    %v834 = vmul.f32 %v145, %v731
    %v835 = vmul.f32 %v146, %v731
    %v836 = vadd.f32 %v832, %v834
    %v837 = vadd.f32 %v833, %v835
    %v838 = vmax.f32 %v734, %v768
    %v839 = vmax.f32 %v735, %v769
    %v840 = vmax.f32 %v802, %v836
    %v841 = vmax.f32 %v803, %v837
    %v842 = vmax.f32 %v838, %v840
    %v843 = vmax.f32 %v839, %v841
    %s844 = sld [smem:[#allocation5 + $0x2]]
    %v845 = vstv %s844
    %v846 = vadd.f32 %v842, %v845
    %v847 = vadd.f32 %v843, %v845
    %v848 = vmax.f32 %v846, 0.0
    %v849 = vmax.f32 %v847, 0.0
    %s850 = scalar_lea.vmem [#allocation7], 512
    %v851 = vld [vmem:[%s850] sm:$0xff]
    %v852 = vld [vmem:[%s850 + $0x8] sm:$0xff]
    %v853 = vld [vmem:[%s850 + $0x10] sm:$0xff]
    %v854 = vld [vmem:[%s850 + $0x18] sm:$0xff]
    %v855 = vld [vmem:[%s850 + $0x20] sm:$0xff]
    %v856 = vld [vmem:[%s850 + $0x28] sm:$0xff]
    %v857 = vld [vmem:[%s850 + $0x30] sm:$0xff]
    %v858 = vld [vmem:[%s850 + $0x38] sm:$0xff]
    %v859 = vld [vmem:[%s850 + $0x40] sm:$0xff]
    %v860 = vld [vmem:[%s850 + $0x48] sm:$0xff]
    %v861 = vld [vmem:[%s850 + $0x50] sm:$0xff]
    %v862 = vld [vmem:[%s850 + $0x58] sm:$0xff]
    %v863 = vld [vmem:[%s850 + $0x60] sm:$0xff]
    %v864 = vld [vmem:[%s850 + $0x68] sm:$0xff]
    %v865 = vld [vmem:[%s850 + $0x70] sm:$0xff]
    %v866 = vld [vmem:[%s850 + $0x78] sm:$0xff]
    %v867 = vld [vmem:[%s850 + $0x80] sm:$0xff]
    %v868 = vld [vmem:[%s850 + $0x88] sm:$0xff]
    %v869 = vld [vmem:[%s850 + $0x90] sm:$0xff]
    %v870 = vld [vmem:[%s850 + $0x98] sm:$0xff]
    %v871 = vld [vmem:[%s850 + $0xa0] sm:$0xff]
    %v872 = vld [vmem:[%s850 + $0xa8] sm:$0xff]
    %v873 = vld [vmem:[%s850 + $0xb0] sm:$0xff]
    %v874 = vld [vmem:[%s850 + $0xb8] sm:$0xff]
    %v875 = vld [vmem:[%s850 + $0xc0] sm:$0xff]
    %v876 = vld [vmem:[%s850 + $0xc8] sm:$0xff]
    %v877 = vld [vmem:[%s850 + $0xd0] sm:$0xff]
    %v878 = vld [vmem:[%s850 + $0xd8] sm:$0xff]
    %v879 = vld [vmem:[%s850 + $0xe0] sm:$0xff]
    %v880 = vld [vmem:[%s850 + $0xe8] sm:$0xff]
    %v881 = vld [vmem:[%s850 + $0xf0] sm:$0xff]
    %v882 = vld [vmem:[%s850 + $0xf8] sm:$0xff]
    %883 = vmatprep.subr.mxu0 0.0
    %884 = vmatpush1.msra.mxu0 %v851
    %885 = vmatprep.subr.mxu0 0.0
    %886 = vmatpush1.msra.mxu0 %v852
    %887 = vmatprep.subr.mxu0 0.0
    %888 = vmatpush1.msra.mxu0 %v853
    %889 = vmatprep.subr.mxu0 0.0
    %890 = vmatpush1.msra.mxu0 %v854
    %891 = vmatprep.subr.mxu0 0.0
    %892 = vmatpush1.msra.mxu0 %v855
    %893 = vmatprep.subr.mxu0 0.0
    %894 = vmatpush1.msra.mxu0 %v856
    %895 = vmatprep.subr.mxu0 0.0
    %896 = vmatpush1.msra.mxu0 %v857
    %897 = vmatprep.subr.mxu0 0.0
    %898 = vmatpush1.msra.mxu0 %v858
    %899 = vmatprep.subr.mxu0 0.0
    %900 = vmatpush1.msra.mxu0 %v859
    %901 = vmatprep.subr.mxu0 0.0
    %902 = vmatpush1.msra.mxu0 %v860
    %903 = vmatprep.subr.mxu0 0.0
    %904 = vmatpush1.msra.mxu0 %v861
    %905 = vmatprep.subr.mxu0 0.0
    %906 = vmatpush1.msra.mxu0 %v862
    %907 = vmatprep.subr.mxu0 0.0
    %908 = vmatpush1.msra.mxu0 %v863
    %909 = vmatprep.subr.mxu0 0.0
    %910 = vmatpush1.msra.mxu0 %v864
    %911 = vmatprep.subr.mxu0 0.0
    %912 = vmatpush1.msra.mxu0 %v865
    %913 = vmatprep.subr.mxu0 0.0
    %914 = vmatpush1.msra.mxu0 %v866
    %915 = vmatprep.subr.mxu0 0.0
    %916 = vmatpush1.msra.mxu0 %v867
    %917 = vmatprep.subr.mxu0 0.0
    %918 = vmatpush1.msra.mxu0 %v868
    %919 = vmatprep.subr.mxu0 0.0
    %920 = vmatpush1.msra.mxu0 %v869
    %921 = vmatprep.subr.mxu0 0.0
    %922 = vmatpush1.msra.mxu0 %v870
    %923 = vmatprep.subr.mxu0 0.0
    %924 = vmatpush1.msra.mxu0 %v871
    %925 = vmatprep.subr.mxu0 0.0
    %926 = vmatpush1.msra.mxu0 %v872
    %927 = vmatprep.subr.mxu0 0.0
    %928 = vmatpush1.msra.mxu0 %v873
    %929 = vmatprep.subr.mxu0 0.0
    %930 = vmatpush1.msra.mxu0 %v874
    %931 = vmatprep.subr.mxu0 0.0
    %932 = vmatpush1.msra.mxu0 %v875
    %933 = vmatprep.subr.mxu0 0.0
    %934 = vmatpush1.msra.mxu0 %v876
    %935 = vmatprep.subr.mxu0 0.0
    %936 = vmatpush1.msra.mxu0 %v877
    %937 = vmatprep.subr.mxu0 0.0
    %938 = vmatpush1.msra.mxu0 %v878
    %939 = vmatprep.subr.mxu0 0.0
    %940 = vmatpush1.msra.mxu0 %v879
    %941 = vmatprep.subr.mxu0 0.0
    %942 = vmatpush1.msra.mxu0 %v880
    %943 = vmatprep.subr.mxu0 0.0
    %944 = vmatpush1.msra.mxu0 %v881
    %945 = vmatprep.subr.mxu0 0.0
    %946 = vmatpush1.msra.mxu0 %v882
    %947 = vmatprep.mubr.f32.mxu0 %v849
    %948 = vmatmul.mubr.f32.gmra.mrb[0].mxu0 %v848
    %v949 = vpop.f32.mrb[0].mxu0
    %v950 = vadd.f32 0.0, %v949
    %v951 = vpop.f32.mrb[0].mxu0
    %952 = vdwg.mxu0
    %v953 = vadd.f32 %v681, %v950
    %s954 = sld [smem:[#allocation2 + $0x180]]
    %s955 = sld [smem:[#allocation2 + $0x181]]
    %s956 = sld [smem:[#allocation2 + $0x182]]
    %s957 = sld [smem:[#allocation2 + $0x183]]
    %s958 = sld [smem:[#allocation2 + $0x184]]
    %s959 = sld [smem:[#allocation2 + $0x185]]
    %s960 = sld [smem:[#allocation2 + $0x186]]
    %s961 = sld [smem:[#allocation2 + $0x187]]
    %s962 = sld [smem:[#allocation2 + $0x188]]
    %v963 = vstv %s954
    %v964 = vmul.f32 %v100, %v963
    %v965 = vmul.f32 %v101, %v963
    %v966 = vstv %s955
    %v967 = vmul.f32 %v103, %v966
    %v968 = vmul.f32 %v104, %v966
    %v969 = vadd.f32 %v964, %v967
    %v970 = vadd.f32 %v965, %v968
    %v971 = vstv %s956
    %v972 = vmul.f32 %v106, %v971
    %v973 = vmul.f32 %v107, %v971
    %v974 = vadd.f32 %v969, %v972
    %v975 = vadd.f32 %v970, %v973
    %v976 = vstv %s957
    %v977 = vmul.f32 %v112, %v976
    %v978 = vmul.f32 %v113, %v976
    %v979 = vadd.f32 %v974, %v977
    %v980 = vadd.f32 %v975, %v978
    %v981 = vstv %s958
    %v982 = vmul.f32 %v115, %v981
    %v983 = vmul.f32 %v116, %v981
    %v984 = vadd.f32 %v979, %v982
    %v985 = vadd.f32 %v980, %v983
    %v986 = vstv %s959
    %v987 = vmul.f32 %v118, %v986
    %v988 = vmul.f32 %v119, %v986
    %v989 = vadd.f32 %v984, %v987
    %v990 = vadd.f32 %v985, %v988
    %v991 = vstv %s960
    %v992 = vmul.f32 %v124, %v991
    %v993 = vmul.f32 %v125, %v991
    %v994 = vadd.f32 %v989, %v992
    %v995 = vadd.f32 %v990, %v993
    %v996 = vstv %s961
    %v997 = vmul.f32 %v127, %v996
    %v998 = vmul.f32 %v128, %v996
    %v999 = vadd.f32 %v994, %v997
    %v1000 = vadd.f32 %v995, %v998
    %v1001 = vstv %s962
    %v1002 = vmul.f32 %v130, %v1001
    %v1003 = vmul.f32 %v131, %v1001
    %v1004 = vadd.f32 %v999, %v1002
    %v1005 = vadd.f32 %v1000, %v1003
    %v1006 = vmul.f32 %v103, %v963
    %v1007 = vmul.f32 %v104, %v963
    %v1008 = vmul.f32 %v106, %v966
    %v1009 = vmul.f32 %v107, %v966
    %v1010 = vadd.f32 %v1006, %v1008
    %v1011 = vadd.f32 %v1007, %v1009
    %v1012 = vmul.f32 %v109, %v971
    %v1013 = vmul.f32 %v110, %v971
    %v1014 = vadd.f32 %v1010, %v1012
    %v1015 = vadd.f32 %v1011, %v1013
    %v1016 = vmul.f32 %v115, %v976
    %v1017 = vmul.f32 %v116, %v976
    %v1018 = vadd.f32 %v1014, %v1016
    %v1019 = vadd.f32 %v1015, %v1017
    %v1020 = vmul.f32 %v118, %v981
    %v1021 = vmul.f32 %v119, %v981
    %v1022 = vadd.f32 %v1018, %v1020
    %v1023 = vadd.f32 %v1019, %v1021
    %v1024 = vmul.f32 %v121, %v986
    %v1025 = vmul.f32 %v122, %v986
    %v1026 = vadd.f32 %v1022, %v1024
    %v1027 = vadd.f32 %v1023, %v1025
    %v1028 = vmul.f32 %v127, %v991
    %v1029 = vmul.f32 %v128, %v991
    %v1030 = vadd.f32 %v1026, %v1028
    %v1031 = vadd.f32 %v1027, %v1029
    %v1032 = vmul.f32 %v130, %v996
    %v1033 = vmul.f32 %v131, %v996
    %v1034 = vadd.f32 %v1030, %v1032
    %v1035 = vadd.f32 %v1031, %v1033
    %v1036 = vmul.f32 %v133, %v1001
    %v1037 = vmul.f32 %v134, %v1001
    %v1038 = vadd.f32 %v1034, %v1036
    %v1039 = vadd.f32 %v1035, %v1037
    %v1040 = vmul.f32 %v112, %v963
    %v1041 = vmul.f32 %v113, %v963
    %v1042 = vmul.f32 %v115, %v966
    %v1043 = vmul.f32 %v116, %v966
    %v1044 = vadd.f32 %v1040, %v1042
    %v1045 = vadd.f32 %v1041, %v1043
    %v1046 = vmul.f32 %v118, %v971
    %v1047 = vmul.f32 %v119, %v971
    %v1048 = vadd.f32 %v1044, %v1046
    %v1049 = vadd.f32 %v1045, %v1047
    %v1050 = vmul.f32 %v124, %v976
    %v1051 = vmul.f32 %v125, %v976
    %v1052 = vadd.f32 %v1048, %v1050
    %v1053 = vadd.f32 %v1049, %v1051
    %v1054 = vmul.f32 %v127, %v981
    %v1055 = vmul.f32 %v128, %v981
    %v1056 = vadd.f32 %v1052, %v1054
    %v1057 = vadd.f32 %v1053, %v1055
    %v1058 = vmul.f32 %v130, %v986
    %v1059 = vmul.f32 %v131, %v986
    %v1060 = vadd.f32 %v1056, %v1058
    %v1061 = vadd.f32 %v1057, %v1059
    %v1062 = vmul.f32 %v136, %v991
    %v1063 = vmul.f32 %v137, %v991
    %v1064 = vadd.f32 %v1060, %v1062
    %v1065 = vadd.f32 %v1061, %v1063
    %v1066 = vmul.f32 %v139, %v996
    %v1067 = vmul.f32 %v140, %v996
    %v1068 = vadd.f32 %v1064, %v1066
    %v1069 = vadd.f32 %v1065, %v1067
    %v1070 = vmul.f32 %v142, %v1001
    %v1071 = vmul.f32 %v143, %v1001
    %v1072 = vadd.f32 %v1068, %v1070
    %v1073 = vadd.f32 %v1069, %v1071
    %v1074 = vmul.f32 %v115, %v963
    %v1075 = vmul.f32 %v116, %v963
    %v1076 = vmul.f32 %v118, %v966
    %v1077 = vmul.f32 %v119, %v966
    %v1078 = vadd.f32 %v1074, %v1076
    %v1079 = vadd.f32 %v1075, %v1077
    %v1080 = vmul.f32 %v121, %v971
    %v1081 = vmul.f32 %v122, %v971
    %v1082 = vadd.f32 %v1078, %v1080
    %v1083 = vadd.f32 %v1079, %v1081
    %v1084 = vmul.f32 %v127, %v976
    %v1085 = vmul.f32 %v128, %v976
    %v1086 = vadd.f32 %v1082, %v1084
    %v1087 = vadd.f32 %v1083, %v1085
    %v1088 = vmul.f32 %v130, %v981
    %v1089 = vmul.f32 %v131, %v981
    %v1090 = vadd.f32 %v1086, %v1088
    %v1091 = vadd.f32 %v1087, %v1089
    %v1092 = vmul.f32 %v133, %v986
    %v1093 = vmul.f32 %v134, %v986
    %v1094 = vadd.f32 %v1090, %v1092
    %v1095 = vadd.f32 %v1091, %v1093
    %v1096 = vmul.f32 %v139, %v991
    %v1097 = vmul.f32 %v140, %v991
    %v1098 = vadd.f32 %v1094, %v1096
    %v1099 = vadd.f32 %v1095, %v1097
    %v1100 = vmul.f32 %v142, %v996
    %v1101 = vmul.f32 %v143, %v996
    %v1102 = vadd.f32 %v1098, %v1100
    %v1103 = vadd.f32 %v1099, %v1101
    %v1104 = vmul.f32 %v145, %v1001
    %v1105 = vmul.f32 %v146, %v1001
    %v1106 = vadd.f32 %v1102, %v1104
    %v1107 = vadd.f32 %v1103, %v1105
    %v1108 = vmax.f32 %v1004, %v1038
    %v1109 = vmax.f32 %v1005, %v1039
    %v1110 = vmax.f32 %v1072, %v1106
    %v1111 = vmax.f32 %v1073, %v1107
    %v1112 = vmax.f32 %v1108, %v1110
    %v1113 = vmax.f32 %v1109, %v1111
    %s1114 = sld [smem:[#allocation5 + $0x3]]
    %v1115 = vstv %s1114
    %v1116 = vadd.f32 %v1112, %v1115
    %v1117 = vadd.f32 %v1113, %v1115
    %v1118 = vmax.f32 %v1116, 0.0
    %v1119 = vmax.f32 %v1117, 0.0
    %s1120 = scalar_lea.vmem [#allocation7], 768
    %v1121 = vld [vmem:[%s1120] sm:$0xff]
    %v1122 = vld [vmem:[%s1120 + $0x8] sm:$0xff]
    %v1123 = vld [vmem:[%s1120 + $0x10] sm:$0xff]
    %v1124 = vld [vmem:[%s1120 + $0x18] sm:$0xff]
    %v1125 = vld [vmem:[%s1120 + $0x20] sm:$0xff]
    %v1126 = vld [vmem:[%s1120 + $0x28] sm:$0xff]
    %v1127 = vld [vmem:[%s1120 + $0x30] sm:$0xff]
    %v1128 = vld [vmem:[%s1120 + $0x38] sm:$0xff]
    %v1129 = vld [vmem:[%s1120 + $0x40] sm:$0xff]
    %v1130 = vld [vmem:[%s1120 + $0x48] sm:$0xff]
    %v1131 = vld [vmem:[%s1120 + $0x50] sm:$0xff]
    %v1132 = vld [vmem:[%s1120 + $0x58] sm:$0xff]
    %v1133 = vld [vmem:[%s1120 + $0x60] sm:$0xff]
    %v1134 = vld [vmem:[%s1120 + $0x68] sm:$0xff]
    %v1135 = vld [vmem:[%s1120 + $0x70] sm:$0xff]
    %v1136 = vld [vmem:[%s1120 + $0x78] sm:$0xff]
    %v1137 = vld [vmem:[%s1120 + $0x80] sm:$0xff]
    %v1138 = vld [vmem:[%s1120 + $0x88] sm:$0xff]
    %v1139 = vld [vmem:[%s1120 + $0x90] sm:$0xff]
    %v1140 = vld [vmem:[%s1120 + $0x98] sm:$0xff]
    %v1141 = vld [vmem:[%s1120 + $0xa0] sm:$0xff]
    %v1142 = vld [vmem:[%s1120 + $0xa8] sm:$0xff]
    %v1143 = vld [vmem:[%s1120 + $0xb0] sm:$0xff]
    %v1144 = vld [vmem:[%s1120 + $0xb8] sm:$0xff]
    %v1145 = vld [vmem:[%s1120 + $0xc0] sm:$0xff]
    %v1146 = vld [vmem:[%s1120 + $0xc8] sm:$0xff]
    %v1147 = vld [vmem:[%s1120 + $0xd0] sm:$0xff]
    %v1148 = vld [vmem:[%s1120 + $0xd8] sm:$0xff]
    %v1149 = vld [vmem:[%s1120 + $0xe0] sm:$0xff]
    %v1150 = vld [vmem:[%s1120 + $0xe8] sm:$0xff]
    %v1151 = vld [vmem:[%s1120 + $0xf0] sm:$0xff]
    %v1152 = vld [vmem:[%s1120 + $0xf8] sm:$0xff]
    %1153 = vmatprep.subr.mxu0 0.0
    %1154 = vmatpush1.msra.mxu0 %v1121
    %1155 = vmatprep.subr.mxu0 0.0
    %1156 = vmatpush1.msra.mxu0 %v1122
    %1157 = vmatprep.subr.mxu0 0.0
    %1158 = vmatpush1.msra.mxu0 %v1123
    %1159 = vmatprep.subr.mxu0 0.0
    %1160 = vmatpush1.msra.mxu0 %v1124
    %1161 = vmatprep.subr.mxu0 0.0
    %1162 = vmatpush1.msra.mxu0 %v1125
    %1163 = vmatprep.subr.mxu0 0.0
    %1164 = vmatpush1.msra.mxu0 %v1126
    %1165 = vmatprep.subr.mxu0 0.0
    %1166 = vmatpush1.msra.mxu0 %v1127
    %1167 = vmatprep.subr.mxu0 0.0
    %1168 = vmatpush1.msra.mxu0 %v1128
    %1169 = vmatprep.subr.mxu0 0.0
    %1170 = vmatpush1.msra.mxu0 %v1129
    %1171 = vmatprep.subr.mxu0 0.0
    %1172 = vmatpush1.msra.mxu0 %v1130
    %1173 = vmatprep.subr.mxu0 0.0
    %1174 = vmatpush1.msra.mxu0 %v1131
    %1175 = vmatprep.subr.mxu0 0.0
    %1176 = vmatpush1.msra.mxu0 %v1132
    %1177 = vmatprep.subr.mxu0 0.0
    %1178 = vmatpush1.msra.mxu0 %v1133
    %1179 = vmatprep.subr.mxu0 0.0
    %1180 = vmatpush1.msra.mxu0 %v1134
    %1181 = vmatprep.subr.mxu0 0.0
    %1182 = vmatpush1.msra.mxu0 %v1135
    %1183 = vmatprep.subr.mxu0 0.0
    %1184 = vmatpush1.msra.mxu0 %v1136
    %1185 = vmatprep.subr.mxu0 0.0
    %1186 = vmatpush1.msra.mxu0 %v1137
    %1187 = vmatprep.subr.mxu0 0.0
    %1188 = vmatpush1.msra.mxu0 %v1138
    %1189 = vmatprep.subr.mxu0 0.0
    %1190 = vmatpush1.msra.mxu0 %v1139
    %1191 = vmatprep.subr.mxu0 0.0
    %1192 = vmatpush1.msra.mxu0 %v1140
    %1193 = vmatprep.subr.mxu0 0.0
    %1194 = vmatpush1.msra.mxu0 %v1141
    %1195 = vmatprep.subr.mxu0 0.0
    %1196 = vmatpush1.msra.mxu0 %v1142
    %1197 = vmatprep.subr.mxu0 0.0
    %1198 = vmatpush1.msra.mxu0 %v1143
    %1199 = vmatprep.subr.mxu0 0.0
    %1200 = vmatpush1.msra.mxu0 %v1144
    %1201 = vmatprep.subr.mxu0 0.0
    %1202 = vmatpush1.msra.mxu0 %v1145
    %1203 = vmatprep.subr.mxu0 0.0
    %1204 = vmatpush1.msra.mxu0 %v1146
    %1205 = vmatprep.subr.mxu0 0.0
    %1206 = vmatpush1.msra.mxu0 %v1147
    %1207 = vmatprep.subr.mxu0 0.0
    %1208 = vmatpush1.msra.mxu0 %v1148
    %1209 = vmatprep.subr.mxu0 0.0
    %1210 = vmatpush1.msra.mxu0 %v1149
    %1211 = vmatprep.subr.mxu0 0.0
    %1212 = vmatpush1.msra.mxu0 %v1150
    %1213 = vmatprep.subr.mxu0 0.0
    %1214 = vmatpush1.msra.mxu0 %v1151
    %1215 = vmatprep.subr.mxu0 0.0
    %1216 = vmatpush1.msra.mxu0 %v1152
    %1217 = vmatprep.mubr.f32.mxu0 %v1119
    %1218 = vmatmul.mubr.f32.gmra.mrb[0].mxu0 %v1118
    %v1219 = vpop.f32.mrb[0].mxu0
    %v1220 = vadd.f32 0.0, %v1219
    %v1221 = vpop.f32.mrb[0].mxu0
    %1222 = vdwg.mxu0
    %v1223 = vadd.f32 %v953, %v1220
    %s1224 = sld [smem:[#allocation2 + $0x200]]
    %s1225 = sld [smem:[#allocation2 + $0x201]]
    %s1226 = sld [smem:[#allocation2 + $0x202]]
    %s1227 = sld [smem:[#allocation2 + $0x203]]
    %s1228 = sld [smem:[#allocation2 + $0x204]]
    %s1229 = sld [smem:[#allocation2 + $0x205]]
    %s1230 = sld [smem:[#allocation2 + $0x206]]
    %s1231 = sld [smem:[#allocation2 + $0x207]]
    %s1232 = sld [smem:[#allocation2 + $0x208]]
    %v1233 = vstv %s1224
    %v1234 = vmul.f32 %v100, %v1233
    %v1235 = vmul.f32 %v101, %v1233
    %v1236 = vstv %s1225
    %v1237 = vmul.f32 %v103, %v1236
    %v1238 = vmul.f32 %v104, %v1236
    %v1239 = vadd.f32 %v1234, %v1237
    %v1240 = vadd.f32 %v1235, %v1238
    %v1241 = vstv %s1226
    %v1242 = vmul.f32 %v106, %v1241
    %v1243 = vmul.f32 %v107, %v1241
    %v1244 = vadd.f32 %v1239, %v1242
    %v1245 = vadd.f32 %v1240, %v1243
    %v1246 = vstv %s1227
    %v1247 = vmul.f32 %v112, %v1246
    %v1248 = vmul.f32 %v113, %v1246
    %v1249 = vadd.f32 %v1244, %v1247
    %v1250 = vadd.f32 %v1245, %v1248
    %v1251 = vstv %s1228
    %v1252 = vmul.f32 %v115, %v1251
    %v1253 = vmul.f32 %v116, %v1251
    %v1254 = vadd.f32 %v1249, %v1252
    %v1255 = vadd.f32 %v1250, %v1253
    %v1256 = vstv %s1229
    %v1257 = vmul.f32 %v118, %v1256
    %v1258 = vmul.f32 %v119, %v1256
    %v1259 = vadd.f32 %v1254, %v1257
    %v1260 = vadd.f32 %v1255, %v1258
    %v1261 = vstv %s1230
    %v1262 = vmul.f32 %v124, %v1261
    %v1263 = vmul.f32 %v125, %v1261
    %v1264 = vadd.f32 %v1259, %v1262
    %v1265 = vadd.f32 %v1260, %v1263
    %v1266 = vstv %s1231
    %v1267 = vmul.f32 %v127, %v1266
    %v1268 = vmul.f32 %v128, %v1266
    %v1269 = vadd.f32 %v1264, %v1267
    %v1270 = vadd.f32 %v1265, %v1268
    %v1271 = vstv %s1232
    %v1272 = vmul.f32 %v130, %v1271
    %v1273 = vmul.f32 %v131, %v1271
    %v1274 = vadd.f32 %v1269, %v1272
    %v1275 = vadd.f32 %v1270, %v1273
    %v1276 = vmul.f32 %v103, %v1233
    %v1277 = vmul.f32 %v104, %v1233
    %v1278 = vmul.f32 %v106, %v1236
    %v1279 = vmul.f32 %v107, %v1236
    %v1280 = vadd.f32 %v1276, %v1278
    %v1281 = vadd.f32 %v1277, %v1279
    %v1282 = vmul.f32 %v109, %v1241
    %v1283 = vmul.f32 %v110, %v1241
    %v1284 = vadd.f32 %v1280, %v1282
    %v1285 = vadd.f32 %v1281, %v1283
    %v1286 = vmul.f32 %v115, %v1246
    %v1287 = vmul.f32 %v116, %v1246
    %v1288 = vadd.f32 %v1284, %v1286
    %v1289 = vadd.f32 %v1285, %v1287
    %v1290 = vmul.f32 %v118, %v1251
    %v1291 = vmul.f32 %v119, %v1251
    %v1292 = vadd.f32 %v1288, %v1290
    %v1293 = vadd.f32 %v1289, %v1291
    %v1294 = vmul.f32 %v121, %v1256
    %v1295 = vmul.f32 %v122, %v1256
    %v1296 = vadd.f32 %v1292, %v1294
    %v1297 = vadd.f32 %v1293, %v1295
    %v1298 = vmul.f32 %v127, %v1261
    %v1299 = vmul.f32 %v128, %v1261
    %v1300 = vadd.f32 %v1296, %v1298
    %v1301 = vadd.f32 %v1297, %v1299
    %v1302 = vmul.f32 %v130, %v1266
    %v1303 = vmul.f32 %v131, %v1266
    %v1304 = vadd.f32 %v1300, %v1302
    %v1305 = vadd.f32 %v1301, %v1303
    %v1306 = vmul.f32 %v133, %v1271
    %v1307 = vmul.f32 %v134, %v1271
    %v1308 = vadd.f32 %v1304, %v1306
    %v1309 = vadd.f32 %v1305, %v1307
    %v1310 = vmul.f32 %v112, %v1233
    %v1311 = vmul.f32 %v113, %v1233
    %v1312 = vmul.f32 %v115, %v1236
    %v1313 = vmul.f32 %v116, %v1236
    %v1314 = vadd.f32 %v1310, %v1312
    %v1315 = vadd.f32 %v1311, %v1313
    %v1316 = vmul.f32 %v118, %v1241
    %v1317 = vmul.f32 %v119, %v1241
    %v1318 = vadd.f32 %v1314, %v1316
    %v1319 = vadd.f32 %v1315, %v1317
    %v1320 = vmul.f32 %v124, %v1246
    %v1321 = vmul.f32 %v125, %v1246
    %v1322 = vadd.f32 %v1318, %v1320
    %v1323 = vadd.f32 %v1319, %v1321
    %v1324 = vmul.f32 %v127, %v1251
    %v1325 = vmul.f32 %v128, %v1251
    %v1326 = vadd.f32 %v1322, %v1324
    %v1327 = vadd.f32 %v1323, %v1325
    %v1328 = vmul.f32 %v130, %v1256
    %v1329 = vmul.f32 %v131, %v1256
    %v1330 = vadd.f32 %v1326, %v1328
    %v1331 = vadd.f32 %v1327, %v1329
    %v1332 = vmul.f32 %v136, %v1261
    %v1333 = vmul.f32 %v137, %v1261
    %v1334 = vadd.f32 %v1330, %v1332
    %v1335 = vadd.f32 %v1331, %v1333
    %v1336 = vmul.f32 %v139, %v1266
    %v1337 = vmul.f32 %v140, %v1266
    %v1338 = vadd.f32 %v1334, %v1336
    %v1339 = vadd.f32 %v1335, %v1337
    %v1340 = vmul.f32 %v142, %v1271
    %v1341 = vmul.f32 %v143, %v1271
    %v1342 = vadd.f32 %v1338, %v1340
    %v1343 = vadd.f32 %v1339, %v1341
    %v1344 = vmul.f32 %v115, %v1233
    %v1345 = vmul.f32 %v116, %v1233
    %v1346 = vmul.f32 %v118, %v1236
    %v1347 = vmul.f32 %v119, %v1236
    %v1348 = vadd.f32 %v1344, %v1346
    %v1349 = vadd.f32 %v1345, %v1347
    %v1350 = vmul.f32 %v121, %v1241
    %v1351 = vmul.f32 %v122, %v1241
    %v1352 = vadd.f32 %v1348, %v1350
    %v1353 = vadd.f32 %v1349, %v1351
    %v1354 = vmul.f32 %v127, %v1246
    %v1355 = vmul.f32 %v128, %v1246
    %v1356 = vadd.f32 %v1352, %v1354
    %v1357 = vadd.f32 %v1353, %v1355
    %v1358 = vmul.f32 %v130, %v1251
    %v1359 = vmul.f32 %v131, %v1251
    %v1360 = vadd.f32 %v1356, %v1358
    %v1361 = vadd.f32 %v1357, %v1359
    %v1362 = vmul.f32 %v133, %v1256
    %v1363 = vmul.f32 %v134, %v1256
    %v1364 = vadd.f32 %v1360, %v1362
    %v1365 = vadd.f32 %v1361, %v1363
    %v1366 = vmul.f32 %v139, %v1261
    %v1367 = vmul.f32 %v140, %v1261
    %v1368 = vadd.f32 %v1364, %v1366
    %v1369 = vadd.f32 %v1365, %v1367
    %v1370 = vmul.f32 %v142, %v1266
    %v1371 = vmul.f32 %v143, %v1266
    %v1372 = vadd.f32 %v1368, %v1370
    %v1373 = vadd.f32 %v1369, %v1371
    %v1374 = vmul.f32 %v145, %v1271
    %v1375 = vmul.f32 %v146, %v1271
    %v1376 = vadd.f32 %v1372, %v1374
    %v1377 = vadd.f32 %v1373, %v1375
    %v1378 = vmax.f32 %v1274, %v1308
    %v1379 = vmax.f32 %v1275, %v1309
    %v1380 = vmax.f32 %v1342, %v1376
    %v1381 = vmax.f32 %v1343, %v1377
    %v1382 = vmax.f32 %v1378, %v1380
    %v1383 = vmax.f32 %v1379, %v1381
    %s1384 = sld [smem:[#allocation5 + $0x4]]
    %v1385 = vstv %s1384
    %v1386 = vadd.f32 %v1382, %v1385
    %v1387 = vadd.f32 %v1383, %v1385
    %v1388 = vmax.f32 %v1386, 0.0
    %v1389 = vmax.f32 %v1387, 0.0
    %s1390 = scalar_lea.vmem [#allocation7], 1024
    %v1391 = vld [vmem:[%s1390] sm:$0xff]
    %v1392 = vld [vmem:[%s1390 + $0x8] sm:$0xff]
    %v1393 = vld [vmem:[%s1390 + $0x10] sm:$0xff]
    %v1394 = vld [vmem:[%s1390 + $0x18] sm:$0xff]
    %v1395 = vld [vmem:[%s1390 + $0x20] sm:$0xff]
    %v1396 = vld [vmem:[%s1390 + $0x28] sm:$0xff]
    %v1397 = vld [vmem:[%s1390 + $0x30] sm:$0xff]
    %v1398 = vld [vmem:[%s1390 + $0x38] sm:$0xff]
    %v1399 = vld [vmem:[%s1390 + $0x40] sm:$0xff]
    %v1400 = vld [vmem:[%s1390 + $0x48] sm:$0xff]
    %v1401 = vld [vmem:[%s1390 + $0x50] sm:$0xff]
    %v1402 = vld [vmem:[%s1390 + $0x58] sm:$0xff]
    %v1403 = vld [vmem:[%s1390 + $0x60] sm:$0xff]
    %v1404 = vld [vmem:[%s1390 + $0x68] sm:$0xff]
    %v1405 = vld [vmem:[%s1390 + $0x70] sm:$0xff]
    %v1406 = vld [vmem:[%s1390 + $0x78] sm:$0xff]
    %v1407 = vld [vmem:[%s1390 + $0x80] sm:$0xff]
    %v1408 = vld [vmem:[%s1390 + $0x88] sm:$0xff]
    %v1409 = vld [vmem:[%s1390 + $0x90] sm:$0xff]
    %v1410 = vld [vmem:[%s1390 + $0x98] sm:$0xff]
    %v1411 = vld [vmem:[%s1390 + $0xa0] sm:$0xff]
    %v1412 = vld [vmem:[%s1390 + $0xa8] sm:$0xff]
    %v1413 = vld [vmem:[%s1390 + $0xb0] sm:$0xff]
    %v1414 = vld [vmem:[%s1390 + $0xb8] sm:$0xff]
    %v1415 = vld [vmem:[%s1390 + $0xc0] sm:$0xff]
    %v1416 = vld [vmem:[%s1390 + $0xc8] sm:$0xff]
    %v1417 = vld [vmem:[%s1390 + $0xd0] sm:$0xff]
    %v1418 = vld [vmem:[%s1390 + $0xd8] sm:$0xff]
    %v1419 = vld [vmem:[%s1390 + $0xe0] sm:$0xff]
    %v1420 = vld [vmem:[%s1390 + $0xe8] sm:$0xff]
    %v1421 = vld [vmem:[%s1390 + $0xf0] sm:$0xff]
    %v1422 = vld [vmem:[%s1390 + $0xf8] sm:$0xff]
    %1423 = vmatprep.subr.mxu0 0.0
    %1424 = vmatpush1.msra.mxu0 %v1391
    %1425 = vmatprep.subr.mxu0 0.0
    %1426 = vmatpush1.msra.mxu0 %v1392
    %1427 = vmatprep.subr.mxu0 0.0
    %1428 = vmatpush1.msra.mxu0 %v1393
    %1429 = vmatprep.subr.mxu0 0.0
    %1430 = vmatpush1.msra.mxu0 %v1394
    %1431 = vmatprep.subr.mxu0 0.0
    %1432 = vmatpush1.msra.mxu0 %v1395
    %1433 = vmatprep.subr.mxu0 0.0
    %1434 = vmatpush1.msra.mxu0 %v1396
    %1435 = vmatprep.subr.mxu0 0.0
    %1436 = vmatpush1.msra.mxu0 %v1397
    %1437 = vmatprep.subr.mxu0 0.0
    %1438 = vmatpush1.msra.mxu0 %v1398
    %1439 = vmatprep.subr.mxu0 0.0
    %1440 = vmatpush1.msra.mxu0 %v1399
    %1441 = vmatprep.subr.mxu0 0.0
    %1442 = vmatpush1.msra.mxu0 %v1400
    %1443 = vmatprep.subr.mxu0 0.0
    %1444 = vmatpush1.msra.mxu0 %v1401
    %1445 = vmatprep.subr.mxu0 0.0
    %1446 = vmatpush1.msra.mxu0 %v1402
    %1447 = vmatprep.subr.mxu0 0.0
    %1448 = vmatpush1.msra.mxu0 %v1403
    %1449 = vmatprep.subr.mxu0 0.0
    %1450 = vmatpush1.msra.mxu0 %v1404
    %1451 = vmatprep.subr.mxu0 0.0
    %1452 = vmatpush1.msra.mxu0 %v1405
    %1453 = vmatprep.subr.mxu0 0.0
    %1454 = vmatpush1.msra.mxu0 %v1406
    %1455 = vmatprep.subr.mxu0 0.0
    %1456 = vmatpush1.msra.mxu0 %v1407
    %1457 = vmatprep.subr.mxu0 0.0
    %1458 = vmatpush1.msra.mxu0 %v1408
    %1459 = vmatprep.subr.mxu0 0.0
    %1460 = vmatpush1.msra.mxu0 %v1409
    %1461 = vmatprep.subr.mxu0 0.0
    %1462 = vmatpush1.msra.mxu0 %v1410
    %1463 = vmatprep.subr.mxu0 0.0
    %1464 = vmatpush1.msra.mxu0 %v1411
    %1465 = vmatprep.subr.mxu0 0.0
    %1466 = vmatpush1.msra.mxu0 %v1412
    %1467 = vmatprep.subr.mxu0 0.0
    %1468 = vmatpush1.msra.mxu0 %v1413
    %1469 = vmatprep.subr.mxu0 0.0
    %1470 = vmatpush1.msra.mxu0 %v1414
    %1471 = vmatprep.subr.mxu0 0.0
    %1472 = vmatpush1.msra.mxu0 %v1415
    %1473 = vmatprep.subr.mxu0 0.0
    %1474 = vmatpush1.msra.mxu0 %v1416
    %1475 = vmatprep.subr.mxu0 0.0
    %1476 = vmatpush1.msra.mxu0 %v1417
    %1477 = vmatprep.subr.mxu0 0.0
    %1478 = vmatpush1.msra.mxu0 %v1418
    %1479 = vmatprep.subr.mxu0 0.0
    %1480 = vmatpush1.msra.mxu0 %v1419
    %1481 = vmatprep.subr.mxu0 0.0
    %1482 = vmatpush1.msra.mxu0 %v1420
    %1483 = vmatprep.subr.mxu0 0.0
    %1484 = vmatpush1.msra.mxu0 %v1421
    %1485 = vmatprep.subr.mxu0 0.0
    %1486 = vmatpush1.msra.mxu0 %v1422
    %1487 = vmatprep.mubr.f32.mxu0 %v1389
    %1488 = vmatmul.mubr.f32.gmra.mrb[0].mxu0 %v1388
    %v1489 = vpop.f32.mrb[0].mxu0
    %v1490 = vadd.f32 0.0, %v1489
    %v1491 = vpop.f32.mrb[0].mxu0
    %1492 = vdwg.mxu0
    %v1493 = vadd.f32 %v1223, %v1490
    %s1494 = sld [smem:[#allocation2 + $0x280]]
    %s1495 = sld [smem:[#allocation2 + $0x281]]
    %s1496 = sld [smem:[#allocation2 + $0x282]]
    %s1497 = sld [smem:[#allocation2 + $0x283]]
    %s1498 = sld [smem:[#allocation2 + $0x284]]
    %s1499 = sld [smem:[#allocation2 + $0x285]]
    %s1500 = sld [smem:[#allocation2 + $0x286]]
    %s1501 = sld [smem:[#allocation2 + $0x287]]
    %s1502 = sld [smem:[#allocation2 + $0x288]]
    %v1503 = vstv %s1494
    %v1504 = vmul.f32 %v100, %v1503
    %v1505 = vmul.f32 %v101, %v1503
    %v1506 = vstv %s1495
    %v1507 = vmul.f32 %v103, %v1506
    %v1508 = vmul.f32 %v104, %v1506
    %v1509 = vadd.f32 %v1504, %v1507
    %v1510 = vadd.f32 %v1505, %v1508
    %v1511 = vstv %s1496
    %v1512 = vmul.f32 %v106, %v1511
    %v1513 = vmul.f32 %v107, %v1511
    %v1514 = vadd.f32 %v1509, %v1512
    %v1515 = vadd.f32 %v1510, %v1513
    %v1516 = vstv %s1497
    %v1517 = vmul.f32 %v112, %v1516
    %v1518 = vmul.f32 %v113, %v1516
    %v1519 = vadd.f32 %v1514, %v1517
    %v1520 = vadd.f32 %v1515, %v1518
    %v1521 = vstv %s1498
    %v1522 = vmul.f32 %v115, %v1521
    %v1523 = vmul.f32 %v116, %v1521
    %v1524 = vadd.f32 %v1519, %v1522
    %v1525 = vadd.f32 %v1520, %v1523
    %v1526 = vstv %s1499
    %v1527 = vmul.f32 %v118, %v1526
    %v1528 = vmul.f32 %v119, %v1526
    %v1529 = vadd.f32 %v1524, %v1527
    %v1530 = vadd.f32 %v1525, %v1528
    %v1531 = vstv %s1500
    %v1532 = vmul.f32 %v124, %v1531
    %v1533 = vmul.f32 %v125, %v1531
    %v1534 = vadd.f32 %v1529, %v1532
    %v1535 = vadd.f32 %v1530, %v1533
    %v1536 = vstv %s1501
    %v1537 = vmul.f32 %v127, %v1536
    %v1538 = vmul.f32 %v128, %v1536
    %v1539 = vadd.f32 %v1534, %v1537
    %v1540 = vadd.f32 %v1535, %v1538
    %v1541 = vstv %s1502
    %v1542 = vmul.f32 %v130, %v1541
    %v1543 = vmul.f32 %v131, %v1541
    %v1544 = vadd.f32 %v1539, %v1542
    %v1545 = vadd.f32 %v1540, %v1543
    %v1546 = vmul.f32 %v103, %v1503
    %v1547 = vmul.f32 %v104, %v1503
    %v1548 = vmul.f32 %v106, %v1506
    %v1549 = vmul.f32 %v107, %v1506
    %v1550 = vadd.f32 %v1546, %v1548
    %v1551 = vadd.f32 %v1547, %v1549
    %v1552 = vmul.f32 %v109, %v1511
    %v1553 = vmul.f32 %v110, %v1511
    %v1554 = vadd.f32 %v1550, %v1552
    %v1555 = vadd.f32 %v1551, %v1553
    %v1556 = vmul.f32 %v115, %v1516
    %v1557 = vmul.f32 %v116, %v1516
    %v1558 = vadd.f32 %v1554, %v1556
    %v1559 = vadd.f32 %v1555, %v1557
    %v1560 = vmul.f32 %v118, %v1521
    %v1561 = vmul.f32 %v119, %v1521
    %v1562 = vadd.f32 %v1558, %v1560
    %v1563 = vadd.f32 %v1559, %v1561
    %v1564 = vmul.f32 %v121, %v1526
    %v1565 = vmul.f32 %v122, %v1526
    %v1566 = vadd.f32 %v1562, %v1564
    %v1567 = vadd.f32 %v1563, %v1565
    %v1568 = vmul.f32 %v127, %v1531
    %v1569 = vmul.f32 %v128, %v1531
    %v1570 = vadd.f32 %v1566, %v1568
    %v1571 = vadd.f32 %v1567, %v1569
    %v1572 = vmul.f32 %v130, %v1536
    %v1573 = vmul.f32 %v131, %v1536
    %v1574 = vadd.f32 %v1570, %v1572
    %v1575 = vadd.f32 %v1571, %v1573
    %v1576 = vmul.f32 %v133, %v1541
    %v1577 = vmul.f32 %v134, %v1541
    %v1578 = vadd.f32 %v1574, %v1576
    %v1579 = vadd.f32 %v1575, %v1577
    %v1580 = vmul.f32 %v112, %v1503
    %v1581 = vmul.f32 %v113, %v1503
    %v1582 = vmul.f32 %v115, %v1506
    %v1583 = vmul.f32 %v116, %v1506
    %v1584 = vadd.f32 %v1580, %v1582
    %v1585 = vadd.f32 %v1581, %v1583
    %v1586 = vmul.f32 %v118, %v1511
    %v1587 = vmul.f32 %v119, %v1511
    %v1588 = vadd.f32 %v1584, %v1586
    %v1589 = vadd.f32 %v1585, %v1587
    %v1590 = vmul.f32 %v124, %v1516
    %v1591 = vmul.f32 %v125, %v1516
    %v1592 = vadd.f32 %v1588, %v1590
    %v1593 = vadd.f32 %v1589, %v1591
    %v1594 = vmul.f32 %v127, %v1521
    %v1595 = vmul.f32 %v128, %v1521
    %v1596 = vadd.f32 %v1592, %v1594
    %v1597 = vadd.f32 %v1593, %v1595
    %v1598 = vmul.f32 %v130, %v1526
    %v1599 = vmul.f32 %v131, %v1526
    %v1600 = vadd.f32 %v1596, %v1598
    %v1601 = vadd.f32 %v1597, %v1599
    %v1602 = vmul.f32 %v136, %v1531
    %v1603 = vmul.f32 %v137, %v1531
    %v1604 = vadd.f32 %v1600, %v1602
    %v1605 = vadd.f32 %v1601, %v1603
    %v1606 = vmul.f32 %v139, %v1536
    %v1607 = vmul.f32 %v140, %v1536
    %v1608 = vadd.f32 %v1604, %v1606
    %v1609 = vadd.f32 %v1605, %v1607
    %v1610 = vmul.f32 %v142, %v1541
    %v1611 = vmul.f32 %v143, %v1541
    %v1612 = vadd.f32 %v1608, %v1610
    %v1613 = vadd.f32 %v1609, %v1611
    %v1614 = vmul.f32 %v115, %v1503
    %v1615 = vmul.f32 %v116, %v1503
    %v1616 = vmul.f32 %v118, %v1506
    %v1617 = vmul.f32 %v119, %v1506
    %v1618 = vadd.f32 %v1614, %v1616
    %v1619 = vadd.f32 %v1615, %v1617
    %v1620 = vmul.f32 %v121, %v1511
    %v1621 = vmul.f32 %v122, %v1511
    %v1622 = vadd.f32 %v1618, %v1620
    %v1623 = vadd.f32 %v1619, %v1621
    %v1624 = vmul.f32 %v127, %v1516
    %v1625 = vmul.f32 %v128, %v1516
    %v1626 = vadd.f32 %v1622, %v1624
    %v1627 = vadd.f32 %v1623, %v1625
    %v1628 = vmul.f32 %v130, %v1521
    %v1629 = vmul.f32 %v131, %v1521
    %v1630 = vadd.f32 %v1626, %v1628
    %v1631 = vadd.f32 %v1627, %v1629
    %v1632 = vmul.f32 %v133, %v1526
    %v1633 = vmul.f32 %v134, %v1526
    %v1634 = vadd.f32 %v1630, %v1632
    %v1635 = vadd.f32 %v1631, %v1633
    %v1636 = vmul.f32 %v139, %v1531
    %v1637 = vmul.f32 %v140, %v1531
    %v1638 = vadd.f32 %v1634, %v1636
    %v1639 = vadd.f32 %v1635, %v1637
    %v1640 = vmul.f32 %v142, %v1536
    %v1641 = vmul.f32 %v143, %v1536
    %v1642 = vadd.f32 %v1638, %v1640
    %v1643 = vadd.f32 %v1639, %v1641
    %v1644 = vmul.f32 %v145, %v1541
    %v1645 = vmul.f32 %v146, %v1541
    %v1646 = vadd.f32 %v1642, %v1644
    %v1647 = vadd.f32 %v1643, %v1645
    %v1648 = vmax.f32 %v1544, %v1578
    %v1649 = vmax.f32 %v1545, %v1579
    %v1650 = vmax.f32 %v1612, %v1646
    %v1651 = vmax.f32 %v1613, %v1647
    %v1652 = vmax.f32 %v1648, %v1650
    %v1653 = vmax.f32 %v1649, %v1651
    %s1654 = sld [smem:[#allocation5 + $0x5]]
    %v1655 = vstv %s1654
    %v1656 = vadd.f32 %v1652, %v1655
    %v1657 = vadd.f32 %v1653, %v1655
    %v1658 = vmax.f32 %v1656, 0.0
    %v1659 = vmax.f32 %v1657, 0.0
    %s1660 = scalar_lea.vmem [#allocation7], 1280
    %v1661 = vld [vmem:[%s1660] sm:$0xff]
    %v1662 = vld [vmem:[%s1660 + $0x8] sm:$0xff]
    %v1663 = vld [vmem:[%s1660 + $0x10] sm:$0xff]
    %v1664 = vld [vmem:[%s1660 + $0x18] sm:$0xff]
    %v1665 = vld [vmem:[%s1660 + $0x20] sm:$0xff]
    %v1666 = vld [vmem:[%s1660 + $0x28] sm:$0xff]
    %v1667 = vld [vmem:[%s1660 + $0x30] sm:$0xff]
    %v1668 = vld [vmem:[%s1660 + $0x38] sm:$0xff]
    %v1669 = vld [vmem:[%s1660 + $0x40] sm:$0xff]
    %v1670 = vld [vmem:[%s1660 + $0x48] sm:$0xff]
    %v1671 = vld [vmem:[%s1660 + $0x50] sm:$0xff]
    %v1672 = vld [vmem:[%s1660 + $0x58] sm:$0xff]
    %v1673 = vld [vmem:[%s1660 + $0x60] sm:$0xff]
    %v1674 = vld [vmem:[%s1660 + $0x68] sm:$0xff]
    %v1675 = vld [vmem:[%s1660 + $0x70] sm:$0xff]
    %v1676 = vld [vmem:[%s1660 + $0x78] sm:$0xff]
    %v1677 = vld [vmem:[%s1660 + $0x80] sm:$0xff]
    %v1678 = vld [vmem:[%s1660 + $0x88] sm:$0xff]
    %v1679 = vld [vmem:[%s1660 + $0x90] sm:$0xff]
    %v1680 = vld [vmem:[%s1660 + $0x98] sm:$0xff]
    %v1681 = vld [vmem:[%s1660 + $0xa0] sm:$0xff]
    %v1682 = vld [vmem:[%s1660 + $0xa8] sm:$0xff]
    %v1683 = vld [vmem:[%s1660 + $0xb0] sm:$0xff]
    %v1684 = vld [vmem:[%s1660 + $0xb8] sm:$0xff]
    %v1685 = vld [vmem:[%s1660 + $0xc0] sm:$0xff]
    %v1686 = vld [vmem:[%s1660 + $0xc8] sm:$0xff]
    %v1687 = vld [vmem:[%s1660 + $0xd0] sm:$0xff]
    %v1688 = vld [vmem:[%s1660 + $0xd8] sm:$0xff]
    %v1689 = vld [vmem:[%s1660 + $0xe0] sm:$0xff]
    %v1690 = vld [vmem:[%s1660 + $0xe8] sm:$0xff]
    %v1691 = vld [vmem:[%s1660 + $0xf0] sm:$0xff]
    %v1692 = vld [vmem:[%s1660 + $0xf8] sm:$0xff]
    %1693 = vmatprep.subr.mxu0 0.0
    %1694 = vmatpush1.msra.mxu0 %v1661
    %1695 = vmatprep.subr.mxu0 0.0
    %1696 = vmatpush1.msra.mxu0 %v1662
    %1697 = vmatprep.subr.mxu0 0.0
    %1698 = vmatpush1.msra.mxu0 %v1663
    %1699 = vmatprep.subr.mxu0 0.0
    %1700 = vmatpush1.msra.mxu0 %v1664
    %1701 = vmatprep.subr.mxu0 0.0
    %1702 = vmatpush1.msra.mxu0 %v1665
    %1703 = vmatprep.subr.mxu0 0.0
    %1704 = vmatpush1.msra.mxu0 %v1666
    %1705 = vmatprep.subr.mxu0 0.0
    %1706 = vmatpush1.msra.mxu0 %v1667
    %1707 = vmatprep.subr.mxu0 0.0
    %1708 = vmatpush1.msra.mxu0 %v1668
    %1709 = vmatprep.subr.mxu0 0.0
    %1710 = vmatpush1.msra.mxu0 %v1669
    %1711 = vmatprep.subr.mxu0 0.0
    %1712 = vmatpush1.msra.mxu0 %v1670
    %1713 = vmatprep.subr.mxu0 0.0
    %1714 = vmatpush1.msra.mxu0 %v1671
    %1715 = vmatprep.subr.mxu0 0.0
    %1716 = vmatpush1.msra.mxu0 %v1672
    %1717 = vmatprep.subr.mxu0 0.0
    %1718 = vmatpush1.msra.mxu0 %v1673
    %1719 = vmatprep.subr.mxu0 0.0
    %1720 = vmatpush1.msra.mxu0 %v1674
    %1721 = vmatprep.subr.mxu0 0.0
    %1722 = vmatpush1.msra.mxu0 %v1675
    %1723 = vmatprep.subr.mxu0 0.0
    %1724 = vmatpush1.msra.mxu0 %v1676
    %1725 = vmatprep.subr.mxu0 0.0
    %1726 = vmatpush1.msra.mxu0 %v1677
    %1727 = vmatprep.subr.mxu0 0.0
    %1728 = vmatpush1.msra.mxu0 %v1678
    %1729 = vmatprep.subr.mxu0 0.0
    %1730 = vmatpush1.msra.mxu0 %v1679
    %1731 = vmatprep.subr.mxu0 0.0
    %1732 = vmatpush1.msra.mxu0 %v1680
    %1733 = vmatprep.subr.mxu0 0.0
    %1734 = vmatpush1.msra.mxu0 %v1681
    %1735 = vmatprep.subr.mxu0 0.0
    %1736 = vmatpush1.msra.mxu0 %v1682
    %1737 = vmatprep.subr.mxu0 0.0
    %1738 = vmatpush1.msra.mxu0 %v1683
    %1739 = vmatprep.subr.mxu0 0.0
    %1740 = vmatpush1.msra.mxu0 %v1684
    %1741 = vmatprep.subr.mxu0 0.0
    %1742 = vmatpush1.msra.mxu0 %v1685
    %1743 = vmatprep.subr.mxu0 0.0
    %1744 = vmatpush1.msra.mxu0 %v1686
    %1745 = vmatprep.subr.mxu0 0.0
    %1746 = vmatpush1.msra.mxu0 %v1687
    %1747 = vmatprep.subr.mxu0 0.0
    %1748 = vmatpush1.msra.mxu0 %v1688
    %1749 = vmatprep.subr.mxu0 0.0
    %1750 = vmatpush1.msra.mxu0 %v1689
    %1751 = vmatprep.subr.mxu0 0.0
    %1752 = vmatpush1.msra.mxu0 %v1690
    %1753 = vmatprep.subr.mxu0 0.0
    %1754 = vmatpush1.msra.mxu0 %v1691
    %1755 = vmatprep.subr.mxu0 0.0
    %1756 = vmatpush1.msra.mxu0 %v1692
    %1757 = vmatprep.mubr.f32.mxu0 %v1659
    %1758 = vmatmul.mubr.f32.gmra.mrb[0].mxu0 %v1658
    %v1759 = vpop.f32.mrb[0].mxu0
    %v1760 = vadd.f32 0.0, %v1759
    %v1761 = vpop.f32.mrb[0].mxu0
    %1762 = vdwg.mxu0
    %v1763 = vadd.f32 %v1493, %v1760
    %s1764 = sld [smem:[#allocation2 + $0x300]]
    %s1765 = sld [smem:[#allocation2 + $0x301]]
    %s1766 = sld [smem:[#allocation2 + $0x302]]
    %s1767 = sld [smem:[#allocation2 + $0x303]]
    %s1768 = sld [smem:[#allocation2 + $0x304]]
    %s1769 = sld [smem:[#allocation2 + $0x305]]
    %s1770 = sld [smem:[#allocation2 + $0x306]]
    %s1771 = sld [smem:[#allocation2 + $0x307]]
    %s1772 = sld [smem:[#allocation2 + $0x308]]
    %v1773 = vstv %s1764
    %v1774 = vmul.f32 %v100, %v1773
    %v1775 = vmul.f32 %v101, %v1773
    %v1776 = vstv %s1765
    %v1777 = vmul.f32 %v103, %v1776
    %v1778 = vmul.f32 %v104, %v1776
    %v1779 = vadd.f32 %v1774, %v1777
    %v1780 = vadd.f32 %v1775, %v1778
    %v1781 = vstv %s1766
    %v1782 = vmul.f32 %v106, %v1781
    %v1783 = vmul.f32 %v107, %v1781
    %v1784 = vadd.f32 %v1779, %v1782
    %v1785 = vadd.f32 %v1780, %v1783
    %v1786 = vstv %s1767
    %v1787 = vmul.f32 %v112, %v1786
    %v1788 = vmul.f32 %v113, %v1786
    %v1789 = vadd.f32 %v1784, %v1787
    %v1790 = vadd.f32 %v1785, %v1788
    %v1791 = vstv %s1768
    %v1792 = vmul.f32 %v115, %v1791
    %v1793 = vmul.f32 %v116, %v1791
    %v1794 = vadd.f32 %v1789, %v1792
    %v1795 = vadd.f32 %v1790, %v1793
    %v1796 = vstv %s1769
    %v1797 = vmul.f32 %v118, %v1796
    %v1798 = vmul.f32 %v119, %v1796
    %v1799 = vadd.f32 %v1794, %v1797
    %v1800 = vadd.f32 %v1795, %v1798
    %v1801 = vstv %s1770
    %v1802 = vmul.f32 %v124, %v1801
    %v1803 = vmul.f32 %v125, %v1801
    %v1804 = vadd.f32 %v1799, %v1802
    %v1805 = vadd.f32 %v1800, %v1803
    %v1806 = vstv %s1771
    %v1807 = vmul.f32 %v127, %v1806
    %v1808 = vmul.f32 %v128, %v1806
    %v1809 = vadd.f32 %v1804, %v1807
    %v1810 = vadd.f32 %v1805, %v1808
    %v1811 = vstv %s1772
    %v1812 = vmul.f32 %v130, %v1811
    %v1813 = vmul.f32 %v131, %v1811
    %v1814 = vadd.f32 %v1809, %v1812
    %v1815 = vadd.f32 %v1810, %v1813
    %v1816 = vmul.f32 %v103, %v1773
    %v1817 = vmul.f32 %v104, %v1773
    %v1818 = vmul.f32 %v106, %v1776
    %v1819 = vmul.f32 %v107, %v1776
    %v1820 = vadd.f32 %v1816, %v1818
    %v1821 = vadd.f32 %v1817, %v1819
    %v1822 = vmul.f32 %v109, %v1781
    %v1823 = vmul.f32 %v110, %v1781
    %v1824 = vadd.f32 %v1820, %v1822
    %v1825 = vadd.f32 %v1821, %v1823
    %v1826 = vmul.f32 %v115, %v1786
    %v1827 = vmul.f32 %v116, %v1786
    %v1828 = vadd.f32 %v1824, %v1826
    %v1829 = vadd.f32 %v1825, %v1827
    %v1830 = vmul.f32 %v118, %v1791
    %v1831 = vmul.f32 %v119, %v1791
    %v1832 = vadd.f32 %v1828, %v1830
    %v1833 = vadd.f32 %v1829, %v1831
    %v1834 = vmul.f32 %v121, %v1796
    %v1835 = vmul.f32 %v122, %v1796
    %v1836 = vadd.f32 %v1832, %v1834
    %v1837 = vadd.f32 %v1833, %v1835
    %v1838 = vmul.f32 %v127, %v1801
    %v1839 = vmul.f32 %v128, %v1801
    %v1840 = vadd.f32 %v1836, %v1838
    %v1841 = vadd.f32 %v1837, %v1839
    %v1842 = vmul.f32 %v130, %v1806
    %v1843 = vmul.f32 %v131, %v1806
    %v1844 = vadd.f32 %v1840, %v1842
    %v1845 = vadd.f32 %v1841, %v1843
    %v1846 = vmul.f32 %v133, %v1811
    %v1847 = vmul.f32 %v134, %v1811
    %v1848 = vadd.f32 %v1844, %v1846
    %v1849 = vadd.f32 %v1845, %v1847
    %v1850 = vmul.f32 %v112, %v1773
    %v1851 = vmul.f32 %v113, %v1773
    %v1852 = vmul.f32 %v115, %v1776
    %v1853 = vmul.f32 %v116, %v1776
    %v1854 = vadd.f32 %v1850, %v1852
    %v1855 = vadd.f32 %v1851, %v1853
    %v1856 = vmul.f32 %v118, %v1781
    %v1857 = vmul.f32 %v119, %v1781
    %v1858 = vadd.f32 %v1854, %v1856
    %v1859 = vadd.f32 %v1855, %v1857
    %v1860 = vmul.f32 %v124, %v1786
    %v1861 = vmul.f32 %v125, %v1786
    %v1862 = vadd.f32 %v1858, %v1860
    %v1863 = vadd.f32 %v1859, %v1861
    %v1864 = vmul.f32 %v127, %v1791
    %v1865 = vmul.f32 %v128, %v1791
    %v1866 = vadd.f32 %v1862, %v1864
    %v1867 = vadd.f32 %v1863, %v1865
    %v1868 = vmul.f32 %v130, %v1796
    %v1869 = vmul.f32 %v131, %v1796
    %v1870 = vadd.f32 %v1866, %v1868
    %v1871 = vadd.f32 %v1867, %v1869
    %v1872 = vmul.f32 %v136, %v1801
    %v1873 = vmul.f32 %v137, %v1801
    %v1874 = vadd.f32 %v1870, %v1872
    %v1875 = vadd.f32 %v1871, %v1873
    %v1876 = vmul.f32 %v139, %v1806
    %v1877 = vmul.f32 %v140, %v1806
    %v1878 = vadd.f32 %v1874, %v1876
    %v1879 = vadd.f32 %v1875, %v1877
    %v1880 = vmul.f32 %v142, %v1811
    %v1881 = vmul.f32 %v143, %v1811
    %v1882 = vadd.f32 %v1878, %v1880
    %v1883 = vadd.f32 %v1879, %v1881
    %v1884 = vmul.f32 %v115, %v1773
    %v1885 = vmul.f32 %v116, %v1773
    %v1886 = vmul.f32 %v118, %v1776
    %v1887 = vmul.f32 %v119, %v1776
    %v1888 = vadd.f32 %v1884, %v1886
    %v1889 = vadd.f32 %v1885, %v1887
    %v1890 = vmul.f32 %v121, %v1781
    %v1891 = vmul.f32 %v122, %v1781
    %v1892 = vadd.f32 %v1888, %v1890
    %v1893 = vadd.f32 %v1889, %v1891
    %v1894 = vmul.f32 %v127, %v1786
    %v1895 = vmul.f32 %v128, %v1786
    %v1896 = vadd.f32 %v1892, %v1894
    %v1897 = vadd.f32 %v1893, %v1895
    %v1898 = vmul.f32 %v130, %v1791
    %v1899 = vmul.f32 %v131, %v1791
    %v1900 = vadd.f32 %v1896, %v1898
    %v1901 = vadd.f32 %v1897, %v1899
    %v1902 = vmul.f32 %v133, %v1796
    %v1903 = vmul.f32 %v134, %v1796
    %v1904 = vadd.f32 %v1900, %v1902
    %v1905 = vadd.f32 %v1901, %v1903
    %v1906 = vmul.f32 %v139, %v1801
    %v1907 = vmul.f32 %v140, %v1801
    %v1908 = vadd.f32 %v1904, %v1906
    %v1909 = vadd.f32 %v1905, %v1907
    %v1910 = vmul.f32 %v142, %v1806
    %v1911 = vmul.f32 %v143, %v1806
    %v1912 = vadd.f32 %v1908, %v1910
    %v1913 = vadd.f32 %v1909, %v1911
    %v1914 = vmul.f32 %v145, %v1811
    %v1915 = vmul.f32 %v146, %v1811
    %v1916 = vadd.f32 %v1912, %v1914
    %v1917 = vadd.f32 %v1913, %v1915
    %v1918 = vmax.f32 %v1814, %v1848
    %v1919 = vmax.f32 %v1815, %v1849
    %v1920 = vmax.f32 %v1882, %v1916
    %v1921 = vmax.f32 %v1883, %v1917
    %v1922 = vmax.f32 %v1918, %v1920
    %v1923 = vmax.f32 %v1919, %v1921
    %s1924 = sld [smem:[#allocation5 + $0x6]]
    %v1925 = vstv %s1924
    %v1926 = vadd.f32 %v1922, %v1925
    %v1927 = vadd.f32 %v1923, %v1925
    %v1928 = vmax.f32 %v1926, 0.0
    %v1929 = vmax.f32 %v1927, 0.0
    %s1930 = scalar_lea.vmem [#allocation7], 1536
    %v1931 = vld [vmem:[%s1930] sm:$0xff]
    %v1932 = vld [vmem:[%s1930 + $0x8] sm:$0xff]
    %v1933 = vld [vmem:[%s1930 + $0x10] sm:$0xff]
    %v1934 = vld [vmem:[%s1930 + $0x18] sm:$0xff]
    %v1935 = vld [vmem:[%s1930 + $0x20] sm:$0xff]
    %v1936 = vld [vmem:[%s1930 + $0x28] sm:$0xff]
    %v1937 = vld [vmem:[%s1930 + $0x30] sm:$0xff]
    %v1938 = vld [vmem:[%s1930 + $0x38] sm:$0xff]
    %v1939 = vld [vmem:[%s1930 + $0x40] sm:$0xff]
    %v1940 = vld [vmem:[%s1930 + $0x48] sm:$0xff]
    %v1941 = vld [vmem:[%s1930 + $0x50] sm:$0xff]
    %v1942 = vld [vmem:[%s1930 + $0x58] sm:$0xff]
    %v1943 = vld [vmem:[%s1930 + $0x60] sm:$0xff]
    %v1944 = vld [vmem:[%s1930 + $0x68] sm:$0xff]
    %v1945 = vld [vmem:[%s1930 + $0x70] sm:$0xff]
    %v1946 = vld [vmem:[%s1930 + $0x78] sm:$0xff]
    %v1947 = vld [vmem:[%s1930 + $0x80] sm:$0xff]
    %v1948 = vld [vmem:[%s1930 + $0x88] sm:$0xff]
    %v1949 = vld [vmem:[%s1930 + $0x90] sm:$0xff]
    %v1950 = vld [vmem:[%s1930 + $0x98] sm:$0xff]
    %v1951 = vld [vmem:[%s1930 + $0xa0] sm:$0xff]
    %v1952 = vld [vmem:[%s1930 + $0xa8] sm:$0xff]
    %v1953 = vld [vmem:[%s1930 + $0xb0] sm:$0xff]
    %v1954 = vld [vmem:[%s1930 + $0xb8] sm:$0xff]
    %v1955 = vld [vmem:[%s1930 + $0xc0] sm:$0xff]
    %v1956 = vld [vmem:[%s1930 + $0xc8] sm:$0xff]
    %v1957 = vld [vmem:[%s1930 + $0xd0] sm:$0xff]
    %v1958 = vld [vmem:[%s1930 + $0xd8] sm:$0xff]
    %v1959 = vld [vmem:[%s1930 + $0xe0] sm:$0xff]
    %v1960 = vld [vmem:[%s1930 + $0xe8] sm:$0xff]
    %v1961 = vld [vmem:[%s1930 + $0xf0] sm:$0xff]
    %v1962 = vld [vmem:[%s1930 + $0xf8] sm:$0xff]
    %1963 = vmatprep.subr.mxu0 0.0
    %1964 = vmatpush1.msra.mxu0 %v1931
    %1965 = vmatprep.subr.mxu0 0.0
    %1966 = vmatpush1.msra.mxu0 %v1932
    %1967 = vmatprep.subr.mxu0 0.0
    %1968 = vmatpush1.msra.mxu0 %v1933
    %1969 = vmatprep.subr.mxu0 0.0
    %1970 = vmatpush1.msra.mxu0 %v1934
    %1971 = vmatprep.subr.mxu0 0.0
    %1972 = vmatpush1.msra.mxu0 %v1935
    %1973 = vmatprep.subr.mxu0 0.0
    %1974 = vmatpush1.msra.mxu0 %v1936
    %1975 = vmatprep.subr.mxu0 0.0
    %1976 = vmatpush1.msra.mxu0 %v1937
    %1977 = vmatprep.subr.mxu0 0.0
    %1978 = vmatpush1.msra.mxu0 %v1938
    %1979 = vmatprep.subr.mxu0 0.0
    %1980 = vmatpush1.msra.mxu0 %v1939
    %1981 = vmatprep.subr.mxu0 0.0
    %1982 = vmatpush1.msra.mxu0 %v1940
    %1983 = vmatprep.subr.mxu0 0.0
    %1984 = vmatpush1.msra.mxu0 %v1941
    %1985 = vmatprep.subr.mxu0 0.0
    %1986 = vmatpush1.msra.mxu0 %v1942
    %1987 = vmatprep.subr.mxu0 0.0
    %1988 = vmatpush1.msra.mxu0 %v1943
    %1989 = vmatprep.subr.mxu0 0.0
    %1990 = vmatpush1.msra.mxu0 %v1944
    %1991 = vmatprep.subr.mxu0 0.0
    %1992 = vmatpush1.msra.mxu0 %v1945
    %1993 = vmatprep.subr.mxu0 0.0
    %1994 = vmatpush1.msra.mxu0 %v1946
    %1995 = vmatprep.subr.mxu0 0.0
    %1996 = vmatpush1.msra.mxu0 %v1947
    %1997 = vmatprep.subr.mxu0 0.0
    %1998 = vmatpush1.msra.mxu0 %v1948
    %1999 = vmatprep.subr.mxu0 0.0
    %2000 = vmatpush1.msra.mxu0 %v1949
    %2001 = vmatprep.subr.mxu0 0.0
    %2002 = vmatpush1.msra.mxu0 %v1950
    %2003 = vmatprep.subr.mxu0 0.0
    %2004 = vmatpush1.msra.mxu0 %v1951
    %2005 = vmatprep.subr.mxu0 0.0
    %2006 = vmatpush1.msra.mxu0 %v1952
    %2007 = vmatprep.subr.mxu0 0.0
    %2008 = vmatpush1.msra.mxu0 %v1953
    %2009 = vmatprep.subr.mxu0 0.0
    %2010 = vmatpush1.msra.mxu0 %v1954
    %2011 = vmatprep.subr.mxu0 0.0
    %2012 = vmatpush1.msra.mxu0 %v1955
    %2013 = vmatprep.subr.mxu0 0.0
    %2014 = vmatpush1.msra.mxu0 %v1956
    %2015 = vmatprep.subr.mxu0 0.0
    %2016 = vmatpush1.msra.mxu0 %v1957
    %2017 = vmatprep.subr.mxu0 0.0
    %2018 = vmatpush1.msra.mxu0 %v1958
    %2019 = vmatprep.subr.mxu0 0.0
    %2020 = vmatpush1.msra.mxu0 %v1959
    %2021 = vmatprep.subr.mxu0 0.0
    %2022 = vmatpush1.msra.mxu0 %v1960
    %2023 = vmatprep.subr.mxu0 0.0
    %2024 = vmatpush1.msra.mxu0 %v1961
    %2025 = vmatprep.subr.mxu0 0.0
    %2026 = vmatpush1.msra.mxu0 %v1962
    %2027 = vmatprep.mubr.f32.mxu0 %v1929
    %2028 = vmatmul.mubr.f32.gmra.mrb[0].mxu0 %v1928
    %v2029 = vpop.f32.mrb[0].mxu0
    %v2030 = vadd.f32 0.0, %v2029
    %v2031 = vpop.f32.mrb[0].mxu0
    %2032 = vdwg.mxu0
    %v2033 = vadd.f32 %v1763, %v2030
    %s2034 = sld [smem:[#allocation2 + $0x380]]
    %s2035 = sld [smem:[#allocation2 + $0x381]]
    %s2036 = sld [smem:[#allocation2 + $0x382]]
    %s2037 = sld [smem:[#allocation2 + $0x383]]
    %s2038 = sld [smem:[#allocation2 + $0x384]]
    %s2039 = sld [smem:[#allocation2 + $0x385]]
    %s2040 = sld [smem:[#allocation2 + $0x386]]
    %s2041 = sld [smem:[#allocation2 + $0x387]]
    %s2042 = sld [smem:[#allocation2 + $0x388]]
    %v2043 = vstv %s2034
    %v2044 = vmul.f32 %v100, %v2043
    %v2045 = vmul.f32 %v101, %v2043
    %v2046 = vstv %s2035
    %v2047 = vmul.f32 %v103, %v2046
    %v2048 = vmul.f32 %v104, %v2046
    %v2049 = vadd.f32 %v2044, %v2047
    %v2050 = vadd.f32 %v2045, %v2048
    %v2051 = vstv %s2036
    %v2052 = vmul.f32 %v106, %v2051
    %v2053 = vmul.f32 %v107, %v2051
    %v2054 = vadd.f32 %v2049, %v2052
    %v2055 = vadd.f32 %v2050, %v2053
    %v2056 = vstv %s2037
    %v2057 = vmul.f32 %v112, %v2056
    %v2058 = vmul.f32 %v113, %v2056
    %v2059 = vadd.f32 %v2054, %v2057
    %v2060 = vadd.f32 %v2055, %v2058
    %v2061 = vstv %s2038
    %v2062 = vmul.f32 %v115, %v2061
    %v2063 = vmul.f32 %v116, %v2061
    %v2064 = vadd.f32 %v2059, %v2062
    %v2065 = vadd.f32 %v2060, %v2063
    %v2066 = vstv %s2039
    %v2067 = vmul.f32 %v118, %v2066
    %v2068 = vmul.f32 %v119, %v2066
    %v2069 = vadd.f32 %v2064, %v2067
    %v2070 = vadd.f32 %v2065, %v2068
    %v2071 = vstv %s2040
    %v2072 = vmul.f32 %v124, %v2071
    %v2073 = vmul.f32 %v125, %v2071
    %v2074 = vadd.f32 %v2069, %v2072
    %v2075 = vadd.f32 %v2070, %v2073
    %v2076 = vstv %s2041
    %v2077 = vmul.f32 %v127, %v2076
    %v2078 = vmul.f32 %v128, %v2076
    %v2079 = vadd.f32 %v2074, %v2077
    %v2080 = vadd.f32 %v2075, %v2078
    %v2081 = vstv %s2042
    %v2082 = vmul.f32 %v130, %v2081
    %v2083 = vmul.f32 %v131, %v2081
    %v2084 = vadd.f32 %v2079, %v2082
    %v2085 = vadd.f32 %v2080, %v2083
    %v2086 = vmul.f32 %v103, %v2043
    %v2087 = vmul.f32 %v104, %v2043
    %v2088 = vmul.f32 %v106, %v2046
    %v2089 = vmul.f32 %v107, %v2046
    %v2090 = vadd.f32 %v2086, %v2088
    %v2091 = vadd.f32 %v2087, %v2089
    %v2092 = vmul.f32 %v109, %v2051
    %v2093 = vmul.f32 %v110, %v2051
    %v2094 = vadd.f32 %v2090, %v2092
    %v2095 = vadd.f32 %v2091, %v2093
    %v2096 = vmul.f32 %v115, %v2056
    %v2097 = vmul.f32 %v116, %v2056
    %v2098 = vadd.f32 %v2094, %v2096
    %v2099 = vadd.f32 %v2095, %v2097
    %v2100 = vmul.f32 %v118, %v2061
    %v2101 = vmul.f32 %v119, %v2061
    %v2102 = vadd.f32 %v2098, %v2100
    %v2103 = vadd.f32 %v2099, %v2101
    %v2104 = vmul.f32 %v121, %v2066
    %v2105 = vmul.f32 %v122, %v2066
    %v2106 = vadd.f32 %v2102, %v2104
    %v2107 = vadd.f32 %v2103, %v2105
    %v2108 = vmul.f32 %v127, %v2071
    %v2109 = vmul.f32 %v128, %v2071
    %v2110 = vadd.f32 %v2106, %v2108
    %v2111 = vadd.f32 %v2107, %v2109
    %v2112 = vmul.f32 %v130, %v2076
    %v2113 = vmul.f32 %v131, %v2076
    %v2114 = vadd.f32 %v2110, %v2112
    %v2115 = vadd.f32 %v2111, %v2113
    %v2116 = vmul.f32 %v133, %v2081
    %v2117 = vmul.f32 %v134, %v2081
    %v2118 = vadd.f32 %v2114, %v2116
    %v2119 = vadd.f32 %v2115, %v2117
    %v2120 = vmul.f32 %v112, %v2043
    %v2121 = vmul.f32 %v113, %v2043
    %v2122 = vmul.f32 %v115, %v2046
    %v2123 = vmul.f32 %v116, %v2046
    %v2124 = vadd.f32 %v2120, %v2122
    %v2125 = vadd.f32 %v2121, %v2123
    %v2126 = vmul.f32 %v118, %v2051
    %v2127 = vmul.f32 %v119, %v2051
    %v2128 = vadd.f32 %v2124, %v2126
    %v2129 = vadd.f32 %v2125, %v2127
    %v2130 = vmul.f32 %v124, %v2056
    %v2131 = vmul.f32 %v125, %v2056
    %v2132 = vadd.f32 %v2128, %v2130
    %v2133 = vadd.f32 %v2129, %v2131
    %v2134 = vmul.f32 %v127, %v2061
    %v2135 = vmul.f32 %v128, %v2061
    %v2136 = vadd.f32 %v2132, %v2134
    %v2137 = vadd.f32 %v2133, %v2135
    %v2138 = vmul.f32 %v130, %v2066
    %v2139 = vmul.f32 %v131, %v2066
    %v2140 = vadd.f32 %v2136, %v2138
    %v2141 = vadd.f32 %v2137, %v2139
    %v2142 = vmul.f32 %v136, %v2071
    %v2143 = vmul.f32 %v137, %v2071
    %v2144 = vadd.f32 %v2140, %v2142
    %v2145 = vadd.f32 %v2141, %v2143
    %v2146 = vmul.f32 %v139, %v2076
    %v2147 = vmul.f32 %v140, %v2076
    %v2148 = vadd.f32 %v2144, %v2146
    %v2149 = vadd.f32 %v2145, %v2147
    %v2150 = vmul.f32 %v142, %v2081
    %v2151 = vmul.f32 %v143, %v2081
    %v2152 = vadd.f32 %v2148, %v2150
    %v2153 = vadd.f32 %v2149, %v2151
    %v2154 = vmul.f32 %v115, %v2043
    %v2155 = vmul.f32 %v116, %v2043
    %v2156 = vmul.f32 %v118, %v2046
    %v2157 = vmul.f32 %v119, %v2046
    %v2158 = vadd.f32 %v2154, %v2156
    %v2159 = vadd.f32 %v2155, %v2157
    %v2160 = vmul.f32 %v121, %v2051
    %v2161 = vmul.f32 %v122, %v2051
    %v2162 = vadd.f32 %v2158, %v2160
    %v2163 = vadd.f32 %v2159, %v2161
    %v2164 = vmul.f32 %v127, %v2056
    %v2165 = vmul.f32 %v128, %v2056
    %v2166 = vadd.f32 %v2162, %v2164
    %v2167 = vadd.f32 %v2163, %v2165
    %v2168 = vmul.f32 %v130, %v2061
    %v2169 = vmul.f32 %v131, %v2061
    %v2170 = vadd.f32 %v2166, %v2168
    %v2171 = vadd.f32 %v2167, %v2169
    %v2172 = vmul.f32 %v133, %v2066
    %v2173 = vmul.f32 %v134, %v2066
    %v2174 = vadd.f32 %v2170, %v2172
    %v2175 = vadd.f32 %v2171, %v2173
    %v2176 = vmul.f32 %v139, %v2071
    %v2177 = vmul.f32 %v140, %v2071
    %v2178 = vadd.f32 %v2174, %v2176
    %v2179 = vadd.f32 %v2175, %v2177
    %v2180 = vmul.f32 %v142, %v2076
    %v2181 = vmul.f32 %v143, %v2076
    %v2182 = vadd.f32 %v2178, %v2180
    %v2183 = vadd.f32 %v2179, %v2181
    %v2184 = vmul.f32 %v145, %v2081
    %v2185 = vmul.f32 %v146, %v2081
    %v2186 = vadd.f32 %v2182, %v2184
    %v2187 = vadd.f32 %v2183, %v2185
    %v2188 = vmax.f32 %v2084, %v2118
    %v2189 = vmax.f32 %v2085, %v2119
    %v2190 = vmax.f32 %v2152, %v2186
    %v2191 = vmax.f32 %v2153, %v2187
    %v2192 = vmax.f32 %v2188, %v2190
    %v2193 = vmax.f32 %v2189, %v2191
    %s2194 = sld [smem:[#allocation5 + $0x7]]
    %v2195 = vstv %s2194
    %v2196 = vadd.f32 %v2192, %v2195
    %v2197 = vadd.f32 %v2193, %v2195
    %v2198 = vmax.f32 %v2196, 0.0
    %v2199 = vmax.f32 %v2197, 0.0
    %s2200 = scalar_lea.vmem [#allocation7], 1792
    %v2201 = vld [vmem:[%s2200] sm:$0xff]
    %v2202 = vld [vmem:[%s2200 + $0x8] sm:$0xff]
    %v2203 = vld [vmem:[%s2200 + $0x10] sm:$0xff]
    %v2204 = vld [vmem:[%s2200 + $0x18] sm:$0xff]
    %v2205 = vld [vmem:[%s2200 + $0x20] sm:$0xff]
    %v2206 = vld [vmem:[%s2200 + $0x28] sm:$0xff]
    %v2207 = vld [vmem:[%s2200 + $0x30] sm:$0xff]
    %v2208 = vld [vmem:[%s2200 + $0x38] sm:$0xff]
    %v2209 = vld [vmem:[%s2200 + $0x40] sm:$0xff]
    %v2210 = vld [vmem:[%s2200 + $0x48] sm:$0xff]
    %v2211 = vld [vmem:[%s2200 + $0x50] sm:$0xff]
    %v2212 = vld [vmem:[%s2200 + $0x58] sm:$0xff]
    %v2213 = vld [vmem:[%s2200 + $0x60] sm:$0xff]
    %v2214 = vld [vmem:[%s2200 + $0x68] sm:$0xff]
    %v2215 = vld [vmem:[%s2200 + $0x70] sm:$0xff]
    %v2216 = vld [vmem:[%s2200 + $0x78] sm:$0xff]
    %v2217 = vld [vmem:[%s2200 + $0x80] sm:$0xff]
    %v2218 = vld [vmem:[%s2200 + $0x88] sm:$0xff]
    %v2219 = vld [vmem:[%s2200 + $0x90] sm:$0xff]
    %v2220 = vld [vmem:[%s2200 + $0x98] sm:$0xff]
    %v2221 = vld [vmem:[%s2200 + $0xa0] sm:$0xff]
    %v2222 = vld [vmem:[%s2200 + $0xa8] sm:$0xff]
    %v2223 = vld [vmem:[%s2200 + $0xb0] sm:$0xff]
    %v2224 = vld [vmem:[%s2200 + $0xb8] sm:$0xff]
    %v2225 = vld [vmem:[%s2200 + $0xc0] sm:$0xff]
    %v2226 = vld [vmem:[%s2200 + $0xc8] sm:$0xff]
    %v2227 = vld [vmem:[%s2200 + $0xd0] sm:$0xff]
    %v2228 = vld [vmem:[%s2200 + $0xd8] sm:$0xff]
    %v2229 = vld [vmem:[%s2200 + $0xe0] sm:$0xff]
    %v2230 = vld [vmem:[%s2200 + $0xe8] sm:$0xff]
    %v2231 = vld [vmem:[%s2200 + $0xf0] sm:$0xff]
    %v2232 = vld [vmem:[%s2200 + $0xf8] sm:$0xff]
    %2233 = vmatprep.subr.mxu0 0.0
    %2234 = vmatpush1.msra.mxu0 %v2201
    %2235 = vmatprep.subr.mxu0 0.0
    %2236 = vmatpush1.msra.mxu0 %v2202
    %2237 = vmatprep.subr.mxu0 0.0
    %2238 = vmatpush1.msra.mxu0 %v2203
    %2239 = vmatprep.subr.mxu0 0.0
    %2240 = vmatpush1.msra.mxu0 %v2204
    %2241 = vmatprep.subr.mxu0 0.0
    %2242 = vmatpush1.msra.mxu0 %v2205
    %2243 = vmatprep.subr.mxu0 0.0
    %2244 = vmatpush1.msra.mxu0 %v2206
    %2245 = vmatprep.subr.mxu0 0.0
    %2246 = vmatpush1.msra.mxu0 %v2207
    %2247 = vmatprep.subr.mxu0 0.0
    %2248 = vmatpush1.msra.mxu0 %v2208
    %2249 = vmatprep.subr.mxu0 0.0
    %2250 = vmatpush1.msra.mxu0 %v2209
    %2251 = vmatprep.subr.mxu0 0.0
    %2252 = vmatpush1.msra.mxu0 %v2210
    %2253 = vmatprep.subr.mxu0 0.0
    %2254 = vmatpush1.msra.mxu0 %v2211
    %2255 = vmatprep.subr.mxu0 0.0
    %2256 = vmatpush1.msra.mxu0 %v2212
    %2257 = vmatprep.subr.mxu0 0.0
    %2258 = vmatpush1.msra.mxu0 %v2213
    %2259 = vmatprep.subr.mxu0 0.0
    %2260 = vmatpush1.msra.mxu0 %v2214
    %2261 = vmatprep.subr.mxu0 0.0
    %2262 = vmatpush1.msra.mxu0 %v2215
    %2263 = vmatprep.subr.mxu0 0.0
    %2264 = vmatpush1.msra.mxu0 %v2216
    %2265 = vmatprep.subr.mxu0 0.0
    %2266 = vmatpush1.msra.mxu0 %v2217
    %2267 = vmatprep.subr.mxu0 0.0
    %2268 = vmatpush1.msra.mxu0 %v2218
    %2269 = vmatprep.subr.mxu0 0.0
    %2270 = vmatpush1.msra.mxu0 %v2219
    %2271 = vmatprep.subr.mxu0 0.0
    %2272 = vmatpush1.msra.mxu0 %v2220
    %2273 = vmatprep.subr.mxu0 0.0
    %2274 = vmatpush1.msra.mxu0 %v2221
    %2275 = vmatprep.subr.mxu0 0.0
    %2276 = vmatpush1.msra.mxu0 %v2222
    %2277 = vmatprep.subr.mxu0 0.0
    %2278 = vmatpush1.msra.mxu0 %v2223
    %2279 = vmatprep.subr.mxu0 0.0
    %2280 = vmatpush1.msra.mxu0 %v2224
    %2281 = vmatprep.subr.mxu0 0.0
    %2282 = vmatpush1.msra.mxu0 %v2225
    %2283 = vmatprep.subr.mxu0 0.0
    %2284 = vmatpush1.msra.mxu0 %v2226
    %2285 = vmatprep.subr.mxu0 0.0
    %2286 = vmatpush1.msra.mxu0 %v2227
    %2287 = vmatprep.subr.mxu0 0.0
    %2288 = vmatpush1.msra.mxu0 %v2228
    %2289 = vmatprep.subr.mxu0 0.0
    %2290 = vmatpush1.msra.mxu0 %v2229
    %2291 = vmatprep.subr.mxu0 0.0
    %2292 = vmatpush1.msra.mxu0 %v2230
    %2293 = vmatprep.subr.mxu0 0.0
    %2294 = vmatpush1.msra.mxu0 %v2231
    %2295 = vmatprep.subr.mxu0 0.0
    %2296 = vmatpush1.msra.mxu0 %v2232
    %2297 = vmatprep.mubr.f32.mxu0 %v2199
    %2298 = vmatmul.mubr.f32.gmra.mrb[0].mxu0 %v2198
    %v2299 = vpop.f32.mrb[0].mxu0
    %v2300 = vadd.f32 0.0, %v2299
    %v2301 = vpop.f32.mrb[0].mxu0
    %2302 = vdwg.mxu0
    %v2303 = vadd.f32 %v2033, %v2300
    %s2304 = sld [smem:[#allocation2 + $0x400]]
    %s2305 = sld [smem:[#allocation2 + $0x401]]
    %s2306 = sld [smem:[#allocation2 + $0x402]]
    %s2307 = sld [smem:[#allocation2 + $0x403]]
    %s2308 = sld [smem:[#allocation2 + $0x404]]
    %s2309 = sld [smem:[#allocation2 + $0x405]]
    %s2310 = sld [smem:[#allocation2 + $0x406]]
    %s2311 = sld [smem:[#allocation2 + $0x407]]
    %s2312 = sld [smem:[#allocation2 + $0x408]]
    %v2313 = vstv %s2304
    %v2314 = vmul.f32 %v100, %v2313
    %v2315 = vmul.f32 %v101, %v2313
    %v2316 = vstv %s2305
    %v2317 = vmul.f32 %v103, %v2316
    %v2318 = vmul.f32 %v104, %v2316
    %v2319 = vadd.f32 %v2314, %v2317
    %v2320 = vadd.f32 %v2315, %v2318
    %v2321 = vstv %s2306
    %v2322 = vmul.f32 %v106, %v2321
    %v2323 = vmul.f32 %v107, %v2321
    %v2324 = vadd.f32 %v2319, %v2322
    %v2325 = vadd.f32 %v2320, %v2323
    %v2326 = vstv %s2307
    %v2327 = vmul.f32 %v112, %v2326
    %v2328 = vmul.f32 %v113, %v2326
    %v2329 = vadd.f32 %v2324, %v2327
    %v2330 = vadd.f32 %v2325, %v2328
    %v2331 = vstv %s2308
    %v2332 = vmul.f32 %v115, %v2331
    %v2333 = vmul.f32 %v116, %v2331
    %v2334 = vadd.f32 %v2329, %v2332
    %v2335 = vadd.f32 %v2330, %v2333
    %v2336 = vstv %s2309
    %v2337 = vmul.f32 %v118, %v2336
    %v2338 = vmul.f32 %v119, %v2336
    %v2339 = vadd.f32 %v2334, %v2337
    %v2340 = vadd.f32 %v2335, %v2338
    %v2341 = vstv %s2310
    %v2342 = vmul.f32 %v124, %v2341
    %v2343 = vmul.f32 %v125, %v2341
    %v2344 = vadd.f32 %v2339, %v2342
    %v2345 = vadd.f32 %v2340, %v2343
    %v2346 = vstv %s2311
    %v2347 = vmul.f32 %v127, %v2346
    %v2348 = vmul.f32 %v128, %v2346
    %v2349 = vadd.f32 %v2344, %v2347
    %v2350 = vadd.f32 %v2345, %v2348
    %v2351 = vstv %s2312
    %v2352 = vmul.f32 %v130, %v2351
    %v2353 = vmul.f32 %v131, %v2351
    %v2354 = vadd.f32 %v2349, %v2352
    %v2355 = vadd.f32 %v2350, %v2353
    %v2356 = vmul.f32 %v103, %v2313
    %v2357 = vmul.f32 %v104, %v2313
    %v2358 = vmul.f32 %v106, %v2316
    %v2359 = vmul.f32 %v107, %v2316
    %v2360 = vadd.f32 %v2356, %v2358
    %v2361 = vadd.f32 %v2357, %v2359
    %v2362 = vmul.f32 %v109, %v2321
    %v2363 = vmul.f32 %v110, %v2321
    %v2364 = vadd.f32 %v2360, %v2362
    %v2365 = vadd.f32 %v2361, %v2363
    %v2366 = vmul.f32 %v115, %v2326
    %v2367 = vmul.f32 %v116, %v2326
    %v2368 = vadd.f32 %v2364, %v2366
    %v2369 = vadd.f32 %v2365, %v2367
    %v2370 = vmul.f32 %v118, %v2331
    %v2371 = vmul.f32 %v119, %v2331
    %v2372 = vadd.f32 %v2368, %v2370
    %v2373 = vadd.f32 %v2369, %v2371
    %v2374 = vmul.f32 %v121, %v2336
    %v2375 = vmul.f32 %v122, %v2336
    %v2376 = vadd.f32 %v2372, %v2374
    %v2377 = vadd.f32 %v2373, %v2375
    %v2378 = vmul.f32 %v127, %v2341
    %v2379 = vmul.f32 %v128, %v2341
    %v2380 = vadd.f32 %v2376, %v2378
    %v2381 = vadd.f32 %v2377, %v2379
    %v2382 = vmul.f32 %v130, %v2346
    %v2383 = vmul.f32 %v131, %v2346
    %v2384 = vadd.f32 %v2380, %v2382
    %v2385 = vadd.f32 %v2381, %v2383
    %v2386 = vmul.f32 %v133, %v2351
    %v2387 = vmul.f32 %v134, %v2351
    %v2388 = vadd.f32 %v2384, %v2386
    %v2389 = vadd.f32 %v2385, %v2387
    %v2390 = vmul.f32 %v112, %v2313
    %v2391 = vmul.f32 %v113, %v2313
    %v2392 = vmul.f32 %v115, %v2316
    %v2393 = vmul.f32 %v116, %v2316
    %v2394 = vadd.f32 %v2390, %v2392
    %v2395 = vadd.f32 %v2391, %v2393
    %v2396 = vmul.f32 %v118, %v2321
    %v2397 = vmul.f32 %v119, %v2321
    %v2398 = vadd.f32 %v2394, %v2396
    %v2399 = vadd.f32 %v2395, %v2397
    %v2400 = vmul.f32 %v124, %v2326
    %v2401 = vmul.f32 %v125, %v2326
    %v2402 = vadd.f32 %v2398, %v2400
    %v2403 = vadd.f32 %v2399, %v2401
    %v2404 = vmul.f32 %v127, %v2331
    %v2405 = vmul.f32 %v128, %v2331
    %v2406 = vadd.f32 %v2402, %v2404
    %v2407 = vadd.f32 %v2403, %v2405
    %v2408 = vmul.f32 %v130, %v2336
    %v2409 = vmul.f32 %v131, %v2336
    %v2410 = vadd.f32 %v2406, %v2408
    %v2411 = vadd.f32 %v2407, %v2409
    %v2412 = vmul.f32 %v136, %v2341
    %v2413 = vmul.f32 %v137, %v2341
    %v2414 = vadd.f32 %v2410, %v2412
    %v2415 = vadd.f32 %v2411, %v2413
    %v2416 = vmul.f32 %v139, %v2346
    %v2417 = vmul.f32 %v140, %v2346
    %v2418 = vadd.f32 %v2414, %v2416
    %v2419 = vadd.f32 %v2415, %v2417
    %v2420 = vmul.f32 %v142, %v2351
    %v2421 = vmul.f32 %v143, %v2351
    %v2422 = vadd.f32 %v2418, %v2420
    %v2423 = vadd.f32 %v2419, %v2421
    %v2424 = vmul.f32 %v115, %v2313
    %v2425 = vmul.f32 %v116, %v2313
    %v2426 = vmul.f32 %v118, %v2316
    %v2427 = vmul.f32 %v119, %v2316
    %v2428 = vadd.f32 %v2424, %v2426
    %v2429 = vadd.f32 %v2425, %v2427
    %v2430 = vmul.f32 %v121, %v2321
    %v2431 = vmul.f32 %v122, %v2321
    %v2432 = vadd.f32 %v2428, %v2430
    %v2433 = vadd.f32 %v2429, %v2431
    %v2434 = vmul.f32 %v127, %v2326
    %v2435 = vmul.f32 %v128, %v2326
    %v2436 = vadd.f32 %v2432, %v2434
    %v2437 = vadd.f32 %v2433, %v2435
    %v2438 = vmul.f32 %v130, %v2331
    %v2439 = vmul.f32 %v131, %v2331
    %v2440 = vadd.f32 %v2436, %v2438
    %v2441 = vadd.f32 %v2437, %v2439
    %v2442 = vmul.f32 %v133, %v2336
    %v2443 = vmul.f32 %v134, %v2336
    %v2444 = vadd.f32 %v2440, %v2442
    %v2445 = vadd.f32 %v2441, %v2443
    %v2446 = vmul.f32 %v139, %v2341
    %v2447 = vmul.f32 %v140, %v2341
    %v2448 = vadd.f32 %v2444, %v2446
    %v2449 = vadd.f32 %v2445, %v2447
    %v2450 = vmul.f32 %v142, %v2346
    %v2451 = vmul.f32 %v143, %v2346
    %v2452 = vadd.f32 %v2448, %v2450
    %v2453 = vadd.f32 %v2449, %v2451
    %v2454 = vmul.f32 %v145, %v2351
    %v2455 = vmul.f32 %v146, %v2351
    %v2456 = vadd.f32 %v2452, %v2454
    %v2457 = vadd.f32 %v2453, %v2455
    %v2458 = vmax.f32 %v2354, %v2388
    %v2459 = vmax.f32 %v2355, %v2389
    %v2460 = vmax.f32 %v2422, %v2456
    %v2461 = vmax.f32 %v2423, %v2457
    %v2462 = vmax.f32 %v2458, %v2460
    %v2463 = vmax.f32 %v2459, %v2461
    %s2464 = sld [smem:[#allocation5 + $0x8]]
    %v2465 = vstv %s2464
    %v2466 = vadd.f32 %v2462, %v2465
    %v2467 = vadd.f32 %v2463, %v2465
    %v2468 = vmax.f32 %v2466, 0.0
    %v2469 = vmax.f32 %v2467, 0.0
    %s2470 = scalar_lea.vmem [#allocation7], 2048
    %v2471 = vld [vmem:[%s2470] sm:$0xff]
    %v2472 = vld [vmem:[%s2470 + $0x8] sm:$0xff]
    %v2473 = vld [vmem:[%s2470 + $0x10] sm:$0xff]
    %v2474 = vld [vmem:[%s2470 + $0x18] sm:$0xff]
    %v2475 = vld [vmem:[%s2470 + $0x20] sm:$0xff]
    %v2476 = vld [vmem:[%s2470 + $0x28] sm:$0xff]
    %v2477 = vld [vmem:[%s2470 + $0x30] sm:$0xff]
    %v2478 = vld [vmem:[%s2470 + $0x38] sm:$0xff]
    %v2479 = vld [vmem:[%s2470 + $0x40] sm:$0xff]
    %v2480 = vld [vmem:[%s2470 + $0x48] sm:$0xff]
    %v2481 = vld [vmem:[%s2470 + $0x50] sm:$0xff]
    %v2482 = vld [vmem:[%s2470 + $0x58] sm:$0xff]
    %v2483 = vld [vmem:[%s2470 + $0x60] sm:$0xff]
    %v2484 = vld [vmem:[%s2470 + $0x68] sm:$0xff]
    %v2485 = vld [vmem:[%s2470 + $0x70] sm:$0xff]
    %v2486 = vld [vmem:[%s2470 + $0x78] sm:$0xff]
    %v2487 = vld [vmem:[%s2470 + $0x80] sm:$0xff]
    %v2488 = vld [vmem:[%s2470 + $0x88] sm:$0xff]
    %v2489 = vld [vmem:[%s2470 + $0x90] sm:$0xff]
    %v2490 = vld [vmem:[%s2470 + $0x98] sm:$0xff]
    %v2491 = vld [vmem:[%s2470 + $0xa0] sm:$0xff]
    %v2492 = vld [vmem:[%s2470 + $0xa8] sm:$0xff]
    %v2493 = vld [vmem:[%s2470 + $0xb0] sm:$0xff]
    %v2494 = vld [vmem:[%s2470 + $0xb8] sm:$0xff]
    %v2495 = vld [vmem:[%s2470 + $0xc0] sm:$0xff]
    %v2496 = vld [vmem:[%s2470 + $0xc8] sm:$0xff]
    %v2497 = vld [vmem:[%s2470 + $0xd0] sm:$0xff]
    %v2498 = vld [vmem:[%s2470 + $0xd8] sm:$0xff]
    %v2499 = vld [vmem:[%s2470 + $0xe0] sm:$0xff]
    %v2500 = vld [vmem:[%s2470 + $0xe8] sm:$0xff]
    %v2501 = vld [vmem:[%s2470 + $0xf0] sm:$0xff]
    %v2502 = vld [vmem:[%s2470 + $0xf8] sm:$0xff]
    %2503 = vmatprep.subr.mxu0 0.0
    %2504 = vmatpush1.msra.mxu0 %v2471
    %2505 = vmatprep.subr.mxu0 0.0
    %2506 = vmatpush1.msra.mxu0 %v2472
    %2507 = vmatprep.subr.mxu0 0.0
    %2508 = vmatpush1.msra.mxu0 %v2473
    %2509 = vmatprep.subr.mxu0 0.0
    %2510 = vmatpush1.msra.mxu0 %v2474
    %2511 = vmatprep.subr.mxu0 0.0
    %2512 = vmatpush1.msra.mxu0 %v2475
    %2513 = vmatprep.subr.mxu0 0.0
    %2514 = vmatpush1.msra.mxu0 %v2476
    %2515 = vmatprep.subr.mxu0 0.0
    %2516 = vmatpush1.msra.mxu0 %v2477
    %2517 = vmatprep.subr.mxu0 0.0
    %2518 = vmatpush1.msra.mxu0 %v2478
    %2519 = vmatprep.subr.mxu0 0.0
    %2520 = vmatpush1.msra.mxu0 %v2479
    %2521 = vmatprep.subr.mxu0 0.0
    %2522 = vmatpush1.msra.mxu0 %v2480
    %2523 = vmatprep.subr.mxu0 0.0
    %2524 = vmatpush1.msra.mxu0 %v2481
    %2525 = vmatprep.subr.mxu0 0.0
    %2526 = vmatpush1.msra.mxu0 %v2482
    %2527 = vmatprep.subr.mxu0 0.0
    %2528 = vmatpush1.msra.mxu0 %v2483
    %2529 = vmatprep.subr.mxu0 0.0
    %2530 = vmatpush1.msra.mxu0 %v2484
    %2531 = vmatprep.subr.mxu0 0.0
    %2532 = vmatpush1.msra.mxu0 %v2485
    %2533 = vmatprep.subr.mxu0 0.0
    %2534 = vmatpush1.msra.mxu0 %v2486
    %2535 = vmatprep.subr.mxu0 0.0
    %2536 = vmatpush1.msra.mxu0 %v2487
    %2537 = vmatprep.subr.mxu0 0.0
    %2538 = vmatpush1.msra.mxu0 %v2488
    %2539 = vmatprep.subr.mxu0 0.0
    %2540 = vmatpush1.msra.mxu0 %v2489
    %2541 = vmatprep.subr.mxu0 0.0
    %2542 = vmatpush1.msra.mxu0 %v2490
    %2543 = vmatprep.subr.mxu0 0.0
    %2544 = vmatpush1.msra.mxu0 %v2491
    %2545 = vmatprep.subr.mxu0 0.0
    %2546 = vmatpush1.msra.mxu0 %v2492
    %2547 = vmatprep.subr.mxu0 0.0
    %2548 = vmatpush1.msra.mxu0 %v2493
    %2549 = vmatprep.subr.mxu0 0.0
    %2550 = vmatpush1.msra.mxu0 %v2494
    %2551 = vmatprep.subr.mxu0 0.0
    %2552 = vmatpush1.msra.mxu0 %v2495
    %2553 = vmatprep.subr.mxu0 0.0
    %2554 = vmatpush1.msra.mxu0 %v2496
    %2555 = vmatprep.subr.mxu0 0.0
    %2556 = vmatpush1.msra.mxu0 %v2497
    %2557 = vmatprep.subr.mxu0 0.0
    %2558 = vmatpush1.msra.mxu0 %v2498
    %2559 = vmatprep.subr.mxu0 0.0
    %2560 = vmatpush1.msra.mxu0 %v2499
    %2561 = vmatprep.subr.mxu0 0.0
    %2562 = vmatpush1.msra.mxu0 %v2500
    %2563 = vmatprep.subr.mxu0 0.0
    %2564 = vmatpush1.msra.mxu0 %v2501
    %2565 = vmatprep.subr.mxu0 0.0
    %2566 = vmatpush1.msra.mxu0 %v2502
    %2567 = vmatprep.mubr.f32.mxu0 %v2469
    %2568 = vmatmul.mubr.f32.gmra.mrb[0].mxu0 %v2468
    %v2569 = vpop.f32.mrb[0].mxu0
    %v2570 = vadd.f32 0.0, %v2569
    %v2571 = vpop.f32.mrb[0].mxu0
    %2572 = vdwg.mxu0
    %v2573 = vadd.f32 %v2303, %v2570
    %s2574 = sld [smem:[#allocation2 + $0x480]]
    %s2575 = sld [smem:[#allocation2 + $0x481]]
    %s2576 = sld [smem:[#allocation2 + $0x482]]
    %s2577 = sld [smem:[#allocation2 + $0x483]]
    %s2578 = sld [smem:[#allocation2 + $0x484]]
    %s2579 = sld [smem:[#allocation2 + $0x485]]
    %s2580 = sld [smem:[#allocation2 + $0x486]]
    %s2581 = sld [smem:[#allocation2 + $0x487]]
    %s2582 = sld [smem:[#allocation2 + $0x488]]
    %v2583 = vstv %s2574
    %v2584 = vmul.f32 %v100, %v2583
    %v2585 = vmul.f32 %v101, %v2583
    %v2586 = vstv %s2575
    %v2587 = vmul.f32 %v103, %v2586
    %v2588 = vmul.f32 %v104, %v2586
    %v2589 = vadd.f32 %v2584, %v2587
    %v2590 = vadd.f32 %v2585, %v2588
    %v2591 = vstv %s2576
    %v2592 = vmul.f32 %v106, %v2591
    %v2593 = vmul.f32 %v107, %v2591
    %v2594 = vadd.f32 %v2589, %v2592
    %v2595 = vadd.f32 %v2590, %v2593
    %v2596 = vstv %s2577
    %v2597 = vmul.f32 %v112, %v2596
    %v2598 = vmul.f32 %v113, %v2596
    %v2599 = vadd.f32 %v2594, %v2597
    %v2600 = vadd.f32 %v2595, %v2598
    %v2601 = vstv %s2578
    %v2602 = vmul.f32 %v115, %v2601
    %v2603 = vmul.f32 %v116, %v2601
    %v2604 = vadd.f32 %v2599, %v2602
    %v2605 = vadd.f32 %v2600, %v2603
    %v2606 = vstv %s2579
    %v2607 = vmul.f32 %v118, %v2606
    %v2608 = vmul.f32 %v119, %v2606
    %v2609 = vadd.f32 %v2604, %v2607
    %v2610 = vadd.f32 %v2605, %v2608
    %v2611 = vstv %s2580
    %v2612 = vmul.f32 %v124, %v2611
    %v2613 = vmul.f32 %v125, %v2611
    %v2614 = vadd.f32 %v2609, %v2612
    %v2615 = vadd.f32 %v2610, %v2613
    %v2616 = vstv %s2581
    %v2617 = vmul.f32 %v127, %v2616
    %v2618 = vmul.f32 %v128, %v2616
    %v2619 = vadd.f32 %v2614, %v2617
    %v2620 = vadd.f32 %v2615, %v2618
    %v2621 = vstv %s2582
    %v2622 = vmul.f32 %v130, %v2621
    %v2623 = vmul.f32 %v131, %v2621
    %v2624 = vadd.f32 %v2619, %v2622
    %v2625 = vadd.f32 %v2620, %v2623
    %v2626 = vmul.f32 %v103, %v2583
    %v2627 = vmul.f32 %v104, %v2583
    %v2628 = vmul.f32 %v106, %v2586
    %v2629 = vmul.f32 %v107, %v2586
    %v2630 = vadd.f32 %v2626, %v2628
    %v2631 = vadd.f32 %v2627, %v2629
    %v2632 = vmul.f32 %v109, %v2591
    %v2633 = vmul.f32 %v110, %v2591
    %v2634 = vadd.f32 %v2630, %v2632
    %v2635 = vadd.f32 %v2631, %v2633
    %v2636 = vmul.f32 %v115, %v2596
    %v2637 = vmul.f32 %v116, %v2596
    %v2638 = vadd.f32 %v2634, %v2636
    %v2639 = vadd.f32 %v2635, %v2637
    %v2640 = vmul.f32 %v118, %v2601
    %v2641 = vmul.f32 %v119, %v2601
    %v2642 = vadd.f32 %v2638, %v2640
    %v2643 = vadd.f32 %v2639, %v2641
    %v2644 = vmul.f32 %v121, %v2606
    %v2645 = vmul.f32 %v122, %v2606
    %v2646 = vadd.f32 %v2642, %v2644
    %v2647 = vadd.f32 %v2643, %v2645
    %v2648 = vmul.f32 %v127, %v2611
    %v2649 = vmul.f32 %v128, %v2611
    %v2650 = vadd.f32 %v2646, %v2648
    %v2651 = vadd.f32 %v2647, %v2649
    %v2652 = vmul.f32 %v130, %v2616
    %v2653 = vmul.f32 %v131, %v2616
    %v2654 = vadd.f32 %v2650, %v2652
    %v2655 = vadd.f32 %v2651, %v2653
    %v2656 = vmul.f32 %v133, %v2621
    %v2657 = vmul.f32 %v134, %v2621
    %v2658 = vadd.f32 %v2654, %v2656
    %v2659 = vadd.f32 %v2655, %v2657
    %v2660 = vmul.f32 %v112, %v2583
    %v2661 = vmul.f32 %v113, %v2583
    %v2662 = vmul.f32 %v115, %v2586
    %v2663 = vmul.f32 %v116, %v2586
    %v2664 = vadd.f32 %v2660, %v2662
    %v2665 = vadd.f32 %v2661, %v2663
    %v2666 = vmul.f32 %v118, %v2591
    %v2667 = vmul.f32 %v119, %v2591
    %v2668 = vadd.f32 %v2664, %v2666
    %v2669 = vadd.f32 %v2665, %v2667
    %v2670 = vmul.f32 %v124, %v2596
    %v2671 = vmul.f32 %v125, %v2596
    %v2672 = vadd.f32 %v2668, %v2670
    %v2673 = vadd.f32 %v2669, %v2671
    %v2674 = vmul.f32 %v127, %v2601
    %v2675 = vmul.f32 %v128, %v2601
    %v2676 = vadd.f32 %v2672, %v2674
    %v2677 = vadd.f32 %v2673, %v2675
    %v2678 = vmul.f32 %v130, %v2606
    %v2679 = vmul.f32 %v131, %v2606
    %v2680 = vadd.f32 %v2676, %v2678
    %v2681 = vadd.f32 %v2677, %v2679
    %v2682 = vmul.f32 %v136, %v2611
    %v2683 = vmul.f32 %v137, %v2611
    %v2684 = vadd.f32 %v2680, %v2682
    %v2685 = vadd.f32 %v2681, %v2683
    %v2686 = vmul.f32 %v139, %v2616
    %v2687 = vmul.f32 %v140, %v2616
    %v2688 = vadd.f32 %v2684, %v2686
    %v2689 = vadd.f32 %v2685, %v2687
    %v2690 = vmul.f32 %v142, %v2621
    %v2691 = vmul.f32 %v143, %v2621
    %v2692 = vadd.f32 %v2688, %v2690
    %v2693 = vadd.f32 %v2689, %v2691
    %v2694 = vmul.f32 %v115, %v2583
    %v2695 = vmul.f32 %v116, %v2583
    %v2696 = vmul.f32 %v118, %v2586
    %v2697 = vmul.f32 %v119, %v2586
    %v2698 = vadd.f32 %v2694, %v2696
    %v2699 = vadd.f32 %v2695, %v2697
    %v2700 = vmul.f32 %v121, %v2591
    %v2701 = vmul.f32 %v122, %v2591
    %v2702 = vadd.f32 %v2698, %v2700
    %v2703 = vadd.f32 %v2699, %v2701
    %v2704 = vmul.f32 %v127, %v2596
    %v2705 = vmul.f32 %v128, %v2596
    %v2706 = vadd.f32 %v2702, %v2704
    %v2707 = vadd.f32 %v2703, %v2705
    %v2708 = vmul.f32 %v130, %v2601
    %v2709 = vmul.f32 %v131, %v2601
    %v2710 = vadd.f32 %v2706, %v2708
    %v2711 = vadd.f32 %v2707, %v2709
    %v2712 = vmul.f32 %v133, %v2606
    %v2713 = vmul.f32 %v134, %v2606
    %v2714 = vadd.f32 %v2710, %v2712
    %v2715 = vadd.f32 %v2711, %v2713
    %v2716 = vmul.f32 %v139, %v2611
    %v2717 = vmul.f32 %v140, %v2611
    %v2718 = vadd.f32 %v2714, %v2716
    %v2719 = vadd.f32 %v2715, %v2717
    %v2720 = vmul.f32 %v142, %v2616
    %v2721 = vmul.f32 %v143, %v2616
    %v2722 = vadd.f32 %v2718, %v2720
    %v2723 = vadd.f32 %v2719, %v2721
    %v2724 = vmul.f32 %v145, %v2621
    %v2725 = vmul.f32 %v146, %v2621
    %v2726 = vadd.f32 %v2722, %v2724
    %v2727 = vadd.f32 %v2723, %v2725
    %v2728 = vmax.f32 %v2624, %v2658
    %v2729 = vmax.f32 %v2625, %v2659
    %v2730 = vmax.f32 %v2692, %v2726
    %v2731 = vmax.f32 %v2693, %v2727
    %v2732 = vmax.f32 %v2728, %v2730
    %v2733 = vmax.f32 %v2729, %v2731
    %s2734 = sld [smem:[#allocation5 + $0x9]]
    %v2735 = vstv %s2734
    %v2736 = vadd.f32 %v2732, %v2735
    %v2737 = vadd.f32 %v2733, %v2735
    %v2738 = vmax.f32 %v2736, 0.0
    %v2739 = vmax.f32 %v2737, 0.0
    %s2740 = scalar_lea.vmem [#allocation7], 2304
    %v2741 = vld [vmem:[%s2740] sm:$0xff]
    %v2742 = vld [vmem:[%s2740 + $0x8] sm:$0xff]
    %v2743 = vld [vmem:[%s2740 + $0x10] sm:$0xff]
    %v2744 = vld [vmem:[%s2740 + $0x18] sm:$0xff]
    %v2745 = vld [vmem:[%s2740 + $0x20] sm:$0xff]
    %v2746 = vld [vmem:[%s2740 + $0x28] sm:$0xff]
    %v2747 = vld [vmem:[%s2740 + $0x30] sm:$0xff]
    %v2748 = vld [vmem:[%s2740 + $0x38] sm:$0xff]
    %v2749 = vld [vmem:[%s2740 + $0x40] sm:$0xff]
    %v2750 = vld [vmem:[%s2740 + $0x48] sm:$0xff]
    %v2751 = vld [vmem:[%s2740 + $0x50] sm:$0xff]
    %v2752 = vld [vmem:[%s2740 + $0x58] sm:$0xff]
    %v2753 = vld [vmem:[%s2740 + $0x60] sm:$0xff]
    %v2754 = vld [vmem:[%s2740 + $0x68] sm:$0xff]
    %v2755 = vld [vmem:[%s2740 + $0x70] sm:$0xff]
    %v2756 = vld [vmem:[%s2740 + $0x78] sm:$0xff]
    %v2757 = vld [vmem:[%s2740 + $0x80] sm:$0xff]
    %v2758 = vld [vmem:[%s2740 + $0x88] sm:$0xff]
    %v2759 = vld [vmem:[%s2740 + $0x90] sm:$0xff]
    %v2760 = vld [vmem:[%s2740 + $0x98] sm:$0xff]
    %v2761 = vld [vmem:[%s2740 + $0xa0] sm:$0xff]
    %v2762 = vld [vmem:[%s2740 + $0xa8] sm:$0xff]
    %v2763 = vld [vmem:[%s2740 + $0xb0] sm:$0xff]
    %v2764 = vld [vmem:[%s2740 + $0xb8] sm:$0xff]
    %v2765 = vld [vmem:[%s2740 + $0xc0] sm:$0xff]
    %v2766 = vld [vmem:[%s2740 + $0xc8] sm:$0xff]
    %v2767 = vld [vmem:[%s2740 + $0xd0] sm:$0xff]
    %v2768 = vld [vmem:[%s2740 + $0xd8] sm:$0xff]
    %v2769 = vld [vmem:[%s2740 + $0xe0] sm:$0xff]
    %v2770 = vld [vmem:[%s2740 + $0xe8] sm:$0xff]
    %v2771 = vld [vmem:[%s2740 + $0xf0] sm:$0xff]
    %v2772 = vld [vmem:[%s2740 + $0xf8] sm:$0xff]
    %2773 = vmatprep.subr.mxu0 0.0
    %2774 = vmatpush1.msra.mxu0 %v2741
    %2775 = vmatprep.subr.mxu0 0.0
    %2776 = vmatpush1.msra.mxu0 %v2742
    %2777 = vmatprep.subr.mxu0 0.0
    %2778 = vmatpush1.msra.mxu0 %v2743
    %2779 = vmatprep.subr.mxu0 0.0
    %2780 = vmatpush1.msra.mxu0 %v2744
    %2781 = vmatprep.subr.mxu0 0.0
    %2782 = vmatpush1.msra.mxu0 %v2745
    %2783 = vmatprep.subr.mxu0 0.0
    %2784 = vmatpush1.msra.mxu0 %v2746
    %2785 = vmatprep.subr.mxu0 0.0
    %2786 = vmatpush1.msra.mxu0 %v2747
    %2787 = vmatprep.subr.mxu0 0.0
    %2788 = vmatpush1.msra.mxu0 %v2748
    %2789 = vmatprep.subr.mxu0 0.0
    %2790 = vmatpush1.msra.mxu0 %v2749
    %2791 = vmatprep.subr.mxu0 0.0
    %2792 = vmatpush1.msra.mxu0 %v2750
    %2793 = vmatprep.subr.mxu0 0.0
    %2794 = vmatpush1.msra.mxu0 %v2751
    %2795 = vmatprep.subr.mxu0 0.0
    %2796 = vmatpush1.msra.mxu0 %v2752
    %2797 = vmatprep.subr.mxu0 0.0
    %2798 = vmatpush1.msra.mxu0 %v2753
    %2799 = vmatprep.subr.mxu0 0.0
    %2800 = vmatpush1.msra.mxu0 %v2754
    %2801 = vmatprep.subr.mxu0 0.0
    %2802 = vmatpush1.msra.mxu0 %v2755
    %2803 = vmatprep.subr.mxu0 0.0
    %2804 = vmatpush1.msra.mxu0 %v2756
    %2805 = vmatprep.subr.mxu0 0.0
    %2806 = vmatpush1.msra.mxu0 %v2757
    %2807 = vmatprep.subr.mxu0 0.0
    %2808 = vmatpush1.msra.mxu0 %v2758
    %2809 = vmatprep.subr.mxu0 0.0
    %2810 = vmatpush1.msra.mxu0 %v2759
    %2811 = vmatprep.subr.mxu0 0.0
    %2812 = vmatpush1.msra.mxu0 %v2760
    %2813 = vmatprep.subr.mxu0 0.0
    %2814 = vmatpush1.msra.mxu0 %v2761
    %2815 = vmatprep.subr.mxu0 0.0
    %2816 = vmatpush1.msra.mxu0 %v2762
    %2817 = vmatprep.subr.mxu0 0.0
    %2818 = vmatpush1.msra.mxu0 %v2763
    %2819 = vmatprep.subr.mxu0 0.0
    %2820 = vmatpush1.msra.mxu0 %v2764
    %2821 = vmatprep.subr.mxu0 0.0
    %2822 = vmatpush1.msra.mxu0 %v2765
    %2823 = vmatprep.subr.mxu0 0.0
    %2824 = vmatpush1.msra.mxu0 %v2766
    %2825 = vmatprep.subr.mxu0 0.0
    %2826 = vmatpush1.msra.mxu0 %v2767
    %2827 = vmatprep.subr.mxu0 0.0
    %2828 = vmatpush1.msra.mxu0 %v2768
    %2829 = vmatprep.subr.mxu0 0.0
    %2830 = vmatpush1.msra.mxu0 %v2769
    %2831 = vmatprep.subr.mxu0 0.0
    %2832 = vmatpush1.msra.mxu0 %v2770
    %2833 = vmatprep.subr.mxu0 0.0
    %2834 = vmatpush1.msra.mxu0 %v2771
    %2835 = vmatprep.subr.mxu0 0.0
    %2836 = vmatpush1.msra.mxu0 %v2772
    %2837 = vmatprep.mubr.f32.mxu0 %v2739
    %2838 = vmatmul.mubr.f32.gmra.mrb[0].mxu0 %v2738
    %v2839 = vpop.f32.mrb[0].mxu0
    %v2840 = vadd.f32 0.0, %v2839
    %v2841 = vpop.f32.mrb[0].mxu0
    %2842 = vdwg.mxu0
    %v2843 = vadd.f32 %v2573, %v2840
    %s2844 = sld [smem:[#allocation2 + $0x500]]
    %s2845 = sld [smem:[#allocation2 + $0x501]]
    %s2846 = sld [smem:[#allocation2 + $0x502]]
    %s2847 = sld [smem:[#allocation2 + $0x503]]
    %s2848 = sld [smem:[#allocation2 + $0x504]]
    %s2849 = sld [smem:[#allocation2 + $0x505]]
    %s2850 = sld [smem:[#allocation2 + $0x506]]
    %s2851 = sld [smem:[#allocation2 + $0x507]]
    %s2852 = sld [smem:[#allocation2 + $0x508]]
    %v2853 = vstv %s2844
    %v2854 = vmul.f32 %v100, %v2853
    %v2855 = vmul.f32 %v101, %v2853
    %v2856 = vstv %s2845
    %v2857 = vmul.f32 %v103, %v2856
    %v2858 = vmul.f32 %v104, %v2856
    %v2859 = vadd.f32 %v2854, %v2857
    %v2860 = vadd.f32 %v2855, %v2858
    %v2861 = vstv %s2846
    %v2862 = vmul.f32 %v106, %v2861
    %v2863 = vmul.f32 %v107, %v2861
    %v2864 = vadd.f32 %v2859, %v2862
    %v2865 = vadd.f32 %v2860, %v2863
    %v2866 = vstv %s2847
    %v2867 = vmul.f32 %v112, %v2866
    %v2868 = vmul.f32 %v113, %v2866
    %v2869 = vadd.f32 %v2864, %v2867
    %v2870 = vadd.f32 %v2865, %v2868
    %v2871 = vstv %s2848
    %v2872 = vmul.f32 %v115, %v2871
    %v2873 = vmul.f32 %v116, %v2871
    %v2874 = vadd.f32 %v2869, %v2872
    %v2875 = vadd.f32 %v2870, %v2873
    %v2876 = vstv %s2849
    %v2877 = vmul.f32 %v118, %v2876
    %v2878 = vmul.f32 %v119, %v2876
    %v2879 = vadd.f32 %v2874, %v2877
    %v2880 = vadd.f32 %v2875, %v2878
    %v2881 = vstv %s2850
    %v2882 = vmul.f32 %v124, %v2881
    %v2883 = vmul.f32 %v125, %v2881
    %v2884 = vadd.f32 %v2879, %v2882
    %v2885 = vadd.f32 %v2880, %v2883
    %v2886 = vstv %s2851
    %v2887 = vmul.f32 %v127, %v2886
    %v2888 = vmul.f32 %v128, %v2886
    %v2889 = vadd.f32 %v2884, %v2887
    %v2890 = vadd.f32 %v2885, %v2888
    %v2891 = vstv %s2852
    %v2892 = vmul.f32 %v130, %v2891
    %v2893 = vmul.f32 %v131, %v2891
    %v2894 = vadd.f32 %v2889, %v2892
    %v2895 = vadd.f32 %v2890, %v2893
    %v2896 = vmul.f32 %v103, %v2853
    %v2897 = vmul.f32 %v104, %v2853
    %v2898 = vmul.f32 %v106, %v2856
    %v2899 = vmul.f32 %v107, %v2856
    %v2900 = vadd.f32 %v2896, %v2898
    %v2901 = vadd.f32 %v2897, %v2899
    %v2902 = vmul.f32 %v109, %v2861
    %v2903 = vmul.f32 %v110, %v2861
    %v2904 = vadd.f32 %v2900, %v2902
    %v2905 = vadd.f32 %v2901, %v2903
    %v2906 = vmul.f32 %v115, %v2866
    %v2907 = vmul.f32 %v116, %v2866
    %v2908 = vadd.f32 %v2904, %v2906
    %v2909 = vadd.f32 %v2905, %v2907
    %v2910 = vmul.f32 %v118, %v2871
    %v2911 = vmul.f32 %v119, %v2871
    %v2912 = vadd.f32 %v2908, %v2910
    %v2913 = vadd.f32 %v2909, %v2911
    %v2914 = vmul.f32 %v121, %v2876
    %v2915 = vmul.f32 %v122, %v2876
    %v2916 = vadd.f32 %v2912, %v2914
    %v2917 = vadd.f32 %v2913, %v2915
    %v2918 = vmul.f32 %v127, %v2881
    %v2919 = vmul.f32 %v128, %v2881
    %v2920 = vadd.f32 %v2916, %v2918
    %v2921 = vadd.f32 %v2917, %v2919
    %v2922 = vmul.f32 %v130, %v2886
    %v2923 = vmul.f32 %v131, %v2886
    %v2924 = vadd.f32 %v2920, %v2922
    %v2925 = vadd.f32 %v2921, %v2923
    %v2926 = vmul.f32 %v133, %v2891
    %v2927 = vmul.f32 %v134, %v2891
    %v2928 = vadd.f32 %v2924, %v2926
    %v2929 = vadd.f32 %v2925, %v2927
    %v2930 = vmul.f32 %v112, %v2853
    %v2931 = vmul.f32 %v113, %v2853
    %v2932 = vmul.f32 %v115, %v2856
    %v2933 = vmul.f32 %v116, %v2856
    %v2934 = vadd.f32 %v2930, %v2932
    %v2935 = vadd.f32 %v2931, %v2933
    %v2936 = vmul.f32 %v118, %v2861
    %v2937 = vmul.f32 %v119, %v2861
    %v2938 = vadd.f32 %v2934, %v2936
    %v2939 = vadd.f32 %v2935, %v2937
    %v2940 = vmul.f32 %v124, %v2866
    %v2941 = vmul.f32 %v125, %v2866
    %v2942 = vadd.f32 %v2938, %v2940
    %v2943 = vadd.f32 %v2939, %v2941
    %v2944 = vmul.f32 %v127, %v2871
    %v2945 = vmul.f32 %v128, %v2871
    %v2946 = vadd.f32 %v2942, %v2944
    %v2947 = vadd.f32 %v2943, %v2945
    %v2948 = vmul.f32 %v130, %v2876
    %v2949 = vmul.f32 %v131, %v2876
    %v2950 = vadd.f32 %v2946, %v2948
    %v2951 = vadd.f32 %v2947, %v2949
    %v2952 = vmul.f32 %v136, %v2881
    %v2953 = vmul.f32 %v137, %v2881
    %v2954 = vadd.f32 %v2950, %v2952
    %v2955 = vadd.f32 %v2951, %v2953
    %v2956 = vmul.f32 %v139, %v2886
    %v2957 = vmul.f32 %v140, %v2886
    %v2958 = vadd.f32 %v2954, %v2956
    %v2959 = vadd.f32 %v2955, %v2957
    %v2960 = vmul.f32 %v142, %v2891
    %v2961 = vmul.f32 %v143, %v2891
    %v2962 = vadd.f32 %v2958, %v2960
    %v2963 = vadd.f32 %v2959, %v2961
    %v2964 = vmul.f32 %v115, %v2853
    %v2965 = vmul.f32 %v116, %v2853
    %v2966 = vmul.f32 %v118, %v2856
    %v2967 = vmul.f32 %v119, %v2856
    %v2968 = vadd.f32 %v2964, %v2966
    %v2969 = vadd.f32 %v2965, %v2967
    %v2970 = vmul.f32 %v121, %v2861
    %v2971 = vmul.f32 %v122, %v2861
    %v2972 = vadd.f32 %v2968, %v2970
    %v2973 = vadd.f32 %v2969, %v2971
    %v2974 = vmul.f32 %v127, %v2866
    %v2975 = vmul.f32 %v128, %v2866
    %v2976 = vadd.f32 %v2972, %v2974
    %v2977 = vadd.f32 %v2973, %v2975
    %v2978 = vmul.f32 %v130, %v2871
    %v2979 = vmul.f32 %v131, %v2871
    %v2980 = vadd.f32 %v2976, %v2978
    %v2981 = vadd.f32 %v2977, %v2979
    %v2982 = vmul.f32 %v133, %v2876
    %v2983 = vmul.f32 %v134, %v2876
    %v2984 = vadd.f32 %v2980, %v2982
    %v2985 = vadd.f32 %v2981, %v2983
    %v2986 = vmul.f32 %v139, %v2881
    %v2987 = vmul.f32 %v140, %v2881
    %v2988 = vadd.f32 %v2984, %v2986
    %v2989 = vadd.f32 %v2985, %v2987
    %v2990 = vmul.f32 %v142, %v2886
    %v2991 = vmul.f32 %v143, %v2886
    %v2992 = vadd.f32 %v2988, %v2990
    %v2993 = vadd.f32 %v2989, %v2991
    %v2994 = vmul.f32 %v145, %v2891
    %v2995 = vmul.f32 %v146, %v2891
    %v2996 = vadd.f32 %v2992, %v2994
    %v2997 = vadd.f32 %v2993, %v2995
    %v2998 = vmax.f32 %v2894, %v2928
    %v2999 = vmax.f32 %v2895, %v2929
    %v3000 = vmax.f32 %v2962, %v2996
    %v3001 = vmax.f32 %v2963, %v2997
    %v3002 = vmax.f32 %v2998, %v3000
    %v3003 = vmax.f32 %v2999, %v3001
    %s3004 = sld [smem:[#allocation5 + $0xa]]
    %v3005 = vstv %s3004
    %v3006 = vadd.f32 %v3002, %v3005
    %v3007 = vadd.f32 %v3003, %v3005
    %v3008 = vmax.f32 %v3006, 0.0
    %v3009 = vmax.f32 %v3007, 0.0
    %s3010 = scalar_lea.vmem [#allocation7], 2560
    %v3011 = vld [vmem:[%s3010] sm:$0xff]
    %v3012 = vld [vmem:[%s3010 + $0x8] sm:$0xff]
    %v3013 = vld [vmem:[%s3010 + $0x10] sm:$0xff]
    %v3014 = vld [vmem:[%s3010 + $0x18] sm:$0xff]
    %v3015 = vld [vmem:[%s3010 + $0x20] sm:$0xff]
    %v3016 = vld [vmem:[%s3010 + $0x28] sm:$0xff]
    %v3017 = vld [vmem:[%s3010 + $0x30] sm:$0xff]
    %v3018 = vld [vmem:[%s3010 + $0x38] sm:$0xff]
    %v3019 = vld [vmem:[%s3010 + $0x40] sm:$0xff]
    %v3020 = vld [vmem:[%s3010 + $0x48] sm:$0xff]
    %v3021 = vld [vmem:[%s3010 + $0x50] sm:$0xff]
    %v3022 = vld [vmem:[%s3010 + $0x58] sm:$0xff]
    %v3023 = vld [vmem:[%s3010 + $0x60] sm:$0xff]
    %v3024 = vld [vmem:[%s3010 + $0x68] sm:$0xff]
    %v3025 = vld [vmem:[%s3010 + $0x70] sm:$0xff]
    %v3026 = vld [vmem:[%s3010 + $0x78] sm:$0xff]
    %v3027 = vld [vmem:[%s3010 + $0x80] sm:$0xff]
    %v3028 = vld [vmem:[%s3010 + $0x88] sm:$0xff]
    %v3029 = vld [vmem:[%s3010 + $0x90] sm:$0xff]
    %v3030 = vld [vmem:[%s3010 + $0x98] sm:$0xff]
    %v3031 = vld [vmem:[%s3010 + $0xa0] sm:$0xff]
    %v3032 = vld [vmem:[%s3010 + $0xa8] sm:$0xff]
    %v3033 = vld [vmem:[%s3010 + $0xb0] sm:$0xff]
    %v3034 = vld [vmem:[%s3010 + $0xb8] sm:$0xff]
    %v3035 = vld [vmem:[%s3010 + $0xc0] sm:$0xff]
    %v3036 = vld [vmem:[%s3010 + $0xc8] sm:$0xff]
    %v3037 = vld [vmem:[%s3010 + $0xd0] sm:$0xff]
    %v3038 = vld [vmem:[%s3010 + $0xd8] sm:$0xff]
    %v3039 = vld [vmem:[%s3010 + $0xe0] sm:$0xff]
    %v3040 = vld [vmem:[%s3010 + $0xe8] sm:$0xff]
    %v3041 = vld [vmem:[%s3010 + $0xf0] sm:$0xff]
    %v3042 = vld [vmem:[%s3010 + $0xf8] sm:$0xff]
    %3043 = vmatprep.subr.mxu0 0.0
    %3044 = vmatpush1.msra.mxu0 %v3011
    %3045 = vmatprep.subr.mxu0 0.0
    %3046 = vmatpush1.msra.mxu0 %v3012
    %3047 = vmatprep.subr.mxu0 0.0
    %3048 = vmatpush1.msra.mxu0 %v3013
    %3049 = vmatprep.subr.mxu0 0.0
    %3050 = vmatpush1.msra.mxu0 %v3014
    %3051 = vmatprep.subr.mxu0 0.0
    %3052 = vmatpush1.msra.mxu0 %v3015
    %3053 = vmatprep.subr.mxu0 0.0
    %3054 = vmatpush1.msra.mxu0 %v3016
    %3055 = vmatprep.subr.mxu0 0.0
    %3056 = vmatpush1.msra.mxu0 %v3017
    %3057 = vmatprep.subr.mxu0 0.0
    %3058 = vmatpush1.msra.mxu0 %v3018
    %3059 = vmatprep.subr.mxu0 0.0
    %3060 = vmatpush1.msra.mxu0 %v3019
    %3061 = vmatprep.subr.mxu0 0.0
    %3062 = vmatpush1.msra.mxu0 %v3020
    %3063 = vmatprep.subr.mxu0 0.0
    %3064 = vmatpush1.msra.mxu0 %v3021
    %3065 = vmatprep.subr.mxu0 0.0
    %3066 = vmatpush1.msra.mxu0 %v3022
    %3067 = vmatprep.subr.mxu0 0.0
    %3068 = vmatpush1.msra.mxu0 %v3023
    %3069 = vmatprep.subr.mxu0 0.0
    %3070 = vmatpush1.msra.mxu0 %v3024
    %3071 = vmatprep.subr.mxu0 0.0
    %3072 = vmatpush1.msra.mxu0 %v3025
    %3073 = vmatprep.subr.mxu0 0.0
    %3074 = vmatpush1.msra.mxu0 %v3026
    %3075 = vmatprep.subr.mxu0 0.0
    %3076 = vmatpush1.msra.mxu0 %v3027
    %3077 = vmatprep.subr.mxu0 0.0
    %3078 = vmatpush1.msra.mxu0 %v3028
    %3079 = vmatprep.subr.mxu0 0.0
    %3080 = vmatpush1.msra.mxu0 %v3029
    %3081 = vmatprep.subr.mxu0 0.0
    %3082 = vmatpush1.msra.mxu0 %v3030
    %3083 = vmatprep.subr.mxu0 0.0
    %3084 = vmatpush1.msra.mxu0 %v3031
    %3085 = vmatprep.subr.mxu0 0.0
    %3086 = vmatpush1.msra.mxu0 %v3032
    %3087 = vmatprep.subr.mxu0 0.0
    %3088 = vmatpush1.msra.mxu0 %v3033
    %3089 = vmatprep.subr.mxu0 0.0
    %3090 = vmatpush1.msra.mxu0 %v3034
    %3091 = vmatprep.subr.mxu0 0.0
    %3092 = vmatpush1.msra.mxu0 %v3035
    %3093 = vmatprep.subr.mxu0 0.0
    %3094 = vmatpush1.msra.mxu0 %v3036
    %3095 = vmatprep.subr.mxu0 0.0
    %3096 = vmatpush1.msra.mxu0 %v3037
    %3097 = vmatprep.subr.mxu0 0.0
    %3098 = vmatpush1.msra.mxu0 %v3038
    %3099 = vmatprep.subr.mxu0 0.0
    %3100 = vmatpush1.msra.mxu0 %v3039
    %3101 = vmatprep.subr.mxu0 0.0
    %3102 = vmatpush1.msra.mxu0 %v3040
    %3103 = vmatprep.subr.mxu0 0.0
    %3104 = vmatpush1.msra.mxu0 %v3041
    %3105 = vmatprep.subr.mxu0 0.0
    %3106 = vmatpush1.msra.mxu0 %v3042
    %3107 = vmatprep.mubr.f32.mxu0 %v3009
    %3108 = vmatmul.mubr.f32.gmra.mrb[0].mxu0 %v3008
    %v3109 = vpop.f32.mrb[0].mxu0
    %v3110 = vadd.f32 0.0, %v3109
    %v3111 = vpop.f32.mrb[0].mxu0
    %3112 = vdwg.mxu0
    %v3113 = vadd.f32 %v2843, %v3110
    %s3114 = sld [smem:[#allocation2 + $0x580]]
    %s3115 = sld [smem:[#allocation2 + $0x581]]
    %s3116 = sld [smem:[#allocation2 + $0x582]]
    %s3117 = sld [smem:[#allocation2 + $0x583]]
    %s3118 = sld [smem:[#allocation2 + $0x584]]
    %s3119 = sld [smem:[#allocation2 + $0x585]]
    %s3120 = sld [smem:[#allocation2 + $0x586]]
    %s3121 = sld [smem:[#allocation2 + $0x587]]
    %s3122 = sld [smem:[#allocation2 + $0x588]]
    %v3123 = vstv %s3114
    %v3124 = vmul.f32 %v100, %v3123
    %v3125 = vmul.f32 %v101, %v3123
    %v3126 = vstv %s3115
    %v3127 = vmul.f32 %v103, %v3126
    %v3128 = vmul.f32 %v104, %v3126
    %v3129 = vadd.f32 %v3124, %v3127
    %v3130 = vadd.f32 %v3125, %v3128
    %v3131 = vstv %s3116
    %v3132 = vmul.f32 %v106, %v3131
    %v3133 = vmul.f32 %v107, %v3131
    %v3134 = vadd.f32 %v3129, %v3132
    %v3135 = vadd.f32 %v3130, %v3133
    %v3136 = vstv %s3117
    %v3137 = vmul.f32 %v112, %v3136
    %v3138 = vmul.f32 %v113, %v3136
    %v3139 = vadd.f32 %v3134, %v3137
    %v3140 = vadd.f32 %v3135, %v3138
    %v3141 = vstv %s3118
    %v3142 = vmul.f32 %v115, %v3141
    %v3143 = vmul.f32 %v116, %v3141
    %v3144 = vadd.f32 %v3139, %v3142
    %v3145 = vadd.f32 %v3140, %v3143
    %v3146 = vstv %s3119
    %v3147 = vmul.f32 %v118, %v3146
    %v3148 = vmul.f32 %v119, %v3146
    %v3149 = vadd.f32 %v3144, %v3147
    %v3150 = vadd.f32 %v3145, %v3148
    %v3151 = vstv %s3120
    %v3152 = vmul.f32 %v124, %v3151
    %v3153 = vmul.f32 %v125, %v3151
    %v3154 = vadd.f32 %v3149, %v3152
    %v3155 = vadd.f32 %v3150, %v3153
    %v3156 = vstv %s3121
    %v3157 = vmul.f32 %v127, %v3156
    %v3158 = vmul.f32 %v128, %v3156
    %v3159 = vadd.f32 %v3154, %v3157
    %v3160 = vadd.f32 %v3155, %v3158
    %v3161 = vstv %s3122
    %v3162 = vmul.f32 %v130, %v3161
    %v3163 = vmul.f32 %v131, %v3161
    %v3164 = vadd.f32 %v3159, %v3162
    %v3165 = vadd.f32 %v3160, %v3163
    %v3166 = vmul.f32 %v103, %v3123
    %v3167 = vmul.f32 %v104, %v3123
    %v3168 = vmul.f32 %v106, %v3126
    %v3169 = vmul.f32 %v107, %v3126
    %v3170 = vadd.f32 %v3166, %v3168
    %v3171 = vadd.f32 %v3167, %v3169
    %v3172 = vmul.f32 %v109, %v3131
    %v3173 = vmul.f32 %v110, %v3131
    %v3174 = vadd.f32 %v3170, %v3172
    %v3175 = vadd.f32 %v3171, %v3173
    %v3176 = vmul.f32 %v115, %v3136
    %v3177 = vmul.f32 %v116, %v3136
    %v3178 = vadd.f32 %v3174, %v3176
    %v3179 = vadd.f32 %v3175, %v3177
    %v3180 = vmul.f32 %v118, %v3141
    %v3181 = vmul.f32 %v119, %v3141
    %v3182 = vadd.f32 %v3178, %v3180
    %v3183 = vadd.f32 %v3179, %v3181
    %v3184 = vmul.f32 %v121, %v3146
    %v3185 = vmul.f32 %v122, %v3146
    %v3186 = vadd.f32 %v3182, %v3184
    %v3187 = vadd.f32 %v3183, %v3185
    %v3188 = vmul.f32 %v127, %v3151
    %v3189 = vmul.f32 %v128, %v3151
    %v3190 = vadd.f32 %v3186, %v3188
    %v3191 = vadd.f32 %v3187, %v3189
    %v3192 = vmul.f32 %v130, %v3156
    %v3193 = vmul.f32 %v131, %v3156
    %v3194 = vadd.f32 %v3190, %v3192
    %v3195 = vadd.f32 %v3191, %v3193
    %v3196 = vmul.f32 %v133, %v3161
    %v3197 = vmul.f32 %v134, %v3161
    %v3198 = vadd.f32 %v3194, %v3196
    %v3199 = vadd.f32 %v3195, %v3197
    %v3200 = vmul.f32 %v112, %v3123
    %v3201 = vmul.f32 %v113, %v3123
    %v3202 = vmul.f32 %v115, %v3126
    %v3203 = vmul.f32 %v116, %v3126
    %v3204 = vadd.f32 %v3200, %v3202
    %v3205 = vadd.f32 %v3201, %v3203
    %v3206 = vmul.f32 %v118, %v3131
    %v3207 = vmul.f32 %v119, %v3131
    %v3208 = vadd.f32 %v3204, %v3206
    %v3209 = vadd.f32 %v3205, %v3207
    %v3210 = vmul.f32 %v124, %v3136
    %v3211 = vmul.f32 %v125, %v3136
    %v3212 = vadd.f32 %v3208, %v3210
    %v3213 = vadd.f32 %v3209, %v3211
    %v3214 = vmul.f32 %v127, %v3141
    %v3215 = vmul.f32 %v128, %v3141
    %v3216 = vadd.f32 %v3212, %v3214
    %v3217 = vadd.f32 %v3213, %v3215
    %v3218 = vmul.f32 %v130, %v3146
    %v3219 = vmul.f32 %v131, %v3146
    %v3220 = vadd.f32 %v3216, %v3218
    %v3221 = vadd.f32 %v3217, %v3219
    %v3222 = vmul.f32 %v136, %v3151
    %v3223 = vmul.f32 %v137, %v3151
    %v3224 = vadd.f32 %v3220, %v3222
    %v3225 = vadd.f32 %v3221, %v3223
    %v3226 = vmul.f32 %v139, %v3156
    %v3227 = vmul.f32 %v140, %v3156
    %v3228 = vadd.f32 %v3224, %v3226
    %v3229 = vadd.f32 %v3225, %v3227
    %v3230 = vmul.f32 %v142, %v3161
    %v3231 = vmul.f32 %v143, %v3161
    %v3232 = vadd.f32 %v3228, %v3230
    %v3233 = vadd.f32 %v3229, %v3231
    %v3234 = vmul.f32 %v115, %v3123
    %v3235 = vmul.f32 %v116, %v3123
    %v3236 = vmul.f32 %v118, %v3126
    %v3237 = vmul.f32 %v119, %v3126
    %v3238 = vadd.f32 %v3234, %v3236
    %v3239 = vadd.f32 %v3235, %v3237
    %v3240 = vmul.f32 %v121, %v3131
    %v3241 = vmul.f32 %v122, %v3131
    %v3242 = vadd.f32 %v3238, %v3240
    %v3243 = vadd.f32 %v3239, %v3241
    %v3244 = vmul.f32 %v127, %v3136
    %v3245 = vmul.f32 %v128, %v3136
    %v3246 = vadd.f32 %v3242, %v3244
    %v3247 = vadd.f32 %v3243, %v3245
    %v3248 = vmul.f32 %v130, %v3141
    %v3249 = vmul.f32 %v131, %v3141
    %v3250 = vadd.f32 %v3246, %v3248
    %v3251 = vadd.f32 %v3247, %v3249
    %v3252 = vmul.f32 %v133, %v3146
    %v3253 = vmul.f32 %v134, %v3146
    %v3254 = vadd.f32 %v3250, %v3252
    %v3255 = vadd.f32 %v3251, %v3253
    %v3256 = vmul.f32 %v139, %v3151
    %v3257 = vmul.f32 %v140, %v3151
    %v3258 = vadd.f32 %v3254, %v3256
    %v3259 = vadd.f32 %v3255, %v3257
    %v3260 = vmul.f32 %v142, %v3156
    %v3261 = vmul.f32 %v143, %v3156
    %v3262 = vadd.f32 %v3258, %v3260
    %v3263 = vadd.f32 %v3259, %v3261
    %v3264 = vmul.f32 %v145, %v3161
    %v3265 = vmul.f32 %v146, %v3161
    %v3266 = vadd.f32 %v3262, %v3264
    %v3267 = vadd.f32 %v3263, %v3265
    %v3268 = vmax.f32 %v3164, %v3198
    %v3269 = vmax.f32 %v3165, %v3199
    %v3270 = vmax.f32 %v3232, %v3266
    %v3271 = vmax.f32 %v3233, %v3267
    %v3272 = vmax.f32 %v3268, %v3270
    %v3273 = vmax.f32 %v3269, %v3271
    %s3274 = sld [smem:[#allocation5 + $0xb]]
    %v3275 = vstv %s3274
    %v3276 = vadd.f32 %v3272, %v3275
    %v3277 = vadd.f32 %v3273, %v3275
    %v3278 = vmax.f32 %v3276, 0.0
    %v3279 = vmax.f32 %v3277, 0.0
    %s3280 = scalar_lea.vmem [#allocation7], 2816
    %v3281 = vld [vmem:[%s3280] sm:$0xff]
    %v3282 = vld [vmem:[%s3280 + $0x8] sm:$0xff]
    %v3283 = vld [vmem:[%s3280 + $0x10] sm:$0xff]
    %v3284 = vld [vmem:[%s3280 + $0x18] sm:$0xff]
    %v3285 = vld [vmem:[%s3280 + $0x20] sm:$0xff]
    %v3286 = vld [vmem:[%s3280 + $0x28] sm:$0xff]
    %v3287 = vld [vmem:[%s3280 + $0x30] sm:$0xff]
    %v3288 = vld [vmem:[%s3280 + $0x38] sm:$0xff]
    %v3289 = vld [vmem:[%s3280 + $0x40] sm:$0xff]
    %v3290 = vld [vmem:[%s3280 + $0x48] sm:$0xff]
    %v3291 = vld [vmem:[%s3280 + $0x50] sm:$0xff]
    %v3292 = vld [vmem:[%s3280 + $0x58] sm:$0xff]
    %v3293 = vld [vmem:[%s3280 + $0x60] sm:$0xff]
    %v3294 = vld [vmem:[%s3280 + $0x68] sm:$0xff]
    %v3295 = vld [vmem:[%s3280 + $0x70] sm:$0xff]
    %v3296 = vld [vmem:[%s3280 + $0x78] sm:$0xff]
    %v3297 = vld [vmem:[%s3280 + $0x80] sm:$0xff]
    %v3298 = vld [vmem:[%s3280 + $0x88] sm:$0xff]
    %v3299 = vld [vmem:[%s3280 + $0x90] sm:$0xff]
    %v3300 = vld [vmem:[%s3280 + $0x98] sm:$0xff]
    %v3301 = vld [vmem:[%s3280 + $0xa0] sm:$0xff]
    %v3302 = vld [vmem:[%s3280 + $0xa8] sm:$0xff]
    %v3303 = vld [vmem:[%s3280 + $0xb0] sm:$0xff]
    %v3304 = vld [vmem:[%s3280 + $0xb8] sm:$0xff]
    %v3305 = vld [vmem:[%s3280 + $0xc0] sm:$0xff]
    %v3306 = vld [vmem:[%s3280 + $0xc8] sm:$0xff]
    %v3307 = vld [vmem:[%s3280 + $0xd0] sm:$0xff]
    %v3308 = vld [vmem:[%s3280 + $0xd8] sm:$0xff]
    %v3309 = vld [vmem:[%s3280 + $0xe0] sm:$0xff]
    %v3310 = vld [vmem:[%s3280 + $0xe8] sm:$0xff]
    %v3311 = vld [vmem:[%s3280 + $0xf0] sm:$0xff]
    %v3312 = vld [vmem:[%s3280 + $0xf8] sm:$0xff]
    %3313 = vmatprep.subr.mxu0 0.0
    %3314 = vmatpush1.msra.mxu0 %v3281
    %3315 = vmatprep.subr.mxu0 0.0
    %3316 = vmatpush1.msra.mxu0 %v3282
    %3317 = vmatprep.subr.mxu0 0.0
    %3318 = vmatpush1.msra.mxu0 %v3283
    %3319 = vmatprep.subr.mxu0 0.0
    %3320 = vmatpush1.msra.mxu0 %v3284
    %3321 = vmatprep.subr.mxu0 0.0
    %3322 = vmatpush1.msra.mxu0 %v3285
    %3323 = vmatprep.subr.mxu0 0.0
    %3324 = vmatpush1.msra.mxu0 %v3286
    %3325 = vmatprep.subr.mxu0 0.0
    %3326 = vmatpush1.msra.mxu0 %v3287
    %3327 = vmatprep.subr.mxu0 0.0
    %3328 = vmatpush1.msra.mxu0 %v3288
    %3329 = vmatprep.subr.mxu0 0.0
    %3330 = vmatpush1.msra.mxu0 %v3289
    %3331 = vmatprep.subr.mxu0 0.0
    %3332 = vmatpush1.msra.mxu0 %v3290
    %3333 = vmatprep.subr.mxu0 0.0
    %3334 = vmatpush1.msra.mxu0 %v3291
    %3335 = vmatprep.subr.mxu0 0.0
    %3336 = vmatpush1.msra.mxu0 %v3292
    %3337 = vmatprep.subr.mxu0 0.0
    %3338 = vmatpush1.msra.mxu0 %v3293
    %3339 = vmatprep.subr.mxu0 0.0
    %3340 = vmatpush1.msra.mxu0 %v3294
    %3341 = vmatprep.subr.mxu0 0.0
    %3342 = vmatpush1.msra.mxu0 %v3295
    %3343 = vmatprep.subr.mxu0 0.0
    %3344 = vmatpush1.msra.mxu0 %v3296
    %3345 = vmatprep.subr.mxu0 0.0
    %3346 = vmatpush1.msra.mxu0 %v3297
    %3347 = vmatprep.subr.mxu0 0.0
    %3348 = vmatpush1.msra.mxu0 %v3298
    %3349 = vmatprep.subr.mxu0 0.0
    %3350 = vmatpush1.msra.mxu0 %v3299
    %3351 = vmatprep.subr.mxu0 0.0
    %3352 = vmatpush1.msra.mxu0 %v3300
    %3353 = vmatprep.subr.mxu0 0.0
    %3354 = vmatpush1.msra.mxu0 %v3301
    %3355 = vmatprep.subr.mxu0 0.0
    %3356 = vmatpush1.msra.mxu0 %v3302
    %3357 = vmatprep.subr.mxu0 0.0
    %3358 = vmatpush1.msra.mxu0 %v3303
    %3359 = vmatprep.subr.mxu0 0.0
    %3360 = vmatpush1.msra.mxu0 %v3304
    %3361 = vmatprep.subr.mxu0 0.0
    %3362 = vmatpush1.msra.mxu0 %v3305
    %3363 = vmatprep.subr.mxu0 0.0
    %3364 = vmatpush1.msra.mxu0 %v3306
    %3365 = vmatprep.subr.mxu0 0.0
    %3366 = vmatpush1.msra.mxu0 %v3307
    %3367 = vmatprep.subr.mxu0 0.0
    %3368 = vmatpush1.msra.mxu0 %v3308
    %3369 = vmatprep.subr.mxu0 0.0
    %3370 = vmatpush1.msra.mxu0 %v3309
    %3371 = vmatprep.subr.mxu0 0.0
    %3372 = vmatpush1.msra.mxu0 %v3310
    %3373 = vmatprep.subr.mxu0 0.0
    %3374 = vmatpush1.msra.mxu0 %v3311
    %3375 = vmatprep.subr.mxu0 0.0
    %3376 = vmatpush1.msra.mxu0 %v3312
    %3377 = vmatprep.mubr.f32.mxu0 %v3279
    %3378 = vmatmul.mubr.f32.gmra.mrb[0].mxu0 %v3278
    %v3379 = vpop.f32.mrb[0].mxu0
    %v3380 = vadd.f32 0.0, %v3379
    %v3381 = vpop.f32.mrb[0].mxu0
    %3382 = vdwg.mxu0
    %v3383 = vadd.f32 %v3113, %v3380
    %s3384 = sld [smem:[#allocation2 + $0x600]]
    %s3385 = sld [smem:[#allocation2 + $0x601]]
    %s3386 = sld [smem:[#allocation2 + $0x602]]
    %s3387 = sld [smem:[#allocation2 + $0x603]]
    %s3388 = sld [smem:[#allocation2 + $0x604]]
    %s3389 = sld [smem:[#allocation2 + $0x605]]
    %s3390 = sld [smem:[#allocation2 + $0x606]]
    %s3391 = sld [smem:[#allocation2 + $0x607]]
    %s3392 = sld [smem:[#allocation2 + $0x608]]
    %v3393 = vstv %s3384
    %v3394 = vmul.f32 %v100, %v3393
    %v3395 = vmul.f32 %v101, %v3393
    %v3396 = vstv %s3385
    %v3397 = vmul.f32 %v103, %v3396
    %v3398 = vmul.f32 %v104, %v3396
    %v3399 = vadd.f32 %v3394, %v3397
    %v3400 = vadd.f32 %v3395, %v3398
    %v3401 = vstv %s3386
    %v3402 = vmul.f32 %v106, %v3401
    %v3403 = vmul.f32 %v107, %v3401
    %v3404 = vadd.f32 %v3399, %v3402
    %v3405 = vadd.f32 %v3400, %v3403
    %v3406 = vstv %s3387
    %v3407 = vmul.f32 %v112, %v3406
    %v3408 = vmul.f32 %v113, %v3406
    %v3409 = vadd.f32 %v3404, %v3407
    %v3410 = vadd.f32 %v3405, %v3408
    %v3411 = vstv %s3388
    %v3412 = vmul.f32 %v115, %v3411
    %v3413 = vmul.f32 %v116, %v3411
    %v3414 = vadd.f32 %v3409, %v3412
    %v3415 = vadd.f32 %v3410, %v3413
    %v3416 = vstv %s3389
    %v3417 = vmul.f32 %v118, %v3416
    %v3418 = vmul.f32 %v119, %v3416
    %v3419 = vadd.f32 %v3414, %v3417
    %v3420 = vadd.f32 %v3415, %v3418
    %v3421 = vstv %s3390
    %v3422 = vmul.f32 %v124, %v3421
    %v3423 = vmul.f32 %v125, %v3421
    %v3424 = vadd.f32 %v3419, %v3422
    %v3425 = vadd.f32 %v3420, %v3423
    %v3426 = vstv %s3391
    %v3427 = vmul.f32 %v127, %v3426
    %v3428 = vmul.f32 %v128, %v3426
    %v3429 = vadd.f32 %v3424, %v3427
    %v3430 = vadd.f32 %v3425, %v3428
    %v3431 = vstv %s3392
    %v3432 = vmul.f32 %v130, %v3431
    %v3433 = vmul.f32 %v131, %v3431
    %v3434 = vadd.f32 %v3429, %v3432
    %v3435 = vadd.f32 %v3430, %v3433
    %v3436 = vmul.f32 %v103, %v3393
    %v3437 = vmul.f32 %v104, %v3393
    %v3438 = vmul.f32 %v106, %v3396
    %v3439 = vmul.f32 %v107, %v3396
    %v3440 = vadd.f32 %v3436, %v3438
    %v3441 = vadd.f32 %v3437, %v3439
    %v3442 = vmul.f32 %v109, %v3401
    %v3443 = vmul.f32 %v110, %v3401
    %v3444 = vadd.f32 %v3440, %v3442
    %v3445 = vadd.f32 %v3441, %v3443
    %v3446 = vmul.f32 %v115, %v3406
    %v3447 = vmul.f32 %v116, %v3406
    %v3448 = vadd.f32 %v3444, %v3446
    %v3449 = vadd.f32 %v3445, %v3447
    %v3450 = vmul.f32 %v118, %v3411
    %v3451 = vmul.f32 %v119, %v3411
    %v3452 = vadd.f32 %v3448, %v3450
    %v3453 = vadd.f32 %v3449, %v3451
    %v3454 = vmul.f32 %v121, %v3416
    %v3455 = vmul.f32 %v122, %v3416
    %v3456 = vadd.f32 %v3452, %v3454
    %v3457 = vadd.f32 %v3453, %v3455
    %v3458 = vmul.f32 %v127, %v3421
    %v3459 = vmul.f32 %v128, %v3421
    %v3460 = vadd.f32 %v3456, %v3458
    %v3461 = vadd.f32 %v3457, %v3459
    %v3462 = vmul.f32 %v130, %v3426
    %v3463 = vmul.f32 %v131, %v3426
    %v3464 = vadd.f32 %v3460, %v3462
    %v3465 = vadd.f32 %v3461, %v3463
    %v3466 = vmul.f32 %v133, %v3431
    %v3467 = vmul.f32 %v134, %v3431
    %v3468 = vadd.f32 %v3464, %v3466
    %v3469 = vadd.f32 %v3465, %v3467
    %v3470 = vmul.f32 %v112, %v3393
    %v3471 = vmul.f32 %v113, %v3393
    %v3472 = vmul.f32 %v115, %v3396
    %v3473 = vmul.f32 %v116, %v3396
    %v3474 = vadd.f32 %v3470, %v3472
    %v3475 = vadd.f32 %v3471, %v3473
    %v3476 = vmul.f32 %v118, %v3401
    %v3477 = vmul.f32 %v119, %v3401
    %v3478 = vadd.f32 %v3474, %v3476
    %v3479 = vadd.f32 %v3475, %v3477
    %v3480 = vmul.f32 %v124, %v3406
    %v3481 = vmul.f32 %v125, %v3406
    %v3482 = vadd.f32 %v3478, %v3480
    %v3483 = vadd.f32 %v3479, %v3481
    %v3484 = vmul.f32 %v127, %v3411
    %v3485 = vmul.f32 %v128, %v3411
    %v3486 = vadd.f32 %v3482, %v3484
    %v3487 = vadd.f32 %v3483, %v3485
    %v3488 = vmul.f32 %v130, %v3416
    %v3489 = vmul.f32 %v131, %v3416
    %v3490 = vadd.f32 %v3486, %v3488
    %v3491 = vadd.f32 %v3487, %v3489
    %v3492 = vmul.f32 %v136, %v3421
    %v3493 = vmul.f32 %v137, %v3421
    %v3494 = vadd.f32 %v3490, %v3492
    %v3495 = vadd.f32 %v3491, %v3493
    %v3496 = vmul.f32 %v139, %v3426
    %v3497 = vmul.f32 %v140, %v3426
    %v3498 = vadd.f32 %v3494, %v3496
    %v3499 = vadd.f32 %v3495, %v3497
    %v3500 = vmul.f32 %v142, %v3431
    %v3501 = vmul.f32 %v143, %v3431
    %v3502 = vadd.f32 %v3498, %v3500
    %v3503 = vadd.f32 %v3499, %v3501
    %v3504 = vmul.f32 %v115, %v3393
    %v3505 = vmul.f32 %v116, %v3393
    %v3506 = vmul.f32 %v118, %v3396
    %v3507 = vmul.f32 %v119, %v3396
    %v3508 = vadd.f32 %v3504, %v3506
    %v3509 = vadd.f32 %v3505, %v3507
    %v3510 = vmul.f32 %v121, %v3401
    %v3511 = vmul.f32 %v122, %v3401
    %v3512 = vadd.f32 %v3508, %v3510
    %v3513 = vadd.f32 %v3509, %v3511
    %v3514 = vmul.f32 %v127, %v3406
    %v3515 = vmul.f32 %v128, %v3406
    %v3516 = vadd.f32 %v3512, %v3514
    %v3517 = vadd.f32 %v3513, %v3515
    %v3518 = vmul.f32 %v130, %v3411
    %v3519 = vmul.f32 %v131, %v3411
    %v3520 = vadd.f32 %v3516, %v3518
    %v3521 = vadd.f32 %v3517, %v3519
    %v3522 = vmul.f32 %v133, %v3416
    %v3523 = vmul.f32 %v134, %v3416
    %v3524 = vadd.f32 %v3520, %v3522
    %v3525 = vadd.f32 %v3521, %v3523
    %v3526 = vmul.f32 %v139, %v3421
    %v3527 = vmul.f32 %v140, %v3421
    %v3528 = vadd.f32 %v3524, %v3526
    %v3529 = vadd.f32 %v3525, %v3527
    %v3530 = vmul.f32 %v142, %v3426
    %v3531 = vmul.f32 %v143, %v3426
    %v3532 = vadd.f32 %v3528, %v3530
    %v3533 = vadd.f32 %v3529, %v3531
    %v3534 = vmul.f32 %v145, %v3431
    %v3535 = vmul.f32 %v146, %v3431
    %v3536 = vadd.f32 %v3532, %v3534
    %v3537 = vadd.f32 %v3533, %v3535
    %v3538 = vmax.f32 %v3434, %v3468
    %v3539 = vmax.f32 %v3435, %v3469
    %v3540 = vmax.f32 %v3502, %v3536
    %v3541 = vmax.f32 %v3503, %v3537
    %v3542 = vmax.f32 %v3538, %v3540
    %v3543 = vmax.f32 %v3539, %v3541
    %s3544 = sld [smem:[#allocation5 + $0xc]]
    %v3545 = vstv %s3544
    %v3546 = vadd.f32 %v3542, %v3545
    %v3547 = vadd.f32 %v3543, %v3545
    %v3548 = vmax.f32 %v3546, 0.0
    %v3549 = vmax.f32 %v3547, 0.0
    %s3550 = scalar_lea.vmem [#allocation7], 3072
    %v3551 = vld [vmem:[%s3550] sm:$0xff]
    %v3552 = vld [vmem:[%s3550 + $0x8] sm:$0xff]
    %v3553 = vld [vmem:[%s3550 + $0x10] sm:$0xff]
    %v3554 = vld [vmem:[%s3550 + $0x18] sm:$0xff]
    %v3555 = vld [vmem:[%s3550 + $0x20] sm:$0xff]
    %v3556 = vld [vmem:[%s3550 + $0x28] sm:$0xff]
    %v3557 = vld [vmem:[%s3550 + $0x30] sm:$0xff]
    %v3558 = vld [vmem:[%s3550 + $0x38] sm:$0xff]
    %v3559 = vld [vmem:[%s3550 + $0x40] sm:$0xff]
    %v3560 = vld [vmem:[%s3550 + $0x48] sm:$0xff]
    %v3561 = vld [vmem:[%s3550 + $0x50] sm:$0xff]
    %v3562 = vld [vmem:[%s3550 + $0x58] sm:$0xff]
    %v3563 = vld [vmem:[%s3550 + $0x60] sm:$0xff]
    %v3564 = vld [vmem:[%s3550 + $0x68] sm:$0xff]
    %v3565 = vld [vmem:[%s3550 + $0x70] sm:$0xff]
    %v3566 = vld [vmem:[%s3550 + $0x78] sm:$0xff]
    %v3567 = vld [vmem:[%s3550 + $0x80] sm:$0xff]
    %v3568 = vld [vmem:[%s3550 + $0x88] sm:$0xff]
    %v3569 = vld [vmem:[%s3550 + $0x90] sm:$0xff]
    %v3570 = vld [vmem:[%s3550 + $0x98] sm:$0xff]
    %v3571 = vld [vmem:[%s3550 + $0xa0] sm:$0xff]
    %v3572 = vld [vmem:[%s3550 + $0xa8] sm:$0xff]
    %v3573 = vld [vmem:[%s3550 + $0xb0] sm:$0xff]
    %v3574 = vld [vmem:[%s3550 + $0xb8] sm:$0xff]
    %v3575 = vld [vmem:[%s3550 + $0xc0] sm:$0xff]
    %v3576 = vld [vmem:[%s3550 + $0xc8] sm:$0xff]
    %v3577 = vld [vmem:[%s3550 + $0xd0] sm:$0xff]
    %v3578 = vld [vmem:[%s3550 + $0xd8] sm:$0xff]
    %v3579 = vld [vmem:[%s3550 + $0xe0] sm:$0xff]
    %v3580 = vld [vmem:[%s3550 + $0xe8] sm:$0xff]
    %v3581 = vld [vmem:[%s3550 + $0xf0] sm:$0xff]
    %v3582 = vld [vmem:[%s3550 + $0xf8] sm:$0xff]
    %3583 = vmatprep.subr.mxu0 0.0
    %3584 = vmatpush1.msra.mxu0 %v3551
    %3585 = vmatprep.subr.mxu0 0.0
    %3586 = vmatpush1.msra.mxu0 %v3552
    %3587 = vmatprep.subr.mxu0 0.0
    %3588 = vmatpush1.msra.mxu0 %v3553
    %3589 = vmatprep.subr.mxu0 0.0
    %3590 = vmatpush1.msra.mxu0 %v3554
    %3591 = vmatprep.subr.mxu0 0.0
    %3592 = vmatpush1.msra.mxu0 %v3555
    %3593 = vmatprep.subr.mxu0 0.0
    %3594 = vmatpush1.msra.mxu0 %v3556
    %3595 = vmatprep.subr.mxu0 0.0
    %3596 = vmatpush1.msra.mxu0 %v3557
    %3597 = vmatprep.subr.mxu0 0.0
    %3598 = vmatpush1.msra.mxu0 %v3558
    %3599 = vmatprep.subr.mxu0 0.0
    %3600 = vmatpush1.msra.mxu0 %v3559
    %3601 = vmatprep.subr.mxu0 0.0
    %3602 = vmatpush1.msra.mxu0 %v3560
    %3603 = vmatprep.subr.mxu0 0.0
    %3604 = vmatpush1.msra.mxu0 %v3561
    %3605 = vmatprep.subr.mxu0 0.0
    %3606 = vmatpush1.msra.mxu0 %v3562
    %3607 = vmatprep.subr.mxu0 0.0
    %3608 = vmatpush1.msra.mxu0 %v3563
    %3609 = vmatprep.subr.mxu0 0.0
    %3610 = vmatpush1.msra.mxu0 %v3564
    %3611 = vmatprep.subr.mxu0 0.0
    %3612 = vmatpush1.msra.mxu0 %v3565
    %3613 = vmatprep.subr.mxu0 0.0
    %3614 = vmatpush1.msra.mxu0 %v3566
    %3615 = vmatprep.subr.mxu0 0.0
    %3616 = vmatpush1.msra.mxu0 %v3567
    %3617 = vmatprep.subr.mxu0 0.0
    %3618 = vmatpush1.msra.mxu0 %v3568
    %3619 = vmatprep.subr.mxu0 0.0
    %3620 = vmatpush1.msra.mxu0 %v3569
    %3621 = vmatprep.subr.mxu0 0.0
    %3622 = vmatpush1.msra.mxu0 %v3570
    %3623 = vmatprep.subr.mxu0 0.0
    %3624 = vmatpush1.msra.mxu0 %v3571
    %3625 = vmatprep.subr.mxu0 0.0
    %3626 = vmatpush1.msra.mxu0 %v3572
    %3627 = vmatprep.subr.mxu0 0.0
    %3628 = vmatpush1.msra.mxu0 %v3573
    %3629 = vmatprep.subr.mxu0 0.0
    %3630 = vmatpush1.msra.mxu0 %v3574
    %3631 = vmatprep.subr.mxu0 0.0
    %3632 = vmatpush1.msra.mxu0 %v3575
    %3633 = vmatprep.subr.mxu0 0.0
    %3634 = vmatpush1.msra.mxu0 %v3576
    %3635 = vmatprep.subr.mxu0 0.0
    %3636 = vmatpush1.msra.mxu0 %v3577
    %3637 = vmatprep.subr.mxu0 0.0
    %3638 = vmatpush1.msra.mxu0 %v3578
    %3639 = vmatprep.subr.mxu0 0.0
    %3640 = vmatpush1.msra.mxu0 %v3579
    %3641 = vmatprep.subr.mxu0 0.0
    %3642 = vmatpush1.msra.mxu0 %v3580
    %3643 = vmatprep.subr.mxu0 0.0
    %3644 = vmatpush1.msra.mxu0 %v3581
    %3645 = vmatprep.subr.mxu0 0.0
    %3646 = vmatpush1.msra.mxu0 %v3582
    %3647 = vmatprep.mubr.f32.mxu0 %v3549
    %3648 = vmatmul.mubr.f32.gmra.mrb[0].mxu0 %v3548
    %v3649 = vpop.f32.mrb[0].mxu0
    %v3650 = vadd.f32 0.0, %v3649
    %v3651 = vpop.f32.mrb[0].mxu0
    %3652 = vdwg.mxu0
    %v3653 = vadd.f32 %v3383, %v3650
    %s3654 = sld [smem:[#allocation2 + $0x680]]
    %s3655 = sld [smem:[#allocation2 + $0x681]]
    %s3656 = sld [smem:[#allocation2 + $0x682]]
    %s3657 = sld [smem:[#allocation2 + $0x683]]
    %s3658 = sld [smem:[#allocation2 + $0x684]]
    %s3659 = sld [smem:[#allocation2 + $0x685]]
    %s3660 = sld [smem:[#allocation2 + $0x686]]
    %s3661 = sld [smem:[#allocation2 + $0x687]]
    %s3662 = sld [smem:[#allocation2 + $0x688]]
    %v3663 = vstv %s3654
    %v3664 = vmul.f32 %v100, %v3663
    %v3665 = vmul.f32 %v101, %v3663
    %v3666 = vstv %s3655
    %v3667 = vmul.f32 %v103, %v3666
    %v3668 = vmul.f32 %v104, %v3666
    %v3669 = vadd.f32 %v3664, %v3667
    %v3670 = vadd.f32 %v3665, %v3668
    %v3671 = vstv %s3656
    %v3672 = vmul.f32 %v106, %v3671
    %v3673 = vmul.f32 %v107, %v3671
    %v3674 = vadd.f32 %v3669, %v3672
    %v3675 = vadd.f32 %v3670, %v3673
    %v3676 = vstv %s3657
    %v3677 = vmul.f32 %v112, %v3676
    %v3678 = vmul.f32 %v113, %v3676
    %v3679 = vadd.f32 %v3674, %v3677
    %v3680 = vadd.f32 %v3675, %v3678
    %v3681 = vstv %s3658
    %v3682 = vmul.f32 %v115, %v3681
    %v3683 = vmul.f32 %v116, %v3681
    %v3684 = vadd.f32 %v3679, %v3682
    %v3685 = vadd.f32 %v3680, %v3683
    %v3686 = vstv %s3659
    %v3687 = vmul.f32 %v118, %v3686
    %v3688 = vmul.f32 %v119, %v3686
    %v3689 = vadd.f32 %v3684, %v3687
    %v3690 = vadd.f32 %v3685, %v3688
    %v3691 = vstv %s3660
    %v3692 = vmul.f32 %v124, %v3691
    %v3693 = vmul.f32 %v125, %v3691
    %v3694 = vadd.f32 %v3689, %v3692
    %v3695 = vadd.f32 %v3690, %v3693
    %v3696 = vstv %s3661
    %v3697 = vmul.f32 %v127, %v3696
    %v3698 = vmul.f32 %v128, %v3696
    %v3699 = vadd.f32 %v3694, %v3697
    %v3700 = vadd.f32 %v3695, %v3698
    %v3701 = vstv %s3662
    %v3702 = vmul.f32 %v130, %v3701
    %v3703 = vmul.f32 %v131, %v3701
    %v3704 = vadd.f32 %v3699, %v3702
    %v3705 = vadd.f32 %v3700, %v3703
    %v3706 = vmul.f32 %v103, %v3663
    %v3707 = vmul.f32 %v104, %v3663
    %v3708 = vmul.f32 %v106, %v3666
    %v3709 = vmul.f32 %v107, %v3666
    %v3710 = vadd.f32 %v3706, %v3708
    %v3711 = vadd.f32 %v3707, %v3709
    %v3712 = vmul.f32 %v109, %v3671
    %v3713 = vmul.f32 %v110, %v3671
    %v3714 = vadd.f32 %v3710, %v3712
    %v3715 = vadd.f32 %v3711, %v3713
    %v3716 = vmul.f32 %v115, %v3676
    %v3717 = vmul.f32 %v116, %v3676
    %v3718 = vadd.f32 %v3714, %v3716
    %v3719 = vadd.f32 %v3715, %v3717
    %v3720 = vmul.f32 %v118, %v3681
    %v3721 = vmul.f32 %v119, %v3681
    %v3722 = vadd.f32 %v3718, %v3720
    %v3723 = vadd.f32 %v3719, %v3721
    %v3724 = vmul.f32 %v121, %v3686
    %v3725 = vmul.f32 %v122, %v3686
    %v3726 = vadd.f32 %v3722, %v3724
    %v3727 = vadd.f32 %v3723, %v3725
    %v3728 = vmul.f32 %v127, %v3691
    %v3729 = vmul.f32 %v128, %v3691
    %v3730 = vadd.f32 %v3726, %v3728
    %v3731 = vadd.f32 %v3727, %v3729
    %v3732 = vmul.f32 %v130, %v3696
    %v3733 = vmul.f32 %v131, %v3696
    %v3734 = vadd.f32 %v3730, %v3732
    %v3735 = vadd.f32 %v3731, %v3733
    %v3736 = vmul.f32 %v133, %v3701
    %v3737 = vmul.f32 %v134, %v3701
    %v3738 = vadd.f32 %v3734, %v3736
    %v3739 = vadd.f32 %v3735, %v3737
    %v3740 = vmul.f32 %v112, %v3663
    %v3741 = vmul.f32 %v113, %v3663
    %v3742 = vmul.f32 %v115, %v3666
    %v3743 = vmul.f32 %v116, %v3666
    %v3744 = vadd.f32 %v3740, %v3742
    %v3745 = vadd.f32 %v3741, %v3743
    %v3746 = vmul.f32 %v118, %v3671
    %v3747 = vmul.f32 %v119, %v3671
    %v3748 = vadd.f32 %v3744, %v3746
    %v3749 = vadd.f32 %v3745, %v3747
    %v3750 = vmul.f32 %v124, %v3676
    %v3751 = vmul.f32 %v125, %v3676
    %v3752 = vadd.f32 %v3748, %v3750
    %v3753 = vadd.f32 %v3749, %v3751
    %v3754 = vmul.f32 %v127, %v3681
    %v3755 = vmul.f32 %v128, %v3681
    %v3756 = vadd.f32 %v3752, %v3754
    %v3757 = vadd.f32 %v3753, %v3755
    %v3758 = vmul.f32 %v130, %v3686
    %v3759 = vmul.f32 %v131, %v3686
    %v3760 = vadd.f32 %v3756, %v3758
    %v3761 = vadd.f32 %v3757, %v3759
    %v3762 = vmul.f32 %v136, %v3691
    %v3763 = vmul.f32 %v137, %v3691
    %v3764 = vadd.f32 %v3760, %v3762
    %v3765 = vadd.f32 %v3761, %v3763
    %v3766 = vmul.f32 %v139, %v3696
    %v3767 = vmul.f32 %v140, %v3696
    %v3768 = vadd.f32 %v3764, %v3766
    %v3769 = vadd.f32 %v3765, %v3767
    %v3770 = vmul.f32 %v142, %v3701
    %v3771 = vmul.f32 %v143, %v3701
    %v3772 = vadd.f32 %v3768, %v3770
    %v3773 = vadd.f32 %v3769, %v3771
    %v3774 = vmul.f32 %v115, %v3663
    %v3775 = vmul.f32 %v116, %v3663
    %v3776 = vmul.f32 %v118, %v3666
    %v3777 = vmul.f32 %v119, %v3666
    %v3778 = vadd.f32 %v3774, %v3776
    %v3779 = vadd.f32 %v3775, %v3777
    %v3780 = vmul.f32 %v121, %v3671
    %v3781 = vmul.f32 %v122, %v3671
    %v3782 = vadd.f32 %v3778, %v3780
    %v3783 = vadd.f32 %v3779, %v3781
    %v3784 = vmul.f32 %v127, %v3676
    %v3785 = vmul.f32 %v128, %v3676
    %v3786 = vadd.f32 %v3782, %v3784
    %v3787 = vadd.f32 %v3783, %v3785
    %v3788 = vmul.f32 %v130, %v3681
    %v3789 = vmul.f32 %v131, %v3681
    %v3790 = vadd.f32 %v3786, %v3788
    %v3791 = vadd.f32 %v3787, %v3789
    %v3792 = vmul.f32 %v133, %v3686
    %v3793 = vmul.f32 %v134, %v3686
    %v3794 = vadd.f32 %v3790, %v3792
    %v3795 = vadd.f32 %v3791, %v3793
    %v3796 = vmul.f32 %v139, %v3691
    %v3797 = vmul.f32 %v140, %v3691
    %v3798 = vadd.f32 %v3794, %v3796
    %v3799 = vadd.f32 %v3795, %v3797
    %v3800 = vmul.f32 %v142, %v3696
    %v3801 = vmul.f32 %v143, %v3696
    %v3802 = vadd.f32 %v3798, %v3800
    %v3803 = vadd.f32 %v3799, %v3801
    %v3804 = vmul.f32 %v145, %v3701
    %v3805 = vmul.f32 %v146, %v3701
    %v3806 = vadd.f32 %v3802, %v3804
    %v3807 = vadd.f32 %v3803, %v3805
    %v3808 = vmax.f32 %v3704, %v3738
    %v3809 = vmax.f32 %v3705, %v3739
    %v3810 = vmax.f32 %v3772, %v3806
    %v3811 = vmax.f32 %v3773, %v3807
    %v3812 = vmax.f32 %v3808, %v3810
    %v3813 = vmax.f32 %v3809, %v3811
    %s3814 = sld [smem:[#allocation5 + $0xd]]
    %v3815 = vstv %s3814
    %v3816 = vadd.f32 %v3812, %v3815
    %v3817 = vadd.f32 %v3813, %v3815
    %v3818 = vmax.f32 %v3816, 0.0
    %v3819 = vmax.f32 %v3817, 0.0
    %s3820 = scalar_lea.vmem [#allocation7], 3328
    %v3821 = vld [vmem:[%s3820] sm:$0xff]
    %v3822 = vld [vmem:[%s3820 + $0x8] sm:$0xff]
    %v3823 = vld [vmem:[%s3820 + $0x10] sm:$0xff]
    %v3824 = vld [vmem:[%s3820 + $0x18] sm:$0xff]
    %v3825 = vld [vmem:[%s3820 + $0x20] sm:$0xff]
    %v3826 = vld [vmem:[%s3820 + $0x28] sm:$0xff]
    %v3827 = vld [vmem:[%s3820 + $0x30] sm:$0xff]
    %v3828 = vld [vmem:[%s3820 + $0x38] sm:$0xff]
    %v3829 = vld [vmem:[%s3820 + $0x40] sm:$0xff]
    %v3830 = vld [vmem:[%s3820 + $0x48] sm:$0xff]
    %v3831 = vld [vmem:[%s3820 + $0x50] sm:$0xff]
    %v3832 = vld [vmem:[%s3820 + $0x58] sm:$0xff]
    %v3833 = vld [vmem:[%s3820 + $0x60] sm:$0xff]
    %v3834 = vld [vmem:[%s3820 + $0x68] sm:$0xff]
    %v3835 = vld [vmem:[%s3820 + $0x70] sm:$0xff]
    %v3836 = vld [vmem:[%s3820 + $0x78] sm:$0xff]
    %v3837 = vld [vmem:[%s3820 + $0x80] sm:$0xff]
    %v3838 = vld [vmem:[%s3820 + $0x88] sm:$0xff]
    %v3839 = vld [vmem:[%s3820 + $0x90] sm:$0xff]
    %v3840 = vld [vmem:[%s3820 + $0x98] sm:$0xff]
    %v3841 = vld [vmem:[%s3820 + $0xa0] sm:$0xff]
    %v3842 = vld [vmem:[%s3820 + $0xa8] sm:$0xff]
    %v3843 = vld [vmem:[%s3820 + $0xb0] sm:$0xff]
    %v3844 = vld [vmem:[%s3820 + $0xb8] sm:$0xff]
    %v3845 = vld [vmem:[%s3820 + $0xc0] sm:$0xff]
    %v3846 = vld [vmem:[%s3820 + $0xc8] sm:$0xff]
    %v3847 = vld [vmem:[%s3820 + $0xd0] sm:$0xff]
    %v3848 = vld [vmem:[%s3820 + $0xd8] sm:$0xff]
    %v3849 = vld [vmem:[%s3820 + $0xe0] sm:$0xff]
    %v3850 = vld [vmem:[%s3820 + $0xe8] sm:$0xff]
    %v3851 = vld [vmem:[%s3820 + $0xf0] sm:$0xff]
    %v3852 = vld [vmem:[%s3820 + $0xf8] sm:$0xff]
    %3853 = vmatprep.subr.mxu0 0.0
    %3854 = vmatpush1.msra.mxu0 %v3821
    %3855 = vmatprep.subr.mxu0 0.0
    %3856 = vmatpush1.msra.mxu0 %v3822
    %3857 = vmatprep.subr.mxu0 0.0
    %3858 = vmatpush1.msra.mxu0 %v3823
    %3859 = vmatprep.subr.mxu0 0.0
    %3860 = vmatpush1.msra.mxu0 %v3824
    %3861 = vmatprep.subr.mxu0 0.0
    %3862 = vmatpush1.msra.mxu0 %v3825
    %3863 = vmatprep.subr.mxu0 0.0
    %3864 = vmatpush1.msra.mxu0 %v3826
    %3865 = vmatprep.subr.mxu0 0.0
    %3866 = vmatpush1.msra.mxu0 %v3827
    %3867 = vmatprep.subr.mxu0 0.0
    %3868 = vmatpush1.msra.mxu0 %v3828
    %3869 = vmatprep.subr.mxu0 0.0
    %3870 = vmatpush1.msra.mxu0 %v3829
    %3871 = vmatprep.subr.mxu0 0.0
    %3872 = vmatpush1.msra.mxu0 %v3830
    %3873 = vmatprep.subr.mxu0 0.0
    %3874 = vmatpush1.msra.mxu0 %v3831
    %3875 = vmatprep.subr.mxu0 0.0
    %3876 = vmatpush1.msra.mxu0 %v3832
    %3877 = vmatprep.subr.mxu0 0.0
    %3878 = vmatpush1.msra.mxu0 %v3833
    %3879 = vmatprep.subr.mxu0 0.0
    %3880 = vmatpush1.msra.mxu0 %v3834
    %3881 = vmatprep.subr.mxu0 0.0
    %3882 = vmatpush1.msra.mxu0 %v3835
    %3883 = vmatprep.subr.mxu0 0.0
    %3884 = vmatpush1.msra.mxu0 %v3836
    %3885 = vmatprep.subr.mxu0 0.0
    %3886 = vmatpush1.msra.mxu0 %v3837
    %3887 = vmatprep.subr.mxu0 0.0
    %3888 = vmatpush1.msra.mxu0 %v3838
    %3889 = vmatprep.subr.mxu0 0.0
    %3890 = vmatpush1.msra.mxu0 %v3839
    %3891 = vmatprep.subr.mxu0 0.0
    %3892 = vmatpush1.msra.mxu0 %v3840
    %3893 = vmatprep.subr.mxu0 0.0
    %3894 = vmatpush1.msra.mxu0 %v3841
    %3895 = vmatprep.subr.mxu0 0.0
    %3896 = vmatpush1.msra.mxu0 %v3842
    %3897 = vmatprep.subr.mxu0 0.0
    %3898 = vmatpush1.msra.mxu0 %v3843
    %3899 = vmatprep.subr.mxu0 0.0
    %3900 = vmatpush1.msra.mxu0 %v3844
    %3901 = vmatprep.subr.mxu0 0.0
    %3902 = vmatpush1.msra.mxu0 %v3845
    %3903 = vmatprep.subr.mxu0 0.0
    %3904 = vmatpush1.msra.mxu0 %v3846
    %3905 = vmatprep.subr.mxu0 0.0
    %3906 = vmatpush1.msra.mxu0 %v3847
    %3907 = vmatprep.subr.mxu0 0.0
    %3908 = vmatpush1.msra.mxu0 %v3848
    %3909 = vmatprep.subr.mxu0 0.0
    %3910 = vmatpush1.msra.mxu0 %v3849
    %3911 = vmatprep.subr.mxu0 0.0
    %3912 = vmatpush1.msra.mxu0 %v3850
    %3913 = vmatprep.subr.mxu0 0.0
    %3914 = vmatpush1.msra.mxu0 %v3851
    %3915 = vmatprep.subr.mxu0 0.0
    %3916 = vmatpush1.msra.mxu0 %v3852
    %3917 = vmatprep.mubr.f32.mxu0 %v3819
    %3918 = vmatmul.mubr.f32.gmra.mrb[0].mxu0 %v3818
    %v3919 = vpop.f32.mrb[0].mxu0
    %v3920 = vadd.f32 0.0, %v3919
    %v3921 = vpop.f32.mrb[0].mxu0
    %3922 = vdwg.mxu0
    %v3923 = vadd.f32 %v3653, %v3920
    %s3924 = sld [smem:[#allocation2 + $0x700]]
    %s3925 = sld [smem:[#allocation2 + $0x701]]
    %s3926 = sld [smem:[#allocation2 + $0x702]]
    %s3927 = sld [smem:[#allocation2 + $0x703]]
    %s3928 = sld [smem:[#allocation2 + $0x704]]
    %s3929 = sld [smem:[#allocation2 + $0x705]]
    %s3930 = sld [smem:[#allocation2 + $0x706]]
    %s3931 = sld [smem:[#allocation2 + $0x707]]
    %s3932 = sld [smem:[#allocation2 + $0x708]]
    %v3933 = vstv %s3924
    %v3934 = vmul.f32 %v100, %v3933
    %v3935 = vmul.f32 %v101, %v3933
    %v3936 = vstv %s3925
    %v3937 = vmul.f32 %v103, %v3936
    %v3938 = vmul.f32 %v104, %v3936
    %v3939 = vadd.f32 %v3934, %v3937
    %v3940 = vadd.f32 %v3935, %v3938
    %v3941 = vstv %s3926
    %v3942 = vmul.f32 %v106, %v3941
    %v3943 = vmul.f32 %v107, %v3941
    %v3944 = vadd.f32 %v3939, %v3942
    %v3945 = vadd.f32 %v3940, %v3943
    %v3946 = vstv %s3927
    %v3947 = vmul.f32 %v112, %v3946
    %v3948 = vmul.f32 %v113, %v3946
    %v3949 = vadd.f32 %v3944, %v3947
    %v3950 = vadd.f32 %v3945, %v3948
    %v3951 = vstv %s3928
    %v3952 = vmul.f32 %v115, %v3951
    %v3953 = vmul.f32 %v116, %v3951
    %v3954 = vadd.f32 %v3949, %v3952
    %v3955 = vadd.f32 %v3950, %v3953
    %v3956 = vstv %s3929
    %v3957 = vmul.f32 %v118, %v3956
    %v3958 = vmul.f32 %v119, %v3956
    %v3959 = vadd.f32 %v3954, %v3957
    %v3960 = vadd.f32 %v3955, %v3958
    %v3961 = vstv %s3930
    %v3962 = vmul.f32 %v124, %v3961
    %v3963 = vmul.f32 %v125, %v3961
    %v3964 = vadd.f32 %v3959, %v3962
    %v3965 = vadd.f32 %v3960, %v3963
    %v3966 = vstv %s3931
    %v3967 = vmul.f32 %v127, %v3966
    %v3968 = vmul.f32 %v128, %v3966
    %v3969 = vadd.f32 %v3964, %v3967
    %v3970 = vadd.f32 %v3965, %v3968
    %v3971 = vstv %s3932
    %v3972 = vmul.f32 %v130, %v3971
    %v3973 = vmul.f32 %v131, %v3971
    %v3974 = vadd.f32 %v3969, %v3972
    %v3975 = vadd.f32 %v3970, %v3973
    %v3976 = vmul.f32 %v103, %v3933
    %v3977 = vmul.f32 %v104, %v3933
    %v3978 = vmul.f32 %v106, %v3936
    %v3979 = vmul.f32 %v107, %v3936
    %v3980 = vadd.f32 %v3976, %v3978
    %v3981 = vadd.f32 %v3977, %v3979
    %v3982 = vmul.f32 %v109, %v3941
    %v3983 = vmul.f32 %v110, %v3941
    %v3984 = vadd.f32 %v3980, %v3982
    %v3985 = vadd.f32 %v3981, %v3983
    %v3986 = vmul.f32 %v115, %v3946
    %v3987 = vmul.f32 %v116, %v3946
    %v3988 = vadd.f32 %v3984, %v3986
    %v3989 = vadd.f32 %v3985, %v3987
    %v3990 = vmul.f32 %v118, %v3951
    %v3991 = vmul.f32 %v119, %v3951
    %v3992 = vadd.f32 %v3988, %v3990
    %v3993 = vadd.f32 %v3989, %v3991
    %v3994 = vmul.f32 %v121, %v3956
    %v3995 = vmul.f32 %v122, %v3956
    %v3996 = vadd.f32 %v3992, %v3994
    %v3997 = vadd.f32 %v3993, %v3995
    %v3998 = vmul.f32 %v127, %v3961
    %v3999 = vmul.f32 %v128, %v3961
    %v4000 = vadd.f32 %v3996, %v3998
    %v4001 = vadd.f32 %v3997, %v3999
    %v4002 = vmul.f32 %v130, %v3966
    %v4003 = vmul.f32 %v131, %v3966
    %v4004 = vadd.f32 %v4000, %v4002
    %v4005 = vadd.f32 %v4001, %v4003
    %v4006 = vmul.f32 %v133, %v3971
    %v4007 = vmul.f32 %v134, %v3971
    %v4008 = vadd.f32 %v4004, %v4006
    %v4009 = vadd.f32 %v4005, %v4007
    %v4010 = vmul.f32 %v112, %v3933
    %v4011 = vmul.f32 %v113, %v3933
    %v4012 = vmul.f32 %v115, %v3936
    %v4013 = vmul.f32 %v116, %v3936
    %v4014 = vadd.f32 %v4010, %v4012
    %v4015 = vadd.f32 %v4011, %v4013
    %v4016 = vmul.f32 %v118, %v3941
    %v4017 = vmul.f32 %v119, %v3941
    %v4018 = vadd.f32 %v4014, %v4016
    %v4019 = vadd.f32 %v4015, %v4017
    %v4020 = vmul.f32 %v124, %v3946
    %v4021 = vmul.f32 %v125, %v3946
    %v4022 = vadd.f32 %v4018, %v4020
    %v4023 = vadd.f32 %v4019, %v4021
    %v4024 = vmul.f32 %v127, %v3951
    %v4025 = vmul.f32 %v128, %v3951
    %v4026 = vadd.f32 %v4022, %v4024
    %v4027 = vadd.f32 %v4023, %v4025
    %v4028 = vmul.f32 %v130, %v3956
    %v4029 = vmul.f32 %v131, %v3956
    %v4030 = vadd.f32 %v4026, %v4028
    %v4031 = vadd.f32 %v4027, %v4029
    %v4032 = vmul.f32 %v136, %v3961
    %v4033 = vmul.f32 %v137, %v3961
    %v4034 = vadd.f32 %v4030, %v4032
    %v4035 = vadd.f32 %v4031, %v4033
    %v4036 = vmul.f32 %v139, %v3966
    %v4037 = vmul.f32 %v140, %v3966
    %v4038 = vadd.f32 %v4034, %v4036
    %v4039 = vadd.f32 %v4035, %v4037
    %v4040 = vmul.f32 %v142, %v3971
    %v4041 = vmul.f32 %v143, %v3971
    %v4042 = vadd.f32 %v4038, %v4040
    %v4043 = vadd.f32 %v4039, %v4041
    %v4044 = vmul.f32 %v115, %v3933
    %v4045 = vmul.f32 %v116, %v3933
    %v4046 = vmul.f32 %v118, %v3936
    %v4047 = vmul.f32 %v119, %v3936
    %v4048 = vadd.f32 %v4044, %v4046
    %v4049 = vadd.f32 %v4045, %v4047
    %v4050 = vmul.f32 %v121, %v3941
    %v4051 = vmul.f32 %v122, %v3941
    %v4052 = vadd.f32 %v4048, %v4050
    %v4053 = vadd.f32 %v4049, %v4051
    %v4054 = vmul.f32 %v127, %v3946
    %v4055 = vmul.f32 %v128, %v3946
    %v4056 = vadd.f32 %v4052, %v4054
    %v4057 = vadd.f32 %v4053, %v4055
    %v4058 = vmul.f32 %v130, %v3951
    %v4059 = vmul.f32 %v131, %v3951
    %v4060 = vadd.f32 %v4056, %v4058
    %v4061 = vadd.f32 %v4057, %v4059
    %v4062 = vmul.f32 %v133, %v3956
    %v4063 = vmul.f32 %v134, %v3956
    %v4064 = vadd.f32 %v4060, %v4062
    %v4065 = vadd.f32 %v4061, %v4063
    %v4066 = vmul.f32 %v139, %v3961
    %v4067 = vmul.f32 %v140, %v3961
    %v4068 = vadd.f32 %v4064, %v4066
    %v4069 = vadd.f32 %v4065, %v4067
    %v4070 = vmul.f32 %v142, %v3966
    %v4071 = vmul.f32 %v143, %v3966
    %v4072 = vadd.f32 %v4068, %v4070
    %v4073 = vadd.f32 %v4069, %v4071
    %v4074 = vmul.f32 %v145, %v3971
    %v4075 = vmul.f32 %v146, %v3971
    %v4076 = vadd.f32 %v4072, %v4074
    %v4077 = vadd.f32 %v4073, %v4075
    %v4078 = vmax.f32 %v3974, %v4008
    %v4079 = vmax.f32 %v3975, %v4009
    %v4080 = vmax.f32 %v4042, %v4076
    %v4081 = vmax.f32 %v4043, %v4077
    %v4082 = vmax.f32 %v4078, %v4080
    %v4083 = vmax.f32 %v4079, %v4081
    %s4084 = sld [smem:[#allocation5 + $0xe]]
    %v4085 = vstv %s4084
    %v4086 = vadd.f32 %v4082, %v4085
    %v4087 = vadd.f32 %v4083, %v4085
    %v4088 = vmax.f32 %v4086, 0.0
    %v4089 = vmax.f32 %v4087, 0.0
    %s4090 = scalar_lea.vmem [#allocation7], 3584
    %v4091 = vld [vmem:[%s4090] sm:$0xff]
    %v4092 = vld [vmem:[%s4090 + $0x8] sm:$0xff]
    %v4093 = vld [vmem:[%s4090 + $0x10] sm:$0xff]
    %v4094 = vld [vmem:[%s4090 + $0x18] sm:$0xff]
    %v4095 = vld [vmem:[%s4090 + $0x20] sm:$0xff]
    %v4096 = vld [vmem:[%s4090 + $0x28] sm:$0xff]
    %v4097 = vld [vmem:[%s4090 + $0x30] sm:$0xff]
    %v4098 = vld [vmem:[%s4090 + $0x38] sm:$0xff]
    %v4099 = vld [vmem:[%s4090 + $0x40] sm:$0xff]
    %v4100 = vld [vmem:[%s4090 + $0x48] sm:$0xff]
    %v4101 = vld [vmem:[%s4090 + $0x50] sm:$0xff]
    %v4102 = vld [vmem:[%s4090 + $0x58] sm:$0xff]
    %v4103 = vld [vmem:[%s4090 + $0x60] sm:$0xff]
    %v4104 = vld [vmem:[%s4090 + $0x68] sm:$0xff]
    %v4105 = vld [vmem:[%s4090 + $0x70] sm:$0xff]
    %v4106 = vld [vmem:[%s4090 + $0x78] sm:$0xff]
    %v4107 = vld [vmem:[%s4090 + $0x80] sm:$0xff]
    %v4108 = vld [vmem:[%s4090 + $0x88] sm:$0xff]
    %v4109 = vld [vmem:[%s4090 + $0x90] sm:$0xff]
    %v4110 = vld [vmem:[%s4090 + $0x98] sm:$0xff]
    %v4111 = vld [vmem:[%s4090 + $0xa0] sm:$0xff]
    %v4112 = vld [vmem:[%s4090 + $0xa8] sm:$0xff]
    %v4113 = vld [vmem:[%s4090 + $0xb0] sm:$0xff]
    %v4114 = vld [vmem:[%s4090 + $0xb8] sm:$0xff]
    %v4115 = vld [vmem:[%s4090 + $0xc0] sm:$0xff]
    %v4116 = vld [vmem:[%s4090 + $0xc8] sm:$0xff]
    %v4117 = vld [vmem:[%s4090 + $0xd0] sm:$0xff]
    %v4118 = vld [vmem:[%s4090 + $0xd8] sm:$0xff]
    %v4119 = vld [vmem:[%s4090 + $0xe0] sm:$0xff]
    %v4120 = vld [vmem:[%s4090 + $0xe8] sm:$0xff]
    %v4121 = vld [vmem:[%s4090 + $0xf0] sm:$0xff]
    %v4122 = vld [vmem:[%s4090 + $0xf8] sm:$0xff]
    %4123 = vmatprep.subr.mxu0 0.0
    %4124 = vmatpush1.msra.mxu0 %v4091
    %4125 = vmatprep.subr.mxu0 0.0
    %4126 = vmatpush1.msra.mxu0 %v4092
    %4127 = vmatprep.subr.mxu0 0.0
    %4128 = vmatpush1.msra.mxu0 %v4093
    %4129 = vmatprep.subr.mxu0 0.0
    %4130 = vmatpush1.msra.mxu0 %v4094
    %4131 = vmatprep.subr.mxu0 0.0
    %4132 = vmatpush1.msra.mxu0 %v4095
    %4133 = vmatprep.subr.mxu0 0.0
    %4134 = vmatpush1.msra.mxu0 %v4096
    %4135 = vmatprep.subr.mxu0 0.0
    %4136 = vmatpush1.msra.mxu0 %v4097
    %4137 = vmatprep.subr.mxu0 0.0
    %4138 = vmatpush1.msra.mxu0 %v4098
    %4139 = vmatprep.subr.mxu0 0.0
    %4140 = vmatpush1.msra.mxu0 %v4099
    %4141 = vmatprep.subr.mxu0 0.0
    %4142 = vmatpush1.msra.mxu0 %v4100
    %4143 = vmatprep.subr.mxu0 0.0
    %4144 = vmatpush1.msra.mxu0 %v4101
    %4145 = vmatprep.subr.mxu0 0.0
    %4146 = vmatpush1.msra.mxu0 %v4102
    %4147 = vmatprep.subr.mxu0 0.0
    %4148 = vmatpush1.msra.mxu0 %v4103
    %4149 = vmatprep.subr.mxu0 0.0
    %4150 = vmatpush1.msra.mxu0 %v4104
    %4151 = vmatprep.subr.mxu0 0.0
    %4152 = vmatpush1.msra.mxu0 %v4105
    %4153 = vmatprep.subr.mxu0 0.0
    %4154 = vmatpush1.msra.mxu0 %v4106
    %4155 = vmatprep.subr.mxu0 0.0
    %4156 = vmatpush1.msra.mxu0 %v4107
    %4157 = vmatprep.subr.mxu0 0.0
    %4158 = vmatpush1.msra.mxu0 %v4108
    %4159 = vmatprep.subr.mxu0 0.0
    %4160 = vmatpush1.msra.mxu0 %v4109
    %4161 = vmatprep.subr.mxu0 0.0
    %4162 = vmatpush1.msra.mxu0 %v4110
    %4163 = vmatprep.subr.mxu0 0.0
    %4164 = vmatpush1.msra.mxu0 %v4111
    %4165 = vmatprep.subr.mxu0 0.0
    %4166 = vmatpush1.msra.mxu0 %v4112
    %4167 = vmatprep.subr.mxu0 0.0
    %4168 = vmatpush1.msra.mxu0 %v4113
    %4169 = vmatprep.subr.mxu0 0.0
    %4170 = vmatpush1.msra.mxu0 %v4114
    %4171 = vmatprep.subr.mxu0 0.0
    %4172 = vmatpush1.msra.mxu0 %v4115
    %4173 = vmatprep.subr.mxu0 0.0
    %4174 = vmatpush1.msra.mxu0 %v4116
    %4175 = vmatprep.subr.mxu0 0.0
    %4176 = vmatpush1.msra.mxu0 %v4117
    %4177 = vmatprep.subr.mxu0 0.0
    %4178 = vmatpush1.msra.mxu0 %v4118
    %4179 = vmatprep.subr.mxu0 0.0
    %4180 = vmatpush1.msra.mxu0 %v4119
    %4181 = vmatprep.subr.mxu0 0.0
    %4182 = vmatpush1.msra.mxu0 %v4120
    %4183 = vmatprep.subr.mxu0 0.0
    %4184 = vmatpush1.msra.mxu0 %v4121
    %4185 = vmatprep.subr.mxu0 0.0
    %4186 = vmatpush1.msra.mxu0 %v4122
    %4187 = vmatprep.mubr.f32.mxu0 %v4089
    %4188 = vmatmul.mubr.f32.gmra.mrb[0].mxu0 %v4088
    %v4189 = vpop.f32.mrb[0].mxu0
    %v4190 = vadd.f32 0.0, %v4189
    %v4191 = vpop.f32.mrb[0].mxu0
    %4192 = vdwg.mxu0
    %v4193 = vadd.f32 %v3923, %v4190
    %s4194 = sld [smem:[#allocation2 + $0x780]]
    %s4195 = sld [smem:[#allocation2 + $0x781]]
    %s4196 = sld [smem:[#allocation2 + $0x782]]
    %s4197 = sld [smem:[#allocation2 + $0x783]]
    %s4198 = sld [smem:[#allocation2 + $0x784]]
    %s4199 = sld [smem:[#allocation2 + $0x785]]
    %s4200 = sld [smem:[#allocation2 + $0x786]]
    %s4201 = sld [smem:[#allocation2 + $0x787]]
    %s4202 = sld [smem:[#allocation2 + $0x788]]
    %v4203 = vstv %s4194
    %v4204 = vmul.f32 %v100, %v4203
    %v4205 = vmul.f32 %v101, %v4203
    %v4206 = vstv %s4195
    %v4207 = vmul.f32 %v103, %v4206
    %v4208 = vmul.f32 %v104, %v4206
    %v4209 = vadd.f32 %v4204, %v4207
    %v4210 = vadd.f32 %v4205, %v4208
    %v4211 = vstv %s4196
    %v4212 = vmul.f32 %v106, %v4211
    %v4213 = vmul.f32 %v107, %v4211
    %v4214 = vadd.f32 %v4209, %v4212
    %v4215 = vadd.f32 %v4210, %v4213
    %v4216 = vstv %s4197
    %v4217 = vmul.f32 %v112, %v4216
    %v4218 = vmul.f32 %v113, %v4216
    %v4219 = vadd.f32 %v4214, %v4217
    %v4220 = vadd.f32 %v4215, %v4218
    %v4221 = vstv %s4198
    %v4222 = vmul.f32 %v115, %v4221
    %v4223 = vmul.f32 %v116, %v4221
    %v4224 = vadd.f32 %v4219, %v4222
    %v4225 = vadd.f32 %v4220, %v4223
    %v4226 = vstv %s4199
    %v4227 = vmul.f32 %v118, %v4226
    %v4228 = vmul.f32 %v119, %v4226
    %v4229 = vadd.f32 %v4224, %v4227
    %v4230 = vadd.f32 %v4225, %v4228
    %v4231 = vstv %s4200
    %v4232 = vmul.f32 %v124, %v4231
    %v4233 = vmul.f32 %v125, %v4231
    %v4234 = vadd.f32 %v4229, %v4232
    %v4235 = vadd.f32 %v4230, %v4233
    %v4236 = vstv %s4201
    %v4237 = vmul.f32 %v127, %v4236
    %v4238 = vmul.f32 %v128, %v4236
    %v4239 = vadd.f32 %v4234, %v4237
    %v4240 = vadd.f32 %v4235, %v4238
    %v4241 = vstv %s4202
    %v4242 = vmul.f32 %v130, %v4241
    %v4243 = vmul.f32 %v131, %v4241
    %v4244 = vadd.f32 %v4239, %v4242
    %v4245 = vadd.f32 %v4240, %v4243
    %v4246 = vmul.f32 %v103, %v4203
    %v4247 = vmul.f32 %v104, %v4203
    %v4248 = vmul.f32 %v106, %v4206
    %v4249 = vmul.f32 %v107, %v4206
    %v4250 = vadd.f32 %v4246, %v4248
    %v4251 = vadd.f32 %v4247, %v4249
    %v4252 = vmul.f32 %v109, %v4211
    %v4253 = vmul.f32 %v110, %v4211
    %v4254 = vadd.f32 %v4250, %v4252
    %v4255 = vadd.f32 %v4251, %v4253
    %v4256 = vmul.f32 %v115, %v4216
    %v4257 = vmul.f32 %v116, %v4216
    %v4258 = vadd.f32 %v4254, %v4256
    %v4259 = vadd.f32 %v4255, %v4257
    %v4260 = vmul.f32 %v118, %v4221
    %v4261 = vmul.f32 %v119, %v4221
    %v4262 = vadd.f32 %v4258, %v4260
    %v4263 = vadd.f32 %v4259, %v4261
    %v4264 = vmul.f32 %v121, %v4226
    %v4265 = vmul.f32 %v122, %v4226
    %v4266 = vadd.f32 %v4262, %v4264
    %v4267 = vadd.f32 %v4263, %v4265
    %v4268 = vmul.f32 %v127, %v4231
    %v4269 = vmul.f32 %v128, %v4231
    %v4270 = vadd.f32 %v4266, %v4268
    %v4271 = vadd.f32 %v4267, %v4269
    %v4272 = vmul.f32 %v130, %v4236
    %v4273 = vmul.f32 %v131, %v4236
    %v4274 = vadd.f32 %v4270, %v4272
    %v4275 = vadd.f32 %v4271, %v4273
    %v4276 = vmul.f32 %v133, %v4241
    %v4277 = vmul.f32 %v134, %v4241
    %v4278 = vadd.f32 %v4274, %v4276
    %v4279 = vadd.f32 %v4275, %v4277
    %v4280 = vmul.f32 %v112, %v4203
    %v4281 = vmul.f32 %v113, %v4203
    %v4282 = vmul.f32 %v115, %v4206
    %v4283 = vmul.f32 %v116, %v4206
    %v4284 = vadd.f32 %v4280, %v4282
    %v4285 = vadd.f32 %v4281, %v4283
    %v4286 = vmul.f32 %v118, %v4211
    %v4287 = vmul.f32 %v119, %v4211
    %v4288 = vadd.f32 %v4284, %v4286
    %v4289 = vadd.f32 %v4285, %v4287
    %v4290 = vmul.f32 %v124, %v4216
    %v4291 = vmul.f32 %v125, %v4216
    %v4292 = vadd.f32 %v4288, %v4290
    %v4293 = vadd.f32 %v4289, %v4291
    %v4294 = vmul.f32 %v127, %v4221
    %v4295 = vmul.f32 %v128, %v4221
    %v4296 = vadd.f32 %v4292, %v4294
    %v4297 = vadd.f32 %v4293, %v4295
    %v4298 = vmul.f32 %v130, %v4226
    %v4299 = vmul.f32 %v131, %v4226
    %v4300 = vadd.f32 %v4296, %v4298
    %v4301 = vadd.f32 %v4297, %v4299
    %v4302 = vmul.f32 %v136, %v4231
    %v4303 = vmul.f32 %v137, %v4231
    %v4304 = vadd.f32 %v4300, %v4302
    %v4305 = vadd.f32 %v4301, %v4303
    %v4306 = vmul.f32 %v139, %v4236
    %v4307 = vmul.f32 %v140, %v4236
    %v4308 = vadd.f32 %v4304, %v4306
    %v4309 = vadd.f32 %v4305, %v4307
    %v4310 = vmul.f32 %v142, %v4241
    %v4311 = vmul.f32 %v143, %v4241
    %v4312 = vadd.f32 %v4308, %v4310
    %v4313 = vadd.f32 %v4309, %v4311
    %v4314 = vmul.f32 %v115, %v4203
    %v4315 = vmul.f32 %v116, %v4203
    %v4316 = vmul.f32 %v118, %v4206
    %v4317 = vmul.f32 %v119, %v4206
    %v4318 = vadd.f32 %v4314, %v4316
    %v4319 = vadd.f32 %v4315, %v4317
    %v4320 = vmul.f32 %v121, %v4211
    %v4321 = vmul.f32 %v122, %v4211
    %v4322 = vadd.f32 %v4318, %v4320
    %v4323 = vadd.f32 %v4319, %v4321
    %v4324 = vmul.f32 %v127, %v4216
    %v4325 = vmul.f32 %v128, %v4216
    %v4326 = vadd.f32 %v4322, %v4324
    %v4327 = vadd.f32 %v4323, %v4325
    %v4328 = vmul.f32 %v130, %v4221
    %v4329 = vmul.f32 %v131, %v4221
    %v4330 = vadd.f32 %v4326, %v4328
    %v4331 = vadd.f32 %v4327, %v4329
    %v4332 = vmul.f32 %v133, %v4226
    %v4333 = vmul.f32 %v134, %v4226
    %v4334 = vadd.f32 %v4330, %v4332
    %v4335 = vadd.f32 %v4331, %v4333
    %v4336 = vmul.f32 %v139, %v4231
    %v4337 = vmul.f32 %v140, %v4231
    %v4338 = vadd.f32 %v4334, %v4336
    %v4339 = vadd.f32 %v4335, %v4337
    %v4340 = vmul.f32 %v142, %v4236
    %v4341 = vmul.f32 %v143, %v4236
    %v4342 = vadd.f32 %v4338, %v4340
    %v4343 = vadd.f32 %v4339, %v4341
    %v4344 = vmul.f32 %v145, %v4241
    %v4345 = vmul.f32 %v146, %v4241
    %v4346 = vadd.f32 %v4342, %v4344
    %v4347 = vadd.f32 %v4343, %v4345
    %v4348 = vmax.f32 %v4244, %v4278
    %v4349 = vmax.f32 %v4245, %v4279
    %v4350 = vmax.f32 %v4312, %v4346
    %v4351 = vmax.f32 %v4313, %v4347
    %v4352 = vmax.f32 %v4348, %v4350
    %v4353 = vmax.f32 %v4349, %v4351
    %s4354 = sld [smem:[#allocation5 + $0xf]]
    %v4355 = vstv %s4354
    %v4356 = vadd.f32 %v4352, %v4355
    %v4357 = vadd.f32 %v4353, %v4355
    %v4358 = vmax.f32 %v4356, 0.0
    %v4359 = vmax.f32 %v4357, 0.0
    %s4360 = scalar_lea.vmem [#allocation7], 3840
    %v4361 = vld [vmem:[%s4360] sm:$0xff]
    %v4362 = vld [vmem:[%s4360 + $0x8] sm:$0xff]
    %v4363 = vld [vmem:[%s4360 + $0x10] sm:$0xff]
    %v4364 = vld [vmem:[%s4360 + $0x18] sm:$0xff]
    %v4365 = vld [vmem:[%s4360 + $0x20] sm:$0xff]
    %v4366 = vld [vmem:[%s4360 + $0x28] sm:$0xff]
    %v4367 = vld [vmem:[%s4360 + $0x30] sm:$0xff]
    %v4368 = vld [vmem:[%s4360 + $0x38] sm:$0xff]
    %v4369 = vld [vmem:[%s4360 + $0x40] sm:$0xff]
    %v4370 = vld [vmem:[%s4360 + $0x48] sm:$0xff]
    %v4371 = vld [vmem:[%s4360 + $0x50] sm:$0xff]
    %v4372 = vld [vmem:[%s4360 + $0x58] sm:$0xff]
    %v4373 = vld [vmem:[%s4360 + $0x60] sm:$0xff]
    %v4374 = vld [vmem:[%s4360 + $0x68] sm:$0xff]
    %v4375 = vld [vmem:[%s4360 + $0x70] sm:$0xff]
    %v4376 = vld [vmem:[%s4360 + $0x78] sm:$0xff]
    %v4377 = vld [vmem:[%s4360 + $0x80] sm:$0xff]
    %v4378 = vld [vmem:[%s4360 + $0x88] sm:$0xff]
    %v4379 = vld [vmem:[%s4360 + $0x90] sm:$0xff]
    %v4380 = vld [vmem:[%s4360 + $0x98] sm:$0xff]
    %v4381 = vld [vmem:[%s4360 + $0xa0] sm:$0xff]
    %v4382 = vld [vmem:[%s4360 + $0xa8] sm:$0xff]
    %v4383 = vld [vmem:[%s4360 + $0xb0] sm:$0xff]
    %v4384 = vld [vmem:[%s4360 + $0xb8] sm:$0xff]
    %v4385 = vld [vmem:[%s4360 + $0xc0] sm:$0xff]
    %v4386 = vld [vmem:[%s4360 + $0xc8] sm:$0xff]
    %v4387 = vld [vmem:[%s4360 + $0xd0] sm:$0xff]
    %v4388 = vld [vmem:[%s4360 + $0xd8] sm:$0xff]
    %v4389 = vld [vmem:[%s4360 + $0xe0] sm:$0xff]
    %v4390 = vld [vmem:[%s4360 + $0xe8] sm:$0xff]
    %v4391 = vld [vmem:[%s4360 + $0xf0] sm:$0xff]
    %v4392 = vld [vmem:[%s4360 + $0xf8] sm:$0xff]
    %4393 = vmatprep.subr.mxu0 0.0
    %4394 = vmatpush1.msra.mxu0 %v4361
    %4395 = vmatprep.subr.mxu0 0.0
    %4396 = vmatpush1.msra.mxu0 %v4362
    %4397 = vmatprep.subr.mxu0 0.0
    %4398 = vmatpush1.msra.mxu0 %v4363
    %4399 = vmatprep.subr.mxu0 0.0
    %4400 = vmatpush1.msra.mxu0 %v4364
    %4401 = vmatprep.subr.mxu0 0.0
    %4402 = vmatpush1.msra.mxu0 %v4365
    %4403 = vmatprep.subr.mxu0 0.0
    %4404 = vmatpush1.msra.mxu0 %v4366
    %4405 = vmatprep.subr.mxu0 0.0
    %4406 = vmatpush1.msra.mxu0 %v4367
    %4407 = vmatprep.subr.mxu0 0.0
    %4408 = vmatpush1.msra.mxu0 %v4368
    %4409 = vmatprep.subr.mxu0 0.0
    %4410 = vmatpush1.msra.mxu0 %v4369
    %4411 = vmatprep.subr.mxu0 0.0
    %4412 = vmatpush1.msra.mxu0 %v4370
    %4413 = vmatprep.subr.mxu0 0.0
    %4414 = vmatpush1.msra.mxu0 %v4371
    %4415 = vmatprep.subr.mxu0 0.0
    %4416 = vmatpush1.msra.mxu0 %v4372
    %4417 = vmatprep.subr.mxu0 0.0
    %4418 = vmatpush1.msra.mxu0 %v4373
    %4419 = vmatprep.subr.mxu0 0.0
    %4420 = vmatpush1.msra.mxu0 %v4374
    %4421 = vmatprep.subr.mxu0 0.0
    %4422 = vmatpush1.msra.mxu0 %v4375
    %4423 = vmatprep.subr.mxu0 0.0
    %4424 = vmatpush1.msra.mxu0 %v4376
    %4425 = vmatprep.subr.mxu0 0.0
    %4426 = vmatpush1.msra.mxu0 %v4377
    %4427 = vmatprep.subr.mxu0 0.0
    %4428 = vmatpush1.msra.mxu0 %v4378
    %4429 = vmatprep.subr.mxu0 0.0
    %4430 = vmatpush1.msra.mxu0 %v4379
    %4431 = vmatprep.subr.mxu0 0.0
    %4432 = vmatpush1.msra.mxu0 %v4380
    %4433 = vmatprep.subr.mxu0 0.0
    %4434 = vmatpush1.msra.mxu0 %v4381
    %4435 = vmatprep.subr.mxu0 0.0
    %4436 = vmatpush1.msra.mxu0 %v4382
    %4437 = vmatprep.subr.mxu0 0.0
    %4438 = vmatpush1.msra.mxu0 %v4383
    %4439 = vmatprep.subr.mxu0 0.0
    %4440 = vmatpush1.msra.mxu0 %v4384
    %4441 = vmatprep.subr.mxu0 0.0
    %4442 = vmatpush1.msra.mxu0 %v4385
    %4443 = vmatprep.subr.mxu0 0.0
    %4444 = vmatpush1.msra.mxu0 %v4386
    %4445 = vmatprep.subr.mxu0 0.0
    %4446 = vmatpush1.msra.mxu0 %v4387
    %4447 = vmatprep.subr.mxu0 0.0
    %4448 = vmatpush1.msra.mxu0 %v4388
    %4449 = vmatprep.subr.mxu0 0.0
    %4450 = vmatpush1.msra.mxu0 %v4389
    %4451 = vmatprep.subr.mxu0 0.0
    %4452 = vmatpush1.msra.mxu0 %v4390
    %4453 = vmatprep.subr.mxu0 0.0
    %4454 = vmatpush1.msra.mxu0 %v4391
    %4455 = vmatprep.subr.mxu0 0.0
    %4456 = vmatpush1.msra.mxu0 %v4392
    %4457 = vmatprep.mubr.f32.mxu0 %v4359
    %4458 = vmatmul.mubr.f32.gmra.mrb[0].mxu0 %v4358
    %v4459 = vpop.f32.mrb[0].mxu0
    %v4460 = vadd.f32 0.0, %v4459
    %v4461 = vpop.f32.mrb[0].mxu0
    %4462 = vdwg.mxu0
    %v4463 = vadd.f32 %v4193, %v4460
    %v4464 = vld [vmem:[#allocation8] sm:$0x1]
    %v4466 = vlaneseq
    %v4467 = vshrl.u32 %v4466, 7
    %v4468 = vsub.s32 0, %v4467
    %v4469 = vrot.slane %v4464, %v4468
    %v4471 = vadd.f32 %v4463, %v4469
    %v4472 = vmax.f32 %v4471, 0.0
    %v4473 = vld [vmem:[#allocation10] sm:$0xff]
    %v4474 = vld [vmem:[#allocation10 + $0x8] sm:$0xff]
    %v4475 = vld [vmem:[#allocation10 + $0x10] sm:$0xff]
    %v4476 = vld [vmem:[#allocation10 + $0x18] sm:$0xff]
    %v4477 = vld [vmem:[#allocation10 + $0x20] sm:$0xff]
    %v4478 = vld [vmem:[#allocation10 + $0x28] sm:$0xff]
    %v4479 = vld [vmem:[#allocation10 + $0x30] sm:$0xff]
    %v4480 = vld [vmem:[#allocation10 + $0x38] sm:$0xff]
    %v4481 = vld [vmem:[#allocation10 + $0x40] sm:$0xff]
    %v4482 = vld [vmem:[#allocation10 + $0x48] sm:$0xff]
    %v4483 = vld [vmem:[#allocation10 + $0x50] sm:$0xff]
    %v4484 = vld [vmem:[#allocation10 + $0x58] sm:$0xff]
    %v4485 = vld [vmem:[#allocation10 + $0x60] sm:$0xff]
    %v4486 = vld [vmem:[#allocation10 + $0x68] sm:$0xff]
    %v4487 = vld [vmem:[#allocation10 + $0x70] sm:$0xff]
    %v4488 = vld [vmem:[#allocation10 + $0x78] sm:$0xff]
    %v4489 = vld [vmem:[#allocation11] sm:$0x1]
    %v4491 = vlaneseq
    %v4492 = vshrl.u32 %v4491, 7
    %v4493 = vsub.s32 0, %v4492
    %v4494 = vrot.slane %v4489, %v4493
    %4496 = vmatprep.subr.mxu0 0.0
    %4497 = vmatpush1.msra.mxu0 %v4473
    %4498 = vmatprep.subr.mxu0 0.0
    %4499 = vmatpush1.msra.mxu0 %v4474
    %4500 = vmatprep.subr.mxu0 0.0
    %4501 = vmatpush1.msra.mxu0 %v4475
    %4502 = vmatprep.subr.mxu0 0.0
    %4503 = vmatpush1.msra.mxu0 %v4476
    %4504 = vmatprep.subr.mxu0 0.0
    %4505 = vmatpush1.msra.mxu0 %v4477
    %4506 = vmatprep.subr.mxu0 0.0
    %4507 = vmatpush1.msra.mxu0 %v4478
    %4508 = vmatprep.subr.mxu0 0.0
    %4509 = vmatpush1.msra.mxu0 %v4479
    %4510 = vmatprep.subr.mxu0 0.0
    %4511 = vmatpush1.msra.mxu0 %v4480
    %4512 = vmatprep.subr.mxu0 0.0
    %4513 = vmatpush1.msra.mxu0 %v4481
    %4514 = vmatprep.subr.mxu0 0.0
    %4515 = vmatpush1.msra.mxu0 %v4482
    %4516 = vmatprep.subr.mxu0 0.0
    %4517 = vmatpush1.msra.mxu0 %v4483
    %4518 = vmatprep.subr.mxu0 0.0
    %4519 = vmatpush1.msra.mxu0 %v4484
    %4520 = vmatprep.subr.mxu0 0.0
    %4521 = vmatpush1.msra.mxu0 %v4485
    %4522 = vmatprep.subr.mxu0 0.0
    %4523 = vmatpush1.msra.mxu0 %v4486
    %4524 = vmatprep.subr.mxu0 0.0
    %4525 = vmatpush1.msra.mxu0 %v4487
    %4526 = vmatprep.subr.mxu0 0.0
    %4527 = vmatpush1.msra.mxu0 %v4488
    %4528 = vmatprep.subr.mxu0 0.0
    %4529 = vmatpush1.msra.mxu0 0.0
    %4530 = vmatprep.subr.mxu0 0.0
    %4531 = vmatpush1.msra.mxu0 0.0
    %4532 = vmatprep.subr.mxu0 0.0
    %4533 = vmatpush1.msra.mxu0 0.0
    %4534 = vmatprep.subr.mxu0 0.0
    %4535 = vmatpush1.msra.mxu0 0.0
    %4536 = vmatprep.subr.mxu0 0.0
    %4537 = vmatpush1.msra.mxu0 0.0
    %4538 = vmatprep.subr.mxu0 0.0
    %4539 = vmatpush1.msra.mxu0 0.0
    %4540 = vmatprep.subr.mxu0 0.0
    %4541 = vmatpush1.msra.mxu0 0.0
    %4542 = vmatprep.subr.mxu0 0.0
    %4543 = vmatpush1.msra.mxu0 0.0
    %4544 = vmatprep.subr.mxu0 0.0
    %4545 = vmatpush1.msra.mxu0 0.0
    %4546 = vmatprep.subr.mxu0 0.0
    %4547 = vmatpush1.msra.mxu0 0.0
    %4548 = vmatprep.subr.mxu0 0.0
    %4549 = vmatpush1.msra.mxu0 0.0
    %4550 = vmatprep.subr.mxu0 0.0
    %4551 = vmatpush1.msra.mxu0 0.0
    %4552 = vmatprep.subr.mxu0 0.0
    %4553 = vmatpush1.msra.mxu0 0.0
    %4554 = vmatprep.subr.mxu0 0.0
    %4555 = vmatpush1.msra.mxu0 0.0
    %4556 = vmatprep.subr.mxu0 0.0
    %4557 = vmatpush1.msra.mxu0 0.0
    %4558 = vmatprep.subr.mxu0 0.0
    %4559 = vmatpush1.msra.mxu0 0.0
    %4560 = vmatprep.mubr.f32.mxu0 0.0
    %4561 = vmatmul.mubr.f32.gmra.mrb[0].mxu0 %v4472
    %v4562 = vpop.f32.mrb[0].mxu0
    %v4563 = vadd.f32 %v4494, %v4562
    %v4564 = vpop.f32.mrb[0].mxu0
    %4565 = vdwg.mxu0
    %4566 = vst [vmem:[%s7] sm:$0xff] %v4563
    // Predicated region
    $region54: #{simple_cnn_forward.1} parent=1 // pred_check
      _
    $region55: #{simple_cnn_forward.1} parent=1 // pred_check_branch
      %4568 = sbr.rel (0) target = $region57
    $region56: #{simple_cnn_forward.1} parent=1 // pred_region
      _
    $region57: #{simple_cnn_forward.1} parent=1 // pred_fallthru
      _
    // Predicated region
    $region58: #{simple_cnn_forward.1} parent=1 // pred_check
      _
    $region59: #{simple_cnn_forward.1} parent=1 // pred_check_branch
      %4570 = sbr.rel (0) target = $region61
    $region60: #{simple_cnn_forward.1} parent=1 // pred_region
      _
    $region61: #{simple_cnn_forward.1} parent=1 // pred_fallthru
      _
    %4571 = vsyncpa [#allocation3], 1
    %4572 = vsyncpa [#allocation9], 1
    %4573 = vsyncpa [#allocation12], 1
    %4574 = vsyncpa [#allocation4], 1
    %4575 = vsyncpa [#allocation6], 1

</llo_original>
